<compile_context>
chip_gen: v7x
topology: tpu7x:2x2x1
jax: 0.10.0
libtpu: 0.0.40
codegen_flags: <defaults>
</compile_context>

<pallas_src>
import jax
import jax.numpy as jnp
from jax.experimental import pallas as pl
from jax.experimental.pallas import tpu as pltpu


# ----------------------------------------------------------------------------
# Fused kernel: RNN encoder + reparam + RK4 latent ODE + decoder.
# ----------------------------------------------------------------------------
def _latent_ode_kernel(
    dt_ref,                       # SMEM (T_pred,) step sizes (last entry unused)
    x_ref,                        # (T_obs*B_pad, obs_dim)  reversed-time obs
    eps_ref,                      # (B_pad, latent_dim)     reparam noise
    w1x_ref, b1_ref,              # (obs_dim, Rh), (1, Rh)  rec.i2h (x part)
    w1h_ref,                      # (Rh, Rh)                rec.i2h (h part)
    w2_ref, b2_ref,               # (Rh, 2L), (1, 2L)       rec.h2o
    wfd1_ref, bfd1_ref,           # (L, 2H), (1, 2H)        [func.fc1 | dec.fc1]
    fw1_ref, fb1_ref,             # (L, H), (1, H)          func.fc1
    fw2_ref, fb2_ref,             # (H, H), (1, H)          func.fc2
    fw3_ref, fb3_ref,             # (H, L), (1, L)          func.fc3
    dw2_ref, db2_ref,             # (H, obs), (1, obs)      dec.fc2
    enc_ref,                      # out: (B_pad, 2L)        [qz0_mean | qz0_logvar]
    predz_ref,                    # out: (B_pad, T_pred*L)  packed latent traj
    predx_ref,                    # out: (B_pad, T_pred*obs) packed decoded traj
):
    f32 = jnp.float32
    B_pad, latent = eps_ref.shape
    T_obs = x_ref.shape[0] // B_pad
    T_pred = dt_ref.shape[0]
    H = fw2_ref.shape[0]
    obs = dw2_ref.shape[1]

    # ---- Recognition RNN over reversed sequence (fully unrolled) -----------
    # x-projection for ALL timesteps in one matmul.
    xw = jnp.dot(x_ref[...], w1x_ref[...], preferred_element_type=f32) + b1_ref[...]
    w1h = w1h_ref[...]
    h = jnp.zeros((B_pad, w1h.shape[0]), f32)
    for ti in range(T_obs):
        pre = xw[ti * B_pad:(ti + 1) * B_pad, :] + jnp.dot(
            h, w1h, preferred_element_type=f32)
        h = jnp.tanh(pre)
    enc = jnp.dot(h, w2_ref[...], preferred_element_type=f32) + b2_ref[...]
    enc_ref[...] = enc.astype(enc_ref.dtype)

    # ---- Reparameterization -------------------------------------------------
    qm = enc[:, :latent]
    ql = enc[:, latent:]
    z = eps_ref[...] * jnp.exp(0.5 * ql) + qm

    # ---- RK4 latent ODE fused with decoder (fully unrolled) -----------------
    wfd1 = wfd1_ref[...]
    bfd1 = bfd1_ref[...]
    fw1 = fw1_ref[...]
    fb1 = fb1_ref[...]
    fw2 = fw2_ref[...]
    fb2 = fb2_ref[...]
    fw3 = fw3_ref[...]
    fb3 = fb3_ref[...]
    dw2 = dw2_ref[...]
    db2 = db2_ref[...]

    def elu(a):
        return jnp.where(a > 0, a, jnp.exp(a) - 1.0)

    def f(zz):
        a = elu(jnp.dot(zz, fw1, preferred_element_type=f32) + fb1)
        a = elu(jnp.dot(a, fw2, preferred_element_type=f32) + fb2)
        return jnp.dot(a, fw3, preferred_element_type=f32) + fb3

    for i in range(T_pred):
        # One fused matmul feeds both the decoder (ReLU half) and k1 (ELU half).
        comb = jnp.dot(z, wfd1, preferred_element_type=f32) + bfd1    # (B, 2H)
        dec_h = jnp.maximum(comb[:, H:], 0.0)
        x_out = jnp.dot(dec_h, dw2, preferred_element_type=f32) + db2

        predz_ref[:, i * latent:(i + 1) * latent] = z.astype(predz_ref.dtype)
        predx_ref[:, i * obs:(i + 1) * obs] = x_out.astype(predx_ref.dtype)

        if i + 1 < T_pred:
            hdt = dt_ref[i]                      # scalar step size from SMEM
            a1 = elu(comb[:, :H])                # = elu(z @ fw1 + fb1)
            a1 = elu(jnp.dot(a1, fw2, preferred_element_type=f32) + fb2)
            k1 = jnp.dot(a1, fw3, preferred_element_type=f32) + fb3
            k2 = f(z + 0.5 * hdt * k1)
            k3 = f(z + 0.5 * hdt * k2)
            k4 = f(z + hdt * k3)
            z = z + (hdt / 6.0) * (k1 + 2.0 * k2 + 2.0 * k3 + k4)


# ----------------------------------------------------------------------------
# Wrapper: full LatentODE forward in one pallas_call.
# ----------------------------------------------------------------------------
@jax.jit
def latent_ode_forward(x, t, eps, params):
    """x: (B, T_obs, obs_dim), t: (T_pred,), eps: (B, latent_dim).

    Returns (pred_x, pred_z, qz0_mean, qz0_logvar).
    """
    B, T_obs, obs_dim = x.shape
    T_pred = t.shape[0]
    rnn_nhidden = params["rec_i2h_w"].shape[0]
    latent_dim = params["func_fc1_w"].shape[1]
    nhidden = params["func_fc1_w"].shape[0]
    out_dim = 2 * latent_dim
    f32 = jnp.float32

    # pad batch to a multiple of 8 sublanes
    B_pad = max(8, ((B + 7) // 8) * 8)

    # ---- inputs -------------------------------------------------------------
    # reversed time order, padded, flattened to (T_obs*B_pad, obs_dim)
    x_rev = jnp.transpose(x[:, ::-1, :], (1, 0, 2)).astype(f32)
    x_rev = jnp.pad(x_rev, ((0, 0), (0, B_pad - B), (0, 0)))
    x_flat = x_rev.reshape(T_obs * B_pad, obs_dim)

    eps_pad = jnp.pad(eps.astype(f32), ((0, B_pad - B), (0, 0)))

    # step sizes (padded with one trailing zero, never read) -> SMEM
    dt = jnp.concatenate([jnp.diff(t), jnp.zeros((1,), t.dtype)]).astype(f32)

    # ---- weights (transposed / reshaped once) -------------------------------
    w_i2h, b_i2h = params["rec_i2h_w"], params["rec_i2h_b"]
    w1x_t = jnp.transpose(w_i2h[:, :obs_dim]).astype(f32)       # (obs, Rh)
    b1r = b_i2h.reshape(1, rnn_nhidden).astype(f32)
    w1h_t = jnp.transpose(w_i2h[:, obs_dim:]).astype(f32)       # (Rh, Rh)
    w2_t = jnp.transpose(params["rec_h2o_w"]).astype(f32)       # (Rh, 2L)
    b2r = params["rec_h2o_b"].reshape(1, out_dim).astype(f32)

    fw1_t = jnp.transpose(params["func_fc1_w"]).astype(f32)     # (L, H)
    fb1r = params["func_fc1_b"].reshape(1, nhidden).astype(f32)
    fw2_t = jnp.transpose(params["func_fc2_w"]).astype(f32)     # (H, H)
    fb2r = params["func_fc2_b"].reshape(1, nhidden).astype(f32)
    fw3_t = jnp.transpose(params["func_fc3_w"]).astype(f32)     # (H, L)
    fb3r = params["func_fc3_b"].reshape(1, latent_dim).astype(f32)

    dw1_t = jnp.transpose(params["dec_fc1_w"]).astype(f32)      # (L, H)
    db1r = params["dec_fc1_b"].reshape(1, nhidden).astype(f32)
    dw2_t = jnp.transpose(params["dec_fc2_w"]).astype(f32)      # (H, obs)
    db2r = params["dec_fc2_b"].reshape(1, obs_dim).astype(f32)

    # fused [func.fc1 | dec.fc1] weight / bias
    wfd1 = jnp.concatenate([fw1_t, dw1_t], axis=1)              # (L, 2H)
    bfd1 = jnp.concatenate([fb1r, db1r], axis=1)                # (1, 2H)

    # ---- cost estimate ------------------------------------------------------
    f_flops = 2 * B_pad * (latent_dim * nhidden + nhidden * nhidden
                           + nhidden * latent_dim)
    step_flops = (2 * B_pad * latent_dim * 2 * nhidden          # fused fc1
                  + 2 * B_pad * nhidden * obs_dim               # dec fc2
                  + 2 * B_pad * (nhidden * nhidden + nhidden * latent_dim)  # k1 tail
                  + 3 * f_flops)                                # k2..k4
    flops = (2 * T_obs * B_pad * obs_dim * rnn_nhidden
             + T_obs * 2 * B_pad * rnn_nhidden * rnn_nhidden
             + 2 * B_pad * rnn_nhidden * out_dim
             + T_pred * step_flops)
    trans = (T_obs * B_pad * rnn_nhidden + B_pad * latent_dim
             + (T_pred - 1) * 4 * 2 * B_pad * nhidden)
    bytes_accessed = 4 * (x_flat.size + eps_pad.size + dt.size
                          + w1x_t.size + b1r.size + w1h_t.size + w2_t.size + b2r.size
                          + wfd1.size + bfd1.size + fw1_t.size + fb1r.size
                          + fw2_t.size + fb2r.size + fw3_t.size + fb3r.size
                          + dw2_t.size + db2r.size
                          + B_pad * out_dim + B_pad * T_pred * (latent_dim + obs_dim))

    vmem_spec = pl.BlockSpec(memory_space=pltpu.MemorySpace.VMEM)
    smem_spec = pl.BlockSpec(memory_space=pltpu.MemorySpace.SMEM)

    enc, predz_p, predx_p = pl.pallas_call(
        _latent_ode_kernel,
        out_shape=(
            jax.ShapeDtypeStruct((B_pad, out_dim), f32),
            jax.ShapeDtypeStruct((B_pad, T_pred * latent_dim), f32),
            jax.ShapeDtypeStruct((B_pad, T_pred * obs_dim), f32),
        ),
        in_specs=[smem_spec] + [vmem_spec] * 17,
        out_specs=(vmem_spec, vmem_spec, vmem_spec),
        cost_estimate=pl.CostEstimate(
            flops=int(flops),
            transcendentals=int(trans),
            bytes_accessed=int(bytes_accessed),
        ),
    )(dt, x_flat, eps_pad,
      w1x_t, b1r, w1h_t, w2_t, b2r,
      wfd1, bfd1,
      fw1_t, fb1r, fw2_t, fb2r, fw3_t, fb3r,
      dw2_t, db2r)

    qz0_mean = enc[:B, :latent_dim]
    qz0_logvar = enc[:B, latent_dim:]
    pred_z = predz_p[:B].reshape(B, T_pred, latent_dim)
    pred_x = predx_p[:B].reshape(B, T_pred, obs_dim)
    return pred_x, pred_z, qz0_mean, qz0_logvar


# ----------------------------------------------------------------------------
# Parameter init mimicking nn.Linear (uniform +/- 1/sqrt(fan_in)).
# ----------------------------------------------------------------------------
def init_params(key, latent_dim=4, obs_dim=2, nhidden=20, rnn_nhidden=25):
    def linear(k, out_f, in_f):
        k1, k2 = jax.random.split(k)
        lim = 1.0 / jnp.sqrt(jnp.float32(in_f))
        w = jax.random.uniform(k1, (out_f, in_f), jnp.float32, -lim, lim)
        b = jax.random.uniform(k2, (out_f,), jnp.float32, -lim, lim)
        return w, b

    keys = jax.random.split(key, 7)
    p = {}
    p["rec_i2h_w"], p["rec_i2h_b"] = linear(keys[0], rnn_nhidden, obs_dim + rnn_nhidden)
    p["rec_h2o_w"], p["rec_h2o_b"] = linear(keys[1], 2 * latent_dim, rnn_nhidden)
    p["func_fc1_w"], p["func_fc1_b"] = linear(keys[2], nhidden, latent_dim)
    p["func_fc2_w"], p["func_fc2_b"] = linear(keys[3], nhidden, nhidden)
    p["func_fc3_w"], p["func_fc3_b"] = linear(keys[4], latent_dim, nhidden)
    p["dec_fc1_w"], p["dec_fc1_b"] = linear(keys[5], nhidden, latent_dim)
    p["dec_fc2_w"], p["dec_fc2_b"] = linear(keys[6], obs_dim, nhidden)
    return p


# ----------------------------------------------------------------------------
# Pure-JAX reference with identical math (RNN loop, RK4, ELU, decoder).
# ----------------------------------------------------------------------------
def reference_forward(x, t, eps, params):
    B, T_obs, _ = x.shape
    latent_dim = params["func_fc1_w"].shape[1]
    rnn_nhidden = params["rec_i2h_w"].shape[0]

    h = jnp.zeros((B, rnn_nhidden), jnp.float32)
    out = None
    for ti in reversed(range(T_obs)):
        combined = jnp.concatenate([x[:, ti, :], h], axis=1)
        h = jnp.tanh(combined @ params["rec_i2h_w"].T + params["rec_i2h_b"])
        out = h @ params["rec_h2o_w"].T + params["rec_h2o_b"]

    qm, ql = out[:, :latent_dim], out[:, latent_dim:]
    z0 = eps * jnp.exp(0.5 * ql) + qm

    def f(z):
        a = z @ params["func_fc1_w"].T + params["func_fc1_b"]
        a = jnp.where(a > 0, a, jnp.exp(a) - 1.0)
        a = a @ params["func_fc2_w"].T + params["func_fc2_b"]
        a = jnp.where(a > 0, a, jnp.exp(a) - 1.0)
        return a @ params["func_fc3_w"].T + params["func_fc3_b"]

    zs = [z0]
    z = z0
    for i in range(t.shape[0] - 1):
        hdt = t[i + 1] - t[i]
        k1 = f(z)
        k2 = f(z + 0.5 * hdt * k1)
        k3 = f(z + 0.5 * hdt * k2)
        k4 = f(z + hdt * k3)
        z = z + (hdt / 6.0) * (k1 + 2.0 * k2 + 2.0 * k3 + k4)
        zs.append(z)
    pred_z = jnp.stack(zs, axis=1)  # (B, T_pred, latent)

    d1 = jnp.maximum(pred_z @ params["dec_fc1_w"].T + params["dec_fc1_b"], 0.0)
    pred_x = d1 @ params["dec_fc2_w"].T + params["dec_fc2_b"]
    return pred_x, pred_z, qm, ql


if __name__ == "__main__":
    latent_dim, obs_dim, nhidden, rnn_nhidden, nspiral = 4, 2, 20, 25, 4
    T_obs, T_pred = 8, 8

    key = jax.random.PRNGKey(0)
    kp, kx, ke = jax.random.split(key, 3)
    params = init_params(kp, latent_dim, obs_dim, nhidden, rnn_nhidden)

    x = jax.random.normal(kx, (nspiral, T_obs, obs_dim), jnp.float32)
    t = jnp.linspace(0.0, 0.9, T_pred).astype(jnp.float32)
    eps = jax.random.normal(ke, (nspiral, latent_dim), jnp.float32)

    pred_x, pred_z, qm, ql = latent_ode_forward(x, t, eps, params)
    jax.block_until_ready((pred_x, pred_z, qm, ql))

    ref_x, ref_z, ref_qm, ref_ql = reference_forward(x, t, eps, params)

    assert pred_x.shape == (nspiral, T_pred, obs_dim)
    assert pred_z.shape == (nspiral, T_pred, latent_dim)
    assert jnp.allclose(qm, ref_qm, atol=1e-3, rtol=1e-3)
    assert jnp.allclose(ql, ref_ql, atol=1e-3, rtol=1e-3)
    assert jnp.allclose(pred_z, ref_z, atol=1e-3, rtol=1e-3)
    assert jnp.allclose(pred_x, ref_x, atol=1e-3, rtol=1e-3)

    print("KERNEL_OK")
</pallas_src>

<mosaic_0001>
module attributes {stable_mosaic.version = 11 : i64} {
  func.func @_latent_ode_kernel(%arg0: memref<8xf32, #tpu.memory_space<smem>>, %arg1: memref<64x2xf32, #tpu.memory_space<vmem>>, %arg2: memref<8x4xf32, #tpu.memory_space<vmem>>, %arg3: memref<2x25xf32, #tpu.memory_space<vmem>>, %arg4: memref<1x25xf32, #tpu.memory_space<vmem>>, %arg5: memref<25x25xf32, #tpu.memory_space<vmem>>, %arg6: memref<25x8xf32, #tpu.memory_space<vmem>>, %arg7: memref<1x8xf32, #tpu.memory_space<vmem>>, %arg8: memref<4x40xf32, #tpu.memory_space<vmem>>, %arg9: memref<1x40xf32, #tpu.memory_space<vmem>>, %arg10: memref<4x20xf32, #tpu.memory_space<vmem>>, %arg11: memref<1x20xf32, #tpu.memory_space<vmem>>, %arg12: memref<20x20xf32, #tpu.memory_space<vmem>>, %arg13: memref<1x20xf32, #tpu.memory_space<vmem>>, %arg14: memref<20x4xf32, #tpu.memory_space<vmem>>, %arg15: memref<1x4xf32, #tpu.memory_space<vmem>>, %arg16: memref<20x2xf32, #tpu.memory_space<vmem>>, %arg17: memref<1x2xf32, #tpu.memory_space<vmem>>, %arg18: memref<8x8xf32, #tpu.memory_space<vmem>>, %arg19: memref<8x32xf32, #tpu.memory_space<vmem>>, %arg20: memref<8x16xf32, #tpu.memory_space<vmem>>) attributes {dimension_semantics = [], scalar_prefetch = 0 : i64, scratch_operands = 0 : i64, tpu.core_type = #tpu.core_type<tc>} {
    %c0 = arith.constant 0 : index
    %c0_0 = arith.constant 0 : index
    %0 = vector.load %arg1[%c0, %c0_0] : memref<64x2xf32, #tpu.memory_space<vmem>>, vector<64x2xf32>
    %c0_1 = arith.constant 0 : index
    %c0_2 = arith.constant 0 : index
    %1 = vector.load %arg3[%c0_1, %c0_2] : memref<2x25xf32, #tpu.memory_space<vmem>>, vector<2x25xf32>
    %cst = arith.constant dense<0.000000e+00> : vector<64x25xf32>
    %2 = tpu.matmul %0, %1, %cst {dimension_numbers = #tpu.dot_dimension_numbers<[1], [0], [0], [1], [0, 0, 1, 1], [], []>} : vector<64x2xf32>, vector<2x25xf32>, vector<64x25xf32> -> vector<64x25xf32>
    %c0_3 = arith.constant 0 : index
    %c0_4 = arith.constant 0 : index
    %3 = vector.load %arg4[%c0_3, %c0_4] : memref<1x25xf32, #tpu.memory_space<vmem>>, vector<1x25xf32>
    %4 = vector.broadcast %3 : vector<1x25xf32> to vector<64x25xf32>
    %5 = arith.addf %2, %4 : vector<64x25xf32>
    %c0_5 = arith.constant 0 : index
    %c0_6 = arith.constant 0 : index
    %6 = vector.load %arg5[%c0_5, %c0_6] : memref<25x25xf32, #tpu.memory_space<vmem>>, vector<25x25xf32>
    %cst_7 = arith.constant 0.000000e+00 : f32
    %7 = vector.broadcast %cst_7 : f32 to vector<8x25xf32>
    %8 = vector.extract_strided_slice %5 {offsets = [0, 0], sizes = [8, 25], strides = [1, 1]} : vector<64x25xf32> to vector<8x25xf32>
    %cst_8 = arith.constant dense<0.000000e+00> : vector<8x25xf32>
    %9 = tpu.matmul %7, %6, %cst_8 {dimension_numbers = #tpu.dot_dimension_numbers<[1], [0], [0], [1], [0, 0, 1, 1], [], []>} : vector<8x25xf32>, vector<25x25xf32>, vector<8x25xf32> -> vector<8x25xf32>
    %10 = arith.addf %8, %9 : vector<8x25xf32>
    %11 = math.tanh %10 : vector<8x25xf32>
    %12 = vector.extract_strided_slice %5 {offsets = [8, 0], sizes = [8, 25], strides = [1, 1]} : vector<64x25xf32> to vector<8x25xf32>
    %cst_9 = arith.constant dense<0.000000e+00> : vector<8x25xf32>
    %13 = tpu.matmul %11, %6, %cst_9 {dimension_numbers = #tpu.dot_dimension_numbers<[1], [0], [0], [1], [0, 0, 1, 1], [], []>} : vector<8x25xf32>, vector<25x25xf32>, vector<8x25xf32> -> vector<8x25xf32>
    %14 = arith.addf %12, %13 : vector<8x25xf32>
    %15 = math.tanh %14 : vector<8x25xf32>
    %16 = vector.extract_strided_slice %5 {offsets = [16, 0], sizes = [8, 25], strides = [1, 1]} : vector<64x25xf32> to vector<8x25xf32>
    %cst_10 = arith.constant dense<0.000000e+00> : vector<8x25xf32>
    %17 = tpu.matmul %15, %6, %cst_10 {dimension_numbers = #tpu.dot_dimension_numbers<[1], [0], [0], [1], [0, 0, 1, 1], [], []>} : vector<8x25xf32>, vector<25x25xf32>, vector<8x25xf32> -> vector<8x25xf32>
    %18 = arith.addf %16, %17 : vector<8x25xf32>
    %19 = math.tanh %18 : vector<8x25xf32>
    %20 = vector.extract_strided_slice %5 {offsets = [24, 0], sizes = [8, 25], strides = [1, 1]} : vector<64x25xf32> to vector<8x25xf32>
    %cst_11 = arith.constant dense<0.000000e+00> : vector<8x25xf32>
    %21 = tpu.matmul %19, %6, %cst_11 {dimension_numbers = #tpu.dot_dimension_numbers<[1], [0], [0], [1], [0, 0, 1, 1], [], []>} : vector<8x25xf32>, vector<25x25xf32>, vector<8x25xf32> -> vector<8x25xf32>
    %22 = arith.addf %20, %21 : vector<8x25xf32>
    %23 = math.tanh %22 : vector<8x25xf32>
    %24 = vector.extract_strided_slice %5 {offsets = [32, 0], sizes = [8, 25], strides = [1, 1]} : vector<64x25xf32> to vector<8x25xf32>
    %cst_12 = arith.constant dense<0.000000e+00> : vector<8x25xf32>
    %25 = tpu.matmul %23, %6, %cst_12 {dimension_numbers = #tpu.dot_dimension_numbers<[1], [0], [0], [1], [0, 0, 1, 1], [], []>} : vector<8x25xf32>, vector<25x25xf32>, vector<8x25xf32> -> vector<8x25xf32>
    %26 = arith.addf %24, %25 : vector<8x25xf32>
    %27 = math.tanh %26 : vector<8x25xf32>
    %28 = vector.extract_strided_slice %5 {offsets = [40, 0], sizes = [8, 25], strides = [1, 1]} : vector<64x25xf32> to vector<8x25xf32>
    %cst_13 = arith.constant dense<0.000000e+00> : vector<8x25xf32>
    %29 = tpu.matmul %27, %6, %cst_13 {dimension_numbers = #tpu.dot_dimension_numbers<[1], [0], [0], [1], [0, 0, 1, 1], [], []>} : vector<8x25xf32>, vector<25x25xf32>, vector<8x25xf32> -> vector<8x25xf32>
    %30 = arith.addf %28, %29 : vector<8x25xf32>
    %31 = math.tanh %30 : vector<8x25xf32>
    %32 = vector.extract_strided_slice %5 {offsets = [48, 0], sizes = [8, 25], strides = [1, 1]} : vector<64x25xf32> to vector<8x25xf32>
    %cst_14 = arith.constant dense<0.000000e+00> : vector<8x25xf32>
    %33 = tpu.matmul %31, %6, %cst_14 {dimension_numbers = #tpu.dot_dimension_numbers<[1], [0], [0], [1], [0, 0, 1, 1], [], []>} : vector<8x25xf32>, vector<25x25xf32>, vector<8x25xf32> -> vector<8x25xf32>
    %34 = arith.addf %32, %33 : vector<8x25xf32>
    %35 = math.tanh %34 : vector<8x25xf32>
    %36 = vector.extract_strided_slice %5 {offsets = [56, 0], sizes = [8, 25], strides = [1, 1]} : vector<64x25xf32> to vector<8x25xf32>
    %cst_15 = arith.constant dense<0.000000e+00> : vector<8x25xf32>
    %37 = tpu.matmul %35, %6, %cst_15 {dimension_numbers = #tpu.dot_dimension_numbers<[1], [0], [0], [1], [0, 0, 1, 1], [], []>} : vector<8x25xf32>, vector<25x25xf32>, vector<8x25xf32> -> vector<8x25xf32>
    %38 = arith.addf %36, %37 : vector<8x25xf32>
    %39 = math.tanh %38 : vector<8x25xf32>
    %c0_16 = arith.constant 0 : index
    %c0_17 = arith.constant 0 : index
    %40 = vector.load %arg6[%c0_16, %c0_17] : memref<25x8xf32, #tpu.memory_space<vmem>>, vector<25x8xf32>
    %cst_18 = arith.constant dense<0.000000e+00> : vector<8x8xf32>
    %41 = tpu.matmul %39, %40, %cst_18 {dimension_numbers = #tpu.dot_dimension_numbers<[1], [0], [0], [1], [0, 0, 1, 1], [], []>} : vector<8x25xf32>, vector<25x8xf32>, vector<8x8xf32> -> vector<8x8xf32>
    %c0_19 = arith.constant 0 : index
    %c0_20 = arith.constant 0 : index
    %42 = vector.load %arg7[%c0_19, %c0_20] : memref<1x8xf32, #tpu.memory_space<vmem>>, vector<1x8xf32>
    %43 = vector.broadcast %42 : vector<1x8xf32> to vector<8x8xf32>
    %44 = arith.addf %41, %43 : vector<8x8xf32>
    %c0_21 = arith.constant 0 : index
    %c0_22 = arith.constant 0 : index
    %45 = vector.load %arg18[%c0_21, %c0_22] : memref<8x8xf32, #tpu.memory_space<vmem>>, vector<8x8xf32>
    tpu.vector_store %arg18[%c0_21, %c0_22], %44 {strides = array<i32>} : memref<8x8xf32, #tpu.memory_space<vmem>>, vector<8x8xf32>,
    %46 = vector.extract_strided_slice %44 {offsets = [0, 0], sizes = [8, 4], strides = [1, 1]} : vector<8x8xf32> to vector<8x4xf32>
    %47 = vector.extract_strided_slice %44 {offsets = [0, 4], sizes = [8, 4], strides = [1, 1]} : vector<8x8xf32> to vector<8x4xf32>
    %c0_23 = arith.constant 0 : index
    %c0_24 = arith.constant 0 : index
    %48 = vector.load %arg2[%c0_23, %c0_24] : memref<8x4xf32, #tpu.memory_space<vmem>>, vector<8x4xf32>
    %cst_25 = arith.constant 5.000000e-01 : f32
    %49 = vector.broadcast %cst_25 : f32 to vector<8x4xf32>
    %50 = arith.mulf %49, %47 : vector<8x4xf32>
    %51 = math.exp %50 : vector<8x4xf32>
    %52 = arith.mulf %48, %51 : vector<8x4xf32>
    %53 = arith.addf %52, %46 : vector<8x4xf32>
    %c0_26 = arith.constant 0 : index
    %c0_27 = arith.constant 0 : index
    %54 = vector.load %arg8[%c0_26, %c0_27] : memref<4x40xf32, #tpu.memory_space<vmem>>, vector<4x40xf32>
    %c0_28 = arith.constant 0 : index
    %c0_29 = arith.constant 0 : index
    %55 = vector.load %arg9[%c0_28, %c0_29] : memref<1x40xf32, #tpu.memory_space<vmem>>, vector<1x40xf32>
    %c0_30 = arith.constant 0 : index
    %c0_31 = arith.constant 0 : index
    %56 = vector.load %arg10[%c0_30, %c0_31] : memref<4x20xf32, #tpu.memory_space<vmem>>, vector<4x20xf32>
    %c0_32 = arith.constant 0 : index
    %c0_33 = arith.constant 0 : index
    %57 = vector.load %arg11[%c0_32, %c0_33] : memref<1x20xf32, #tpu.memory_space<vmem>>, vector<1x20xf32>
    %c0_34 = arith.constant 0 : index
    %c0_35 = arith.constant 0 : index
    %58 = vector.load %arg12[%c0_34, %c0_35] : memref<20x20xf32, #tpu.memory_space<vmem>>, vector<20x20xf32>
    %c0_36 = arith.constant 0 : index
    %c0_37 = arith.constant 0 : index
    %59 = vector.load %arg13[%c0_36, %c0_37] : memref<1x20xf32, #tpu.memory_space<vmem>>, vector<1x20xf32>
    %c0_38 = arith.constant 0 : index
    %c0_39 = arith.constant 0 : index
    %60 = vector.load %arg14[%c0_38, %c0_39] : memref<20x4xf32, #tpu.memory_space<vmem>>, vector<20x4xf32>
    %c0_40 = arith.constant 0 : index
    %c0_41 = arith.constant 0 : index
    %61 = vector.load %arg15[%c0_40, %c0_41] : memref<1x4xf32, #tpu.memory_space<vmem>>, vector<1x4xf32>
    %c0_42 = arith.constant 0 : index
    %c0_43 = arith.constant 0 : index
    %62 = vector.load %arg16[%c0_42, %c0_43] : memref<20x2xf32, #tpu.memory_space<vmem>>, vector<20x2xf32>
    %c0_44 = arith.constant 0 : index
    %c0_45 = arith.constant 0 : index
    %63 = vector.load %arg17[%c0_44, %c0_45] : memref<1x2xf32, #tpu.memory_space<vmem>>, vector<1x2xf32>
    %cst_46 = arith.constant dense<0.000000e+00> : vector<8x40xf32>
    %64 = tpu.matmul %53, %54, %cst_46 {dimension_numbers = #tpu.dot_dimension_numbers<[1], [0], [0], [1], [0, 0, 1, 1], [], []>} : vector<8x4xf32>, vector<4x40xf32>, vector<8x40xf32> -> vector<8x40xf32>
    %65 = vector.broadcast %55 : vector<1x40xf32> to vector<8x40xf32>
    %66 = arith.addf %64, %65 : vector<8x40xf32>
    %67 = vector.extract_strided_slice %66 {offsets = [0, 20], sizes = [8, 20], strides = [1, 1]} : vector<8x40xf32> to vector<8x20xf32>
    %cst_47 = arith.constant 0.000000e+00 : f32
    %68 = vector.broadcast %cst_47 : f32 to vector<8x20xf32>
    %69 = arith.maximumf %67, %68 : vector<8x20xf32>
    %cst_48 = arith.constant dense<0.000000e+00> : vector<8x2xf32>
    %70 = tpu.matmul %69, %62, %cst_48 {dimension_numbers = #tpu.dot_dimension_numbers<[1], [0], [0], [1], [0, 0, 1, 1], [], []>} : vector<8x20xf32>, vector<20x2xf32>, vector<8x2xf32> -> vector<8x2xf32>
    %71 = vector.broadcast %63 : vector<1x2xf32> to vector<8x2xf32>
    %72 = arith.addf %70, %71 : vector<8x2xf32>
    %c0_49 = arith.constant 0 : index
    %c0_50 = arith.constant 0 : index
    %73 = vector.load %arg19[%c0_49, %c0_50] : memref<8x32xf32, #tpu.memory_space<vmem>>, vector<8x4xf32>
    tpu.vector_store %arg19[%c0_49, %c0_50], %53 {strides = array<i32>} : memref<8x32xf32, #tpu.memory_space<vmem>>, vector<8x4xf32>,
    %c0_51 = arith.constant 0 : index
    %c0_52 = arith.constant 0 : index
    %74 = vector.load %arg20[%c0_51, %c0_52] : memref<8x16xf32, #tpu.memory_space<vmem>>, vector<8x2xf32>
    tpu.vector_store %arg20[%c0_51, %c0_52], %72 {strides = array<i32>} : memref<8x16xf32, #tpu.memory_space<vmem>>, vector<8x2xf32>,
    %c0_53 = arith.constant 0 : index
    %75 = memref.load %arg0[%c0_53] : memref<8xf32, #tpu.memory_space<smem>>
    %76 = vector.extract_strided_slice %66 {offsets = [0, 0], sizes = [8, 20], strides = [1, 1]} : vector<8x40xf32> to vector<8x20xf32>
    %cst_54 = arith.constant 0.000000e+00 : f32
    %77 = vector.broadcast %cst_54 : f32 to vector<8x20xf32>
    %78 = arith.cmpf ogt, %76, %77 : vector<8x20xf32>
    %79 = math.exp %76 : vector<8x20xf32>
    %cst_55 = arith.constant 1.000000e+00 : f32
    %80 = vector.broadcast %cst_55 : f32 to vector<8x20xf32>
    %81 = arith.subf %79, %80 : vector<8x20xf32>
    %82 = arith.select %78, %76, %81 : vector<8x20xi1>, vector<8x20xf32>
    %cst_56 = arith.constant dense<0.000000e+00> : vector<8x20xf32>
    %83 = tpu.matmul %82, %58, %cst_56 {dimension_numbers = #tpu.dot_dimension_numbers<[1], [0], [0], [1], [0, 0, 1, 1], [], []>} : vector<8x20xf32>, vector<20x20xf32>, vector<8x20xf32> -> vector<8x20xf32>
    %84 = vector.broadcast %59 : vector<1x20xf32> to vector<8x20xf32>
    %85 = arith.addf %83, %84 : vector<8x20xf32>
    %cst_57 = arith.constant 0.000000e+00 : f32
    %86 = vector.broadcast %cst_57 : f32 to vector<8x20xf32>
    %87 = arith.cmpf ogt, %85, %86 : vector<8x20xf32>
    %88 = math.exp %85 : vector<8x20xf32>
    %cst_58 = arith.constant 1.000000e+00 : f32
    %89 = vector.broadcast %cst_58 : f32 to vector<8x20xf32>
    %90 = arith.subf %88, %89 : vector<8x20xf32>
    %91 = arith.select %87, %85, %90 : vector<8x20xi1>, vector<8x20xf32>
    %cst_59 = arith.constant dense<0.000000e+00> : vector<8x4xf32>
    %92 = tpu.matmul %91, %60, %cst_59 {dimension_numbers = #tpu.dot_dimension_numbers<[1], [0], [0], [1], [0, 0, 1, 1], [], []>} : vector<8x20xf32>, vector<20x4xf32>, vector<8x4xf32> -> vector<8x4xf32>
    %93 = vector.broadcast %61 : vector<1x4xf32> to vector<8x4xf32>
    %94 = arith.addf %92, %93 : vector<8x4xf32>
    %cst_60 = arith.constant 5.000000e-01 : f32
    %95 = arith.mulf %cst_60, %75 : f32
    %96 = vector.broadcast %95 : f32 to vector<8x4xf32>
    %97 = arith.mulf %96, %94 : vector<8x4xf32>
    %98 = arith.addf %53, %97 : vector<8x4xf32>
    %cst_61 = arith.constant dense<0.000000e+00> : vector<8x20xf32>
    %99 = tpu.matmul %98, %56, %cst_61 {dimension_numbers = #tpu.dot_dimension_numbers<[1], [0], [0], [1], [0, 0, 1, 1], [], []>} : vector<8x4xf32>, vector<4x20xf32>, vector<8x20xf32> -> vector<8x20xf32>
    %100 = vector.broadcast %57 : vector<1x20xf32> to vector<8x20xf32>
    %101 = arith.addf %99, %100 : vector<8x20xf32>
    %cst_62 = arith.constant 0.000000e+00 : f32
    %102 = vector.broadcast %cst_62 : f32 to vector<8x20xf32>
    %103 = arith.cmpf ogt, %101, %102 : vector<8x20xf32>
    %104 = math.exp %101 : vector<8x20xf32>
    %cst_63 = arith.constant 1.000000e+00 : f32
    %105 = vector.broadcast %cst_63 : f32 to vector<8x20xf32>
    %106 = arith.subf %104, %105 : vector<8x20xf32>
    %107 = arith.select %103, %101, %106 : vector<8x20xi1>, vector<8x20xf32>
    %cst_64 = arith.constant dense<0.000000e+00> : vector<8x20xf32>
    %108 = tpu.matmul %107, %58, %cst_64 {dimension_numbers = #tpu.dot_dimension_numbers<[1], [0], [0], [1], [0, 0, 1, 1], [], []>} : vector<8x20xf32>, vector<20x20xf32>, vector<8x20xf32> -> vector<8x20xf32>
    %109 = vector.broadcast %59 : vector<1x20xf32> to vector<8x20xf32>
    %110 = arith.addf %108, %109 : vector<8x20xf32>
    %cst_65 = arith.constant 0.000000e+00 : f32
    %111 = vector.broadcast %cst_65 : f32 to vector<8x20xf32>
    %112 = arith.cmpf ogt, %110, %111 : vector<8x20xf32>
    %113 = math.exp %110 : vector<8x20xf32>
    %cst_66 = arith.constant 1.000000e+00 : f32
    %114 = vector.broadcast %cst_66 : f32 to vector<8x20xf32>
    %115 = arith.subf %113, %114 : vector<8x20xf32>
    %116 = arith.select %112, %110, %115 : vector<8x20xi1>, vector<8x20xf32>
    %cst_67 = arith.constant dense<0.000000e+00> : vector<8x4xf32>
    %117 = tpu.matmul %116, %60, %cst_67 {dimension_numbers = #tpu.dot_dimension_numbers<[1], [0], [0], [1], [0, 0, 1, 1], [], []>} : vector<8x20xf32>, vector<20x4xf32>, vector<8x4xf32> -> vector<8x4xf32>
    %118 = vector.broadcast %61 : vector<1x4xf32> to vector<8x4xf32>
    %119 = arith.addf %117, %118 : vector<8x4xf32>
    %cst_68 = arith.constant 5.000000e-01 : f32
    %120 = arith.mulf %cst_68, %75 : f32
    %121 = vector.broadcast %120 : f32 to vector<8x4xf32>
    %122 = arith.mulf %121, %119 : vector<8x4xf32>
    %123 = arith.addf %53, %122 : vector<8x4xf32>
    %cst_69 = arith.constant dense<0.000000e+00> : vector<8x20xf32>
    %124 = tpu.matmul %123, %56, %cst_69 {dimension_numbers = #tpu.dot_dimension_numbers<[1], [0], [0], [1], [0, 0, 1, 1], [], []>} : vector<8x4xf32>, vector<4x20xf32>, vector<8x20xf32> -> vector<8x20xf32>
    %125 = vector.broadcast %57 : vector<1x20xf32> to vector<8x20xf32>
    %126 = arith.addf %124, %125 : vector<8x20xf32>
    %cst_70 = arith.constant 0.000000e+00 : f32
    %127 = vector.broadcast %cst_70 : f32 to vector<8x20xf32>
    %128 = arith.cmpf ogt, %126, %127 : vector<8x20xf32>
    %129 = math.exp %126 : vector<8x20xf32>
    %cst_71 = arith.constant 1.000000e+00 : f32
    %130 = vector.broadcast %cst_71 : f32 to vector<8x20xf32>
    %131 = arith.subf %129, %130 : vector<8x20xf32>
    %132 = arith.select %128, %126, %131 : vector<8x20xi1>, vector<8x20xf32>
    %cst_72 = arith.constant dense<0.000000e+00> : vector<8x20xf32>
    %133 = tpu.matmul %132, %58, %cst_72 {dimension_numbers = #tpu.dot_dimension_numbers<[1], [0], [0], [1], [0, 0, 1, 1], [], []>} : vector<8x20xf32>, vector<20x20xf32>, vector<8x20xf32> -> vector<8x20xf32>
    %134 = vector.broadcast %59 : vector<1x20xf32> to vector<8x20xf32>
    %135 = arith.addf %133, %134 : vector<8x20xf32>
    %cst_73 = arith.constant 0.000000e+00 : f32
    %136 = vector.broadcast %cst_73 : f32 to vector<8x20xf32>
    %137 = arith.cmpf ogt, %135, %136 : vector<8x20xf32>
    %138 = math.exp %135 : vector<8x20xf32>
    %cst_74 = arith.constant 1.000000e+00 : f32
    %139 = vector.broadcast %cst_74 : f32 to vector<8x20xf32>
    %140 = arith.subf %138, %139 : vector<8x20xf32>
    %141 = arith.select %137, %135, %140 : vector<8x20xi1>, vector<8x20xf32>
    %cst_75 = arith.constant dense<0.000000e+00> : vector<8x4xf32>
    %142 = tpu.matmul %141, %60, %cst_75 {dimension_numbers = #tpu.dot_dimension_numbers<[1], [0], [0], [1], [0, 0, 1, 1], [], []>} : vector<8x20xf32>, vector<20x4xf32>, vector<8x4xf32> -> vector<8x4xf32>
    %143 = vector.broadcast %61 : vector<1x4xf32> to vector<8x4xf32>
    %144 = arith.addf %142, %143 : vector<8x4xf32>
    %145 = vector.broadcast %75 : f32 to vector<8x4xf32>
    %146 = arith.mulf %145, %144 : vector<8x4xf32>
    %147 = arith.addf %53, %146 : vector<8x4xf32>
    %cst_76 = arith.constant dense<0.000000e+00> : vector<8x20xf32>
    %148 = tpu.matmul %147, %56, %cst_76 {dimension_numbers = #tpu.dot_dimension_numbers<[1], [0], [0], [1], [0, 0, 1, 1], [], []>} : vector<8x4xf32>, vector<4x20xf32>, vector<8x20xf32> -> vector<8x20xf32>
    %149 = vector.broadcast %57 : vector<1x20xf32> to vector<8x20xf32>
    %150 = arith.addf %148, %149 : vector<8x20xf32>
    %cst_77 = arith.constant 0.000000e+00 : f32
    %151 = vector.broadcast %cst_77 : f32 to vector<8x20xf32>
    %152 = arith.cmpf ogt, %150, %151 : vector<8x20xf32>
    %153 = math.exp %150 : vector<8x20xf32>
    %cst_78 = arith.constant 1.000000e+00 : f32
    %154 = vector.broadcast %cst_78 : f32 to vector<8x20xf32>
    %155 = arith.subf %153, %154 : vector<8x20xf32>
    %156 = arith.select %152, %150, %155 : vector<8x20xi1>, vector<8x20xf32>
    %cst_79 = arith.constant dense<0.000000e+00> : vector<8x20xf32>
    %157 = tpu.matmul %156, %58, %cst_79 {dimension_numbers = #tpu.dot_dimension_numbers<[1], [0], [0], [1], [0, 0, 1, 1], [], []>} : vector<8x20xf32>, vector<20x20xf32>, vector<8x20xf32> -> vector<8x20xf32>
    %158 = vector.broadcast %59 : vector<1x20xf32> to vector<8x20xf32>
    %159 = arith.addf %157, %158 : vector<8x20xf32>
    %cst_80 = arith.constant 0.000000e+00 : f32
    %160 = vector.broadcast %cst_80 : f32 to vector<8x20xf32>
    %161 = arith.cmpf ogt, %159, %160 : vector<8x20xf32>
    %162 = math.exp %159 : vector<8x20xf32>
    %cst_81 = arith.constant 1.000000e+00 : f32
    %163 = vector.broadcast %cst_81 : f32 to vector<8x20xf32>
    %164 = arith.subf %162, %163 : vector<8x20xf32>
    %165 = arith.select %161, %159, %164 : vector<8x20xi1>, vector<8x20xf32>
    %cst_82 = arith.constant dense<0.000000e+00> : vector<8x4xf32>
    %166 = tpu.matmul %165, %60, %cst_82 {dimension_numbers = #tpu.dot_dimension_numbers<[1], [0], [0], [1], [0, 0, 1, 1], [], []>} : vector<8x20xf32>, vector<20x4xf32>, vector<8x4xf32> -> vector<8x4xf32>
    %167 = vector.broadcast %61 : vector<1x4xf32> to vector<8x4xf32>
    %168 = arith.addf %166, %167 : vector<8x4xf32>
    %cst_83 = arith.constant 6.000000e+00 : f32
    %169 = arith.divf %75, %cst_83 : f32
    %cst_84 = arith.constant 2.000000e+00 : f32
    %170 = vector.broadcast %cst_84 : f32 to vector<8x4xf32>
    %171 = arith.mulf %170, %119 : vector<8x4xf32>
    %172 = arith.addf %94, %171 : vector<8x4xf32>
    %cst_85 = arith.constant 2.000000e+00 : f32
    %173 = vector.broadcast %cst_85 : f32 to vector<8x4xf32>
    %174 = arith.mulf %173, %144 : vector<8x4xf32>
    %175 = arith.addf %172, %174 : vector<8x4xf32>
    %176 = arith.addf %175, %168 : vector<8x4xf32>
    %177 = vector.broadcast %169 : f32 to vector<8x4xf32>
    %178 = arith.mulf %177, %176 : vector<8x4xf32>
    %179 = arith.addf %53, %178 : vector<8x4xf32>
    %cst_86 = arith.constant dense<0.000000e+00> : vector<8x40xf32>
    %180 = tpu.matmul %179, %54, %cst_86 {dimension_numbers = #tpu.dot_dimension_numbers<[1], [0], [0], [1], [0, 0, 1, 1], [], []>} : vector<8x4xf32>, vector<4x40xf32>, vector<8x40xf32> -> vector<8x40xf32>
    %181 = vector.broadcast %55 : vector<1x40xf32> to vector<8x40xf32>
    %182 = arith.addf %180, %181 : vector<8x40xf32>
    %183 = vector.extract_strided_slice %182 {offsets = [0, 20], sizes = [8, 20], strides = [1, 1]} : vector<8x40xf32> to vector<8x20xf32>
    %cst_87 = arith.constant 0.000000e+00 : f32
    %184 = vector.broadcast %cst_87 : f32 to vector<8x20xf32>
    %185 = arith.maximumf %183, %184 : vector<8x20xf32>
    %cst_88 = arith.constant dense<0.000000e+00> : vector<8x2xf32>
    %186 = tpu.matmul %185, %62, %cst_88 {dimension_numbers = #tpu.dot_dimension_numbers<[1], [0], [0], [1], [0, 0, 1, 1], [], []>} : vector<8x20xf32>, vector<20x2xf32>, vector<8x2xf32> -> vector<8x2xf32>
    %187 = vector.broadcast %63 : vector<1x2xf32> to vector<8x2xf32>
    %188 = arith.addf %186, %187 : vector<8x2xf32>
    %c0_89 = arith.constant 0 : index
    %c4 = arith.constant 4 : index
    %189 = vector.load %arg19[%c0_89, %c4] : memref<8x32xf32, #tpu.memory_space<vmem>>, vector<8x4xf32>
    tpu.vector_store %arg19[%c0_89, %c4], %179 {strides = array<i32>} : memref<8x32xf32, #tpu.memory_space<vmem>>, vector<8x4xf32>,
    %c0_90 = arith.constant 0 : index
    %c2 = arith.constant 2 : index
    %190 = vector.load %arg20[%c0_90, %c2] : memref<8x16xf32, #tpu.memory_space<vmem>>, vector<8x2xf32>
    tpu.vector_store %arg20[%c0_90, %c2], %188 {strides = array<i32>} : memref<8x16xf32, #tpu.memory_space<vmem>>, vector<8x2xf32>,
    %c1 = arith.constant 1 : index
    %191 = memref.load %arg0[%c1] : memref<8xf32, #tpu.memory_space<smem>>
    %192 = vector.extract_strided_slice %182 {offsets = [0, 0], sizes = [8, 20], strides = [1, 1]} : vector<8x40xf32> to vector<8x20xf32>
    %cst_91 = arith.constant 0.000000e+00 : f32
    %193 = vector.broadcast %cst_91 : f32 to vector<8x20xf32>
    %194 = arith.cmpf ogt, %192, %193 : vector<8x20xf32>
    %195 = math.exp %192 : vector<8x20xf32>
    %cst_92 = arith.constant 1.000000e+00 : f32
    %196 = vector.broadcast %cst_92 : f32 to vector<8x20xf32>
    %197 = arith.subf %195, %196 : vector<8x20xf32>
    %198 = arith.select %194, %192, %197 : vector<8x20xi1>, vector<8x20xf32>
    %cst_93 = arith.constant dense<0.000000e+00> : vector<8x20xf32>
    %199 = tpu.matmul %198, %58, %cst_93 {dimension_numbers = #tpu.dot_dimension_numbers<[1], [0], [0], [1], [0, 0, 1, 1], [], []>} : vector<8x20xf32>, vector<20x20xf32>, vector<8x20xf32> -> vector<8x20xf32>
    %200 = vector.broadcast %59 : vector<1x20xf32> to vector<8x20xf32>
    %201 = arith.addf %199, %200 : vector<8x20xf32>
    %cst_94 = arith.constant 0.000000e+00 : f32
    %202 = vector.broadcast %cst_94 : f32 to vector<8x20xf32>
    %203 = arith.cmpf ogt, %201, %202 : vector<8x20xf32>
    %204 = math.exp %201 : vector<8x20xf32>
    %cst_95 = arith.constant 1.000000e+00 : f32
    %205 = vector.broadcast %cst_95 : f32 to vector<8x20xf32>
    %206 = arith.subf %204, %205 : vector<8x20xf32>
    %207 = arith.select %203, %201, %206 : vector<8x20xi1>, vector<8x20xf32>
    %cst_96 = arith.constant dense<0.000000e+00> : vector<8x4xf32>
    %208 = tpu.matmul %207, %60, %cst_96 {dimension_numbers = #tpu.dot_dimension_numbers<[1], [0], [0], [1], [0, 0, 1, 1], [], []>} : vector<8x20xf32>, vector<20x4xf32>, vector<8x4xf32> -> vector<8x4xf32>
    %209 = vector.broadcast %61 : vector<1x4xf32> to vector<8x4xf32>
    %210 = arith.addf %208, %209 : vector<8x4xf32>
    %cst_97 = arith.constant 5.000000e-01 : f32
    %211 = arith.mulf %cst_97, %191 : f32
    %212 = vector.broadcast %211 : f32 to vector<8x4xf32>
    %213 = arith.mulf %212, %210 : vector<8x4xf32>
    %214 = arith.addf %179, %213 : vector<8x4xf32>
    %cst_98 = arith.constant dense<0.000000e+00> : vector<8x20xf32>
    %215 = tpu.matmul %214, %56, %cst_98 {dimension_numbers = #tpu.dot_dimension_numbers<[1], [0], [0], [1], [0, 0, 1, 1], [], []>} : vector<8x4xf32>, vector<4x20xf32>, vector<8x20xf32> -> vector<8x20xf32>
    %216 = vector.broadcast %57 : vector<1x20xf32> to vector<8x20xf32>
    %217 = arith.addf %215, %216 : vector<8x20xf32>
    %cst_99 = arith.constant 0.000000e+00 : f32
    %218 = vector.broadcast %cst_99 : f32 to vector<8x20xf32>
    %219 = arith.cmpf ogt, %217, %218 : vector<8x20xf32>
    %220 = math.exp %217 : vector<8x20xf32>
    %cst_100 = arith.constant 1.000000e+00 : f32
    %221 = vector.broadcast %cst_100 : f32 to vector<8x20xf32>
    %222 = arith.subf %220, %221 : vector<8x20xf32>
    %223 = arith.select %219, %217, %222 : vector<8x20xi1>, vector<8x20xf32>
    %cst_101 = arith.constant dense<0.000000e+00> : vector<8x20xf32>
    %224 = tpu.matmul %223, %58, %cst_101 {dimension_numbers = #tpu.dot_dimension_numbers<[1], [0], [0], [1], [0, 0, 1, 1], [], []>} : vector<8x20xf32>, vector<20x20xf32>, vector<8x20xf32> -> vector<8x20xf32>
    %225 = vector.broadcast %59 : vector<1x20xf32> to vector<8x20xf32>
    %226 = arith.addf %224, %225 : vector<8x20xf32>
    %cst_102 = arith.constant 0.000000e+00 : f32
    %227 = vector.broadcast %cst_102 : f32 to vector<8x20xf32>
    %228 = arith.cmpf ogt, %226, %227 : vector<8x20xf32>
    %229 = math.exp %226 : vector<8x20xf32>
    %cst_103 = arith.constant 1.000000e+00 : f32
    %230 = vector.broadcast %cst_103 : f32 to vector<8x20xf32>
    %231 = arith.subf %229, %230 : vector<8x20xf32>
    %232 = arith.select %228, %226, %231 : vector<8x20xi1>, vector<8x20xf32>
    %cst_104 = arith.constant dense<0.000000e+00> : vector<8x4xf32>
    %233 = tpu.matmul %232, %60, %cst_104 {dimension_numbers = #tpu.dot_dimension_numbers<[1], [0], [0], [1], [0, 0, 1, 1], [], []>} : vector<8x20xf32>, vector<20x4xf32>, vector<8x4xf32> -> vector<8x4xf32>
    %234 = vector.broadcast %61 : vector<1x4xf32> to vector<8x4xf32>
    %235 = arith.addf %233, %234 : vector<8x4xf32>
    %cst_105 = arith.constant 5.000000e-01 : f32
    %236 = arith.mulf %cst_105, %191 : f32
    %237 = vector.broadcast %236 : f32 to vector<8x4xf32>
    %238 = arith.mulf %237, %235 : vector<8x4xf32>
    %239 = arith.addf %179, %238 : vector<8x4xf32>
    %cst_106 = arith.constant dense<0.000000e+00> : vector<8x20xf32>
    %240 = tpu.matmul %239, %56, %cst_106 {dimension_numbers = #tpu.dot_dimension_numbers<[1], [0], [0], [1], [0, 0, 1, 1], [], []>} : vector<8x4xf32>, vector<4x20xf32>, vector<8x20xf32> -> vector<8x20xf32>
    %241 = vector.broadcast %57 : vector<1x20xf32> to vector<8x20xf32>
    %242 = arith.addf %240, %241 : vector<8x20xf32>
    %cst_107 = arith.constant 0.000000e+00 : f32
    %243 = vector.broadcast %cst_107 : f32 to vector<8x20xf32>
    %244 = arith.cmpf ogt, %242, %243 : vector<8x20xf32>
    %245 = math.exp %242 : vector<8x20xf32>
    %cst_108 = arith.constant 1.000000e+00 : f32
    %246 = vector.broadcast %cst_108 : f32 to vector<8x20xf32>
    %247 = arith.subf %245, %246 : vector<8x20xf32>
    %248 = arith.select %244, %242, %247 : vector<8x20xi1>, vector<8x20xf32>
    %cst_109 = arith.constant dense<0.000000e+00> : vector<8x20xf32>
    %249 = tpu.matmul %248, %58, %cst_109 {dimension_numbers = #tpu.dot_dimension_numbers<[1], [0], [0], [1], [0, 0, 1, 1], [], []>} : vector<8x20xf32>, vector<20x20xf32>, vector<8x20xf32> -> vector<8x20xf32>
    %250 = vector.broadcast %59 : vector<1x20xf32> to vector<8x20xf32>
    %251 = arith.addf %249, %250 : vector<8x20xf32>
    %cst_110 = arith.constant 0.000000e+00 : f32
    %252 = vector.broadcast %cst_110 : f32 to vector<8x20xf32>
    %253 = arith.cmpf ogt, %251, %252 : vector<8x20xf32>
    %254 = math.exp %251 : vector<8x20xf32>
    %cst_111 = arith.constant 1.000000e+00 : f32
    %255 = vector.broadcast %cst_111 : f32 to vector<8x20xf32>
    %256 = arith.subf %254, %255 : vector<8x20xf32>
    %257 = arith.select %253, %251, %256 : vector<8x20xi1>, vector<8x20xf32>
    %cst_112 = arith.constant dense<0.000000e+00> : vector<8x4xf32>
    %258 = tpu.matmul %257, %60, %cst_112 {dimension_numbers = #tpu.dot_dimension_numbers<[1], [0], [0], [1], [0, 0, 1, 1], [], []>} : vector<8x20xf32>, vector<20x4xf32>, vector<8x4xf32> -> vector<8x4xf32>
    %259 = vector.broadcast %61 : vector<1x4xf32> to vector<8x4xf32>
    %260 = arith.addf %258, %259 : vector<8x4xf32>
    %261 = vector.broadcast %191 : f32 to vector<8x4xf32>
    %262 = arith.mulf %261, %260 : vector<8x4xf32>
    %263 = arith.addf %179, %262 : vector<8x4xf32>
    %cst_113 = arith.constant dense<0.000000e+00> : vector<8x20xf32>
    %264 = tpu.matmul %263, %56, %cst_113 {dimension_numbers = #tpu.dot_dimension_numbers<[1], [0], [0], [1], [0, 0, 1, 1], [], []>} : vector<8x4xf32>, vector<4x20xf32>, vector<8x20xf32> -> vector<8x20xf32>
    %265 = vector.broadcast %57 : vector<1x20xf32> to vector<8x20xf32>
    %266 = arith.addf %264, %265 : vector<8x20xf32>
    %cst_114 = arith.constant 0.000000e+00 : f32
    %267 = vector.broadcast %cst_114 : f32 to vector<8x20xf32>
    %268 = arith.cmpf ogt, %266, %267 : vector<8x20xf32>
    %269 = math.exp %266 : vector<8x20xf32>
    %cst_115 = arith.constant 1.000000e+00 : f32
    %270 = vector.broadcast %cst_115 : f32 to vector<8x20xf32>
    %271 = arith.subf %269, %270 : vector<8x20xf32>
    %272 = arith.select %268, %266, %271 : vector<8x20xi1>, vector<8x20xf32>
    %cst_116 = arith.constant dense<0.000000e+00> : vector<8x20xf32>
    %273 = tpu.matmul %272, %58, %cst_116 {dimension_numbers = #tpu.dot_dimension_numbers<[1], [0], [0], [1], [0, 0, 1, 1], [], []>} : vector<8x20xf32>, vector<20x20xf32>, vector<8x20xf32> -> vector<8x20xf32>
    %274 = vector.broadcast %59 : vector<1x20xf32> to vector<8x20xf32>
    %275 = arith.addf %273, %274 : vector<8x20xf32>
    %cst_117 = arith.constant 0.000000e+00 : f32
    %276 = vector.broadcast %cst_117 : f32 to vector<8x20xf32>
    %277 = arith.cmpf ogt, %275, %276 : vector<8x20xf32>
    %278 = math.exp %275 : vector<8x20xf32>
    %cst_118 = arith.constant 1.000000e+00 : f32
    %279 = vector.broadcast %cst_118 : f32 to vector<8x20xf32>
    %280 = arith.subf %278, %279 : vector<8x20xf32>
    %281 = arith.select %277, %275, %280 : vector<8x20xi1>, vector<8x20xf32>
    %cst_119 = arith.constant dense<0.000000e+00> : vector<8x4xf32>
    %282 = tpu.matmul %281, %60, %cst_119 {dimension_numbers = #tpu.dot_dimension_numbers<[1], [0], [0], [1], [0, 0, 1, 1], [], []>} : vector<8x20xf32>, vector<20x4xf32>, vector<8x4xf32> -> vector<8x4xf32>
    %283 = vector.broadcast %61 : vector<1x4xf32> to vector<8x4xf32>
    %284 = arith.addf %282, %283 : vector<8x4xf32>
    %cst_120 = arith.constant 6.000000e+00 : f32
    %285 = arith.divf %191, %cst_120 : f32
    %cst_121 = arith.constant 2.000000e+00 : f32
    %286 = vector.broadcast %cst_121 : f32 to vector<8x4xf32>
    %287 = arith.mulf %286, %235 : vector<8x4xf32>
    %288 = arith.addf %210, %287 : vector<8x4xf32>
    %cst_122 = arith.constant 2.000000e+00 : f32
    %289 = vector.broadcast %cst_122 : f32 to vector<8x4xf32>
    %290 = arith.mulf %289, %260 : vector<8x4xf32>
    %291 = arith.addf %288, %290 : vector<8x4xf32>
    %292 = arith.addf %291, %284 : vector<8x4xf32>
    %293 = vector.broadcast %285 : f32 to vector<8x4xf32>
    %294 = arith.mulf %293, %292 : vector<8x4xf32>
    %295 = arith.addf %179, %294 : vector<8x4xf32>
    %cst_123 = arith.constant dense<0.000000e+00> : vector<8x40xf32>
    %296 = tpu.matmul %295, %54, %cst_123 {dimension_numbers = #tpu.dot_dimension_numbers<[1], [0], [0], [1], [0, 0, 1, 1], [], []>} : vector<8x4xf32>, vector<4x40xf32>, vector<8x40xf32> -> vector<8x40xf32>
    %297 = vector.broadcast %55 : vector<1x40xf32> to vector<8x40xf32>
    %298 = arith.addf %296, %297 : vector<8x40xf32>
    %299 = vector.extract_strided_slice %298 {offsets = [0, 20], sizes = [8, 20], strides = [1, 1]} : vector<8x40xf32> to vector<8x20xf32>
    %cst_124 = arith.constant 0.000000e+00 : f32
    %300 = vector.broadcast %cst_124 : f32 to vector<8x20xf32>
    %301 = arith.maximumf %299, %300 : vector<8x20xf32>
    %cst_125 = arith.constant dense<0.000000e+00> : vector<8x2xf32>
    %302 = tpu.matmul %301, %62, %cst_125 {dimension_numbers = #tpu.dot_dimension_numbers<[1], [0], [0], [1], [0, 0, 1, 1], [], []>} : vector<8x20xf32>, vector<20x2xf32>, vector<8x2xf32> -> vector<8x2xf32>
    %303 = vector.broadcast %63 : vector<1x2xf32> to vector<8x2xf32>
    %304 = arith.addf %302, %303 : vector<8x2xf32>
    %c0_126 = arith.constant 0 : index
    %c8 = arith.constant 8 : index
    %305 = vector.load %arg19[%c0_126, %c8] : memref<8x32xf32, #tpu.memory_space<vmem>>, vector<8x4xf32>
    tpu.vector_store %arg19[%c0_126, %c8], %295 {strides = array<i32>} : memref<8x32xf32, #tpu.memory_space<vmem>>, vector<8x4xf32>,
    %c0_127 = arith.constant 0 : index
    %c4_128 = arith.constant 4 : index
    %306 = vector.load %arg20[%c0_127, %c4_128] : memref<8x16xf32, #tpu.memory_space<vmem>>, vector<8x2xf32>
    tpu.vector_store %arg20[%c0_127, %c4_128], %304 {strides = array<i32>} : memref<8x16xf32, #tpu.memory_space<vmem>>, vector<8x2xf32>,
    %c2_129 = arith.constant 2 : index
    %307 = memref.load %arg0[%c2_129] : memref<8xf32, #tpu.memory_space<smem>>
    %308 = vector.extract_strided_slice %298 {offsets = [0, 0], sizes = [8, 20], strides = [1, 1]} : vector<8x40xf32> to vector<8x20xf32>
    %cst_130 = arith.constant 0.000000e+00 : f32
    %309 = vector.broadcast %cst_130 : f32 to vector<8x20xf32>
    %310 = arith.cmpf ogt, %308, %309 : vector<8x20xf32>
    %311 = math.exp %308 : vector<8x20xf32>
    %cst_131 = arith.constant 1.000000e+00 : f32
    %312 = vector.broadcast %cst_131 : f32 to vector<8x20xf32>
    %313 = arith.subf %311, %312 : vector<8x20xf32>
    %314 = arith.select %310, %308, %313 : vector<8x20xi1>, vector<8x20xf32>
    %cst_132 = arith.constant dense<0.000000e+00> : vector<8x20xf32>
    %315 = tpu.matmul %314, %58, %cst_132 {dimension_numbers = #tpu.dot_dimension_numbers<[1], [0], [0], [1], [0, 0, 1, 1], [], []>} : vector<8x20xf32>, vector<20x20xf32>, vector<8x20xf32> -> vector<8x20xf32>
    %316 = vector.broadcast %59 : vector<1x20xf32> to vector<8x20xf32>
    %317 = arith.addf %315, %316 : vector<8x20xf32>
    %cst_133 = arith.constant 0.000000e+00 : f32
    %318 = vector.broadcast %cst_133 : f32 to vector<8x20xf32>
    %319 = arith.cmpf ogt, %317, %318 : vector<8x20xf32>
    %320 = math.exp %317 : vector<8x20xf32>
    %cst_134 = arith.constant 1.000000e+00 : f32
    %321 = vector.broadcast %cst_134 : f32 to vector<8x20xf32>
    %322 = arith.subf %320, %321 : vector<8x20xf32>
    %323 = arith.select %319, %317, %322 : vector<8x20xi1>, vector<8x20xf32>
    %cst_135 = arith.constant dense<0.000000e+00> : vector<8x4xf32>
    %324 = tpu.matmul %323, %60, %cst_135 {dimension_numbers = #tpu.dot_dimension_numbers<[1], [0], [0], [1], [0, 0, 1, 1], [], []>} : vector<8x20xf32>, vector<20x4xf32>, vector<8x4xf32> -> vector<8x4xf32>
    %325 = vector.broadcast %61 : vector<1x4xf32> to vector<8x4xf32>
    %326 = arith.addf %324, %325 : vector<8x4xf32>
    %cst_136 = arith.constant 5.000000e-01 : f32
    %327 = arith.mulf %cst_136, %307 : f32
    %328 = vector.broadcast %327 : f32 to vector<8x4xf32>
    %329 = arith.mulf %328, %326 : vector<8x4xf32>
    %330 = arith.addf %295, %329 : vector<8x4xf32>
    %cst_137 = arith.constant dense<0.000000e+00> : vector<8x20xf32>
    %331 = tpu.matmul %330, %56, %cst_137 {dimension_numbers = #tpu.dot_dimension_numbers<[1], [0], [0], [1], [0, 0, 1, 1], [], []>} : vector<8x4xf32>, vector<4x20xf32>, vector<8x20xf32> -> vector<8x20xf32>
    %332 = vector.broadcast %57 : vector<1x20xf32> to vector<8x20xf32>
    %333 = arith.addf %331, %332 : vector<8x20xf32>
    %cst_138 = arith.constant 0.000000e+00 : f32
    %334 = vector.broadcast %cst_138 : f32 to vector<8x20xf32>
    %335 = arith.cmpf ogt, %333, %334 : vector<8x20xf32>
    %336 = math.exp %333 : vector<8x20xf32>
    %cst_139 = arith.constant 1.000000e+00 : f32
    %337 = vector.broadcast %cst_139 : f32 to vector<8x20xf32>
    %338 = arith.subf %336, %337 : vector<8x20xf32>
    %339 = arith.select %335, %333, %338 : vector<8x20xi1>, vector<8x20xf32>
    %cst_140 = arith.constant dense<0.000000e+00> : vector<8x20xf32>
    %340 = tpu.matmul %339, %58, %cst_140 {dimension_numbers = #tpu.dot_dimension_numbers<[1], [0], [0], [1], [0, 0, 1, 1], [], []>} : vector<8x20xf32>, vector<20x20xf32>, vector<8x20xf32> -> vector<8x20xf32>
    %341 = vector.broadcast %59 : vector<1x20xf32> to vector<8x20xf32>
    %342 = arith.addf %340, %341 : vector<8x20xf32>
    %cst_141 = arith.constant 0.000000e+00 : f32
    %343 = vector.broadcast %cst_141 : f32 to vector<8x20xf32>
    %344 = arith.cmpf ogt, %342, %343 : vector<8x20xf32>
    %345 = math.exp %342 : vector<8x20xf32>
    %cst_142 = arith.constant 1.000000e+00 : f32
    %346 = vector.broadcast %cst_142 : f32 to vector<8x20xf32>
    %347 = arith.subf %345, %346 : vector<8x20xf32>
    %348 = arith.select %344, %342, %347 : vector<8x20xi1>, vector<8x20xf32>
    %cst_143 = arith.constant dense<0.000000e+00> : vector<8x4xf32>
    %349 = tpu.matmul %348, %60, %cst_143 {dimension_numbers = #tpu.dot_dimension_numbers<[1], [0], [0], [1], [0, 0, 1, 1], [], []>} : vector<8x20xf32>, vector<20x4xf32>, vector<8x4xf32> -> vector<8x4xf32>
    %350 = vector.broadcast %61 : vector<1x4xf32> to vector<8x4xf32>
    %351 = arith.addf %349, %350 : vector<8x4xf32>
    %cst_144 = arith.constant 5.000000e-01 : f32
    %352 = arith.mulf %cst_144, %307 : f32
    %353 = vector.broadcast %352 : f32 to vector<8x4xf32>
    %354 = arith.mulf %353, %351 : vector<8x4xf32>
    %355 = arith.addf %295, %354 : vector<8x4xf32>
    %cst_145 = arith.constant dense<0.000000e+00> : vector<8x20xf32>
    %356 = tpu.matmul %355, %56, %cst_145 {dimension_numbers = #tpu.dot_dimension_numbers<[1], [0], [0], [1], [0, 0, 1, 1], [], []>} : vector<8x4xf32>, vector<4x20xf32>, vector<8x20xf32> -> vector<8x20xf32>
    %357 = vector.broadcast %57 : vector<1x20xf32> to vector<8x20xf32>
    %358 = arith.addf %356, %357 : vector<8x20xf32>
    %cst_146 = arith.constant 0.000000e+00 : f32
    %359 = vector.broadcast %cst_146 : f32 to vector<8x20xf32>
    %360 = arith.cmpf ogt, %358, %359 : vector<8x20xf32>
    %361 = math.exp %358 : vector<8x20xf32>
    %cst_147 = arith.constant 1.000000e+00 : f32
    %362 = vector.broadcast %cst_147 : f32 to vector<8x20xf32>
    %363 = arith.subf %361, %362 : vector<8x20xf32>
    %364 = arith.select %360, %358, %363 : vector<8x20xi1>, vector<8x20xf32>
    %cst_148 = arith.constant dense<0.000000e+00> : vector<8x20xf32>
    %365 = tpu.matmul %364, %58, %cst_148 {dimension_numbers = #tpu.dot_dimension_numbers<[1], [0], [0], [1], [0, 0, 1, 1], [], []>} : vector<8x20xf32>, vector<20x20xf32>, vector<8x20xf32> -> vector<8x20xf32>
    %366 = vector.broadcast %59 : vector<1x20xf32> to vector<8x20xf32>
    %367 = arith.addf %365, %366 : vector<8x20xf32>
    %cst_149 = arith.constant 0.000000e+00 : f32
    %368 = vector.broadcast %cst_149 : f32 to vector<8x20xf32>
    %369 = arith.cmpf ogt, %367, %368 : vector<8x20xf32>
    %370 = math.exp %367 : vector<8x20xf32>
    %cst_150 = arith.constant 1.000000e+00 : f32
    %371 = vector.broadcast %cst_150 : f32 to vector<8x20xf32>
    %372 = arith.subf %370, %371 : vector<8x20xf32>
    %373 = arith.select %369, %367, %372 : vector<8x20xi1>, vector<8x20xf32>
    %cst_151 = arith.constant dense<0.000000e+00> : vector<8x4xf32>
    %374 = tpu.matmul %373, %60, %cst_151 {dimension_numbers = #tpu.dot_dimension_numbers<[1], [0], [0], [1], [0, 0, 1, 1], [], []>} : vector<8x20xf32>, vector<20x4xf32>, vector<8x4xf32> -> vector<8x4xf32>
    %375 = vector.broadcast %61 : vector<1x4xf32> to vector<8x4xf32>
    %376 = arith.addf %374, %375 : vector<8x4xf32>
    %377 = vector.broadcast %307 : f32 to vector<8x4xf32>
    %378 = arith.mulf %377, %376 : vector<8x4xf32>
    %379 = arith.addf %295, %378 : vector<8x4xf32>
    %cst_152 = arith.constant dense<0.000000e+00> : vector<8x20xf32>
    %380 = tpu.matmul %379, %56, %cst_152 {dimension_numbers = #tpu.dot_dimension_numbers<[1], [0], [0], [1], [0, 0, 1, 1], [], []>} : vector<8x4xf32>, vector<4x20xf32>, vector<8x20xf32> -> vector<8x20xf32>
    %381 = vector.broadcast %57 : vector<1x20xf32> to vector<8x20xf32>
    %382 = arith.addf %380, %381 : vector<8x20xf32>
    %cst_153 = arith.constant 0.000000e+00 : f32
    %383 = vector.broadcast %cst_153 : f32 to vector<8x20xf32>
    %384 = arith.cmpf ogt, %382, %383 : vector<8x20xf32>
    %385 = math.exp %382 : vector<8x20xf32>
    %cst_154 = arith.constant 1.000000e+00 : f32
    %386 = vector.broadcast %cst_154 : f32 to vector<8x20xf32>
    %387 = arith.subf %385, %386 : vector<8x20xf32>
    %388 = arith.select %384, %382, %387 : vector<8x20xi1>, vector<8x20xf32>
    %cst_155 = arith.constant dense<0.000000e+00> : vector<8x20xf32>
    %389 = tpu.matmul %388, %58, %cst_155 {dimension_numbers = #tpu.dot_dimension_numbers<[1], [0], [0], [1], [0, 0, 1, 1], [], []>} : vector<8x20xf32>, vector<20x20xf32>, vector<8x20xf32> -> vector<8x20xf32>
    %390 = vector.broadcast %59 : vector<1x20xf32> to vector<8x20xf32>
    %391 = arith.addf %389, %390 : vector<8x20xf32>
    %cst_156 = arith.constant 0.000000e+00 : f32
    %392 = vector.broadcast %cst_156 : f32 to vector<8x20xf32>
    %393 = arith.cmpf ogt, %391, %392 : vector<8x20xf32>
    %394 = math.exp %391 : vector<8x20xf32>
    %cst_157 = arith.constant 1.000000e+00 : f32
    %395 = vector.broadcast %cst_157 : f32 to vector<8x20xf32>
    %396 = arith.subf %394, %395 : vector<8x20xf32>
    %397 = arith.select %393, %391, %396 : vector<8x20xi1>, vector<8x20xf32>
    %cst_158 = arith.constant dense<0.000000e+00> : vector<8x4xf32>
    %398 = tpu.matmul %397, %60, %cst_158 {dimension_numbers = #tpu.dot_dimension_numbers<[1], [0], [0], [1], [0, 0, 1, 1], [], []>} : vector<8x20xf32>, vector<20x4xf32>, vector<8x4xf32> -> vector<8x4xf32>
    %399 = vector.broadcast %61 : vector<1x4xf32> to vector<8x4xf32>
    %400 = arith.addf %398, %399 : vector<8x4xf32>
    %cst_159 = arith.constant 6.000000e+00 : f32
    %401 = arith.divf %307, %cst_159 : f32
    %cst_160 = arith.constant 2.000000e+00 : f32
    %402 = vector.broadcast %cst_160 : f32 to vector<8x4xf32>
    %403 = arith.mulf %402, %351 : vector<8x4xf32>
    %404 = arith.addf %326, %403 : vector<8x4xf32>
    %cst_161 = arith.constant 2.000000e+00 : f32
    %405 = vector.broadcast %cst_161 : f32 to vector<8x4xf32>
    %406 = arith.mulf %405, %376 : vector<8x4xf32>
    %407 = arith.addf %404, %406 : vector<8x4xf32>
    %408 = arith.addf %407, %400 : vector<8x4xf32>
    %409 = vector.broadcast %401 : f32 to vector<8x4xf32>
    %410 = arith.mulf %409, %408 : vector<8x4xf32>
    %411 = arith.addf %295, %410 : vector<8x4xf32>
    %cst_162 = arith.constant dense<0.000000e+00> : vector<8x40xf32>
    %412 = tpu.matmul %411, %54, %cst_162 {dimension_numbers = #tpu.dot_dimension_numbers<[1], [0], [0], [1], [0, 0, 1, 1], [], []>} : vector<8x4xf32>, vector<4x40xf32>, vector<8x40xf32> -> vector<8x40xf32>
    %413 = vector.broadcast %55 : vector<1x40xf32> to vector<8x40xf32>
    %414 = arith.addf %412, %413 : vector<8x40xf32>
    %415 = vector.extract_strided_slice %414 {offsets = [0, 20], sizes = [8, 20], strides = [1, 1]} : vector<8x40xf32> to vector<8x20xf32>
    %cst_163 = arith.constant 0.000000e+00 : f32
    %416 = vector.broadcast %cst_163 : f32 to vector<8x20xf32>
    %417 = arith.maximumf %415, %416 : vector<8x20xf32>
    %cst_164 = arith.constant dense<0.000000e+00> : vector<8x2xf32>
    %418 = tpu.matmul %417, %62, %cst_164 {dimension_numbers = #tpu.dot_dimension_numbers<[1], [0], [0], [1], [0, 0, 1, 1], [], []>} : vector<8x20xf32>, vector<20x2xf32>, vector<8x2xf32> -> vector<8x2xf32>
    %419 = vector.broadcast %63 : vector<1x2xf32> to vector<8x2xf32>
    %420 = arith.addf %418, %419 : vector<8x2xf32>
    %c0_165 = arith.constant 0 : index
    %c12 = arith.constant 12 : index
    %421 = vector.load %arg19[%c0_165, %c12] : memref<8x32xf32, #tpu.memory_space<vmem>>, vector<8x4xf32>
    tpu.vector_store %arg19[%c0_165, %c12], %411 {strides = array<i32>} : memref<8x32xf32, #tpu.memory_space<vmem>>, vector<8x4xf32>,
    %c0_166 = arith.constant 0 : index
    %c6 = arith.constant 6 : index
    %422 = vector.load %arg20[%c0_166, %c6] : memref<8x16xf32, #tpu.memory_space<vmem>>, vector<8x2xf32>
    tpu.vector_store %arg20[%c0_166, %c6], %420 {strides = array<i32>} : memref<8x16xf32, #tpu.memory_space<vmem>>, vector<8x2xf32>,
    %c3 = arith.constant 3 : index
    %423 = memref.load %arg0[%c3] : memref<8xf32, #tpu.memory_space<smem>>
    %424 = vector.extract_strided_slice %414 {offsets = [0, 0], sizes = [8, 20], strides = [1, 1]} : vector<8x40xf32> to vector<8x20xf32>
    %cst_167 = arith.constant 0.000000e+00 : f32
    %425 = vector.broadcast %cst_167 : f32 to vector<8x20xf32>
    %426 = arith.cmpf ogt, %424, %425 : vector<8x20xf32>
    %427 = math.exp %424 : vector<8x20xf32>
    %cst_168 = arith.constant 1.000000e+00 : f32
    %428 = vector.broadcast %cst_168 : f32 to vector<8x20xf32>
    %429 = arith.subf %427, %428 : vector<8x20xf32>
    %430 = arith.select %426, %424, %429 : vector<8x20xi1>, vector<8x20xf32>
    %cst_169 = arith.constant dense<0.000000e+00> : vector<8x20xf32>
    %431 = tpu.matmul %430, %58, %cst_169 {dimension_numbers = #tpu.dot_dimension_numbers<[1], [0], [0], [1], [0, 0, 1, 1], [], []>} : vector<8x20xf32>, vector<20x20xf32>, vector<8x20xf32> -> vector<8x20xf32>
    %432 = vector.broadcast %59 : vector<1x20xf32> to vector<8x20xf32>
    %433 = arith.addf %431, %432 : vector<8x20xf32>
    %cst_170 = arith.constant 0.000000e+00 : f32
    %434 = vector.broadcast %cst_170 : f32 to vector<8x20xf32>
    %435 = arith.cmpf ogt, %433, %434 : vector<8x20xf32>
    %436 = math.exp %433 : vector<8x20xf32>
    %cst_171 = arith.constant 1.000000e+00 : f32
    %437 = vector.broadcast %cst_171 : f32 to vector<8x20xf32>
    %438 = arith.subf %436, %437 : vector<8x20xf32>
    %439 = arith.select %435, %433, %438 : vector<8x20xi1>, vector<8x20xf32>
    %cst_172 = arith.constant dense<0.000000e+00> : vector<8x4xf32>
    %440 = tpu.matmul %439, %60, %cst_172 {dimension_numbers = #tpu.dot_dimension_numbers<[1], [0], [0], [1], [0, 0, 1, 1], [], []>} : vector<8x20xf32>, vector<20x4xf32>, vector<8x4xf32> -> vector<8x4xf32>
    %441 = vector.broadcast %61 : vector<1x4xf32> to vector<8x4xf32>
    %442 = arith.addf %440, %441 : vector<8x4xf32>
    %cst_173 = arith.constant 5.000000e-01 : f32
    %443 = arith.mulf %cst_173, %423 : f32
    %444 = vector.broadcast %443 : f32 to vector<8x4xf32>
    %445 = arith.mulf %444, %442 : vector<8x4xf32>
    %446 = arith.addf %411, %445 : vector<8x4xf32>
    %cst_174 = arith.constant dense<0.000000e+00> : vector<8x20xf32>
    %447 = tpu.matmul %446, %56, %cst_174 {dimension_numbers = #tpu.dot_dimension_numbers<[1], [0], [0], [1], [0, 0, 1, 1], [], []>} : vector<8x4xf32>, vector<4x20xf32>, vector<8x20xf32> -> vector<8x20xf32>
    %448 = vector.broadcast %57 : vector<1x20xf32> to vector<8x20xf32>
    %449 = arith.addf %447, %448 : vector<8x20xf32>
    %cst_175 = arith.constant 0.000000e+00 : f32
    %450 = vector.broadcast %cst_175 : f32 to vector<8x20xf32>
    %451 = arith.cmpf ogt, %449, %450 : vector<8x20xf32>
    %452 = math.exp %449 : vector<8x20xf32>
    %cst_176 = arith.constant 1.000000e+00 : f32
    %453 = vector.broadcast %cst_176 : f32 to vector<8x20xf32>
    %454 = arith.subf %452, %453 : vector<8x20xf32>
    %455 = arith.select %451, %449, %454 : vector<8x20xi1>, vector<8x20xf32>
    %cst_177 = arith.constant dense<0.000000e+00> : vector<8x20xf32>
    %456 = tpu.matmul %455, %58, %cst_177 {dimension_numbers = #tpu.dot_dimension_numbers<[1], [0], [0], [1], [0, 0, 1, 1], [], []>} : vector<8x20xf32>, vector<20x20xf32>, vector<8x20xf32> -> vector<8x20xf32>
    %457 = vector.broadcast %59 : vector<1x20xf32> to vector<8x20xf32>
    %458 = arith.addf %456, %457 : vector<8x20xf32>
    %cst_178 = arith.constant 0.000000e+00 : f32
    %459 = vector.broadcast %cst_178 : f32 to vector<8x20xf32>
    %460 = arith.cmpf ogt, %458, %459 : vector<8x20xf32>
    %461 = math.exp %458 : vector<8x20xf32>
    %cst_179 = arith.constant 1.000000e+00 : f32
    %462 = vector.broadcast %cst_179 : f32 to vector<8x20xf32>
    %463 = arith.subf %461, %462 : vector<8x20xf32>
    %464 = arith.select %460, %458, %463 : vector<8x20xi1>, vector<8x20xf32>
    %cst_180 = arith.constant dense<0.000000e+00> : vector<8x4xf32>
    %465 = tpu.matmul %464, %60, %cst_180 {dimension_numbers = #tpu.dot_dimension_numbers<[1], [0], [0], [1], [0, 0, 1, 1], [], []>} : vector<8x20xf32>, vector<20x4xf32>, vector<8x4xf32> -> vector<8x4xf32>
    %466 = vector.broadcast %61 : vector<1x4xf32> to vector<8x4xf32>
    %467 = arith.addf %465, %466 : vector<8x4xf32>
    %cst_181 = arith.constant 5.000000e-01 : f32
    %468 = arith.mulf %cst_181, %423 : f32
    %469 = vector.broadcast %468 : f32 to vector<8x4xf32>
    %470 = arith.mulf %469, %467 : vector<8x4xf32>
    %471 = arith.addf %411, %470 : vector<8x4xf32>
    %cst_182 = arith.constant dense<0.000000e+00> : vector<8x20xf32>
    %472 = tpu.matmul %471, %56, %cst_182 {dimension_numbers = #tpu.dot_dimension_numbers<[1], [0], [0], [1], [0, 0, 1, 1], [], []>} : vector<8x4xf32>, vector<4x20xf32>, vector<8x20xf32> -> vector<8x20xf32>
    %473 = vector.broadcast %57 : vector<1x20xf32> to vector<8x20xf32>
    %474 = arith.addf %472, %473 : vector<8x20xf32>
    %cst_183 = arith.constant 0.000000e+00 : f32
    %475 = vector.broadcast %cst_183 : f32 to vector<8x20xf32>
    %476 = arith.cmpf ogt, %474, %475 : vector<8x20xf32>
    %477 = math.exp %474 : vector<8x20xf32>
    %cst_184 = arith.constant 1.000000e+00 : f32
    %478 = vector.broadcast %cst_184 : f32 to vector<8x20xf32>
    %479 = arith.subf %477, %478 : vector<8x20xf32>
    %480 = arith.select %476, %474, %479 : vector<8x20xi1>, vector<8x20xf32>
    %cst_185 = arith.constant dense<0.000000e+00> : vector<8x20xf32>
    %481 = tpu.matmul %480, %58, %cst_185 {dimension_numbers = #tpu.dot_dimension_numbers<[1], [0], [0], [1], [0, 0, 1, 1], [], []>} : vector<8x20xf32>, vector<20x20xf32>, vector<8x20xf32> -> vector<8x20xf32>
    %482 = vector.broadcast %59 : vector<1x20xf32> to vector<8x20xf32>
    %483 = arith.addf %481, %482 : vector<8x20xf32>
    %cst_186 = arith.constant 0.000000e+00 : f32
    %484 = vector.broadcast %cst_186 : f32 to vector<8x20xf32>
    %485 = arith.cmpf ogt, %483, %484 : vector<8x20xf32>
    %486 = math.exp %483 : vector<8x20xf32>
    %cst_187 = arith.constant 1.000000e+00 : f32
    %487 = vector.broadcast %cst_187 : f32 to vector<8x20xf32>
    %488 = arith.subf %486, %487 : vector<8x20xf32>
    %489 = arith.select %485, %483, %488 : vector<8x20xi1>, vector<8x20xf32>
    %cst_188 = arith.constant dense<0.000000e+00> : vector<8x4xf32>
    %490 = tpu.matmul %489, %60, %cst_188 {dimension_numbers = #tpu.dot_dimension_numbers<[1], [0], [0], [1], [0, 0, 1, 1], [], []>} : vector<8x20xf32>, vector<20x4xf32>, vector<8x4xf32> -> vector<8x4xf32>
    %491 = vector.broadcast %61 : vector<1x4xf32> to vector<8x4xf32>
    %492 = arith.addf %490, %491 : vector<8x4xf32>
    %493 = vector.broadcast %423 : f32 to vector<8x4xf32>
    %494 = arith.mulf %493, %492 : vector<8x4xf32>
    %495 = arith.addf %411, %494 : vector<8x4xf32>
    %cst_189 = arith.constant dense<0.000000e+00> : vector<8x20xf32>
    %496 = tpu.matmul %495, %56, %cst_189 {dimension_numbers = #tpu.dot_dimension_numbers<[1], [0], [0], [1], [0, 0, 1, 1], [], []>} : vector<8x4xf32>, vector<4x20xf32>, vector<8x20xf32> -> vector<8x20xf32>
    %497 = vector.broadcast %57 : vector<1x20xf32> to vector<8x20xf32>
    %498 = arith.addf %496, %497 : vector<8x20xf32>
    %cst_190 = arith.constant 0.000000e+00 : f32
    %499 = vector.broadcast %cst_190 : f32 to vector<8x20xf32>
    %500 = arith.cmpf ogt, %498, %499 : vector<8x20xf32>
    %501 = math.exp %498 : vector<8x20xf32>
    %cst_191 = arith.constant 1.000000e+00 : f32
    %502 = vector.broadcast %cst_191 : f32 to vector<8x20xf32>
    %503 = arith.subf %501, %502 : vector<8x20xf32>
    %504 = arith.select %500, %498, %503 : vector<8x20xi1>, vector<8x20xf32>
    %cst_192 = arith.constant dense<0.000000e+00> : vector<8x20xf32>
    %505 = tpu.matmul %504, %58, %cst_192 {dimension_numbers = #tpu.dot_dimension_numbers<[1], [0], [0], [1], [0, 0, 1, 1], [], []>} : vector<8x20xf32>, vector<20x20xf32>, vector<8x20xf32> -> vector<8x20xf32>
    %506 = vector.broadcast %59 : vector<1x20xf32> to vector<8x20xf32>
    %507 = arith.addf %505, %506 : vector<8x20xf32>
    %cst_193 = arith.constant 0.000000e+00 : f32
    %508 = vector.broadcast %cst_193 : f32 to vector<8x20xf32>
    %509 = arith.cmpf ogt, %507, %508 : vector<8x20xf32>
    %510 = math.exp %507 : vector<8x20xf32>
    %cst_194 = arith.constant 1.000000e+00 : f32
    %511 = vector.broadcast %cst_194 : f32 to vector<8x20xf32>
    %512 = arith.subf %510, %511 : vector<8x20xf32>
    %513 = arith.select %509, %507, %512 : vector<8x20xi1>, vector<8x20xf32>
    %cst_195 = arith.constant dense<0.000000e+00> : vector<8x4xf32>
    %514 = tpu.matmul %513, %60, %cst_195 {dimension_numbers = #tpu.dot_dimension_numbers<[1], [0], [0], [1], [0, 0, 1, 1], [], []>} : vector<8x20xf32>, vector<20x4xf32>, vector<8x4xf32> -> vector<8x4xf32>
    %515 = vector.broadcast %61 : vector<1x4xf32> to vector<8x4xf32>
    %516 = arith.addf %514, %515 : vector<8x4xf32>
    %cst_196 = arith.constant 6.000000e+00 : f32
    %517 = arith.divf %423, %cst_196 : f32
    %cst_197 = arith.constant 2.000000e+00 : f32
    %518 = vector.broadcast %cst_197 : f32 to vector<8x4xf32>
    %519 = arith.mulf %518, %467 : vector<8x4xf32>
    %520 = arith.addf %442, %519 : vector<8x4xf32>
    %cst_198 = arith.constant 2.000000e+00 : f32
    %521 = vector.broadcast %cst_198 : f32 to vector<8x4xf32>
    %522 = arith.mulf %521, %492 : vector<8x4xf32>
    %523 = arith.addf %520, %522 : vector<8x4xf32>
    %524 = arith.addf %523, %516 : vector<8x4xf32>
    %525 = vector.broadcast %517 : f32 to vector<8x4xf32>
    %526 = arith.mulf %525, %524 : vector<8x4xf32>
    %527 = arith.addf %411, %526 : vector<8x4xf32>
    %cst_199 = arith.constant dense<0.000000e+00> : vector<8x40xf32>
    %528 = tpu.matmul %527, %54, %cst_199 {dimension_numbers = #tpu.dot_dimension_numbers<[1], [0], [0], [1], [0, 0, 1, 1], [], []>} : vector<8x4xf32>, vector<4x40xf32>, vector<8x40xf32> -> vector<8x40xf32>
    %529 = vector.broadcast %55 : vector<1x40xf32> to vector<8x40xf32>
    %530 = arith.addf %528, %529 : vector<8x40xf32>
    %531 = vector.extract_strided_slice %530 {offsets = [0, 20], sizes = [8, 20], strides = [1, 1]} : vector<8x40xf32> to vector<8x20xf32>
    %cst_200 = arith.constant 0.000000e+00 : f32
    %532 = vector.broadcast %cst_200 : f32 to vector<8x20xf32>
    %533 = arith.maximumf %531, %532 : vector<8x20xf32>
    %cst_201 = arith.constant dense<0.000000e+00> : vector<8x2xf32>
    %534 = tpu.matmul %533, %62, %cst_201 {dimension_numbers = #tpu.dot_dimension_numbers<[1], [0], [0], [1], [0, 0, 1, 1], [], []>} : vector<8x20xf32>, vector<20x2xf32>, vector<8x2xf32> -> vector<8x2xf32>
    %535 = vector.broadcast %63 : vector<1x2xf32> to vector<8x2xf32>
    %536 = arith.addf %534, %535 : vector<8x2xf32>
    %c0_202 = arith.constant 0 : index
    %c16 = arith.constant 16 : index
    %537 = vector.load %arg19[%c0_202, %c16] : memref<8x32xf32, #tpu.memory_space<vmem>>, vector<8x4xf32>
    tpu.vector_store %arg19[%c0_202, %c16], %527 {strides = array<i32>} : memref<8x32xf32, #tpu.memory_space<vmem>>, vector<8x4xf32>,
    %c0_203 = arith.constant 0 : index
    %c8_204 = arith.constant 8 : index
    %538 = vector.load %arg20[%c0_203, %c8_204] : memref<8x16xf32, #tpu.memory_space<vmem>>, vector<8x2xf32>
    tpu.vector_store %arg20[%c0_203, %c8_204], %536 {strides = array<i32>} : memref<8x16xf32, #tpu.memory_space<vmem>>, vector<8x2xf32>,
    %c4_205 = arith.constant 4 : index
    %539 = memref.load %arg0[%c4_205] : memref<8xf32, #tpu.memory_space<smem>>
    %540 = vector.extract_strided_slice %530 {offsets = [0, 0], sizes = [8, 20], strides = [1, 1]} : vector<8x40xf32> to vector<8x20xf32>
    %cst_206 = arith.constant 0.000000e+00 : f32
    %541 = vector.broadcast %cst_206 : f32 to vector<8x20xf32>
    %542 = arith.cmpf ogt, %540, %541 : vector<8x20xf32>
    %543 = math.exp %540 : vector<8x20xf32>
    %cst_207 = arith.constant 1.000000e+00 : f32
    %544 = vector.broadcast %cst_207 : f32 to vector<8x20xf32>
    %545 = arith.subf %543, %544 : vector<8x20xf32>
    %546 = arith.select %542, %540, %545 : vector<8x20xi1>, vector<8x20xf32>
    %cst_208 = arith.constant dense<0.000000e+00> : vector<8x20xf32>
    %547 = tpu.matmul %546, %58, %cst_208 {dimension_numbers = #tpu.dot_dimension_numbers<[1], [0], [0], [1], [0, 0, 1, 1], [], []>} : vector<8x20xf32>, vector<20x20xf32>, vector<8x20xf32> -> vector<8x20xf32>
    %548 = vector.broadcast %59 : vector<1x20xf32> to vector<8x20xf32>
    %549 = arith.addf %547, %548 : vector<8x20xf32>
    %cst_209 = arith.constant 0.000000e+00 : f32
    %550 = vector.broadcast %cst_209 : f32 to vector<8x20xf32>
    %551 = arith.cmpf ogt, %549, %550 : vector<8x20xf32>
    %552 = math.exp %549 : vector<8x20xf32>
    %cst_210 = arith.constant 1.000000e+00 : f32
    %553 = vector.broadcast %cst_210 : f32 to vector<8x20xf32>
    %554 = arith.subf %552, %553 : vector<8x20xf32>
    %555 = arith.select %551, %549, %554 : vector<8x20xi1>, vector<8x20xf32>
    %cst_211 = arith.constant dense<0.000000e+00> : vector<8x4xf32>
    %556 = tpu.matmul %555, %60, %cst_211 {dimension_numbers = #tpu.dot_dimension_numbers<[1], [0], [0], [1], [0, 0, 1, 1], [], []>} : vector<8x20xf32>, vector<20x4xf32>, vector<8x4xf32> -> vector<8x4xf32>
    %557 = vector.broadcast %61 : vector<1x4xf32> to vector<8x4xf32>
    %558 = arith.addf %556, %557 : vector<8x4xf32>
    %cst_212 = arith.constant 5.000000e-01 : f32
    %559 = arith.mulf %cst_212, %539 : f32
    %560 = vector.broadcast %559 : f32 to vector<8x4xf32>
    %561 = arith.mulf %560, %558 : vector<8x4xf32>
    %562 = arith.addf %527, %561 : vector<8x4xf32>
    %cst_213 = arith.constant dense<0.000000e+00> : vector<8x20xf32>
    %563 = tpu.matmul %562, %56, %cst_213 {dimension_numbers = #tpu.dot_dimension_numbers<[1], [0], [0], [1], [0, 0, 1, 1], [], []>} : vector<8x4xf32>, vector<4x20xf32>, vector<8x20xf32> -> vector<8x20xf32>
    %564 = vector.broadcast %57 : vector<1x20xf32> to vector<8x20xf32>
    %565 = arith.addf %563, %564 : vector<8x20xf32>
    %cst_214 = arith.constant 0.000000e+00 : f32
    %566 = vector.broadcast %cst_214 : f32 to vector<8x20xf32>
    %567 = arith.cmpf ogt, %565, %566 : vector<8x20xf32>
    %568 = math.exp %565 : vector<8x20xf32>
    %cst_215 = arith.constant 1.000000e+00 : f32
    %569 = vector.broadcast %cst_215 : f32 to vector<8x20xf32>
    %570 = arith.subf %568, %569 : vector<8x20xf32>
    %571 = arith.select %567, %565, %570 : vector<8x20xi1>, vector<8x20xf32>
    %cst_216 = arith.constant dense<0.000000e+00> : vector<8x20xf32>
    %572 = tpu.matmul %571, %58, %cst_216 {dimension_numbers = #tpu.dot_dimension_numbers<[1], [0], [0], [1], [0, 0, 1, 1], [], []>} : vector<8x20xf32>, vector<20x20xf32>, vector<8x20xf32> -> vector<8x20xf32>
    %573 = vector.broadcast %59 : vector<1x20xf32> to vector<8x20xf32>
    %574 = arith.addf %572, %573 : vector<8x20xf32>
    %cst_217 = arith.constant 0.000000e+00 : f32
    %575 = vector.broadcast %cst_217 : f32 to vector<8x20xf32>
    %576 = arith.cmpf ogt, %574, %575 : vector<8x20xf32>
    %577 = math.exp %574 : vector<8x20xf32>
    %cst_218 = arith.constant 1.000000e+00 : f32
    %578 = vector.broadcast %cst_218 : f32 to vector<8x20xf32>
    %579 = arith.subf %577, %578 : vector<8x20xf32>
    %580 = arith.select %576, %574, %579 : vector<8x20xi1>, vector<8x20xf32>
    %cst_219 = arith.constant dense<0.000000e+00> : vector<8x4xf32>
    %581 = tpu.matmul %580, %60, %cst_219 {dimension_numbers = #tpu.dot_dimension_numbers<[1], [0], [0], [1], [0, 0, 1, 1], [], []>} : vector<8x20xf32>, vector<20x4xf32>, vector<8x4xf32> -> vector<8x4xf32>
    %582 = vector.broadcast %61 : vector<1x4xf32> to vector<8x4xf32>
    %583 = arith.addf %581, %582 : vector<8x4xf32>
    %cst_220 = arith.constant 5.000000e-01 : f32
    %584 = arith.mulf %cst_220, %539 : f32
    %585 = vector.broadcast %584 : f32 to vector<8x4xf32>
    %586 = arith.mulf %585, %583 : vector<8x4xf32>
    %587 = arith.addf %527, %586 : vector<8x4xf32>
    %cst_221 = arith.constant dense<0.000000e+00> : vector<8x20xf32>
    %588 = tpu.matmul %587, %56, %cst_221 {dimension_numbers = #tpu.dot_dimension_numbers<[1], [0], [0], [1], [0, 0, 1, 1], [], []>} : vector<8x4xf32>, vector<4x20xf32>, vector<8x20xf32> -> vector<8x20xf32>
    %589 = vector.broadcast %57 : vector<1x20xf32> to vector<8x20xf32>
    %590 = arith.addf %588, %589 : vector<8x20xf32>
    %cst_222 = arith.constant 0.000000e+00 : f32
    %591 = vector.broadcast %cst_222 : f32 to vector<8x20xf32>
    %592 = arith.cmpf ogt, %590, %591 : vector<8x20xf32>
    %593 = math.exp %590 : vector<8x20xf32>
    %cst_223 = arith.constant 1.000000e+00 : f32
    %594 = vector.broadcast %cst_223 : f32 to vector<8x20xf32>
    %595 = arith.subf %593, %594 : vector<8x20xf32>
    %596 = arith.select %592, %590, %595 : vector<8x20xi1>, vector<8x20xf32>
    %cst_224 = arith.constant dense<0.000000e+00> : vector<8x20xf32>
    %597 = tpu.matmul %596, %58, %cst_224 {dimension_numbers = #tpu.dot_dimension_numbers<[1], [0], [0], [1], [0, 0, 1, 1], [], []>} : vector<8x20xf32>, vector<20x20xf32>, vector<8x20xf32> -> vector<8x20xf32>
    %598 = vector.broadcast %59 : vector<1x20xf32> to vector<8x20xf32>
    %599 = arith.addf %597, %598 : vector<8x20xf32>
    %cst_225 = arith.constant 0.000000e+00 : f32
    %600 = vector.broadcast %cst_225 : f32 to vector<8x20xf32>
    %601 = arith.cmpf ogt, %599, %600 : vector<8x20xf32>
    %602 = math.exp %599 : vector<8x20xf32>
    %cst_226 = arith.constant 1.000000e+00 : f32
    %603 = vector.broadcast %cst_226 : f32 to vector<8x20xf32>
    %604 = arith.subf %602, %603 : vector<8x20xf32>
    %605 = arith.select %601, %599, %604 : vector<8x20xi1>, vector<8x20xf32>
    %cst_227 = arith.constant dense<0.000000e+00> : vector<8x4xf32>
    %606 = tpu.matmul %605, %60, %cst_227 {dimension_numbers = #tpu.dot_dimension_numbers<[1], [0], [0], [1], [0, 0, 1, 1], [], []>} : vector<8x20xf32>, vector<20x4xf32>, vector<8x4xf32> -> vector<8x4xf32>
    %607 = vector.broadcast %61 : vector<1x4xf32> to vector<8x4xf32>
    %608 = arith.addf %606, %607 : vector<8x4xf32>
    %609 = vector.broadcast %539 : f32 to vector<8x4xf32>
    %610 = arith.mulf %609, %608 : vector<8x4xf32>
    %611 = arith.addf %527, %610 : vector<8x4xf32>
    %cst_228 = arith.constant dense<0.000000e+00> : vector<8x20xf32>
    %612 = tpu.matmul %611, %56, %cst_228 {dimension_numbers = #tpu.dot_dimension_numbers<[1], [0], [0], [1], [0, 0, 1, 1], [], []>} : vector<8x4xf32>, vector<4x20xf32>, vector<8x20xf32> -> vector<8x20xf32>
    %613 = vector.broadcast %57 : vector<1x20xf32> to vector<8x20xf32>
    %614 = arith.addf %612, %613 : vector<8x20xf32>
    %cst_229 = arith.constant 0.000000e+00 : f32
    %615 = vector.broadcast %cst_229 : f32 to vector<8x20xf32>
    %616 = arith.cmpf ogt, %614, %615 : vector<8x20xf32>
    %617 = math.exp %614 : vector<8x20xf32>
    %cst_230 = arith.constant 1.000000e+00 : f32
    %618 = vector.broadcast %cst_230 : f32 to vector<8x20xf32>
    %619 = arith.subf %617, %618 : vector<8x20xf32>
    %620 = arith.select %616, %614, %619 : vector<8x20xi1>, vector<8x20xf32>
    %cst_231 = arith.constant dense<0.000000e+00> : vector<8x20xf32>
    %621 = tpu.matmul %620, %58, %cst_231 {dimension_numbers = #tpu.dot_dimension_numbers<[1], [0], [0], [1], [0, 0, 1, 1], [], []>} : vector<8x20xf32>, vector<20x20xf32>, vector<8x20xf32> -> vector<8x20xf32>
    %622 = vector.broadcast %59 : vector<1x20xf32> to vector<8x20xf32>
    %623 = arith.addf %621, %622 : vector<8x20xf32>
    %cst_232 = arith.constant 0.000000e+00 : f32
    %624 = vector.broadcast %cst_232 : f32 to vector<8x20xf32>
    %625 = arith.cmpf ogt, %623, %624 : vector<8x20xf32>
    %626 = math.exp %623 : vector<8x20xf32>
    %cst_233 = arith.constant 1.000000e+00 : f32
    %627 = vector.broadcast %cst_233 : f32 to vector<8x20xf32>
    %628 = arith.subf %626, %627 : vector<8x20xf32>
    %629 = arith.select %625, %623, %628 : vector<8x20xi1>, vector<8x20xf32>
    %cst_234 = arith.constant dense<0.000000e+00> : vector<8x4xf32>
    %630 = tpu.matmul %629, %60, %cst_234 {dimension_numbers = #tpu.dot_dimension_numbers<[1], [0], [0], [1], [0, 0, 1, 1], [], []>} : vector<8x20xf32>, vector<20x4xf32>, vector<8x4xf32> -> vector<8x4xf32>
    %631 = vector.broadcast %61 : vector<1x4xf32> to vector<8x4xf32>
    %632 = arith.addf %630, %631 : vector<8x4xf32>
    %cst_235 = arith.constant 6.000000e+00 : f32
    %633 = arith.divf %539, %cst_235 : f32
    %cst_236 = arith.constant 2.000000e+00 : f32
    %634 = vector.broadcast %cst_236 : f32 to vector<8x4xf32>
    %635 = arith.mulf %634, %583 : vector<8x4xf32>
    %636 = arith.addf %558, %635 : vector<8x4xf32>
    %cst_237 = arith.constant 2.000000e+00 : f32
    %637 = vector.broadcast %cst_237 : f32 to vector<8x4xf32>
    %638 = arith.mulf %637, %608 : vector<8x4xf32>
    %639 = arith.addf %636, %638 : vector<8x4xf32>
    %640 = arith.addf %639, %632 : vector<8x4xf32>
    %641 = vector.broadcast %633 : f32 to vector<8x4xf32>
    %642 = arith.mulf %641, %640 : vector<8x4xf32>
    %643 = arith.addf %527, %642 : vector<8x4xf32>
    %cst_238 = arith.constant dense<0.000000e+00> : vector<8x40xf32>
    %644 = tpu.matmul %643, %54, %cst_238 {dimension_numbers = #tpu.dot_dimension_numbers<[1], [0], [0], [1], [0, 0, 1, 1], [], []>} : vector<8x4xf32>, vector<4x40xf32>, vector<8x40xf32> -> vector<8x40xf32>
    %645 = vector.broadcast %55 : vector<1x40xf32> to vector<8x40xf32>
    %646 = arith.addf %644, %645 : vector<8x40xf32>
    %647 = vector.extract_strided_slice %646 {offsets = [0, 20], sizes = [8, 20], strides = [1, 1]} : vector<8x40xf32> to vector<8x20xf32>
    %cst_239 = arith.constant 0.000000e+00 : f32
    %648 = vector.broadcast %cst_239 : f32 to vector<8x20xf32>
    %649 = arith.maximumf %647, %648 : vector<8x20xf32>
    %cst_240 = arith.constant dense<0.000000e+00> : vector<8x2xf32>
    %650 = tpu.matmul %649, %62, %cst_240 {dimension_numbers = #tpu.dot_dimension_numbers<[1], [0], [0], [1], [0, 0, 1, 1], [], []>} : vector<8x20xf32>, vector<20x2xf32>, vector<8x2xf32> -> vector<8x2xf32>
    %651 = vector.broadcast %63 : vector<1x2xf32> to vector<8x2xf32>
    %652 = arith.addf %650, %651 : vector<8x2xf32>
    %c0_241 = arith.constant 0 : index
    %c20 = arith.constant 20 : index
    %653 = vector.load %arg19[%c0_241, %c20] : memref<8x32xf32, #tpu.memory_space<vmem>>, vector<8x4xf32>
    tpu.vector_store %arg19[%c0_241, %c20], %643 {strides = array<i32>} : memref<8x32xf32, #tpu.memory_space<vmem>>, vector<8x4xf32>,
    %c0_242 = arith.constant 0 : index
    %c10 = arith.constant 10 : index
    %654 = vector.load %arg20[%c0_242, %c10] : memref<8x16xf32, #tpu.memory_space<vmem>>, vector<8x2xf32>
    tpu.vector_store %arg20[%c0_242, %c10], %652 {strides = array<i32>} : memref<8x16xf32, #tpu.memory_space<vmem>>, vector<8x2xf32>,
    %c5 = arith.constant 5 : index
    %655 = memref.load %arg0[%c5] : memref<8xf32, #tpu.memory_space<smem>>
    %656 = vector.extract_strided_slice %646 {offsets = [0, 0], sizes = [8, 20], strides = [1, 1]} : vector<8x40xf32> to vector<8x20xf32>
    %cst_243 = arith.constant 0.000000e+00 : f32
    %657 = vector.broadcast %cst_243 : f32 to vector<8x20xf32>
    %658 = arith.cmpf ogt, %656, %657 : vector<8x20xf32>
    %659 = math.exp %656 : vector<8x20xf32>
    %cst_244 = arith.constant 1.000000e+00 : f32
    %660 = vector.broadcast %cst_244 : f32 to vector<8x20xf32>
    %661 = arith.subf %659, %660 : vector<8x20xf32>
    %662 = arith.select %658, %656, %661 : vector<8x20xi1>, vector<8x20xf32>
    %cst_245 = arith.constant dense<0.000000e+00> : vector<8x20xf32>
    %663 = tpu.matmul %662, %58, %cst_245 {dimension_numbers = #tpu.dot_dimension_numbers<[1], [0], [0], [1], [0, 0, 1, 1], [], []>} : vector<8x20xf32>, vector<20x20xf32>, vector<8x20xf32> -> vector<8x20xf32>
    %664 = vector.broadcast %59 : vector<1x20xf32> to vector<8x20xf32>
    %665 = arith.addf %663, %664 : vector<8x20xf32>
    %cst_246 = arith.constant 0.000000e+00 : f32
    %666 = vector.broadcast %cst_246 : f32 to vector<8x20xf32>
    %667 = arith.cmpf ogt, %665, %666 : vector<8x20xf32>
    %668 = math.exp %665 : vector<8x20xf32>
    %cst_247 = arith.constant 1.000000e+00 : f32
    %669 = vector.broadcast %cst_247 : f32 to vector<8x20xf32>
    %670 = arith.subf %668, %669 : vector<8x20xf32>
    %671 = arith.select %667, %665, %670 : vector<8x20xi1>, vector<8x20xf32>
    %cst_248 = arith.constant dense<0.000000e+00> : vector<8x4xf32>
    %672 = tpu.matmul %671, %60, %cst_248 {dimension_numbers = #tpu.dot_dimension_numbers<[1], [0], [0], [1], [0, 0, 1, 1], [], []>} : vector<8x20xf32>, vector<20x4xf32>, vector<8x4xf32> -> vector<8x4xf32>
    %673 = vector.broadcast %61 : vector<1x4xf32> to vector<8x4xf32>
    %674 = arith.addf %672, %673 : vector<8x4xf32>
    %cst_249 = arith.constant 5.000000e-01 : f32
    %675 = arith.mulf %cst_249, %655 : f32
    %676 = vector.broadcast %675 : f32 to vector<8x4xf32>
    %677 = arith.mulf %676, %674 : vector<8x4xf32>
    %678 = arith.addf %643, %677 : vector<8x4xf32>
    %cst_250 = arith.constant dense<0.000000e+00> : vector<8x20xf32>
    %679 = tpu.matmul %678, %56, %cst_250 {dimension_numbers = #tpu.dot_dimension_numbers<[1], [0], [0], [1], [0, 0, 1, 1], [], []>} : vector<8x4xf32>, vector<4x20xf32>, vector<8x20xf32> -> vector<8x20xf32>
    %680 = vector.broadcast %57 : vector<1x20xf32> to vector<8x20xf32>
    %681 = arith.addf %679, %680 : vector<8x20xf32>
    %cst_251 = arith.constant 0.000000e+00 : f32
    %682 = vector.broadcast %cst_251 : f32 to vector<8x20xf32>
    %683 = arith.cmpf ogt, %681, %682 : vector<8x20xf32>
    %684 = math.exp %681 : vector<8x20xf32>
    %cst_252 = arith.constant 1.000000e+00 : f32
    %685 = vector.broadcast %cst_252 : f32 to vector<8x20xf32>
    %686 = arith.subf %684, %685 : vector<8x20xf32>
    %687 = arith.select %683, %681, %686 : vector<8x20xi1>, vector<8x20xf32>
    %cst_253 = arith.constant dense<0.000000e+00> : vector<8x20xf32>
    %688 = tpu.matmul %687, %58, %cst_253 {dimension_numbers = #tpu.dot_dimension_numbers<[1], [0], [0], [1], [0, 0, 1, 1], [], []>} : vector<8x20xf32>, vector<20x20xf32>, vector<8x20xf32> -> vector<8x20xf32>
    %689 = vector.broadcast %59 : vector<1x20xf32> to vector<8x20xf32>
    %690 = arith.addf %688, %689 : vector<8x20xf32>
    %cst_254 = arith.constant 0.000000e+00 : f32
    %691 = vector.broadcast %cst_254 : f32 to vector<8x20xf32>
    %692 = arith.cmpf ogt, %690, %691 : vector<8x20xf32>
    %693 = math.exp %690 : vector<8x20xf32>
    %cst_255 = arith.constant 1.000000e+00 : f32
    %694 = vector.broadcast %cst_255 : f32 to vector<8x20xf32>
    %695 = arith.subf %693, %694 : vector<8x20xf32>
    %696 = arith.select %692, %690, %695 : vector<8x20xi1>, vector<8x20xf32>
    %cst_256 = arith.constant dense<0.000000e+00> : vector<8x4xf32>
    %697 = tpu.matmul %696, %60, %cst_256 {dimension_numbers = #tpu.dot_dimension_numbers<[1], [0], [0], [1], [0, 0, 1, 1], [], []>} : vector<8x20xf32>, vector<20x4xf32>, vector<8x4xf32> -> vector<8x4xf32>
    %698 = vector.broadcast %61 : vector<1x4xf32> to vector<8x4xf32>
    %699 = arith.addf %697, %698 : vector<8x4xf32>
    %cst_257 = arith.constant 5.000000e-01 : f32
    %700 = arith.mulf %cst_257, %655 : f32
    %701 = vector.broadcast %700 : f32 to vector<8x4xf32>
    %702 = arith.mulf %701, %699 : vector<8x4xf32>
    %703 = arith.addf %643, %702 : vector<8x4xf32>
    %cst_258 = arith.constant dense<0.000000e+00> : vector<8x20xf32>
    %704 = tpu.matmul %703, %56, %cst_258 {dimension_numbers = #tpu.dot_dimension_numbers<[1], [0], [0], [1], [0, 0, 1, 1], [], []>} : vector<8x4xf32>, vector<4x20xf32>, vector<8x20xf32> -> vector<8x20xf32>
    %705 = vector.broadcast %57 : vector<1x20xf32> to vector<8x20xf32>
    %706 = arith.addf %704, %705 : vector<8x20xf32>
    %cst_259 = arith.constant 0.000000e+00 : f32
    %707 = vector.broadcast %cst_259 : f32 to vector<8x20xf32>
    %708 = arith.cmpf ogt, %706, %707 : vector<8x20xf32>
    %709 = math.exp %706 : vector<8x20xf32>
    %cst_260 = arith.constant 1.000000e+00 : f32
    %710 = vector.broadcast %cst_260 : f32 to vector<8x20xf32>
    %711 = arith.subf %709, %710 : vector<8x20xf32>
    %712 = arith.select %708, %706, %711 : vector<8x20xi1>, vector<8x20xf32>
    %cst_261 = arith.constant dense<0.000000e+00> : vector<8x20xf32>
    %713 = tpu.matmul %712, %58, %cst_261 {dimension_numbers = #tpu.dot_dimension_numbers<[1], [0], [0], [1], [0, 0, 1, 1], [], []>} : vector<8x20xf32>, vector<20x20xf32>, vector<8x20xf32> -> vector<8x20xf32>
    %714 = vector.broadcast %59 : vector<1x20xf32> to vector<8x20xf32>
    %715 = arith.addf %713, %714 : vector<8x20xf32>
    %cst_262 = arith.constant 0.000000e+00 : f32
    %716 = vector.broadcast %cst_262 : f32 to vector<8x20xf32>
    %717 = arith.cmpf ogt, %715, %716 : vector<8x20xf32>
    %718 = math.exp %715 : vector<8x20xf32>
    %cst_263 = arith.constant 1.000000e+00 : f32
    %719 = vector.broadcast %cst_263 : f32 to vector<8x20xf32>
    %720 = arith.subf %718, %719 : vector<8x20xf32>
    %721 = arith.select %717, %715, %720 : vector<8x20xi1>, vector<8x20xf32>
    %cst_264 = arith.constant dense<0.000000e+00> : vector<8x4xf32>
    %722 = tpu.matmul %721, %60, %cst_264 {dimension_numbers = #tpu.dot_dimension_numbers<[1], [0], [0], [1], [0, 0, 1, 1], [], []>} : vector<8x20xf32>, vector<20x4xf32>, vector<8x4xf32> -> vector<8x4xf32>
    %723 = vector.broadcast %61 : vector<1x4xf32> to vector<8x4xf32>
    %724 = arith.addf %722, %723 : vector<8x4xf32>
    %725 = vector.broadcast %655 : f32 to vector<8x4xf32>
    %726 = arith.mulf %725, %724 : vector<8x4xf32>
    %727 = arith.addf %643, %726 : vector<8x4xf32>
    %cst_265 = arith.constant dense<0.000000e+00> : vector<8x20xf32>
    %728 = tpu.matmul %727, %56, %cst_265 {dimension_numbers = #tpu.dot_dimension_numbers<[1], [0], [0], [1], [0, 0, 1, 1], [], []>} : vector<8x4xf32>, vector<4x20xf32>, vector<8x20xf32> -> vector<8x20xf32>
    %729 = vector.broadcast %57 : vector<1x20xf32> to vector<8x20xf32>
    %730 = arith.addf %728, %729 : vector<8x20xf32>
    %cst_266 = arith.constant 0.000000e+00 : f32
    %731 = vector.broadcast %cst_266 : f32 to vector<8x20xf32>
    %732 = arith.cmpf ogt, %730, %731 : vector<8x20xf32>
    %733 = math.exp %730 : vector<8x20xf32>
    %cst_267 = arith.constant 1.000000e+00 : f32
    %734 = vector.broadcast %cst_267 : f32 to vector<8x20xf32>
    %735 = arith.subf %733, %734 : vector<8x20xf32>
    %736 = arith.select %732, %730, %735 : vector<8x20xi1>, vector<8x20xf32>
    %cst_268 = arith.constant dense<0.000000e+00> : vector<8x20xf32>
    %737 = tpu.matmul %736, %58, %cst_268 {dimension_numbers = #tpu.dot_dimension_numbers<[1], [0], [0], [1], [0, 0, 1, 1], [], []>} : vector<8x20xf32>, vector<20x20xf32>, vector<8x20xf32> -> vector<8x20xf32>
    %738 = vector.broadcast %59 : vector<1x20xf32> to vector<8x20xf32>
    %739 = arith.addf %737, %738 : vector<8x20xf32>
    %cst_269 = arith.constant 0.000000e+00 : f32
    %740 = vector.broadcast %cst_269 : f32 to vector<8x20xf32>
    %741 = arith.cmpf ogt, %739, %740 : vector<8x20xf32>
    %742 = math.exp %739 : vector<8x20xf32>
    %cst_270 = arith.constant 1.000000e+00 : f32
    %743 = vector.broadcast %cst_270 : f32 to vector<8x20xf32>
    %744 = arith.subf %742, %743 : vector<8x20xf32>
    %745 = arith.select %741, %739, %744 : vector<8x20xi1>, vector<8x20xf32>
    %cst_271 = arith.constant dense<0.000000e+00> : vector<8x4xf32>
    %746 = tpu.matmul %745, %60, %cst_271 {dimension_numbers = #tpu.dot_dimension_numbers<[1], [0], [0], [1], [0, 0, 1, 1], [], []>} : vector<8x20xf32>, vector<20x4xf32>, vector<8x4xf32> -> vector<8x4xf32>
    %747 = vector.broadcast %61 : vector<1x4xf32> to vector<8x4xf32>
    %748 = arith.addf %746, %747 : vector<8x4xf32>
    %cst_272 = arith.constant 6.000000e+00 : f32
    %749 = arith.divf %655, %cst_272 : f32
    %cst_273 = arith.constant 2.000000e+00 : f32
    %750 = vector.broadcast %cst_273 : f32 to vector<8x4xf32>
    %751 = arith.mulf %750, %699 : vector<8x4xf32>
    %752 = arith.addf %674, %751 : vector<8x4xf32>
    %cst_274 = arith.constant 2.000000e+00 : f32
    %753 = vector.broadcast %cst_274 : f32 to vector<8x4xf32>
    %754 = arith.mulf %753, %724 : vector<8x4xf32>
    %755 = arith.addf %752, %754 : vector<8x4xf32>
    %756 = arith.addf %755, %748 : vector<8x4xf32>
    %757 = vector.broadcast %749 : f32 to vector<8x4xf32>
    %758 = arith.mulf %757, %756 : vector<8x4xf32>
    %759 = arith.addf %643, %758 : vector<8x4xf32>
    %cst_275 = arith.constant dense<0.000000e+00> : vector<8x40xf32>
    %760 = tpu.matmul %759, %54, %cst_275 {dimension_numbers = #tpu.dot_dimension_numbers<[1], [0], [0], [1], [0, 0, 1, 1], [], []>} : vector<8x4xf32>, vector<4x40xf32>, vector<8x40xf32> -> vector<8x40xf32>
    %761 = vector.broadcast %55 : vector<1x40xf32> to vector<8x40xf32>
    %762 = arith.addf %760, %761 : vector<8x40xf32>
    %763 = vector.extract_strided_slice %762 {offsets = [0, 20], sizes = [8, 20], strides = [1, 1]} : vector<8x40xf32> to vector<8x20xf32>
    %cst_276 = arith.constant 0.000000e+00 : f32
    %764 = vector.broadcast %cst_276 : f32 to vector<8x20xf32>
    %765 = arith.maximumf %763, %764 : vector<8x20xf32>
    %cst_277 = arith.constant dense<0.000000e+00> : vector<8x2xf32>
    %766 = tpu.matmul %765, %62, %cst_277 {dimension_numbers = #tpu.dot_dimension_numbers<[1], [0], [0], [1], [0, 0, 1, 1], [], []>} : vector<8x20xf32>, vector<20x2xf32>, vector<8x2xf32> -> vector<8x2xf32>
    %767 = vector.broadcast %63 : vector<1x2xf32> to vector<8x2xf32>
    %768 = arith.addf %766, %767 : vector<8x2xf32>
    %c0_278 = arith.constant 0 : index
    %c24 = arith.constant 24 : index
    %769 = vector.load %arg19[%c0_278, %c24] : memref<8x32xf32, #tpu.memory_space<vmem>>, vector<8x4xf32>
    tpu.vector_store %arg19[%c0_278, %c24], %759 {strides = array<i32>} : memref<8x32xf32, #tpu.memory_space<vmem>>, vector<8x4xf32>,
    %c0_279 = arith.constant 0 : index
    %c12_280 = arith.constant 12 : index
    %770 = vector.load %arg20[%c0_279, %c12_280] : memref<8x16xf32, #tpu.memory_space<vmem>>, vector<8x2xf32>
    tpu.vector_store %arg20[%c0_279, %c12_280], %768 {strides = array<i32>} : memref<8x16xf32, #tpu.memory_space<vmem>>, vector<8x2xf32>,
    %c6_281 = arith.constant 6 : index
    %771 = memref.load %arg0[%c6_281] : memref<8xf32, #tpu.memory_space<smem>>
    %772 = vector.extract_strided_slice %762 {offsets = [0, 0], sizes = [8, 20], strides = [1, 1]} : vector<8x40xf32> to vector<8x20xf32>
    %cst_282 = arith.constant 0.000000e+00 : f32
    %773 = vector.broadcast %cst_282 : f32 to vector<8x20xf32>
    %774 = arith.cmpf ogt, %772, %773 : vector<8x20xf32>
    %775 = math.exp %772 : vector<8x20xf32>
    %cst_283 = arith.constant 1.000000e+00 : f32
    %776 = vector.broadcast %cst_283 : f32 to vector<8x20xf32>
    %777 = arith.subf %775, %776 : vector<8x20xf32>
    %778 = arith.select %774, %772, %777 : vector<8x20xi1>, vector<8x20xf32>
    %cst_284 = arith.constant dense<0.000000e+00> : vector<8x20xf32>
    %779 = tpu.matmul %778, %58, %cst_284 {dimension_numbers = #tpu.dot_dimension_numbers<[1], [0], [0], [1], [0, 0, 1, 1], [], []>} : vector<8x20xf32>, vector<20x20xf32>, vector<8x20xf32> -> vector<8x20xf32>
    %780 = vector.broadcast %59 : vector<1x20xf32> to vector<8x20xf32>
    %781 = arith.addf %779, %780 : vector<8x20xf32>
    %cst_285 = arith.constant 0.000000e+00 : f32
    %782 = vector.broadcast %cst_285 : f32 to vector<8x20xf32>
    %783 = arith.cmpf ogt, %781, %782 : vector<8x20xf32>
    %784 = math.exp %781 : vector<8x20xf32>
    %cst_286 = arith.constant 1.000000e+00 : f32
    %785 = vector.broadcast %cst_286 : f32 to vector<8x20xf32>
    %786 = arith.subf %784, %785 : vector<8x20xf32>
    %787 = arith.select %783, %781, %786 : vector<8x20xi1>, vector<8x20xf32>
    %cst_287 = arith.constant dense<0.000000e+00> : vector<8x4xf32>
    %788 = tpu.matmul %787, %60, %cst_287 {dimension_numbers = #tpu.dot_dimension_numbers<[1], [0], [0], [1], [0, 0, 1, 1], [], []>} : vector<8x20xf32>, vector<20x4xf32>, vector<8x4xf32> -> vector<8x4xf32>
    %789 = vector.broadcast %61 : vector<1x4xf32> to vector<8x4xf32>
    %790 = arith.addf %788, %789 : vector<8x4xf32>
    %cst_288 = arith.constant 5.000000e-01 : f32
    %791 = arith.mulf %cst_288, %771 : f32
    %792 = vector.broadcast %791 : f32 to vector<8x4xf32>
    %793 = arith.mulf %792, %790 : vector<8x4xf32>
    %794 = arith.addf %759, %793 : vector<8x4xf32>
    %cst_289 = arith.constant dense<0.000000e+00> : vector<8x20xf32>
    %795 = tpu.matmul %794, %56, %cst_289 {dimension_numbers = #tpu.dot_dimension_numbers<[1], [0], [0], [1], [0, 0, 1, 1], [], []>} : vector<8x4xf32>, vector<4x20xf32>, vector<8x20xf32> -> vector<8x20xf32>
    %796 = vector.broadcast %57 : vector<1x20xf32> to vector<8x20xf32>
    %797 = arith.addf %795, %796 : vector<8x20xf32>
    %cst_290 = arith.constant 0.000000e+00 : f32
    %798 = vector.broadcast %cst_290 : f32 to vector<8x20xf32>
    %799 = arith.cmpf ogt, %797, %798 : vector<8x20xf32>
    %800 = math.exp %797 : vector<8x20xf32>
    %cst_291 = arith.constant 1.000000e+00 : f32
    %801 = vector.broadcast %cst_291 : f32 to vector<8x20xf32>
    %802 = arith.subf %800, %801 : vector<8x20xf32>
    %803 = arith.select %799, %797, %802 : vector<8x20xi1>, vector<8x20xf32>
    %cst_292 = arith.constant dense<0.000000e+00> : vector<8x20xf32>
    %804 = tpu.matmul %803, %58, %cst_292 {dimension_numbers = #tpu.dot_dimension_numbers<[1], [0], [0], [1], [0, 0, 1, 1], [], []>} : vector<8x20xf32>, vector<20x20xf32>, vector<8x20xf32> -> vector<8x20xf32>
    %805 = vector.broadcast %59 : vector<1x20xf32> to vector<8x20xf32>
    %806 = arith.addf %804, %805 : vector<8x20xf32>
    %cst_293 = arith.constant 0.000000e+00 : f32
    %807 = vector.broadcast %cst_293 : f32 to vector<8x20xf32>
    %808 = arith.cmpf ogt, %806, %807 : vector<8x20xf32>
    %809 = math.exp %806 : vector<8x20xf32>
    %cst_294 = arith.constant 1.000000e+00 : f32
    %810 = vector.broadcast %cst_294 : f32 to vector<8x20xf32>
    %811 = arith.subf %809, %810 : vector<8x20xf32>
    %812 = arith.select %808, %806, %811 : vector<8x20xi1>, vector<8x20xf32>
    %cst_295 = arith.constant dense<0.000000e+00> : vector<8x4xf32>
    %813 = tpu.matmul %812, %60, %cst_295 {dimension_numbers = #tpu.dot_dimension_numbers<[1], [0], [0], [1], [0, 0, 1, 1], [], []>} : vector<8x20xf32>, vector<20x4xf32>, vector<8x4xf32> -> vector<8x4xf32>
    %814 = vector.broadcast %61 : vector<1x4xf32> to vector<8x4xf32>
    %815 = arith.addf %813, %814 : vector<8x4xf32>
    %cst_296 = arith.constant 5.000000e-01 : f32
    %816 = arith.mulf %cst_296, %771 : f32
    %817 = vector.broadcast %816 : f32 to vector<8x4xf32>
    %818 = arith.mulf %817, %815 : vector<8x4xf32>
    %819 = arith.addf %759, %818 : vector<8x4xf32>
    %cst_297 = arith.constant dense<0.000000e+00> : vector<8x20xf32>
    %820 = tpu.matmul %819, %56, %cst_297 {dimension_numbers = #tpu.dot_dimension_numbers<[1], [0], [0], [1], [0, 0, 1, 1], [], []>} : vector<8x4xf32>, vector<4x20xf32>, vector<8x20xf32> -> vector<8x20xf32>
    %821 = vector.broadcast %57 : vector<1x20xf32> to vector<8x20xf32>
    %822 = arith.addf %820, %821 : vector<8x20xf32>
    %cst_298 = arith.constant 0.000000e+00 : f32
    %823 = vector.broadcast %cst_298 : f32 to vector<8x20xf32>
    %824 = arith.cmpf ogt, %822, %823 : vector<8x20xf32>
    %825 = math.exp %822 : vector<8x20xf32>
    %cst_299 = arith.constant 1.000000e+00 : f32
    %826 = vector.broadcast %cst_299 : f32 to vector<8x20xf32>
    %827 = arith.subf %825, %826 : vector<8x20xf32>
    %828 = arith.select %824, %822, %827 : vector<8x20xi1>, vector<8x20xf32>
    %cst_300 = arith.constant dense<0.000000e+00> : vector<8x20xf32>
    %829 = tpu.matmul %828, %58, %cst_300 {dimension_numbers = #tpu.dot_dimension_numbers<[1], [0], [0], [1], [0, 0, 1, 1], [], []>} : vector<8x20xf32>, vector<20x20xf32>, vector<8x20xf32> -> vector<8x20xf32>
    %830 = vector.broadcast %59 : vector<1x20xf32> to vector<8x20xf32>
    %831 = arith.addf %829, %830 : vector<8x20xf32>
    %cst_301 = arith.constant 0.000000e+00 : f32
    %832 = vector.broadcast %cst_301 : f32 to vector<8x20xf32>
    %833 = arith.cmpf ogt, %831, %832 : vector<8x20xf32>
    %834 = math.exp %831 : vector<8x20xf32>
    %cst_302 = arith.constant 1.000000e+00 : f32
    %835 = vector.broadcast %cst_302 : f32 to vector<8x20xf32>
    %836 = arith.subf %834, %835 : vector<8x20xf32>
    %837 = arith.select %833, %831, %836 : vector<8x20xi1>, vector<8x20xf32>
    %cst_303 = arith.constant dense<0.000000e+00> : vector<8x4xf32>
    %838 = tpu.matmul %837, %60, %cst_303 {dimension_numbers = #tpu.dot_dimension_numbers<[1], [0], [0], [1], [0, 0, 1, 1], [], []>} : vector<8x20xf32>, vector<20x4xf32>, vector<8x4xf32> -> vector<8x4xf32>
    %839 = vector.broadcast %61 : vector<1x4xf32> to vector<8x4xf32>
    %840 = arith.addf %838, %839 : vector<8x4xf32>
    %841 = vector.broadcast %771 : f32 to vector<8x4xf32>
    %842 = arith.mulf %841, %840 : vector<8x4xf32>
    %843 = arith.addf %759, %842 : vector<8x4xf32>
    %cst_304 = arith.constant dense<0.000000e+00> : vector<8x20xf32>
    %844 = tpu.matmul %843, %56, %cst_304 {dimension_numbers = #tpu.dot_dimension_numbers<[1], [0], [0], [1], [0, 0, 1, 1], [], []>} : vector<8x4xf32>, vector<4x20xf32>, vector<8x20xf32> -> vector<8x20xf32>
    %845 = vector.broadcast %57 : vector<1x20xf32> to vector<8x20xf32>
    %846 = arith.addf %844, %845 : vector<8x20xf32>
    %cst_305 = arith.constant 0.000000e+00 : f32
    %847 = vector.broadcast %cst_305 : f32 to vector<8x20xf32>
    %848 = arith.cmpf ogt, %846, %847 : vector<8x20xf32>
    %849 = math.exp %846 : vector<8x20xf32>
    %cst_306 = arith.constant 1.000000e+00 : f32
    %850 = vector.broadcast %cst_306 : f32 to vector<8x20xf32>
    %851 = arith.subf %849, %850 : vector<8x20xf32>
    %852 = arith.select %848, %846, %851 : vector<8x20xi1>, vector<8x20xf32>
    %cst_307 = arith.constant dense<0.000000e+00> : vector<8x20xf32>
    %853 = tpu.matmul %852, %58, %cst_307 {dimension_numbers = #tpu.dot_dimension_numbers<[1], [0], [0], [1], [0, 0, 1, 1], [], []>} : vector<8x20xf32>, vector<20x20xf32>, vector<8x20xf32> -> vector<8x20xf32>
    %854 = vector.broadcast %59 : vector<1x20xf32> to vector<8x20xf32>
    %855 = arith.addf %853, %854 : vector<8x20xf32>
    %cst_308 = arith.constant 0.000000e+00 : f32
    %856 = vector.broadcast %cst_308 : f32 to vector<8x20xf32>
    %857 = arith.cmpf ogt, %855, %856 : vector<8x20xf32>
    %858 = math.exp %855 : vector<8x20xf32>
    %cst_309 = arith.constant 1.000000e+00 : f32
    %859 = vector.broadcast %cst_309 : f32 to vector<8x20xf32>
    %860 = arith.subf %858, %859 : vector<8x20xf32>
    %861 = arith.select %857, %855, %860 : vector<8x20xi1>, vector<8x20xf32>
    %cst_310 = arith.constant dense<0.000000e+00> : vector<8x4xf32>
    %862 = tpu.matmul %861, %60, %cst_310 {dimension_numbers = #tpu.dot_dimension_numbers<[1], [0], [0], [1], [0, 0, 1, 1], [], []>} : vector<8x20xf32>, vector<20x4xf32>, vector<8x4xf32> -> vector<8x4xf32>
    %863 = vector.broadcast %61 : vector<1x4xf32> to vector<8x4xf32>
    %864 = arith.addf %862, %863 : vector<8x4xf32>
    %cst_311 = arith.constant 6.000000e+00 : f32
    %865 = arith.divf %771, %cst_311 : f32
    %cst_312 = arith.constant 2.000000e+00 : f32
    %866 = vector.broadcast %cst_312 : f32 to vector<8x4xf32>
    %867 = arith.mulf %866, %815 : vector<8x4xf32>
    %868 = arith.addf %790, %867 : vector<8x4xf32>
    %cst_313 = arith.constant 2.000000e+00 : f32
    %869 = vector.broadcast %cst_313 : f32 to vector<8x4xf32>
    %870 = arith.mulf %869, %840 : vector<8x4xf32>
    %871 = arith.addf %868, %870 : vector<8x4xf32>
    %872 = arith.addf %871, %864 : vector<8x4xf32>
    %873 = vector.broadcast %865 : f32 to vector<8x4xf32>
    %874 = arith.mulf %873, %872 : vector<8x4xf32>
    %875 = arith.addf %759, %874 : vector<8x4xf32>
    %cst_314 = arith.constant dense<0.000000e+00> : vector<8x40xf32>
    %876 = tpu.matmul %875, %54, %cst_314 {dimension_numbers = #tpu.dot_dimension_numbers<[1], [0], [0], [1], [0, 0, 1, 1], [], []>} : vector<8x4xf32>, vector<4x40xf32>, vector<8x40xf32> -> vector<8x40xf32>
    %877 = vector.broadcast %55 : vector<1x40xf32> to vector<8x40xf32>
    %878 = arith.addf %876, %877 : vector<8x40xf32>
    %879 = vector.extract_strided_slice %878 {offsets = [0, 20], sizes = [8, 20], strides = [1, 1]} : vector<8x40xf32> to vector<8x20xf32>
    %cst_315 = arith.constant 0.000000e+00 : f32
    %880 = vector.broadcast %cst_315 : f32 to vector<8x20xf32>
    %881 = arith.maximumf %879, %880 : vector<8x20xf32>
    %cst_316 = arith.constant dense<0.000000e+00> : vector<8x2xf32>
    %882 = tpu.matmul %881, %62, %cst_316 {dimension_numbers = #tpu.dot_dimension_numbers<[1], [0], [0], [1], [0, 0, 1, 1], [], []>} : vector<8x20xf32>, vector<20x2xf32>, vector<8x2xf32> -> vector<8x2xf32>
    %883 = vector.broadcast %63 : vector<1x2xf32> to vector<8x2xf32>
    %884 = arith.addf %882, %883 : vector<8x2xf32>
    %c0_317 = arith.constant 0 : index
    %c28 = arith.constant 28 : index
    %885 = vector.load %arg19[%c0_317, %c28] : memref<8x32xf32, #tpu.memory_space<vmem>>, vector<8x4xf32>
    tpu.vector_store %arg19[%c0_317, %c28], %875 {strides = array<i32>} : memref<8x32xf32, #tpu.memory_space<vmem>>, vector<8x4xf32>,
    %c0_318 = arith.constant 0 : index
    %c14 = arith.constant 14 : index
    %886 = vector.load %arg20[%c0_318, %c14] : memref<8x16xf32, #tpu.memory_space<vmem>>, vector<8x2xf32>
    tpu.vector_store %arg20[%c0_318, %c14], %884 {strides = array<i32>} : memref<8x16xf32, #tpu.memory_space<vmem>>, vector<8x2xf32>,
    return
  }
}

</mosaic_0001>

<llo_original>
// kernel: latent_ode_forward.1
$region0: #{latent_ode_forward.1}
  #allocation0 [shape = 'u32[]', space=smem, size = 0x4, offset = 0x4, fixed_abs, tag = 'smem constant byte address 0x4 - core index']
  #allocation1 [shape = 'u32[144,128]{1,0:T(1,128)}', space=vmem, size = 0x12000, scoped, tag = 'internal scratch']
  %s0 = inlined_call_operand.vmem [shape: f32[8], index: 0, kind: input, shape index: {}]
  %s1 = inlined_call_operand.vmem [shape: f32[64,2], index: 1, kind: input, shape index: {}]
  %s2 = inlined_call_operand.vmem [shape: f32[8,4], index: 2, kind: input, shape index: {}]
  %s3 = inlined_call_operand.vmem [shape: f32[2,25], index: 3, kind: input, shape index: {}]
  %s4 = inlined_call_operand.vmem [shape: f32[1,25], index: 4, kind: input, shape index: {}]
  %s5 = inlined_call_operand.vmem [shape: f32[25,25], index: 5, kind: input, shape index: {}]
  %s6 = inlined_call_operand.vmem [shape: f32[25,8], index: 6, kind: input, shape index: {}]
  %s7 = inlined_call_operand.vmem [shape: f32[1,8], index: 7, kind: input, shape index: {}]
  %s8 = inlined_call_operand.vmem [shape: f32[4,40], index: 8, kind: input, shape index: {}]
  %s9 = inlined_call_operand.vmem [shape: f32[1,40], index: 9, kind: input, shape index: {}]
  %s10 = inlined_call_operand.vmem [shape: f32[4,20], index: 10, kind: input, shape index: {}]
  %s11 = inlined_call_operand.vmem [shape: f32[1,20], index: 11, kind: input, shape index: {}]
  %s12 = inlined_call_operand.vmem [shape: f32[20,20], index: 12, kind: input, shape index: {}]
  %s13 = inlined_call_operand.vmem [shape: f32[1,20], index: 13, kind: input, shape index: {}]
  %s14 = inlined_call_operand.vmem [shape: f32[20,4], index: 14, kind: input, shape index: {}]
  %s15 = inlined_call_operand.vmem [shape: f32[1,4], index: 15, kind: input, shape index: {}]
  %s16 = inlined_call_operand.vmem [shape: f32[20,2], index: 16, kind: input, shape index: {}]
  %s17 = inlined_call_operand.vmem [shape: f32[1,2], index: 17, kind: input, shape index: {}]
  %s18 = inlined_call_operand.vmem [shape: f32[8,8], index: 18, kind: output, shape index: {0}]
  %s19 = inlined_call_operand.vmem [shape: f32[8,32], index: 19, kind: output, shape index: {1}]
  %s20 = inlined_call_operand.vmem [shape: f32[8,16], index: 20, kind: output, shape index: {2}]
  %21 = xla_tuple %s18, %s19, %s20
  %s22 = sld [smem:[#allocation0]]
  $region102: #{latent_ode_forward.1} parent=0
    _
  %s24 = ssub.s32 1, %s22
  %s25 = scalar_select 0, %s24, %s22
  $region1: #{latent_ode_forward.1} parent=0
    #allocation2 [shape = 'u8[512]{0}', space=smem, size = 0x200, scoped, tag = 'input window, operand 0, single buffered']
    #allocation3 [shape = 's32[1]{0}', space=sflag, size = 0x4, scoped, tag = 'scoped memory for latent_ode_forward.1']
    %26 = vsyncpa [#allocation3], 0
    // Predicated region
    $region2: #{latent_ode_forward.1} parent=1 // pred_check
      _
    $region3: #{latent_ode_forward.1} parent=1 // pred_check_branch
      %28 = sbr.rel (0) target = $region5
    $region4: #{latent_ode_forward.1} parent=1 // pred_region
      %s30 = ssub.s32 16, 16
      %31 = vsyncadd [#allocation3], %s30
      %s33 = sshll.u32 %s0, 4
      %s34 = int_to_ptr.vmem [resolvable:$true] %s33
      %36 = dma.vmem_to_smem %s34, 16, [#allocation2], [#allocation3]
    $region5: #{latent_ode_forward.1} parent=1 // pred_fallthru
      _
    // Predicated region
    $region6: #{latent_ode_forward.1} parent=1 // pred_check
      _
    $region7: #{latent_ode_forward.1} parent=1 // pred_check_branch
      %38 = sbr.rel (0) target = $region9
    $region8: #{latent_ode_forward.1} parent=1 // pred_region
      _
    $region9: #{latent_ode_forward.1} parent=1 // pred_fallthru
      _
    // Predicated region
    $region10: #{latent_ode_forward.1} parent=1 // pred_check
      _
    $region11: #{latent_ode_forward.1} parent=1 // pred_check_branch
      %40 = sbr.rel (0) target = $region13
    $region12: #{latent_ode_forward.1} parent=1 // pred_region
      _
    $region13: #{latent_ode_forward.1} parent=1 // pred_fallthru
      _
    // Predicated region
    $region14: #{latent_ode_forward.1} parent=1 // pred_check
      _
    $region15: #{latent_ode_forward.1} parent=1 // pred_check_branch
      %42 = sbr.rel (0) target = $region17
    $region16: #{latent_ode_forward.1} parent=1 // pred_region
      _
    $region17: #{latent_ode_forward.1} parent=1 // pred_fallthru
      _
    // Predicated region
    $region18: #{latent_ode_forward.1} parent=1 // pred_check
      _
    $region19: #{latent_ode_forward.1} parent=1 // pred_check_branch
      %44 = sbr.rel (0) target = $region21
    $region20: #{latent_ode_forward.1} parent=1 // pred_region
      _
    $region21: #{latent_ode_forward.1} parent=1 // pred_fallthru
      _
    // Predicated region
    $region22: #{latent_ode_forward.1} parent=1 // pred_check
      _
    $region23: #{latent_ode_forward.1} parent=1 // pred_check_branch
      %46 = sbr.rel (0) target = $region25
    $region24: #{latent_ode_forward.1} parent=1 // pred_region
      _
    $region25: #{latent_ode_forward.1} parent=1 // pred_fallthru
      _
    // Predicated region
    $region26: #{latent_ode_forward.1} parent=1 // pred_check
      _
    $region27: #{latent_ode_forward.1} parent=1 // pred_check_branch
      %48 = sbr.rel (0) target = $region29
    $region28: #{latent_ode_forward.1} parent=1 // pred_region
      _
    $region29: #{latent_ode_forward.1} parent=1 // pred_fallthru
      _
    // Predicated region
    $region30: #{latent_ode_forward.1} parent=1 // pred_check
      _
    $region31: #{latent_ode_forward.1} parent=1 // pred_check_branch
      %50 = sbr.rel (0) target = $region33
    $region32: #{latent_ode_forward.1} parent=1 // pred_region
      _
    $region33: #{latent_ode_forward.1} parent=1 // pred_fallthru
      _
    // Predicated region
    $region34: #{latent_ode_forward.1} parent=1 // pred_check
      _
    $region35: #{latent_ode_forward.1} parent=1 // pred_check_branch
      %52 = sbr.rel (0) target = $region37
    $region36: #{latent_ode_forward.1} parent=1 // pred_region
      _
    $region37: #{latent_ode_forward.1} parent=1 // pred_fallthru
      _
    // Predicated region
    $region38: #{latent_ode_forward.1} parent=1 // pred_check
      _
    $region39: #{latent_ode_forward.1} parent=1 // pred_check_branch
      %54 = sbr.rel (0) target = $region41
    $region40: #{latent_ode_forward.1} parent=1 // pred_region
      _
    $region41: #{latent_ode_forward.1} parent=1 // pred_fallthru
      _
    // Predicated region
    $region42: #{latent_ode_forward.1} parent=1 // pred_check
      _
    $region43: #{latent_ode_forward.1} parent=1 // pred_check_branch
      %56 = sbr.rel (0) target = $region45
    $region44: #{latent_ode_forward.1} parent=1 // pred_region
      _
    $region45: #{latent_ode_forward.1} parent=1 // pred_fallthru
      _
    // Predicated region
    $region46: #{latent_ode_forward.1} parent=1 // pred_check
      _
    $region47: #{latent_ode_forward.1} parent=1 // pred_check_branch
      %58 = sbr.rel (0) target = $region49
    $region48: #{latent_ode_forward.1} parent=1 // pred_region
      _
    $region49: #{latent_ode_forward.1} parent=1 // pred_fallthru
      _
    // Predicated region
    $region50: #{latent_ode_forward.1} parent=1 // pred_check
      _
    $region51: #{latent_ode_forward.1} parent=1 // pred_check_branch
      %60 = sbr.rel (0) target = $region53
    $region52: #{latent_ode_forward.1} parent=1 // pred_region
      _
    $region53: #{latent_ode_forward.1} parent=1 // pred_fallthru
      _
    // Predicated region
    $region54: #{latent_ode_forward.1} parent=1 // pred_check
      _
    $region55: #{latent_ode_forward.1} parent=1 // pred_check_branch
      %62 = sbr.rel (0) target = $region57
    $region56: #{latent_ode_forward.1} parent=1 // pred_region
      _
    $region57: #{latent_ode_forward.1} parent=1 // pred_fallthru
      _
    // Predicated region
    $region58: #{latent_ode_forward.1} parent=1 // pred_check
      _
    $region59: #{latent_ode_forward.1} parent=1 // pred_check_branch
      %64 = sbr.rel (0) target = $region61
    $region60: #{latent_ode_forward.1} parent=1 // pred_region
      _
    $region61: #{latent_ode_forward.1} parent=1 // pred_fallthru
      _
    // Predicated region
    $region62: #{latent_ode_forward.1} parent=1 // pred_check
      _
    $region63: #{latent_ode_forward.1} parent=1 // pred_check_branch
      %66 = sbr.rel (0) target = $region65
    $region64: #{latent_ode_forward.1} parent=1 // pred_region
      _
    $region65: #{latent_ode_forward.1} parent=1 // pred_fallthru
      _
    // Predicated region
    $region66: #{latent_ode_forward.1} parent=1 // pred_check
      _
    $region67: #{latent_ode_forward.1} parent=1 // pred_check_branch
      %68 = sbr.rel (0) target = $region69
    $region68: #{latent_ode_forward.1} parent=1 // pred_region
      _
    $region69: #{latent_ode_forward.1} parent=1 // pred_fallthru
      _
    // Predicated region
    $region70: #{latent_ode_forward.1} parent=1 // pred_check
      _
    $region71: #{latent_ode_forward.1} parent=1 // pred_check_branch
      %70 = sbr.rel (0) target = $region73
    $region72: #{latent_ode_forward.1} parent=1 // pred_region
      _
    $region73: #{latent_ode_forward.1} parent=1 // pred_fallthru
      _
    // Predicated region
    $region74: #{latent_ode_forward.1} parent=1 // pred_check
      _
    $region75: #{latent_ode_forward.1} parent=1 // pred_check_branch
      %72 = sbr.rel (0) target = $region77
    $region76: #{latent_ode_forward.1} parent=1 // pred_region
      %73 = dma.done [#allocation3], 16
    $region77: #{latent_ode_forward.1} parent=1 // pred_fallthru
      _
    %74 = sfence
    %v75 = vld [vmem:[%s1] sm:$0xff]
    %v76 = vld [vmem:[%s1 + $0x8] sm:$0xff]
    %v77 = vld [vmem:[%s1 + $0x10] sm:$0xff]
    %v78 = vld [vmem:[%s1 + $0x18] sm:$0xff]
    %v79 = vld [vmem:[%s1 + $0x20] sm:$0xff]
    %v80 = vld [vmem:[%s1 + $0x28] sm:$0xff]
    %v81 = vld [vmem:[%s1 + $0x30] sm:$0xff]
    %v82 = vld [vmem:[%s1 + $0x38] sm:$0xff]
    %v83 = vld [vmem:[%s3] sm:$0x3]
    %v84 = vld [vmem:[%s4] sm:$0x1]
    %v86 = vlaneseq
    %v87 = vshrl.u32 %v86, 7
    %v88 = vsub.s32 0, %v87
    %v89 = vrot.slane %v84, %v88
    %vm91 = vcmask 15360
    %v93 = vsel %vm91, %v75, 0
    %v96 = vsel %vm91, %v76, 0
    %v99 = vsel %vm91, %v77, 0
    %v102 = vsel %vm91, %v78, 0
    %v105 = vsel %vm91, %v79, 0
    %v108 = vsel %vm91, %v80, 0
    %v111 = vsel %vm91, %v81, 0
    %v114 = vsel %vm91, %v82, 0
    %vm116 = vcmask 1041408
    %v118 = vsel %vm116, %v83, 0
    %120 = vmatprep.subr.mxu0 0.0
    %121 = vmatpush1.msra.mxu0 %v118
    %122 = vmatprep.subr.mxu0 0.0
    %123 = vmatpush1.msra.mxu0 0.0
    %124 = vmatprep.subr.mxu0 0.0
    %125 = vmatpush1.msra.mxu0 0.0
    %126 = vmatprep.subr.mxu0 0.0
    %127 = vmatpush1.msra.mxu0 0.0
    %128 = vmatprep.subr.mxu0 0.0
    %129 = vmatpush1.msra.mxu0 0.0
    %130 = vmatprep.subr.mxu0 0.0
    %131 = vmatpush1.msra.mxu0 0.0
    %132 = vmatprep.subr.mxu0 0.0
    %133 = vmatpush1.msra.mxu0 0.0
    %134 = vmatprep.subr.mxu0 0.0
    %135 = vmatpush1.msra.mxu0 0.0
    %136 = vmatprep.subr.mxu0 0.0
    %137 = vmatpush1.msra.mxu0 0.0
    %138 = vmatprep.subr.mxu0 0.0
    %139 = vmatpush1.msra.mxu0 0.0
    %140 = vmatprep.subr.mxu0 0.0
    %141 = vmatpush1.msra.mxu0 0.0
    %142 = vmatprep.subr.mxu0 0.0
    %143 = vmatpush1.msra.mxu0 0.0
    %144 = vmatprep.subr.mxu0 0.0
    %145 = vmatpush1.msra.mxu0 0.0
    %146 = vmatprep.subr.mxu0 0.0
    %147 = vmatpush1.msra.mxu0 0.0
    %148 = vmatprep.subr.mxu0 0.0
    %149 = vmatpush1.msra.mxu0 0.0
    %150 = vmatprep.subr.mxu0 0.0
    %151 = vmatpush1.msra.mxu0 0.0
    %152 = vmatprep.subr.mxu0 0.0
    %153 = vmatpush1.msra.mxu0 0.0
    %154 = vmatprep.subr.mxu0 0.0
    %155 = vmatpush1.msra.mxu0 0.0
    %156 = vmatprep.subr.mxu0 0.0
    %157 = vmatpush1.msra.mxu0 0.0
    %158 = vmatprep.subr.mxu0 0.0
    %159 = vmatpush1.msra.mxu0 0.0
    %160 = vmatprep.subr.mxu0 0.0
    %161 = vmatpush1.msra.mxu0 0.0
    %162 = vmatprep.subr.mxu0 0.0
    %163 = vmatpush1.msra.mxu0 0.0
    %164 = vmatprep.subr.mxu0 0.0
    %165 = vmatpush1.msra.mxu0 0.0
    %166 = vmatprep.subr.mxu0 0.0
    %167 = vmatpush1.msra.mxu0 0.0
    %168 = vmatprep.subr.mxu0 0.0
    %169 = vmatpush1.msra.mxu0 0.0
    %170 = vmatprep.subr.mxu0 0.0
    %171 = vmatpush1.msra.mxu0 0.0
    %172 = vmatprep.subr.mxu0 0.0
    %173 = vmatpush1.msra.mxu0 0.0
    %174 = vmatprep.subr.mxu0 0.0
    %175 = vmatpush1.msra.mxu0 0.0
    %176 = vmatprep.subr.mxu0 0.0
    %177 = vmatpush1.msra.mxu0 0.0
    %178 = vmatprep.subr.mxu0 0.0
    %179 = vmatpush1.msra.mxu0 0.0
    %180 = vmatprep.subr.mxu0 0.0
    %181 = vmatpush1.msra.mxu0 0.0
    %182 = vmatprep.subr.mxu0 0.0
    %183 = vmatpush1.msra.mxu0 0.0
    %184 = vmatprep.mubr.f32.mxu0 0.0
    %185 = vmatmul.mubr.f32.gmra.mrb[0].mxu0 %v93
    %v186 = vpop.f32.mrb[0].mxu0
    %v187 = vadd.f32 %v89, %v186
    %v188 = vpop.f32.mrb[0].mxu0
    %189 = vmatprep.mubr.f32.mxu0 0.0
    %190 = vmatmul.mubr.f32.gmra.mrb[0].mxu0 %v96
    %v191 = vpop.f32.mrb[0].mxu0
    %v192 = vadd.f32 %v89, %v191
    %v193 = vpop.f32.mrb[0].mxu0
    %194 = vmatprep.mubr.f32.mxu0 0.0
    %195 = vmatmul.mubr.f32.gmra.mrb[0].mxu0 %v99
    %v196 = vpop.f32.mrb[0].mxu0
    %v197 = vadd.f32 %v89, %v196
    %v198 = vpop.f32.mrb[0].mxu0
    %199 = vmatprep.mubr.f32.mxu0 0.0
    %200 = vmatmul.mubr.f32.gmra.mrb[0].mxu0 %v102
    %v201 = vpop.f32.mrb[0].mxu0
    %v202 = vadd.f32 %v89, %v201
    %v203 = vpop.f32.mrb[0].mxu0
    %204 = vmatprep.mubr.f32.mxu0 0.0
    %205 = vmatmul.mubr.f32.gmra.mrb[0].mxu0 %v105
    %v206 = vpop.f32.mrb[0].mxu0
    %v207 = vadd.f32 %v89, %v206
    %v208 = vpop.f32.mrb[0].mxu0
    %209 = vmatprep.mubr.f32.mxu0 0.0
    %210 = vmatmul.mubr.f32.gmra.mrb[0].mxu0 %v108
    %v211 = vpop.f32.mrb[0].mxu0
    %v212 = vadd.f32 %v89, %v211
    %v213 = vpop.f32.mrb[0].mxu0
    %214 = vmatprep.mubr.f32.mxu0 0.0
    %215 = vmatmul.mubr.f32.gmra.mrb[0].mxu0 %v111
    %v216 = vpop.f32.mrb[0].mxu0
    %v217 = vadd.f32 %v89, %v216
    %v218 = vpop.f32.mrb[0].mxu0
    %219 = vmatprep.mubr.f32.mxu0 0.0
    %220 = vmatmul.mubr.f32.gmra.mrb[0].mxu0 %v114
    %v221 = vpop.f32.mrb[0].mxu0
    %v222 = vadd.f32 %v89, %v221
    %v223 = vpop.f32.mrb[0].mxu0
    %224 = vdwg.mxu0
    %v225 = vld [vmem:[%s5] sm:$0xff]
    %v226 = vld [vmem:[%s5 + $0x8] sm:$0xff]
    %v227 = vld [vmem:[%s5 + $0x10] sm:$0xff]
    %v228 = vld [vmem:[%s5 + $0x18] sm:$0x1]
    %vm229 = vcmask 203776
    %v231 = vsel %vm229, 0.0, 0
    %vm233 = vcmask 1040384
    %v235 = vsel %vm233, %v228, 0
    %237 = vmatprep.subr.mxu0 0.0
    %238 = vmatpush1.msra.mxu0 %v225
    %239 = vmatprep.subr.mxu0 0.0
    %240 = vmatpush1.msra.mxu0 %v226
    %241 = vmatprep.subr.mxu0 0.0
    %242 = vmatpush1.msra.mxu0 %v227
    %243 = vmatprep.subr.mxu0 0.0
    %244 = vmatpush1.msra.mxu0 %v235
    %245 = vmatprep.subr.mxu0 0.0
    %246 = vmatpush1.msra.mxu0 0.0
    %247 = vmatprep.subr.mxu0 0.0
    %248 = vmatpush1.msra.mxu0 0.0
    %249 = vmatprep.subr.mxu0 0.0
    %250 = vmatpush1.msra.mxu0 0.0
    %251 = vmatprep.subr.mxu0 0.0
    %252 = vmatpush1.msra.mxu0 0.0
    %253 = vmatprep.subr.mxu0 0.0
    %254 = vmatpush1.msra.mxu0 0.0
    %255 = vmatprep.subr.mxu0 0.0
    %256 = vmatpush1.msra.mxu0 0.0
    %257 = vmatprep.subr.mxu0 0.0
    %258 = vmatpush1.msra.mxu0 0.0
    %259 = vmatprep.subr.mxu0 0.0
    %260 = vmatpush1.msra.mxu0 0.0
    %261 = vmatprep.subr.mxu0 0.0
    %262 = vmatpush1.msra.mxu0 0.0
    %263 = vmatprep.subr.mxu0 0.0
    %264 = vmatpush1.msra.mxu0 0.0
    %265 = vmatprep.subr.mxu0 0.0
    %266 = vmatpush1.msra.mxu0 0.0
    %267 = vmatprep.subr.mxu0 0.0
    %268 = vmatpush1.msra.mxu0 0.0
    %269 = vmatprep.subr.mxu0 0.0
    %270 = vmatpush1.msra.mxu0 0.0
    %271 = vmatprep.subr.mxu0 0.0
    %272 = vmatpush1.msra.mxu0 0.0
    %273 = vmatprep.subr.mxu0 0.0
    %274 = vmatpush1.msra.mxu0 0.0
    %275 = vmatprep.subr.mxu0 0.0
    %276 = vmatpush1.msra.mxu0 0.0
    %277 = vmatprep.subr.mxu0 0.0
    %278 = vmatpush1.msra.mxu0 0.0
    %279 = vmatprep.subr.mxu0 0.0
    %280 = vmatpush1.msra.mxu0 0.0
    %281 = vmatprep.subr.mxu0 0.0
    %282 = vmatpush1.msra.mxu0 0.0
    %283 = vmatprep.subr.mxu0 0.0
    %284 = vmatpush1.msra.mxu0 0.0
    %285 = vmatprep.subr.mxu0 0.0
    %286 = vmatpush1.msra.mxu0 0.0
    %287 = vmatprep.subr.mxu0 0.0
    %288 = vmatpush1.msra.mxu0 0.0
    %289 = vmatprep.subr.mxu0 0.0
    %290 = vmatpush1.msra.mxu0 0.0
    %291 = vmatprep.subr.mxu0 0.0
    %292 = vmatpush1.msra.mxu0 0.0
    %293 = vmatprep.subr.mxu0 0.0
    %294 = vmatpush1.msra.mxu0 0.0
    %295 = vmatprep.subr.mxu0 0.0
    %296 = vmatpush1.msra.mxu0 0.0
    %297 = vmatprep.subr.mxu0 0.0
    %298 = vmatpush1.msra.mxu0 0.0
    %299 = vmatprep.subr.mxu0 0.0
    %300 = vmatpush1.msra.mxu0 0.0
    %301 = vmatprep.mubr.f32.mxu0 0.0
    %302 = vmatmul.mubr.f32.gmra.mrb[0].mxu0 %v231
    %v303 = vpop.f32.mrb[0].mxu0
    %v304 = vadd.f32 0.0, %v303
    %v305 = vpop.f32.mrb[0].mxu0
    %306 = vdwg.mxu0
    %v307 = vadd.f32 %v187, %v304
    %v308 = vtanh.pop %v307
    %v310 = vsel %vm229, %v308, 0
    %312 = vmatprep.subr.mxu0 0.0
    %313 = vmatpush1.msra.mxu0 %v225
    %314 = vmatprep.subr.mxu0 0.0
    %315 = vmatpush1.msra.mxu0 %v226
    %316 = vmatprep.subr.mxu0 0.0
    %317 = vmatpush1.msra.mxu0 %v227
    %318 = vmatprep.subr.mxu0 0.0
    %319 = vmatpush1.msra.mxu0 %v235
    %320 = vmatprep.subr.mxu0 0.0
    %321 = vmatpush1.msra.mxu0 0.0
    %322 = vmatprep.subr.mxu0 0.0
    %323 = vmatpush1.msra.mxu0 0.0
    %324 = vmatprep.subr.mxu0 0.0
    %325 = vmatpush1.msra.mxu0 0.0
    %326 = vmatprep.subr.mxu0 0.0
    %327 = vmatpush1.msra.mxu0 0.0
    %328 = vmatprep.subr.mxu0 0.0
    %329 = vmatpush1.msra.mxu0 0.0
    %330 = vmatprep.subr.mxu0 0.0
    %331 = vmatpush1.msra.mxu0 0.0
    %332 = vmatprep.subr.mxu0 0.0
    %333 = vmatpush1.msra.mxu0 0.0
    %334 = vmatprep.subr.mxu0 0.0
    %335 = vmatpush1.msra.mxu0 0.0
    %336 = vmatprep.subr.mxu0 0.0
    %337 = vmatpush1.msra.mxu0 0.0
    %338 = vmatprep.subr.mxu0 0.0
    %339 = vmatpush1.msra.mxu0 0.0
    %340 = vmatprep.subr.mxu0 0.0
    %341 = vmatpush1.msra.mxu0 0.0
    %342 = vmatprep.subr.mxu0 0.0
    %343 = vmatpush1.msra.mxu0 0.0
    %344 = vmatprep.subr.mxu0 0.0
    %345 = vmatpush1.msra.mxu0 0.0
    %346 = vmatprep.subr.mxu0 0.0
    %347 = vmatpush1.msra.mxu0 0.0
    %348 = vmatprep.subr.mxu0 0.0
    %349 = vmatpush1.msra.mxu0 0.0
    %350 = vmatprep.subr.mxu0 0.0
    %351 = vmatpush1.msra.mxu0 0.0
    %352 = vmatprep.subr.mxu0 0.0
    %353 = vmatpush1.msra.mxu0 0.0
    %354 = vmatprep.subr.mxu0 0.0
    %355 = vmatpush1.msra.mxu0 0.0
    %356 = vmatprep.subr.mxu0 0.0
    %357 = vmatpush1.msra.mxu0 0.0
    %358 = vmatprep.subr.mxu0 0.0
    %359 = vmatpush1.msra.mxu0 0.0
    %360 = vmatprep.subr.mxu0 0.0
    %361 = vmatpush1.msra.mxu0 0.0
    %362 = vmatprep.subr.mxu0 0.0
    %363 = vmatpush1.msra.mxu0 0.0
    %364 = vmatprep.subr.mxu0 0.0
    %365 = vmatpush1.msra.mxu0 0.0
    %366 = vmatprep.subr.mxu0 0.0
    %367 = vmatpush1.msra.mxu0 0.0
    %368 = vmatprep.subr.mxu0 0.0
    %369 = vmatpush1.msra.mxu0 0.0
    %370 = vmatprep.subr.mxu0 0.0
    %371 = vmatpush1.msra.mxu0 0.0
    %372 = vmatprep.subr.mxu0 0.0
    %373 = vmatpush1.msra.mxu0 0.0
    %374 = vmatprep.subr.mxu0 0.0
    %375 = vmatpush1.msra.mxu0 0.0
    %376 = vmatprep.mubr.f32.mxu0 0.0
    %377 = vmatmul.mubr.f32.gmra.mrb[0].mxu0 %v310
    %v378 = vpop.f32.mrb[0].mxu0
    %v379 = vadd.f32 0.0, %v378
    %v380 = vpop.f32.mrb[0].mxu0
    %381 = vdwg.mxu0
    %v382 = vadd.f32 %v192, %v379
    %v383 = vtanh.pop %v382
    %v385 = vsel %vm229, %v383, 0
    %387 = vmatprep.subr.mxu0 0.0
    %388 = vmatpush1.msra.mxu0 %v225
    %389 = vmatprep.subr.mxu0 0.0
    %390 = vmatpush1.msra.mxu0 %v226
    %391 = vmatprep.subr.mxu0 0.0
    %392 = vmatpush1.msra.mxu0 %v227
    %393 = vmatprep.subr.mxu0 0.0
    %394 = vmatpush1.msra.mxu0 %v235
    %395 = vmatprep.subr.mxu0 0.0
    %396 = vmatpush1.msra.mxu0 0.0
    %397 = vmatprep.subr.mxu0 0.0
    %398 = vmatpush1.msra.mxu0 0.0
    %399 = vmatprep.subr.mxu0 0.0
    %400 = vmatpush1.msra.mxu0 0.0
    %401 = vmatprep.subr.mxu0 0.0
    %402 = vmatpush1.msra.mxu0 0.0
    %403 = vmatprep.subr.mxu0 0.0
    %404 = vmatpush1.msra.mxu0 0.0
    %405 = vmatprep.subr.mxu0 0.0
    %406 = vmatpush1.msra.mxu0 0.0
    %407 = vmatprep.subr.mxu0 0.0
    %408 = vmatpush1.msra.mxu0 0.0
    %409 = vmatprep.subr.mxu0 0.0
    %410 = vmatpush1.msra.mxu0 0.0
    %411 = vmatprep.subr.mxu0 0.0
    %412 = vmatpush1.msra.mxu0 0.0
    %413 = vmatprep.subr.mxu0 0.0
    %414 = vmatpush1.msra.mxu0 0.0
    %415 = vmatprep.subr.mxu0 0.0
    %416 = vmatpush1.msra.mxu0 0.0
    %417 = vmatprep.subr.mxu0 0.0
    %418 = vmatpush1.msra.mxu0 0.0
    %419 = vmatprep.subr.mxu0 0.0
    %420 = vmatpush1.msra.mxu0 0.0
    %421 = vmatprep.subr.mxu0 0.0
    %422 = vmatpush1.msra.mxu0 0.0
    %423 = vmatprep.subr.mxu0 0.0
    %424 = vmatpush1.msra.mxu0 0.0
    %425 = vmatprep.subr.mxu0 0.0
    %426 = vmatpush1.msra.mxu0 0.0
    %427 = vmatprep.subr.mxu0 0.0
    %428 = vmatpush1.msra.mxu0 0.0
    %429 = vmatprep.subr.mxu0 0.0
    %430 = vmatpush1.msra.mxu0 0.0
    %431 = vmatprep.subr.mxu0 0.0
    %432 = vmatpush1.msra.mxu0 0.0
    %433 = vmatprep.subr.mxu0 0.0
    %434 = vmatpush1.msra.mxu0 0.0
    %435 = vmatprep.subr.mxu0 0.0
    %436 = vmatpush1.msra.mxu0 0.0
    %437 = vmatprep.subr.mxu0 0.0
    %438 = vmatpush1.msra.mxu0 0.0
    %439 = vmatprep.subr.mxu0 0.0
    %440 = vmatpush1.msra.mxu0 0.0
    %441 = vmatprep.subr.mxu0 0.0
    %442 = vmatpush1.msra.mxu0 0.0
    %443 = vmatprep.subr.mxu0 0.0
    %444 = vmatpush1.msra.mxu0 0.0
    %445 = vmatprep.subr.mxu0 0.0
    %446 = vmatpush1.msra.mxu0 0.0
    %447 = vmatprep.subr.mxu0 0.0
    %448 = vmatpush1.msra.mxu0 0.0
    %449 = vmatprep.subr.mxu0 0.0
    %450 = vmatpush1.msra.mxu0 0.0
    %451 = vmatprep.mubr.f32.mxu0 0.0
    %452 = vmatmul.mubr.f32.gmra.mrb[0].mxu0 %v385
    %v453 = vpop.f32.mrb[0].mxu0
    %v454 = vadd.f32 0.0, %v453
    %v455 = vpop.f32.mrb[0].mxu0
    %456 = vdwg.mxu0
    %v457 = vadd.f32 %v197, %v454
    %v458 = vtanh.pop %v457
    %v460 = vsel %vm229, %v458, 0
    %462 = vmatprep.subr.mxu0 0.0
    %463 = vmatpush1.msra.mxu0 %v225
    %464 = vmatprep.subr.mxu0 0.0
    %465 = vmatpush1.msra.mxu0 %v226
    %466 = vmatprep.subr.mxu0 0.0
    %467 = vmatpush1.msra.mxu0 %v227
    %468 = vmatprep.subr.mxu0 0.0
    %469 = vmatpush1.msra.mxu0 %v235
    %470 = vmatprep.subr.mxu0 0.0
    %471 = vmatpush1.msra.mxu0 0.0
    %472 = vmatprep.subr.mxu0 0.0
    %473 = vmatpush1.msra.mxu0 0.0
    %474 = vmatprep.subr.mxu0 0.0
    %475 = vmatpush1.msra.mxu0 0.0
    %476 = vmatprep.subr.mxu0 0.0
    %477 = vmatpush1.msra.mxu0 0.0
    %478 = vmatprep.subr.mxu0 0.0
    %479 = vmatpush1.msra.mxu0 0.0
    %480 = vmatprep.subr.mxu0 0.0
    %481 = vmatpush1.msra.mxu0 0.0
    %482 = vmatprep.subr.mxu0 0.0
    %483 = vmatpush1.msra.mxu0 0.0
    %484 = vmatprep.subr.mxu0 0.0
    %485 = vmatpush1.msra.mxu0 0.0
    %486 = vmatprep.subr.mxu0 0.0
    %487 = vmatpush1.msra.mxu0 0.0
    %488 = vmatprep.subr.mxu0 0.0
    %489 = vmatpush1.msra.mxu0 0.0
    %490 = vmatprep.subr.mxu0 0.0
    %491 = vmatpush1.msra.mxu0 0.0
    %492 = vmatprep.subr.mxu0 0.0
    %493 = vmatpush1.msra.mxu0 0.0
    %494 = vmatprep.subr.mxu0 0.0
    %495 = vmatpush1.msra.mxu0 0.0
    %496 = vmatprep.subr.mxu0 0.0
    %497 = vmatpush1.msra.mxu0 0.0
    %498 = vmatprep.subr.mxu0 0.0
    %499 = vmatpush1.msra.mxu0 0.0
    %500 = vmatprep.subr.mxu0 0.0
    %501 = vmatpush1.msra.mxu0 0.0
    %502 = vmatprep.subr.mxu0 0.0
    %503 = vmatpush1.msra.mxu0 0.0
    %504 = vmatprep.subr.mxu0 0.0
    %505 = vmatpush1.msra.mxu0 0.0
    %506 = vmatprep.subr.mxu0 0.0
    %507 = vmatpush1.msra.mxu0 0.0
    %508 = vmatprep.subr.mxu0 0.0
    %509 = vmatpush1.msra.mxu0 0.0
    %510 = vmatprep.subr.mxu0 0.0
    %511 = vmatpush1.msra.mxu0 0.0
    %512 = vmatprep.subr.mxu0 0.0
    %513 = vmatpush1.msra.mxu0 0.0
    %514 = vmatprep.subr.mxu0 0.0
    %515 = vmatpush1.msra.mxu0 0.0
    %516 = vmatprep.subr.mxu0 0.0
    %517 = vmatpush1.msra.mxu0 0.0
    %518 = vmatprep.subr.mxu0 0.0
    %519 = vmatpush1.msra.mxu0 0.0
    %520 = vmatprep.subr.mxu0 0.0
    %521 = vmatpush1.msra.mxu0 0.0
    %522 = vmatprep.subr.mxu0 0.0
    %523 = vmatpush1.msra.mxu0 0.0
    %524 = vmatprep.subr.mxu0 0.0
    %525 = vmatpush1.msra.mxu0 0.0
    %526 = vmatprep.mubr.f32.mxu0 0.0
    %527 = vmatmul.mubr.f32.gmra.mrb[0].mxu0 %v460
    %v528 = vpop.f32.mrb[0].mxu0
    %v529 = vadd.f32 0.0, %v528
    %v530 = vpop.f32.mrb[0].mxu0
    %531 = vdwg.mxu0
    %v532 = vadd.f32 %v202, %v529
    %v533 = vtanh.pop %v532
    %v535 = vsel %vm229, %v533, 0
    %537 = vmatprep.subr.mxu0 0.0
    %538 = vmatpush1.msra.mxu0 %v225
    %539 = vmatprep.subr.mxu0 0.0
    %540 = vmatpush1.msra.mxu0 %v226
    %541 = vmatprep.subr.mxu0 0.0
    %542 = vmatpush1.msra.mxu0 %v227
    %543 = vmatprep.subr.mxu0 0.0
    %544 = vmatpush1.msra.mxu0 %v235
    %545 = vmatprep.subr.mxu0 0.0
    %546 = vmatpush1.msra.mxu0 0.0
    %547 = vmatprep.subr.mxu0 0.0
    %548 = vmatpush1.msra.mxu0 0.0
    %549 = vmatprep.subr.mxu0 0.0
    %550 = vmatpush1.msra.mxu0 0.0
    %551 = vmatprep.subr.mxu0 0.0
    %552 = vmatpush1.msra.mxu0 0.0
    %553 = vmatprep.subr.mxu0 0.0
    %554 = vmatpush1.msra.mxu0 0.0
    %555 = vmatprep.subr.mxu0 0.0
    %556 = vmatpush1.msra.mxu0 0.0
    %557 = vmatprep.subr.mxu0 0.0
    %558 = vmatpush1.msra.mxu0 0.0
    %559 = vmatprep.subr.mxu0 0.0
    %560 = vmatpush1.msra.mxu0 0.0
    %561 = vmatprep.subr.mxu0 0.0
    %562 = vmatpush1.msra.mxu0 0.0
    %563 = vmatprep.subr.mxu0 0.0
    %564 = vmatpush1.msra.mxu0 0.0
    %565 = vmatprep.subr.mxu0 0.0
    %566 = vmatpush1.msra.mxu0 0.0
    %567 = vmatprep.subr.mxu0 0.0
    %568 = vmatpush1.msra.mxu0 0.0
    %569 = vmatprep.subr.mxu0 0.0
    %570 = vmatpush1.msra.mxu0 0.0
    %571 = vmatprep.subr.mxu0 0.0
    %572 = vmatpush1.msra.mxu0 0.0
    %573 = vmatprep.subr.mxu0 0.0
    %574 = vmatpush1.msra.mxu0 0.0
    %575 = vmatprep.subr.mxu0 0.0
    %576 = vmatpush1.msra.mxu0 0.0
    %577 = vmatprep.subr.mxu0 0.0
    %578 = vmatpush1.msra.mxu0 0.0
    %579 = vmatprep.subr.mxu0 0.0
    %580 = vmatpush1.msra.mxu0 0.0
    %581 = vmatprep.subr.mxu0 0.0
    %582 = vmatpush1.msra.mxu0 0.0
    %583 = vmatprep.subr.mxu0 0.0
    %584 = vmatpush1.msra.mxu0 0.0
    %585 = vmatprep.subr.mxu0 0.0
    %586 = vmatpush1.msra.mxu0 0.0
    %587 = vmatprep.subr.mxu0 0.0
    %588 = vmatpush1.msra.mxu0 0.0
    %589 = vmatprep.subr.mxu0 0.0
    %590 = vmatpush1.msra.mxu0 0.0
    %591 = vmatprep.subr.mxu0 0.0
    %592 = vmatpush1.msra.mxu0 0.0
    %593 = vmatprep.subr.mxu0 0.0
    %594 = vmatpush1.msra.mxu0 0.0
    %595 = vmatprep.subr.mxu0 0.0
    %596 = vmatpush1.msra.mxu0 0.0
    %597 = vmatprep.subr.mxu0 0.0
    %598 = vmatpush1.msra.mxu0 0.0
    %599 = vmatprep.subr.mxu0 0.0
    %600 = vmatpush1.msra.mxu0 0.0
    %601 = vmatprep.mubr.f32.mxu0 0.0
    %602 = vmatmul.mubr.f32.gmra.mrb[0].mxu0 %v535
    %v603 = vpop.f32.mrb[0].mxu0
    %v604 = vadd.f32 0.0, %v603
    %v605 = vpop.f32.mrb[0].mxu0
    %606 = vdwg.mxu0
    %v607 = vadd.f32 %v207, %v604
    %v608 = vtanh.pop %v607
    %v610 = vsel %vm229, %v608, 0
    %612 = vmatprep.subr.mxu0 0.0
    %613 = vmatpush1.msra.mxu0 %v225
    %614 = vmatprep.subr.mxu0 0.0
    %615 = vmatpush1.msra.mxu0 %v226
    %616 = vmatprep.subr.mxu0 0.0
    %617 = vmatpush1.msra.mxu0 %v227
    %618 = vmatprep.subr.mxu0 0.0
    %619 = vmatpush1.msra.mxu0 %v235
    %620 = vmatprep.subr.mxu0 0.0
    %621 = vmatpush1.msra.mxu0 0.0
    %622 = vmatprep.subr.mxu0 0.0
    %623 = vmatpush1.msra.mxu0 0.0
    %624 = vmatprep.subr.mxu0 0.0
    %625 = vmatpush1.msra.mxu0 0.0
    %626 = vmatprep.subr.mxu0 0.0
    %627 = vmatpush1.msra.mxu0 0.0
    %628 = vmatprep.subr.mxu0 0.0
    %629 = vmatpush1.msra.mxu0 0.0
    %630 = vmatprep.subr.mxu0 0.0
    %631 = vmatpush1.msra.mxu0 0.0
    %632 = vmatprep.subr.mxu0 0.0
    %633 = vmatpush1.msra.mxu0 0.0
    %634 = vmatprep.subr.mxu0 0.0
    %635 = vmatpush1.msra.mxu0 0.0
    %636 = vmatprep.subr.mxu0 0.0
    %637 = vmatpush1.msra.mxu0 0.0
    %638 = vmatprep.subr.mxu0 0.0
    %639 = vmatpush1.msra.mxu0 0.0
    %640 = vmatprep.subr.mxu0 0.0
    %641 = vmatpush1.msra.mxu0 0.0
    %642 = vmatprep.subr.mxu0 0.0
    %643 = vmatpush1.msra.mxu0 0.0
    %644 = vmatprep.subr.mxu0 0.0
    %645 = vmatpush1.msra.mxu0 0.0
    %646 = vmatprep.subr.mxu0 0.0
    %647 = vmatpush1.msra.mxu0 0.0
    %648 = vmatprep.subr.mxu0 0.0
    %649 = vmatpush1.msra.mxu0 0.0
    %650 = vmatprep.subr.mxu0 0.0
    %651 = vmatpush1.msra.mxu0 0.0
    %652 = vmatprep.subr.mxu0 0.0
    %653 = vmatpush1.msra.mxu0 0.0
    %654 = vmatprep.subr.mxu0 0.0
    %655 = vmatpush1.msra.mxu0 0.0
    %656 = vmatprep.subr.mxu0 0.0
    %657 = vmatpush1.msra.mxu0 0.0
    %658 = vmatprep.subr.mxu0 0.0
    %659 = vmatpush1.msra.mxu0 0.0
    %660 = vmatprep.subr.mxu0 0.0
    %661 = vmatpush1.msra.mxu0 0.0
    %662 = vmatprep.subr.mxu0 0.0
    %663 = vmatpush1.msra.mxu0 0.0
    %664 = vmatprep.subr.mxu0 0.0
    %665 = vmatpush1.msra.mxu0 0.0
    %666 = vmatprep.subr.mxu0 0.0
    %667 = vmatpush1.msra.mxu0 0.0
    %668 = vmatprep.subr.mxu0 0.0
    %669 = vmatpush1.msra.mxu0 0.0
    %670 = vmatprep.subr.mxu0 0.0
    %671 = vmatpush1.msra.mxu0 0.0
    %672 = vmatprep.subr.mxu0 0.0
    %673 = vmatpush1.msra.mxu0 0.0
    %674 = vmatprep.subr.mxu0 0.0
    %675 = vmatpush1.msra.mxu0 0.0
    %676 = vmatprep.mubr.f32.mxu0 0.0
    %677 = vmatmul.mubr.f32.gmra.mrb[0].mxu0 %v610
    %v678 = vpop.f32.mrb[0].mxu0
    %v679 = vadd.f32 0.0, %v678
    %v680 = vpop.f32.mrb[0].mxu0
    %681 = vdwg.mxu0
    %v682 = vadd.f32 %v212, %v679
    %v683 = vtanh.pop %v682
    %v685 = vsel %vm229, %v683, 0
    %687 = vmatprep.subr.mxu0 0.0
    %688 = vmatpush1.msra.mxu0 %v225
    %689 = vmatprep.subr.mxu0 0.0
    %690 = vmatpush1.msra.mxu0 %v226
    %691 = vmatprep.subr.mxu0 0.0
    %692 = vmatpush1.msra.mxu0 %v227
    %693 = vmatprep.subr.mxu0 0.0
    %694 = vmatpush1.msra.mxu0 %v235
    %695 = vmatprep.subr.mxu0 0.0
    %696 = vmatpush1.msra.mxu0 0.0
    %697 = vmatprep.subr.mxu0 0.0
    %698 = vmatpush1.msra.mxu0 0.0
    %699 = vmatprep.subr.mxu0 0.0
    %700 = vmatpush1.msra.mxu0 0.0
    %701 = vmatprep.subr.mxu0 0.0
    %702 = vmatpush1.msra.mxu0 0.0
    %703 = vmatprep.subr.mxu0 0.0
    %704 = vmatpush1.msra.mxu0 0.0
    %705 = vmatprep.subr.mxu0 0.0
    %706 = vmatpush1.msra.mxu0 0.0
    %707 = vmatprep.subr.mxu0 0.0
    %708 = vmatpush1.msra.mxu0 0.0
    %709 = vmatprep.subr.mxu0 0.0
    %710 = vmatpush1.msra.mxu0 0.0
    %711 = vmatprep.subr.mxu0 0.0
    %712 = vmatpush1.msra.mxu0 0.0
    %713 = vmatprep.subr.mxu0 0.0
    %714 = vmatpush1.msra.mxu0 0.0
    %715 = vmatprep.subr.mxu0 0.0
    %716 = vmatpush1.msra.mxu0 0.0
    %717 = vmatprep.subr.mxu0 0.0
    %718 = vmatpush1.msra.mxu0 0.0
    %719 = vmatprep.subr.mxu0 0.0
    %720 = vmatpush1.msra.mxu0 0.0
    %721 = vmatprep.subr.mxu0 0.0
    %722 = vmatpush1.msra.mxu0 0.0
    %723 = vmatprep.subr.mxu0 0.0
    %724 = vmatpush1.msra.mxu0 0.0
    %725 = vmatprep.subr.mxu0 0.0
    %726 = vmatpush1.msra.mxu0 0.0
    %727 = vmatprep.subr.mxu0 0.0
    %728 = vmatpush1.msra.mxu0 0.0
    %729 = vmatprep.subr.mxu0 0.0
    %730 = vmatpush1.msra.mxu0 0.0
    %731 = vmatprep.subr.mxu0 0.0
    %732 = vmatpush1.msra.mxu0 0.0
    %733 = vmatprep.subr.mxu0 0.0
    %734 = vmatpush1.msra.mxu0 0.0
    %735 = vmatprep.subr.mxu0 0.0
    %736 = vmatpush1.msra.mxu0 0.0
    %737 = vmatprep.subr.mxu0 0.0
    %738 = vmatpush1.msra.mxu0 0.0
    %739 = vmatprep.subr.mxu0 0.0
    %740 = vmatpush1.msra.mxu0 0.0
    %741 = vmatprep.subr.mxu0 0.0
    %742 = vmatpush1.msra.mxu0 0.0
    %743 = vmatprep.subr.mxu0 0.0
    %744 = vmatpush1.msra.mxu0 0.0
    %745 = vmatprep.subr.mxu0 0.0
    %746 = vmatpush1.msra.mxu0 0.0
    %747 = vmatprep.subr.mxu0 0.0
    %748 = vmatpush1.msra.mxu0 0.0
    %749 = vmatprep.subr.mxu0 0.0
    %750 = vmatpush1.msra.mxu0 0.0
    %751 = vmatprep.mubr.f32.mxu0 0.0
    %752 = vmatmul.mubr.f32.gmra.mrb[0].mxu0 %v685
    %v753 = vpop.f32.mrb[0].mxu0
    %v754 = vadd.f32 0.0, %v753
    %v755 = vpop.f32.mrb[0].mxu0
    %756 = vdwg.mxu0
    %v757 = vadd.f32 %v217, %v754
    %v758 = vtanh.pop %v757
    %v760 = vsel %vm229, %v758, 0
    %762 = vmatprep.subr.mxu0 0.0
    %763 = vmatpush1.msra.mxu0 %v225
    %764 = vmatprep.subr.mxu0 0.0
    %765 = vmatpush1.msra.mxu0 %v226
    %766 = vmatprep.subr.mxu0 0.0
    %767 = vmatpush1.msra.mxu0 %v227
    %768 = vmatprep.subr.mxu0 0.0
    %769 = vmatpush1.msra.mxu0 %v235
    %770 = vmatprep.subr.mxu0 0.0
    %771 = vmatpush1.msra.mxu0 0.0
    %772 = vmatprep.subr.mxu0 0.0
    %773 = vmatpush1.msra.mxu0 0.0
    %774 = vmatprep.subr.mxu0 0.0
    %775 = vmatpush1.msra.mxu0 0.0
    %776 = vmatprep.subr.mxu0 0.0
    %777 = vmatpush1.msra.mxu0 0.0
    %778 = vmatprep.subr.mxu0 0.0
    %779 = vmatpush1.msra.mxu0 0.0
    %780 = vmatprep.subr.mxu0 0.0
    %781 = vmatpush1.msra.mxu0 0.0
    %782 = vmatprep.subr.mxu0 0.0
    %783 = vmatpush1.msra.mxu0 0.0
    %784 = vmatprep.subr.mxu0 0.0
    %785 = vmatpush1.msra.mxu0 0.0
    %786 = vmatprep.subr.mxu0 0.0
    %787 = vmatpush1.msra.mxu0 0.0
    %788 = vmatprep.subr.mxu0 0.0
    %789 = vmatpush1.msra.mxu0 0.0
    %790 = vmatprep.subr.mxu0 0.0
    %791 = vmatpush1.msra.mxu0 0.0
    %792 = vmatprep.subr.mxu0 0.0
    %793 = vmatpush1.msra.mxu0 0.0
    %794 = vmatprep.subr.mxu0 0.0
    %795 = vmatpush1.msra.mxu0 0.0
    %796 = vmatprep.subr.mxu0 0.0
    %797 = vmatpush1.msra.mxu0 0.0
    %798 = vmatprep.subr.mxu0 0.0
    %799 = vmatpush1.msra.mxu0 0.0
    %800 = vmatprep.subr.mxu0 0.0
    %801 = vmatpush1.msra.mxu0 0.0
    %802 = vmatprep.subr.mxu0 0.0
    %803 = vmatpush1.msra.mxu0 0.0
    %804 = vmatprep.subr.mxu0 0.0
    %805 = vmatpush1.msra.mxu0 0.0
    %806 = vmatprep.subr.mxu0 0.0
    %807 = vmatpush1.msra.mxu0 0.0
    %808 = vmatprep.subr.mxu0 0.0
    %809 = vmatpush1.msra.mxu0 0.0
    %810 = vmatprep.subr.mxu0 0.0
    %811 = vmatpush1.msra.mxu0 0.0
    %812 = vmatprep.subr.mxu0 0.0
    %813 = vmatpush1.msra.mxu0 0.0
    %814 = vmatprep.subr.mxu0 0.0
    %815 = vmatpush1.msra.mxu0 0.0
    %816 = vmatprep.subr.mxu0 0.0
    %817 = vmatpush1.msra.mxu0 0.0
    %818 = vmatprep.subr.mxu0 0.0
    %819 = vmatpush1.msra.mxu0 0.0
    %820 = vmatprep.subr.mxu0 0.0
    %821 = vmatpush1.msra.mxu0 0.0
    %822 = vmatprep.subr.mxu0 0.0
    %823 = vmatpush1.msra.mxu0 0.0
    %824 = vmatprep.subr.mxu0 0.0
    %825 = vmatpush1.msra.mxu0 0.0
    %826 = vmatprep.mubr.f32.mxu0 0.0
    %827 = vmatmul.mubr.f32.gmra.mrb[0].mxu0 %v760
    %v828 = vpop.f32.mrb[0].mxu0
    %v829 = vadd.f32 0.0, %v828
    %v830 = vpop.f32.mrb[0].mxu0
    %831 = vdwg.mxu0
    %v832 = vadd.f32 %v222, %v829
    %v833 = vtanh.pop %v832
    %v834 = vld [vmem:[%s6] sm:$0xff]
    %v835 = vld [vmem:[%s6 + $0x8] sm:$0xff]
    %v836 = vld [vmem:[%s6 + $0x10] sm:$0xff]
    %v837 = vld [vmem:[%s6 + $0x18] sm:$0x1]
    %v838 = vld [vmem:[%s7] sm:$0x1]
    %v840 = vlaneseq
    %v841 = vshrl.u32 %v840, 7
    %v842 = vsub.s32 0, %v841
    %v843 = vrot.slane %v838, %v842
    %v846 = vsel %vm229, %v833, 0
    %v849 = vsel %vm233, %v837, 0
    %851 = vmatprep.subr.mxu0 0.0
    %852 = vmatpush1.msra.mxu0 %v834
    %853 = vmatprep.subr.mxu0 0.0
    %854 = vmatpush1.msra.mxu0 %v835
    %855 = vmatprep.subr.mxu0 0.0
    %856 = vmatpush1.msra.mxu0 %v836
    %857 = vmatprep.subr.mxu0 0.0
    %858 = vmatpush1.msra.mxu0 %v849
    %859 = vmatprep.subr.mxu0 0.0
    %860 = vmatpush1.msra.mxu0 0.0
    %861 = vmatprep.subr.mxu0 0.0
    %862 = vmatpush1.msra.mxu0 0.0
    %863 = vmatprep.subr.mxu0 0.0
    %864 = vmatpush1.msra.mxu0 0.0
    %865 = vmatprep.subr.mxu0 0.0
    %866 = vmatpush1.msra.mxu0 0.0
    %867 = vmatprep.subr.mxu0 0.0
    %868 = vmatpush1.msra.mxu0 0.0
    %869 = vmatprep.subr.mxu0 0.0
    %870 = vmatpush1.msra.mxu0 0.0
    %871 = vmatprep.subr.mxu0 0.0
    %872 = vmatpush1.msra.mxu0 0.0
    %873 = vmatprep.subr.mxu0 0.0
    %874 = vmatpush1.msra.mxu0 0.0
    %875 = vmatprep.subr.mxu0 0.0
    %876 = vmatpush1.msra.mxu0 0.0
    %877 = vmatprep.subr.mxu0 0.0
    %878 = vmatpush1.msra.mxu0 0.0
    %879 = vmatprep.subr.mxu0 0.0
    %880 = vmatpush1.msra.mxu0 0.0
    %881 = vmatprep.subr.mxu0 0.0
    %882 = vmatpush1.msra.mxu0 0.0
    %883 = vmatprep.subr.mxu0 0.0
    %884 = vmatpush1.msra.mxu0 0.0
    %885 = vmatprep.subr.mxu0 0.0
    %886 = vmatpush1.msra.mxu0 0.0
    %887 = vmatprep.subr.mxu0 0.0
    %888 = vmatpush1.msra.mxu0 0.0
    %889 = vmatprep.subr.mxu0 0.0
    %890 = vmatpush1.msra.mxu0 0.0
    %891 = vmatprep.subr.mxu0 0.0
    %892 = vmatpush1.msra.mxu0 0.0
    %893 = vmatprep.subr.mxu0 0.0
    %894 = vmatpush1.msra.mxu0 0.0
    %895 = vmatprep.subr.mxu0 0.0
    %896 = vmatpush1.msra.mxu0 0.0
    %897 = vmatprep.subr.mxu0 0.0
    %898 = vmatpush1.msra.mxu0 0.0
    %899 = vmatprep.subr.mxu0 0.0
    %900 = vmatpush1.msra.mxu0 0.0
    %901 = vmatprep.subr.mxu0 0.0
    %902 = vmatpush1.msra.mxu0 0.0
    %903 = vmatprep.subr.mxu0 0.0
    %904 = vmatpush1.msra.mxu0 0.0
    %905 = vmatprep.subr.mxu0 0.0
    %906 = vmatpush1.msra.mxu0 0.0
    %907 = vmatprep.subr.mxu0 0.0
    %908 = vmatpush1.msra.mxu0 0.0
    %909 = vmatprep.subr.mxu0 0.0
    %910 = vmatpush1.msra.mxu0 0.0
    %911 = vmatprep.subr.mxu0 0.0
    %912 = vmatpush1.msra.mxu0 0.0
    %913 = vmatprep.subr.mxu0 0.0
    %914 = vmatpush1.msra.mxu0 0.0
    %915 = vmatprep.mubr.f32.mxu0 0.0
    %916 = vmatmul.mubr.f32.gmra.mrb[0].mxu0 %v846
    %v917 = vpop.f32.mrb[0].mxu0
    %v918 = vadd.f32 %v843, %v917
    %v919 = vpop.f32.mrb[0].mxu0
    %920 = vdwg.mxu0
    %vm921 = vcmask 64512
    %922 = vst.msk [vmem:[%s18] sm:$0xff] %vm921, %v918
    %v923 = vld [vmem:[%s2] sm:$0xff]
    %v924 = vmul.f32 %v918, 0.5
    %v925 = vmul.f32 %v924, 1.442695
    %v926 = vpow.pop %v925
    %928 = vrot.lane.b32.xlu0 %v926, 124
    %v929 = vpop.permute.xlu0 %928
    %v931 = vmul.f32 %v923, %v929
    %v932 = vadd.f32 %v931, %v918
    %v933 = vld [vmem:[%s8] sm:$0xf]
    %v934 = vld [vmem:[%s9] sm:$0x1]
    %v935 = vld [vmem:[%s10] sm:$0xf]
    %v936 = vld [vmem:[%s11] sm:$0x1]
    %v937 = vld [vmem:[%s12] sm:$0xff]
    %v938 = vld [vmem:[%s12 + $0x8] sm:$0xff]
    %v939 = vld [vmem:[%s12 + $0x10] sm:$0xf]
    %v940 = vld [vmem:[%s13] sm:$0x1]
    %v941 = vld [vmem:[%s14] sm:$0xff]
    %v942 = vld [vmem:[%s14 + $0x8] sm:$0xff]
    %v943 = vld [vmem:[%s14 + $0x10] sm:$0xf]
    %v944 = vld [vmem:[%s15] sm:$0x1]
    %v945 = vld [vmem:[%s16] sm:$0xff]
    %v946 = vld [vmem:[%s16 + $0x8] sm:$0xff]
    %v947 = vld [vmem:[%s16 + $0x10] sm:$0xf]
    %v948 = vld [vmem:[%s17] sm:$0x1]
    %v950 = vlaneseq
    %v951 = vshrl.u32 %v950, 7
    %v952 = vsub.s32 0, %v951
    %v953 = vrot.slane %v934, %v952
    %vm955 = vcmask 31744
    %v957 = vsel %vm955, %v932, 0
    %vm959 = vcmask 1043456
    %v961 = vsel %vm959, %v933, 0
    %963 = vmatprep.subr.mxu0 0.0
    %964 = vmatpush1.msra.mxu0 %v961
    %965 = vmatprep.subr.mxu0 0.0
    %966 = vmatpush1.msra.mxu0 0.0
    %967 = vmatprep.subr.mxu0 0.0
    %968 = vmatpush1.msra.mxu0 0.0
    %969 = vmatprep.subr.mxu0 0.0
    %970 = vmatpush1.msra.mxu0 0.0
    %971 = vmatprep.subr.mxu0 0.0
    %972 = vmatpush1.msra.mxu0 0.0
    %973 = vmatprep.subr.mxu0 0.0
    %974 = vmatpush1.msra.mxu0 0.0
    %975 = vmatprep.subr.mxu0 0.0
    %976 = vmatpush1.msra.mxu0 0.0
    %977 = vmatprep.subr.mxu0 0.0
    %978 = vmatpush1.msra.mxu0 0.0
    %979 = vmatprep.subr.mxu0 0.0
    %980 = vmatpush1.msra.mxu0 0.0
    %981 = vmatprep.subr.mxu0 0.0
    %982 = vmatpush1.msra.mxu0 0.0
    %983 = vmatprep.subr.mxu0 0.0
    %984 = vmatpush1.msra.mxu0 0.0
    %985 = vmatprep.subr.mxu0 0.0
    %986 = vmatpush1.msra.mxu0 0.0
    %987 = vmatprep.subr.mxu0 0.0
    %988 = vmatpush1.msra.mxu0 0.0
    %989 = vmatprep.subr.mxu0 0.0
    %990 = vmatpush1.msra.mxu0 0.0
    %991 = vmatprep.subr.mxu0 0.0
    %992 = vmatpush1.msra.mxu0 0.0
    %993 = vmatprep.subr.mxu0 0.0
    %994 = vmatpush1.msra.mxu0 0.0
    %995 = vmatprep.subr.mxu0 0.0
    %996 = vmatpush1.msra.mxu0 0.0
    %997 = vmatprep.subr.mxu0 0.0
    %998 = vmatpush1.msra.mxu0 0.0
    %999 = vmatprep.subr.mxu0 0.0
    %1000 = vmatpush1.msra.mxu0 0.0
    %1001 = vmatprep.subr.mxu0 0.0
    %1002 = vmatpush1.msra.mxu0 0.0
    %1003 = vmatprep.subr.mxu0 0.0
    %1004 = vmatpush1.msra.mxu0 0.0
    %1005 = vmatprep.subr.mxu0 0.0
    %1006 = vmatpush1.msra.mxu0 0.0
    %1007 = vmatprep.subr.mxu0 0.0
    %1008 = vmatpush1.msra.mxu0 0.0
    %1009 = vmatprep.subr.mxu0 0.0
    %1010 = vmatpush1.msra.mxu0 0.0
    %1011 = vmatprep.subr.mxu0 0.0
    %1012 = vmatpush1.msra.mxu0 0.0
    %1013 = vmatprep.subr.mxu0 0.0
    %1014 = vmatpush1.msra.mxu0 0.0
    %1015 = vmatprep.subr.mxu0 0.0
    %1016 = vmatpush1.msra.mxu0 0.0
    %1017 = vmatprep.subr.mxu0 0.0
    %1018 = vmatpush1.msra.mxu0 0.0
    %1019 = vmatprep.subr.mxu0 0.0
    %1020 = vmatpush1.msra.mxu0 0.0
    %1021 = vmatprep.subr.mxu0 0.0
    %1022 = vmatpush1.msra.mxu0 0.0
    %1023 = vmatprep.subr.mxu0 0.0
    %1024 = vmatpush1.msra.mxu0 0.0
    %1025 = vmatprep.subr.mxu0 0.0
    %1026 = vmatpush1.msra.mxu0 0.0
    %1027 = vmatprep.mubr.f32.mxu0 0.0
    %1028 = vmatmul.mubr.f32.gmra.mrb[0].mxu0 %v957
    %v1029 = vpop.f32.mrb[0].mxu0
    %v1030 = vadd.f32 %v953, %v1029
    %v1031 = vpop.f32.mrb[0].mxu0
    %1032 = vdwg.mxu0
    %v1033 = vmax.f32 %v1030, 0.0
    %v1035 = vlaneseq
    %v1036 = vshrl.u32 %v1035, 7
    %v1037 = vsub.s32 0, %v1036
    %v1038 = vrot.slane %v948, %v1037
    %1041 = vrot.lane.b32.xlu0 %v1033, 108
    %v1042 = vpop.permute.xlu0 %1041
    %vm1043 = vcmask 162816
    %v1044 = vsel %vm1043, %v1042, 0
    %v1047 = vsel %vm959, %v947, 0
    %1049 = vmatprep.subr.mxu0 0.0
    %1050 = vmatpush1.msra.mxu0 %v945
    %1051 = vmatprep.subr.mxu0 0.0
    %1052 = vmatpush1.msra.mxu0 %v946
    %1053 = vmatprep.subr.mxu0 0.0
    %1054 = vmatpush1.msra.mxu0 %v1047
    %1055 = vmatprep.subr.mxu0 0.0
    %1056 = vmatpush1.msra.mxu0 0.0
    %1057 = vmatprep.subr.mxu0 0.0
    %1058 = vmatpush1.msra.mxu0 0.0
    %1059 = vmatprep.subr.mxu0 0.0
    %1060 = vmatpush1.msra.mxu0 0.0
    %1061 = vmatprep.subr.mxu0 0.0
    %1062 = vmatpush1.msra.mxu0 0.0
    %1063 = vmatprep.subr.mxu0 0.0
    %1064 = vmatpush1.msra.mxu0 0.0
    %1065 = vmatprep.subr.mxu0 0.0
    %1066 = vmatpush1.msra.mxu0 0.0
    %1067 = vmatprep.subr.mxu0 0.0
    %1068 = vmatpush1.msra.mxu0 0.0
    %1069 = vmatprep.subr.mxu0 0.0
    %1070 = vmatpush1.msra.mxu0 0.0
    %1071 = vmatprep.subr.mxu0 0.0
    %1072 = vmatpush1.msra.mxu0 0.0
    %1073 = vmatprep.subr.mxu0 0.0
    %1074 = vmatpush1.msra.mxu0 0.0
    %1075 = vmatprep.subr.mxu0 0.0
    %1076 = vmatpush1.msra.mxu0 0.0
    %1077 = vmatprep.subr.mxu0 0.0
    %1078 = vmatpush1.msra.mxu0 0.0
    %1079 = vmatprep.subr.mxu0 0.0
    %1080 = vmatpush1.msra.mxu0 0.0
    %1081 = vmatprep.subr.mxu0 0.0
    %1082 = vmatpush1.msra.mxu0 0.0
    %1083 = vmatprep.subr.mxu0 0.0
    %1084 = vmatpush1.msra.mxu0 0.0
    %1085 = vmatprep.subr.mxu0 0.0
    %1086 = vmatpush1.msra.mxu0 0.0
    %1087 = vmatprep.subr.mxu0 0.0
    %1088 = vmatpush1.msra.mxu0 0.0
    %1089 = vmatprep.subr.mxu0 0.0
    %1090 = vmatpush1.msra.mxu0 0.0
    %1091 = vmatprep.subr.mxu0 0.0
    %1092 = vmatpush1.msra.mxu0 0.0
    %1093 = vmatprep.subr.mxu0 0.0
    %1094 = vmatpush1.msra.mxu0 0.0
    %1095 = vmatprep.subr.mxu0 0.0
    %1096 = vmatpush1.msra.mxu0 0.0
    %1097 = vmatprep.subr.mxu0 0.0
    %1098 = vmatpush1.msra.mxu0 0.0
    %1099 = vmatprep.subr.mxu0 0.0
    %1100 = vmatpush1.msra.mxu0 0.0
    %1101 = vmatprep.subr.mxu0 0.0
    %1102 = vmatpush1.msra.mxu0 0.0
    %1103 = vmatprep.subr.mxu0 0.0
    %1104 = vmatpush1.msra.mxu0 0.0
    %1105 = vmatprep.subr.mxu0 0.0
    %1106 = vmatpush1.msra.mxu0 0.0
    %1107 = vmatprep.subr.mxu0 0.0
    %1108 = vmatpush1.msra.mxu0 0.0
    %1109 = vmatprep.subr.mxu0 0.0
    %1110 = vmatpush1.msra.mxu0 0.0
    %1111 = vmatprep.subr.mxu0 0.0
    %1112 = vmatpush1.msra.mxu0 0.0
    %1113 = vmatprep.mubr.f32.mxu0 0.0
    %1114 = vmatmul.mubr.f32.gmra.mrb[0].mxu0 %v1044
    %v1115 = vpop.f32.mrb[0].mxu0
    %v1116 = vadd.f32 %v1038, %v1115
    %v1117 = vpop.f32.mrb[0].mxu0
    %1118 = vdwg.mxu0
    %1119 = vst.msk [vmem:[%s19] sm:$0xff] %vm955, %v932
    %1120 = vst.msk [vmem:[%s20] sm:$0xff] %vm91, %v1116
    %s1121 = sld [smem:[#allocation2]]
    %vm1122 = vcmp.gt.f32.partialorder %v1030, 0.0
    %v1123 = vmul.f32 %v1030, 1.442695
    %v1124 = vpow.pop %v1123
    %v1125 = vsub.f32 %v1124, 1.0
    %v1126 = vsel %vm1122, %v1030, %v1125
    %v1128 = vlaneseq
    %v1129 = vshrl.u32 %v1128, 7
    %v1130 = vsub.s32 0, %v1129
    %v1131 = vrot.slane %v940, %v1130
    %v1134 = vsel %vm1043, %v1126, 0
    %v1137 = vsel %vm959, %v939, 0
    %1139 = vmatprep.subr.mxu0 0.0
    %1140 = vmatpush1.msra.mxu0 %v937
    %1141 = vmatprep.subr.mxu0 0.0
    %1142 = vmatpush1.msra.mxu0 %v938
    %1143 = vmatprep.subr.mxu0 0.0
    %1144 = vmatpush1.msra.mxu0 %v1137
    %1145 = vmatprep.subr.mxu0 0.0
    %1146 = vmatpush1.msra.mxu0 0.0
    %1147 = vmatprep.subr.mxu0 0.0
    %1148 = vmatpush1.msra.mxu0 0.0
    %1149 = vmatprep.subr.mxu0 0.0
    %1150 = vmatpush1.msra.mxu0 0.0
    %1151 = vmatprep.subr.mxu0 0.0
    %1152 = vmatpush1.msra.mxu0 0.0
    %1153 = vmatprep.subr.mxu0 0.0
    %1154 = vmatpush1.msra.mxu0 0.0
    %1155 = vmatprep.subr.mxu0 0.0
    %1156 = vmatpush1.msra.mxu0 0.0
    %1157 = vmatprep.subr.mxu0 0.0
    %1158 = vmatpush1.msra.mxu0 0.0
    %1159 = vmatprep.subr.mxu0 0.0
    %1160 = vmatpush1.msra.mxu0 0.0
    %1161 = vmatprep.subr.mxu0 0.0
    %1162 = vmatpush1.msra.mxu0 0.0
    %1163 = vmatprep.subr.mxu0 0.0
    %1164 = vmatpush1.msra.mxu0 0.0
    %1165 = vmatprep.subr.mxu0 0.0
    %1166 = vmatpush1.msra.mxu0 0.0
    %1167 = vmatprep.subr.mxu0 0.0
    %1168 = vmatpush1.msra.mxu0 0.0
    %1169 = vmatprep.subr.mxu0 0.0
    %1170 = vmatpush1.msra.mxu0 0.0
    %1171 = vmatprep.subr.mxu0 0.0
    %1172 = vmatpush1.msra.mxu0 0.0
    %1173 = vmatprep.subr.mxu0 0.0
    %1174 = vmatpush1.msra.mxu0 0.0
    %1175 = vmatprep.subr.mxu0 0.0
    %1176 = vmatpush1.msra.mxu0 0.0
    %1177 = vmatprep.subr.mxu0 0.0
    %1178 = vmatpush1.msra.mxu0 0.0
    %1179 = vmatprep.subr.mxu0 0.0
    %1180 = vmatpush1.msra.mxu0 0.0
    %1181 = vmatprep.subr.mxu0 0.0
    %1182 = vmatpush1.msra.mxu0 0.0
    %1183 = vmatprep.subr.mxu0 0.0
    %1184 = vmatpush1.msra.mxu0 0.0
    %1185 = vmatprep.subr.mxu0 0.0
    %1186 = vmatpush1.msra.mxu0 0.0
    %1187 = vmatprep.subr.mxu0 0.0
    %1188 = vmatpush1.msra.mxu0 0.0
    %1189 = vmatprep.subr.mxu0 0.0
    %1190 = vmatpush1.msra.mxu0 0.0
    %1191 = vmatprep.subr.mxu0 0.0
    %1192 = vmatpush1.msra.mxu0 0.0
    %1193 = vmatprep.subr.mxu0 0.0
    %1194 = vmatpush1.msra.mxu0 0.0
    %1195 = vmatprep.subr.mxu0 0.0
    %1196 = vmatpush1.msra.mxu0 0.0
    %1197 = vmatprep.subr.mxu0 0.0
    %1198 = vmatpush1.msra.mxu0 0.0
    %1199 = vmatprep.subr.mxu0 0.0
    %1200 = vmatpush1.msra.mxu0 0.0
    %1201 = vmatprep.subr.mxu0 0.0
    %1202 = vmatpush1.msra.mxu0 0.0
    %1203 = vmatprep.mubr.f32.mxu0 0.0
    %1204 = vmatmul.mubr.f32.gmra.mrb[0].mxu0 %v1134
    %v1205 = vpop.f32.mrb[0].mxu0
    %v1206 = vadd.f32 %v1131, %v1205
    %v1207 = vpop.f32.mrb[0].mxu0
    %1208 = vdwg.mxu0
    %vm1209 = vcmp.gt.f32.partialorder %v1206, 0.0
    %v1210 = vmul.f32 %v1206, 1.442695
    %v1211 = vpow.pop %v1210
    %v1212 = vsub.f32 %v1211, 1.0
    %v1213 = vsel %vm1209, %v1206, %v1212
    %v1215 = vlaneseq
    %v1216 = vshrl.u32 %v1215, 7
    %v1217 = vsub.s32 0, %v1216
    %v1218 = vrot.slane %v944, %v1217
    %v1221 = vsel %vm1043, %v1213, 0
    %v1224 = vsel %vm959, %v943, 0
    %1226 = vmatprep.subr.mxu0 0.0
    %1227 = vmatpush1.msra.mxu0 %v941
    %1228 = vmatprep.subr.mxu0 0.0
    %1229 = vmatpush1.msra.mxu0 %v942
    %1230 = vmatprep.subr.mxu0 0.0
    %1231 = vmatpush1.msra.mxu0 %v1224
    %1232 = vmatprep.subr.mxu0 0.0
    %1233 = vmatpush1.msra.mxu0 0.0
    %1234 = vmatprep.subr.mxu0 0.0
    %1235 = vmatpush1.msra.mxu0 0.0
    %1236 = vmatprep.subr.mxu0 0.0
    %1237 = vmatpush1.msra.mxu0 0.0
    %1238 = vmatprep.subr.mxu0 0.0
    %1239 = vmatpush1.msra.mxu0 0.0
    %1240 = vmatprep.subr.mxu0 0.0
    %1241 = vmatpush1.msra.mxu0 0.0
    %1242 = vmatprep.subr.mxu0 0.0
    %1243 = vmatpush1.msra.mxu0 0.0
    %1244 = vmatprep.subr.mxu0 0.0
    %1245 = vmatpush1.msra.mxu0 0.0
    %1246 = vmatprep.subr.mxu0 0.0
    %1247 = vmatpush1.msra.mxu0 0.0
    %1248 = vmatprep.subr.mxu0 0.0
    %1249 = vmatpush1.msra.mxu0 0.0
    %1250 = vmatprep.subr.mxu0 0.0
    %1251 = vmatpush1.msra.mxu0 0.0
    %1252 = vmatprep.subr.mxu0 0.0
    %1253 = vmatpush1.msra.mxu0 0.0
    %1254 = vmatprep.subr.mxu0 0.0
    %1255 = vmatpush1.msra.mxu0 0.0
    %1256 = vmatprep.subr.mxu0 0.0
    %1257 = vmatpush1.msra.mxu0 0.0
    %1258 = vmatprep.subr.mxu0 0.0
    %1259 = vmatpush1.msra.mxu0 0.0
    %1260 = vmatprep.subr.mxu0 0.0
    %1261 = vmatpush1.msra.mxu0 0.0
    %1262 = vmatprep.subr.mxu0 0.0
    %1263 = vmatpush1.msra.mxu0 0.0
    %1264 = vmatprep.subr.mxu0 0.0
    %1265 = vmatpush1.msra.mxu0 0.0
    %1266 = vmatprep.subr.mxu0 0.0
    %1267 = vmatpush1.msra.mxu0 0.0
    %1268 = vmatprep.subr.mxu0 0.0
    %1269 = vmatpush1.msra.mxu0 0.0
    %1270 = vmatprep.subr.mxu0 0.0
    %1271 = vmatpush1.msra.mxu0 0.0
    %1272 = vmatprep.subr.mxu0 0.0
    %1273 = vmatpush1.msra.mxu0 0.0
    %1274 = vmatprep.subr.mxu0 0.0
    %1275 = vmatpush1.msra.mxu0 0.0
    %1276 = vmatprep.subr.mxu0 0.0
    %1277 = vmatpush1.msra.mxu0 0.0
    %1278 = vmatprep.subr.mxu0 0.0
    %1279 = vmatpush1.msra.mxu0 0.0
    %1280 = vmatprep.subr.mxu0 0.0
    %1281 = vmatpush1.msra.mxu0 0.0
    %1282 = vmatprep.subr.mxu0 0.0
    %1283 = vmatpush1.msra.mxu0 0.0
    %1284 = vmatprep.subr.mxu0 0.0
    %1285 = vmatpush1.msra.mxu0 0.0
    %1286 = vmatprep.subr.mxu0 0.0
    %1287 = vmatpush1.msra.mxu0 0.0
    %1288 = vmatprep.subr.mxu0 0.0
    %1289 = vmatpush1.msra.mxu0 0.0
    %1290 = vmatprep.mubr.f32.mxu0 0.0
    %1291 = vmatmul.mubr.f32.gmra.mrb[0].mxu0 %v1221
    %v1292 = vpop.f32.mrb[0].mxu0
    %v1293 = vadd.f32 %v1218, %v1292
    %v1294 = vpop.f32.mrb[0].mxu0
    %1295 = vdwg.mxu0
    %s1296 = smul.f32 %s1121, 0.5
    %v1297 = vstv %s1296
    %v1298 = vmul.f32 %v1297, %v1293
    %v1299 = vadd.f32 %v932, %v1298
    %v1301 = vlaneseq
    %v1302 = vshrl.u32 %v1301, 7
    %v1303 = vsub.s32 0, %v1302
    %v1304 = vrot.slane %v936, %v1303
    %v1307 = vsel %vm955, %v1299, 0
    %v1310 = vsel %vm959, %v935, 0
    %1312 = vmatprep.subr.mxu0 0.0
    %1313 = vmatpush1.msra.mxu0 %v1310
    %1314 = vmatprep.subr.mxu0 0.0
    %1315 = vmatpush1.msra.mxu0 0.0
    %1316 = vmatprep.subr.mxu0 0.0
    %1317 = vmatpush1.msra.mxu0 0.0
    %1318 = vmatprep.subr.mxu0 0.0
    %1319 = vmatpush1.msra.mxu0 0.0
    %1320 = vmatprep.subr.mxu0 0.0
    %1321 = vmatpush1.msra.mxu0 0.0
    %1322 = vmatprep.subr.mxu0 0.0
    %1323 = vmatpush1.msra.mxu0 0.0
    %1324 = vmatprep.subr.mxu0 0.0
    %1325 = vmatpush1.msra.mxu0 0.0
    %1326 = vmatprep.subr.mxu0 0.0
    %1327 = vmatpush1.msra.mxu0 0.0
    %1328 = vmatprep.subr.mxu0 0.0
    %1329 = vmatpush1.msra.mxu0 0.0
    %1330 = vmatprep.subr.mxu0 0.0
    %1331 = vmatpush1.msra.mxu0 0.0
    %1332 = vmatprep.subr.mxu0 0.0
    %1333 = vmatpush1.msra.mxu0 0.0
    %1334 = vmatprep.subr.mxu0 0.0
    %1335 = vmatpush1.msra.mxu0 0.0
    %1336 = vmatprep.subr.mxu0 0.0
    %1337 = vmatpush1.msra.mxu0 0.0
    %1338 = vmatprep.subr.mxu0 0.0
    %1339 = vmatpush1.msra.mxu0 0.0
    %1340 = vmatprep.subr.mxu0 0.0
    %1341 = vmatpush1.msra.mxu0 0.0
    %1342 = vmatprep.subr.mxu0 0.0
    %1343 = vmatpush1.msra.mxu0 0.0
    %1344 = vmatprep.subr.mxu0 0.0
    %1345 = vmatpush1.msra.mxu0 0.0
    %1346 = vmatprep.subr.mxu0 0.0
    %1347 = vmatpush1.msra.mxu0 0.0
    %1348 = vmatprep.subr.mxu0 0.0
    %1349 = vmatpush1.msra.mxu0 0.0
    %1350 = vmatprep.subr.mxu0 0.0
    %1351 = vmatpush1.msra.mxu0 0.0
    %1352 = vmatprep.subr.mxu0 0.0
    %1353 = vmatpush1.msra.mxu0 0.0
    %1354 = vmatprep.subr.mxu0 0.0
    %1355 = vmatpush1.msra.mxu0 0.0
    %1356 = vmatprep.subr.mxu0 0.0
    %1357 = vmatpush1.msra.mxu0 0.0
    %1358 = vmatprep.subr.mxu0 0.0
    %1359 = vmatpush1.msra.mxu0 0.0
    %1360 = vmatprep.subr.mxu0 0.0
    %1361 = vmatpush1.msra.mxu0 0.0
    %1362 = vmatprep.subr.mxu0 0.0
    %1363 = vmatpush1.msra.mxu0 0.0
    %1364 = vmatprep.subr.mxu0 0.0
    %1365 = vmatpush1.msra.mxu0 0.0
    %1366 = vmatprep.subr.mxu0 0.0
    %1367 = vmatpush1.msra.mxu0 0.0
    %1368 = vmatprep.subr.mxu0 0.0
    %1369 = vmatpush1.msra.mxu0 0.0
    %1370 = vmatprep.subr.mxu0 0.0
    %1371 = vmatpush1.msra.mxu0 0.0
    %1372 = vmatprep.subr.mxu0 0.0
    %1373 = vmatpush1.msra.mxu0 0.0
    %1374 = vmatprep.subr.mxu0 0.0
    %1375 = vmatpush1.msra.mxu0 0.0
    %1376 = vmatprep.mubr.f32.mxu0 0.0
    %1377 = vmatmul.mubr.f32.gmra.mrb[0].mxu0 %v1307
    %v1378 = vpop.f32.mrb[0].mxu0
    %v1379 = vadd.f32 %v1304, %v1378
    %v1380 = vpop.f32.mrb[0].mxu0
    %1381 = vdwg.mxu0
    %vm1382 = vcmp.gt.f32.partialorder %v1379, 0.0
    %v1383 = vmul.f32 %v1379, 1.442695
    %v1384 = vpow.pop %v1383
    %v1385 = vsub.f32 %v1384, 1.0
    %v1386 = vsel %vm1382, %v1379, %v1385
    %v1388 = vsel %vm1043, %v1386, 0
    %1390 = vmatprep.subr.mxu0 0.0
    %1391 = vmatpush1.msra.mxu0 %v937
    %1392 = vmatprep.subr.mxu0 0.0
    %1393 = vmatpush1.msra.mxu0 %v938
    %1394 = vmatprep.subr.mxu0 0.0
    %1395 = vmatpush1.msra.mxu0 %v1137
    %1396 = vmatprep.subr.mxu0 0.0
    %1397 = vmatpush1.msra.mxu0 0.0
    %1398 = vmatprep.subr.mxu0 0.0
    %1399 = vmatpush1.msra.mxu0 0.0
    %1400 = vmatprep.subr.mxu0 0.0
    %1401 = vmatpush1.msra.mxu0 0.0
    %1402 = vmatprep.subr.mxu0 0.0
    %1403 = vmatpush1.msra.mxu0 0.0
    %1404 = vmatprep.subr.mxu0 0.0
    %1405 = vmatpush1.msra.mxu0 0.0
    %1406 = vmatprep.subr.mxu0 0.0
    %1407 = vmatpush1.msra.mxu0 0.0
    %1408 = vmatprep.subr.mxu0 0.0
    %1409 = vmatpush1.msra.mxu0 0.0
    %1410 = vmatprep.subr.mxu0 0.0
    %1411 = vmatpush1.msra.mxu0 0.0
    %1412 = vmatprep.subr.mxu0 0.0
    %1413 = vmatpush1.msra.mxu0 0.0
    %1414 = vmatprep.subr.mxu0 0.0
    %1415 = vmatpush1.msra.mxu0 0.0
    %1416 = vmatprep.subr.mxu0 0.0
    %1417 = vmatpush1.msra.mxu0 0.0
    %1418 = vmatprep.subr.mxu0 0.0
    %1419 = vmatpush1.msra.mxu0 0.0
    %1420 = vmatprep.subr.mxu0 0.0
    %1421 = vmatpush1.msra.mxu0 0.0
    %1422 = vmatprep.subr.mxu0 0.0
    %1423 = vmatpush1.msra.mxu0 0.0
    %1424 = vmatprep.subr.mxu0 0.0
    %1425 = vmatpush1.msra.mxu0 0.0
    %1426 = vmatprep.subr.mxu0 0.0
    %1427 = vmatpush1.msra.mxu0 0.0
    %1428 = vmatprep.subr.mxu0 0.0
    %1429 = vmatpush1.msra.mxu0 0.0
    %1430 = vmatprep.subr.mxu0 0.0
    %1431 = vmatpush1.msra.mxu0 0.0
    %1432 = vmatprep.subr.mxu0 0.0
    %1433 = vmatpush1.msra.mxu0 0.0
    %1434 = vmatprep.subr.mxu0 0.0
    %1435 = vmatpush1.msra.mxu0 0.0
    %1436 = vmatprep.subr.mxu0 0.0
    %1437 = vmatpush1.msra.mxu0 0.0
    %1438 = vmatprep.subr.mxu0 0.0
    %1439 = vmatpush1.msra.mxu0 0.0
    %1440 = vmatprep.subr.mxu0 0.0
    %1441 = vmatpush1.msra.mxu0 0.0
    %1442 = vmatprep.subr.mxu0 0.0
    %1443 = vmatpush1.msra.mxu0 0.0
    %1444 = vmatprep.subr.mxu0 0.0
    %1445 = vmatpush1.msra.mxu0 0.0
    %1446 = vmatprep.subr.mxu0 0.0
    %1447 = vmatpush1.msra.mxu0 0.0
    %1448 = vmatprep.subr.mxu0 0.0
    %1449 = vmatpush1.msra.mxu0 0.0
    %1450 = vmatprep.subr.mxu0 0.0
    %1451 = vmatpush1.msra.mxu0 0.0
    %1452 = vmatprep.subr.mxu0 0.0
    %1453 = vmatpush1.msra.mxu0 0.0
    %1454 = vmatprep.mubr.f32.mxu0 0.0
    %1455 = vmatmul.mubr.f32.gmra.mrb[0].mxu0 %v1388
    %v1456 = vpop.f32.mrb[0].mxu0
    %v1457 = vadd.f32 %v1131, %v1456
    %v1458 = vpop.f32.mrb[0].mxu0
    %1459 = vdwg.mxu0
    %vm1460 = vcmp.gt.f32.partialorder %v1457, 0.0
    %v1461 = vmul.f32 %v1457, 1.442695
    %v1462 = vpow.pop %v1461
    %v1463 = vsub.f32 %v1462, 1.0
    %v1464 = vsel %vm1460, %v1457, %v1463
    %v1466 = vsel %vm1043, %v1464, 0
    %1468 = vmatprep.subr.mxu0 0.0
    %1469 = vmatpush1.msra.mxu0 %v941
    %1470 = vmatprep.subr.mxu0 0.0
    %1471 = vmatpush1.msra.mxu0 %v942
    %1472 = vmatprep.subr.mxu0 0.0
    %1473 = vmatpush1.msra.mxu0 %v1224
    %1474 = vmatprep.subr.mxu0 0.0
    %1475 = vmatpush1.msra.mxu0 0.0
    %1476 = vmatprep.subr.mxu0 0.0
    %1477 = vmatpush1.msra.mxu0 0.0
    %1478 = vmatprep.subr.mxu0 0.0
    %1479 = vmatpush1.msra.mxu0 0.0
    %1480 = vmatprep.subr.mxu0 0.0
    %1481 = vmatpush1.msra.mxu0 0.0
    %1482 = vmatprep.subr.mxu0 0.0
    %1483 = vmatpush1.msra.mxu0 0.0
    %1484 = vmatprep.subr.mxu0 0.0
    %1485 = vmatpush1.msra.mxu0 0.0
    %1486 = vmatprep.subr.mxu0 0.0
    %1487 = vmatpush1.msra.mxu0 0.0
    %1488 = vmatprep.subr.mxu0 0.0
    %1489 = vmatpush1.msra.mxu0 0.0
    %1490 = vmatprep.subr.mxu0 0.0
    %1491 = vmatpush1.msra.mxu0 0.0
    %1492 = vmatprep.subr.mxu0 0.0
    %1493 = vmatpush1.msra.mxu0 0.0
    %1494 = vmatprep.subr.mxu0 0.0
    %1495 = vmatpush1.msra.mxu0 0.0
    %1496 = vmatprep.subr.mxu0 0.0
    %1497 = vmatpush1.msra.mxu0 0.0
    %1498 = vmatprep.subr.mxu0 0.0
    %1499 = vmatpush1.msra.mxu0 0.0
    %1500 = vmatprep.subr.mxu0 0.0
    %1501 = vmatpush1.msra.mxu0 0.0
    %1502 = vmatprep.subr.mxu0 0.0
    %1503 = vmatpush1.msra.mxu0 0.0
    %1504 = vmatprep.subr.mxu0 0.0
    %1505 = vmatpush1.msra.mxu0 0.0
    %1506 = vmatprep.subr.mxu0 0.0
    %1507 = vmatpush1.msra.mxu0 0.0
    %1508 = vmatprep.subr.mxu0 0.0
    %1509 = vmatpush1.msra.mxu0 0.0
    %1510 = vmatprep.subr.mxu0 0.0
    %1511 = vmatpush1.msra.mxu0 0.0
    %1512 = vmatprep.subr.mxu0 0.0
    %1513 = vmatpush1.msra.mxu0 0.0
    %1514 = vmatprep.subr.mxu0 0.0
    %1515 = vmatpush1.msra.mxu0 0.0
    %1516 = vmatprep.subr.mxu0 0.0
    %1517 = vmatpush1.msra.mxu0 0.0
    %1518 = vmatprep.subr.mxu0 0.0
    %1519 = vmatpush1.msra.mxu0 0.0
    %1520 = vmatprep.subr.mxu0 0.0
    %1521 = vmatpush1.msra.mxu0 0.0
    %1522 = vmatprep.subr.mxu0 0.0
    %1523 = vmatpush1.msra.mxu0 0.0
    %1524 = vmatprep.subr.mxu0 0.0
    %1525 = vmatpush1.msra.mxu0 0.0
    %1526 = vmatprep.subr.mxu0 0.0
    %1527 = vmatpush1.msra.mxu0 0.0
    %1528 = vmatprep.subr.mxu0 0.0
    %1529 = vmatpush1.msra.mxu0 0.0
    %1530 = vmatprep.subr.mxu0 0.0
    %1531 = vmatpush1.msra.mxu0 0.0
    %1532 = vmatprep.mubr.f32.mxu0 0.0
    %1533 = vmatmul.mubr.f32.gmra.mrb[0].mxu0 %v1466
    %v1534 = vpop.f32.mrb[0].mxu0
    %v1535 = vadd.f32 %v1218, %v1534
    %v1536 = vpop.f32.mrb[0].mxu0
    %1537 = vdwg.mxu0
    %v1538 = vmul.f32 %v1297, %v1535
    %v1539 = vadd.f32 %v932, %v1538
    %v1541 = vsel %vm955, %v1539, 0
    %1543 = vmatprep.subr.mxu0 0.0
    %1544 = vmatpush1.msra.mxu0 %v1310
    %1545 = vmatprep.subr.mxu0 0.0
    %1546 = vmatpush1.msra.mxu0 0.0
    %1547 = vmatprep.subr.mxu0 0.0
    %1548 = vmatpush1.msra.mxu0 0.0
    %1549 = vmatprep.subr.mxu0 0.0
    %1550 = vmatpush1.msra.mxu0 0.0
    %1551 = vmatprep.subr.mxu0 0.0
    %1552 = vmatpush1.msra.mxu0 0.0
    %1553 = vmatprep.subr.mxu0 0.0
    %1554 = vmatpush1.msra.mxu0 0.0
    %1555 = vmatprep.subr.mxu0 0.0
    %1556 = vmatpush1.msra.mxu0 0.0
    %1557 = vmatprep.subr.mxu0 0.0
    %1558 = vmatpush1.msra.mxu0 0.0
    %1559 = vmatprep.subr.mxu0 0.0
    %1560 = vmatpush1.msra.mxu0 0.0
    %1561 = vmatprep.subr.mxu0 0.0
    %1562 = vmatpush1.msra.mxu0 0.0
    %1563 = vmatprep.subr.mxu0 0.0
    %1564 = vmatpush1.msra.mxu0 0.0
    %1565 = vmatprep.subr.mxu0 0.0
    %1566 = vmatpush1.msra.mxu0 0.0
    %1567 = vmatprep.subr.mxu0 0.0
    %1568 = vmatpush1.msra.mxu0 0.0
    %1569 = vmatprep.subr.mxu0 0.0
    %1570 = vmatpush1.msra.mxu0 0.0
    %1571 = vmatprep.subr.mxu0 0.0
    %1572 = vmatpush1.msra.mxu0 0.0
    %1573 = vmatprep.subr.mxu0 0.0
    %1574 = vmatpush1.msra.mxu0 0.0
    %1575 = vmatprep.subr.mxu0 0.0
    %1576 = vmatpush1.msra.mxu0 0.0
    %1577 = vmatprep.subr.mxu0 0.0
    %1578 = vmatpush1.msra.mxu0 0.0
    %1579 = vmatprep.subr.mxu0 0.0
    %1580 = vmatpush1.msra.mxu0 0.0
    %1581 = vmatprep.subr.mxu0 0.0
    %1582 = vmatpush1.msra.mxu0 0.0
    %1583 = vmatprep.subr.mxu0 0.0
    %1584 = vmatpush1.msra.mxu0 0.0
    %1585 = vmatprep.subr.mxu0 0.0
    %1586 = vmatpush1.msra.mxu0 0.0
    %1587 = vmatprep.subr.mxu0 0.0
    %1588 = vmatpush1.msra.mxu0 0.0
    %1589 = vmatprep.subr.mxu0 0.0
    %1590 = vmatpush1.msra.mxu0 0.0
    %1591 = vmatprep.subr.mxu0 0.0
    %1592 = vmatpush1.msra.mxu0 0.0
    %1593 = vmatprep.subr.mxu0 0.0
    %1594 = vmatpush1.msra.mxu0 0.0
    %1595 = vmatprep.subr.mxu0 0.0
    %1596 = vmatpush1.msra.mxu0 0.0
    %1597 = vmatprep.subr.mxu0 0.0
    %1598 = vmatpush1.msra.mxu0 0.0
    %1599 = vmatprep.subr.mxu0 0.0
    %1600 = vmatpush1.msra.mxu0 0.0
    %1601 = vmatprep.subr.mxu0 0.0
    %1602 = vmatpush1.msra.mxu0 0.0
    %1603 = vmatprep.subr.mxu0 0.0
    %1604 = vmatpush1.msra.mxu0 0.0
    %1605 = vmatprep.subr.mxu0 0.0
    %1606 = vmatpush1.msra.mxu0 0.0
    %1607 = vmatprep.mubr.f32.mxu0 0.0
    %1608 = vmatmul.mubr.f32.gmra.mrb[0].mxu0 %v1541
    %v1609 = vpop.f32.mrb[0].mxu0
    %v1610 = vadd.f32 %v1304, %v1609
    %v1611 = vpop.f32.mrb[0].mxu0
    %1612 = vdwg.mxu0
    %vm1613 = vcmp.gt.f32.partialorder %v1610, 0.0
    %v1614 = vmul.f32 %v1610, 1.442695
    %v1615 = vpow.pop %v1614
    %v1616 = vsub.f32 %v1615, 1.0
    %v1617 = vsel %vm1613, %v1610, %v1616
    %v1619 = vsel %vm1043, %v1617, 0
    %1621 = vmatprep.subr.mxu0 0.0
    %1622 = vmatpush1.msra.mxu0 %v937
    %1623 = vmatprep.subr.mxu0 0.0
    %1624 = vmatpush1.msra.mxu0 %v938
    %1625 = vmatprep.subr.mxu0 0.0
    %1626 = vmatpush1.msra.mxu0 %v1137
    %1627 = vmatprep.subr.mxu0 0.0
    %1628 = vmatpush1.msra.mxu0 0.0
    %1629 = vmatprep.subr.mxu0 0.0
    %1630 = vmatpush1.msra.mxu0 0.0
    %1631 = vmatprep.subr.mxu0 0.0
    %1632 = vmatpush1.msra.mxu0 0.0
    %1633 = vmatprep.subr.mxu0 0.0
    %1634 = vmatpush1.msra.mxu0 0.0
    %1635 = vmatprep.subr.mxu0 0.0
    %1636 = vmatpush1.msra.mxu0 0.0
    %1637 = vmatprep.subr.mxu0 0.0
    %1638 = vmatpush1.msra.mxu0 0.0
    %1639 = vmatprep.subr.mxu0 0.0
    %1640 = vmatpush1.msra.mxu0 0.0
    %1641 = vmatprep.subr.mxu0 0.0
    %1642 = vmatpush1.msra.mxu0 0.0
    %1643 = vmatprep.subr.mxu0 0.0
    %1644 = vmatpush1.msra.mxu0 0.0
    %1645 = vmatprep.subr.mxu0 0.0
    %1646 = vmatpush1.msra.mxu0 0.0
    %1647 = vmatprep.subr.mxu0 0.0
    %1648 = vmatpush1.msra.mxu0 0.0
    %1649 = vmatprep.subr.mxu0 0.0
    %1650 = vmatpush1.msra.mxu0 0.0
    %1651 = vmatprep.subr.mxu0 0.0
    %1652 = vmatpush1.msra.mxu0 0.0
    %1653 = vmatprep.subr.mxu0 0.0
    %1654 = vmatpush1.msra.mxu0 0.0
    %1655 = vmatprep.subr.mxu0 0.0
    %1656 = vmatpush1.msra.mxu0 0.0
    %1657 = vmatprep.subr.mxu0 0.0
    %1658 = vmatpush1.msra.mxu0 0.0
    %1659 = vmatprep.subr.mxu0 0.0
    %1660 = vmatpush1.msra.mxu0 0.0
    %1661 = vmatprep.subr.mxu0 0.0
    %1662 = vmatpush1.msra.mxu0 0.0
    %1663 = vmatprep.subr.mxu0 0.0
    %1664 = vmatpush1.msra.mxu0 0.0
    %1665 = vmatprep.subr.mxu0 0.0
    %1666 = vmatpush1.msra.mxu0 0.0
    %1667 = vmatprep.subr.mxu0 0.0
    %1668 = vmatpush1.msra.mxu0 0.0
    %1669 = vmatprep.subr.mxu0 0.0
    %1670 = vmatpush1.msra.mxu0 0.0
    %1671 = vmatprep.subr.mxu0 0.0
    %1672 = vmatpush1.msra.mxu0 0.0
    %1673 = vmatprep.subr.mxu0 0.0
    %1674 = vmatpush1.msra.mxu0 0.0
    %1675 = vmatprep.subr.mxu0 0.0
    %1676 = vmatpush1.msra.mxu0 0.0
    %1677 = vmatprep.subr.mxu0 0.0
    %1678 = vmatpush1.msra.mxu0 0.0
    %1679 = vmatprep.subr.mxu0 0.0
    %1680 = vmatpush1.msra.mxu0 0.0
    %1681 = vmatprep.subr.mxu0 0.0
    %1682 = vmatpush1.msra.mxu0 0.0
    %1683 = vmatprep.subr.mxu0 0.0
    %1684 = vmatpush1.msra.mxu0 0.0
    %1685 = vmatprep.mubr.f32.mxu0 0.0
    %1686 = vmatmul.mubr.f32.gmra.mrb[0].mxu0 %v1619
    %v1687 = vpop.f32.mrb[0].mxu0
    %v1688 = vadd.f32 %v1131, %v1687
    %v1689 = vpop.f32.mrb[0].mxu0
    %1690 = vdwg.mxu0
    %vm1691 = vcmp.gt.f32.partialorder %v1688, 0.0
    %v1692 = vmul.f32 %v1688, 1.442695
    %v1693 = vpow.pop %v1692
    %v1694 = vsub.f32 %v1693, 1.0
    %v1695 = vsel %vm1691, %v1688, %v1694
    %v1697 = vsel %vm1043, %v1695, 0
    %1699 = vmatprep.subr.mxu0 0.0
    %1700 = vmatpush1.msra.mxu0 %v941
    %1701 = vmatprep.subr.mxu0 0.0
    %1702 = vmatpush1.msra.mxu0 %v942
    %1703 = vmatprep.subr.mxu0 0.0
    %1704 = vmatpush1.msra.mxu0 %v1224
    %1705 = vmatprep.subr.mxu0 0.0
    %1706 = vmatpush1.msra.mxu0 0.0
    %1707 = vmatprep.subr.mxu0 0.0
    %1708 = vmatpush1.msra.mxu0 0.0
    %1709 = vmatprep.subr.mxu0 0.0
    %1710 = vmatpush1.msra.mxu0 0.0
    %1711 = vmatprep.subr.mxu0 0.0
    %1712 = vmatpush1.msra.mxu0 0.0
    %1713 = vmatprep.subr.mxu0 0.0
    %1714 = vmatpush1.msra.mxu0 0.0
    %1715 = vmatprep.subr.mxu0 0.0
    %1716 = vmatpush1.msra.mxu0 0.0
    %1717 = vmatprep.subr.mxu0 0.0
    %1718 = vmatpush1.msra.mxu0 0.0
    %1719 = vmatprep.subr.mxu0 0.0
    %1720 = vmatpush1.msra.mxu0 0.0
    %1721 = vmatprep.subr.mxu0 0.0
    %1722 = vmatpush1.msra.mxu0 0.0
    %1723 = vmatprep.subr.mxu0 0.0
    %1724 = vmatpush1.msra.mxu0 0.0
    %1725 = vmatprep.subr.mxu0 0.0
    %1726 = vmatpush1.msra.mxu0 0.0
    %1727 = vmatprep.subr.mxu0 0.0
    %1728 = vmatpush1.msra.mxu0 0.0
    %1729 = vmatprep.subr.mxu0 0.0
    %1730 = vmatpush1.msra.mxu0 0.0
    %1731 = vmatprep.subr.mxu0 0.0
    %1732 = vmatpush1.msra.mxu0 0.0
    %1733 = vmatprep.subr.mxu0 0.0
    %1734 = vmatpush1.msra.mxu0 0.0
    %1735 = vmatprep.subr.mxu0 0.0
    %1736 = vmatpush1.msra.mxu0 0.0
    %1737 = vmatprep.subr.mxu0 0.0
    %1738 = vmatpush1.msra.mxu0 0.0
    %1739 = vmatprep.subr.mxu0 0.0
    %1740 = vmatpush1.msra.mxu0 0.0
    %1741 = vmatprep.subr.mxu0 0.0
    %1742 = vmatpush1.msra.mxu0 0.0
    %1743 = vmatprep.subr.mxu0 0.0
    %1744 = vmatpush1.msra.mxu0 0.0
    %1745 = vmatprep.subr.mxu0 0.0
    %1746 = vmatpush1.msra.mxu0 0.0
    %1747 = vmatprep.subr.mxu0 0.0
    %1748 = vmatpush1.msra.mxu0 0.0
    %1749 = vmatprep.subr.mxu0 0.0
    %1750 = vmatpush1.msra.mxu0 0.0
    %1751 = vmatprep.subr.mxu0 0.0
    %1752 = vmatpush1.msra.mxu0 0.0
    %1753 = vmatprep.subr.mxu0 0.0
    %1754 = vmatpush1.msra.mxu0 0.0
    %1755 = vmatprep.subr.mxu0 0.0
    %1756 = vmatpush1.msra.mxu0 0.0
    %1757 = vmatprep.subr.mxu0 0.0
    %1758 = vmatpush1.msra.mxu0 0.0
    %1759 = vmatprep.subr.mxu0 0.0
    %1760 = vmatpush1.msra.mxu0 0.0
    %1761 = vmatprep.subr.mxu0 0.0
    %1762 = vmatpush1.msra.mxu0 0.0
    %1763 = vmatprep.mubr.f32.mxu0 0.0
    %1764 = vmatmul.mubr.f32.gmra.mrb[0].mxu0 %v1697
    %v1765 = vpop.f32.mrb[0].mxu0
    %v1766 = vadd.f32 %v1218, %v1765
    %v1767 = vpop.f32.mrb[0].mxu0
    %1768 = vdwg.mxu0
    %v1769 = vstv %s1121
    %v1770 = vmul.f32 %v1769, %v1766
    %v1771 = vadd.f32 %v932, %v1770
    %v1773 = vsel %vm955, %v1771, 0
    %1775 = vmatprep.subr.mxu0 0.0
    %1776 = vmatpush1.msra.mxu0 %v1310
    %1777 = vmatprep.subr.mxu0 0.0
    %1778 = vmatpush1.msra.mxu0 0.0
    %1779 = vmatprep.subr.mxu0 0.0
    %1780 = vmatpush1.msra.mxu0 0.0
    %1781 = vmatprep.subr.mxu0 0.0
    %1782 = vmatpush1.msra.mxu0 0.0
    %1783 = vmatprep.subr.mxu0 0.0
    %1784 = vmatpush1.msra.mxu0 0.0
    %1785 = vmatprep.subr.mxu0 0.0
    %1786 = vmatpush1.msra.mxu0 0.0
    %1787 = vmatprep.subr.mxu0 0.0
    %1788 = vmatpush1.msra.mxu0 0.0
    %1789 = vmatprep.subr.mxu0 0.0
    %1790 = vmatpush1.msra.mxu0 0.0
    %1791 = vmatprep.subr.mxu0 0.0
    %1792 = vmatpush1.msra.mxu0 0.0
    %1793 = vmatprep.subr.mxu0 0.0
    %1794 = vmatpush1.msra.mxu0 0.0
    %1795 = vmatprep.subr.mxu0 0.0
    %1796 = vmatpush1.msra.mxu0 0.0
    %1797 = vmatprep.subr.mxu0 0.0
    %1798 = vmatpush1.msra.mxu0 0.0
    %1799 = vmatprep.subr.mxu0 0.0
    %1800 = vmatpush1.msra.mxu0 0.0
    %1801 = vmatprep.subr.mxu0 0.0
    %1802 = vmatpush1.msra.mxu0 0.0
    %1803 = vmatprep.subr.mxu0 0.0
    %1804 = vmatpush1.msra.mxu0 0.0
    %1805 = vmatprep.subr.mxu0 0.0
    %1806 = vmatpush1.msra.mxu0 0.0
    %1807 = vmatprep.subr.mxu0 0.0
    %1808 = vmatpush1.msra.mxu0 0.0
    %1809 = vmatprep.subr.mxu0 0.0
    %1810 = vmatpush1.msra.mxu0 0.0
    %1811 = vmatprep.subr.mxu0 0.0
    %1812 = vmatpush1.msra.mxu0 0.0
    %1813 = vmatprep.subr.mxu0 0.0
    %1814 = vmatpush1.msra.mxu0 0.0
    %1815 = vmatprep.subr.mxu0 0.0
    %1816 = vmatpush1.msra.mxu0 0.0
    %1817 = vmatprep.subr.mxu0 0.0
    %1818 = vmatpush1.msra.mxu0 0.0
    %1819 = vmatprep.subr.mxu0 0.0
    %1820 = vmatpush1.msra.mxu0 0.0
    %1821 = vmatprep.subr.mxu0 0.0
    %1822 = vmatpush1.msra.mxu0 0.0
    %1823 = vmatprep.subr.mxu0 0.0
    %1824 = vmatpush1.msra.mxu0 0.0
    %1825 = vmatprep.subr.mxu0 0.0
    %1826 = vmatpush1.msra.mxu0 0.0
    %1827 = vmatprep.subr.mxu0 0.0
    %1828 = vmatpush1.msra.mxu0 0.0
    %1829 = vmatprep.subr.mxu0 0.0
    %1830 = vmatpush1.msra.mxu0 0.0
    %1831 = vmatprep.subr.mxu0 0.0
    %1832 = vmatpush1.msra.mxu0 0.0
    %1833 = vmatprep.subr.mxu0 0.0
    %1834 = vmatpush1.msra.mxu0 0.0
    %1835 = vmatprep.subr.mxu0 0.0
    %1836 = vmatpush1.msra.mxu0 0.0
    %1837 = vmatprep.subr.mxu0 0.0
    %1838 = vmatpush1.msra.mxu0 0.0
    %1839 = vmatprep.mubr.f32.mxu0 0.0
    %1840 = vmatmul.mubr.f32.gmra.mrb[0].mxu0 %v1773
    %v1841 = vpop.f32.mrb[0].mxu0
    %v1842 = vadd.f32 %v1304, %v1841
    %v1843 = vpop.f32.mrb[0].mxu0
    %1844 = vdwg.mxu0
    %vm1845 = vcmp.gt.f32.partialorder %v1842, 0.0
    %v1846 = vmul.f32 %v1842, 1.442695
    %v1847 = vpow.pop %v1846
    %v1848 = vsub.f32 %v1847, 1.0
    %v1849 = vsel %vm1845, %v1842, %v1848
    %v1851 = vsel %vm1043, %v1849, 0
    %1853 = vmatprep.subr.mxu0 0.0
    %1854 = vmatpush1.msra.mxu0 %v937
    %1855 = vmatprep.subr.mxu0 0.0
    %1856 = vmatpush1.msra.mxu0 %v938
    %1857 = vmatprep.subr.mxu0 0.0
    %1858 = vmatpush1.msra.mxu0 %v1137
    %1859 = vmatprep.subr.mxu0 0.0
    %1860 = vmatpush1.msra.mxu0 0.0
    %1861 = vmatprep.subr.mxu0 0.0
    %1862 = vmatpush1.msra.mxu0 0.0
    %1863 = vmatprep.subr.mxu0 0.0
    %1864 = vmatpush1.msra.mxu0 0.0
    %1865 = vmatprep.subr.mxu0 0.0
    %1866 = vmatpush1.msra.mxu0 0.0
    %1867 = vmatprep.subr.mxu0 0.0
    %1868 = vmatpush1.msra.mxu0 0.0
    %1869 = vmatprep.subr.mxu0 0.0
    %1870 = vmatpush1.msra.mxu0 0.0
    %1871 = vmatprep.subr.mxu0 0.0
    %1872 = vmatpush1.msra.mxu0 0.0
    %1873 = vmatprep.subr.mxu0 0.0
    %1874 = vmatpush1.msra.mxu0 0.0
    %1875 = vmatprep.subr.mxu0 0.0
    %1876 = vmatpush1.msra.mxu0 0.0
    %1877 = vmatprep.subr.mxu0 0.0
    %1878 = vmatpush1.msra.mxu0 0.0
    %1879 = vmatprep.subr.mxu0 0.0
    %1880 = vmatpush1.msra.mxu0 0.0
    %1881 = vmatprep.subr.mxu0 0.0
    %1882 = vmatpush1.msra.mxu0 0.0
    %1883 = vmatprep.subr.mxu0 0.0
    %1884 = vmatpush1.msra.mxu0 0.0
    %1885 = vmatprep.subr.mxu0 0.0
    %1886 = vmatpush1.msra.mxu0 0.0
    %1887 = vmatprep.subr.mxu0 0.0
    %1888 = vmatpush1.msra.mxu0 0.0
    %1889 = vmatprep.subr.mxu0 0.0
    %1890 = vmatpush1.msra.mxu0 0.0
    %1891 = vmatprep.subr.mxu0 0.0
    %1892 = vmatpush1.msra.mxu0 0.0
    %1893 = vmatprep.subr.mxu0 0.0
    %1894 = vmatpush1.msra.mxu0 0.0
    %1895 = vmatprep.subr.mxu0 0.0
    %1896 = vmatpush1.msra.mxu0 0.0
    %1897 = vmatprep.subr.mxu0 0.0
    %1898 = vmatpush1.msra.mxu0 0.0
    %1899 = vmatprep.subr.mxu0 0.0
    %1900 = vmatpush1.msra.mxu0 0.0
    %1901 = vmatprep.subr.mxu0 0.0
    %1902 = vmatpush1.msra.mxu0 0.0
    %1903 = vmatprep.subr.mxu0 0.0
    %1904 = vmatpush1.msra.mxu0 0.0
    %1905 = vmatprep.subr.mxu0 0.0
    %1906 = vmatpush1.msra.mxu0 0.0
    %1907 = vmatprep.subr.mxu0 0.0
    %1908 = vmatpush1.msra.mxu0 0.0
    %1909 = vmatprep.subr.mxu0 0.0
    %1910 = vmatpush1.msra.mxu0 0.0
    %1911 = vmatprep.subr.mxu0 0.0
    %1912 = vmatpush1.msra.mxu0 0.0
    %1913 = vmatprep.subr.mxu0 0.0
    %1914 = vmatpush1.msra.mxu0 0.0
    %1915 = vmatprep.subr.mxu0 0.0
    %1916 = vmatpush1.msra.mxu0 0.0
    %1917 = vmatprep.mubr.f32.mxu0 0.0
    %1918 = vmatmul.mubr.f32.gmra.mrb[0].mxu0 %v1851
    %v1919 = vpop.f32.mrb[0].mxu0
    %v1920 = vadd.f32 %v1131, %v1919
    %v1921 = vpop.f32.mrb[0].mxu0
    %1922 = vdwg.mxu0
    %vm1923 = vcmp.gt.f32.partialorder %v1920, 0.0
    %v1924 = vmul.f32 %v1920, 1.442695
    %v1925 = vpow.pop %v1924
    %v1926 = vsub.f32 %v1925, 1.0
    %v1927 = vsel %vm1923, %v1920, %v1926
    %v1929 = vsel %vm1043, %v1927, 0
    %1931 = vmatprep.subr.mxu0 0.0
    %1932 = vmatpush1.msra.mxu0 %v941
    %1933 = vmatprep.subr.mxu0 0.0
    %1934 = vmatpush1.msra.mxu0 %v942
    %1935 = vmatprep.subr.mxu0 0.0
    %1936 = vmatpush1.msra.mxu0 %v1224
    %1937 = vmatprep.subr.mxu0 0.0
    %1938 = vmatpush1.msra.mxu0 0.0
    %1939 = vmatprep.subr.mxu0 0.0
    %1940 = vmatpush1.msra.mxu0 0.0
    %1941 = vmatprep.subr.mxu0 0.0
    %1942 = vmatpush1.msra.mxu0 0.0
    %1943 = vmatprep.subr.mxu0 0.0
    %1944 = vmatpush1.msra.mxu0 0.0
    %1945 = vmatprep.subr.mxu0 0.0
    %1946 = vmatpush1.msra.mxu0 0.0
    %1947 = vmatprep.subr.mxu0 0.0
    %1948 = vmatpush1.msra.mxu0 0.0
    %1949 = vmatprep.subr.mxu0 0.0
    %1950 = vmatpush1.msra.mxu0 0.0
    %1951 = vmatprep.subr.mxu0 0.0
    %1952 = vmatpush1.msra.mxu0 0.0
    %1953 = vmatprep.subr.mxu0 0.0
    %1954 = vmatpush1.msra.mxu0 0.0
    %1955 = vmatprep.subr.mxu0 0.0
    %1956 = vmatpush1.msra.mxu0 0.0
    %1957 = vmatprep.subr.mxu0 0.0
    %1958 = vmatpush1.msra.mxu0 0.0
    %1959 = vmatprep.subr.mxu0 0.0
    %1960 = vmatpush1.msra.mxu0 0.0
    %1961 = vmatprep.subr.mxu0 0.0
    %1962 = vmatpush1.msra.mxu0 0.0
    %1963 = vmatprep.subr.mxu0 0.0
    %1964 = vmatpush1.msra.mxu0 0.0
    %1965 = vmatprep.subr.mxu0 0.0
    %1966 = vmatpush1.msra.mxu0 0.0
    %1967 = vmatprep.subr.mxu0 0.0
    %1968 = vmatpush1.msra.mxu0 0.0
    %1969 = vmatprep.subr.mxu0 0.0
    %1970 = vmatpush1.msra.mxu0 0.0
    %1971 = vmatprep.subr.mxu0 0.0
    %1972 = vmatpush1.msra.mxu0 0.0
    %1973 = vmatprep.subr.mxu0 0.0
    %1974 = vmatpush1.msra.mxu0 0.0
    %1975 = vmatprep.subr.mxu0 0.0
    %1976 = vmatpush1.msra.mxu0 0.0
    %1977 = vmatprep.subr.mxu0 0.0
    %1978 = vmatpush1.msra.mxu0 0.0
    %1979 = vmatprep.subr.mxu0 0.0
    %1980 = vmatpush1.msra.mxu0 0.0
    %1981 = vmatprep.subr.mxu0 0.0
    %1982 = vmatpush1.msra.mxu0 0.0
    %1983 = vmatprep.subr.mxu0 0.0
    %1984 = vmatpush1.msra.mxu0 0.0
    %1985 = vmatprep.subr.mxu0 0.0
    %1986 = vmatpush1.msra.mxu0 0.0
    %1987 = vmatprep.subr.mxu0 0.0
    %1988 = vmatpush1.msra.mxu0 0.0
    %1989 = vmatprep.subr.mxu0 0.0
    %1990 = vmatpush1.msra.mxu0 0.0
    %1991 = vmatprep.subr.mxu0 0.0
    %1992 = vmatpush1.msra.mxu0 0.0
    %1993 = vmatprep.subr.mxu0 0.0
    %1994 = vmatpush1.msra.mxu0 0.0
    %1995 = vmatprep.mubr.f32.mxu0 0.0
    %1996 = vmatmul.mubr.f32.gmra.mrb[0].mxu0 %v1929
    %v1997 = vpop.f32.mrb[0].mxu0
    %v1998 = vadd.f32 %v1218, %v1997
    %v1999 = vpop.f32.mrb[0].mxu0
    %2000 = vdwg.mxu0
    %v2001 = vrcp.pop 6.0
    %s2002 = vtos %v2001
    %s2003 = smul.f32 %s1121, %s2002
    %v2004 = vmul.f32 %v1535, 2.0
    %v2005 = vadd.f32 %v1293, %v2004
    %v2006 = vmul.f32 %v1766, 2.0
    %v2007 = vadd.f32 %v2005, %v2006
    %v2008 = vadd.f32 %v2007, %v1998
    %v2009 = vstv %s2003
    %v2010 = vmul.f32 %v2009, %v2008
    %v2011 = vadd.f32 %v932, %v2010
    %v2013 = vsel %vm955, %v2011, 0
    %2015 = vmatprep.subr.mxu0 0.0
    %2016 = vmatpush1.msra.mxu0 %v961
    %2017 = vmatprep.subr.mxu0 0.0
    %2018 = vmatpush1.msra.mxu0 0.0
    %2019 = vmatprep.subr.mxu0 0.0
    %2020 = vmatpush1.msra.mxu0 0.0
    %2021 = vmatprep.subr.mxu0 0.0
    %2022 = vmatpush1.msra.mxu0 0.0
    %2023 = vmatprep.subr.mxu0 0.0
    %2024 = vmatpush1.msra.mxu0 0.0
    %2025 = vmatprep.subr.mxu0 0.0
    %2026 = vmatpush1.msra.mxu0 0.0
    %2027 = vmatprep.subr.mxu0 0.0
    %2028 = vmatpush1.msra.mxu0 0.0
    %2029 = vmatprep.subr.mxu0 0.0
    %2030 = vmatpush1.msra.mxu0 0.0
    %2031 = vmatprep.subr.mxu0 0.0
    %2032 = vmatpush1.msra.mxu0 0.0
    %2033 = vmatprep.subr.mxu0 0.0
    %2034 = vmatpush1.msra.mxu0 0.0
    %2035 = vmatprep.subr.mxu0 0.0
    %2036 = vmatpush1.msra.mxu0 0.0
    %2037 = vmatprep.subr.mxu0 0.0
    %2038 = vmatpush1.msra.mxu0 0.0
    %2039 = vmatprep.subr.mxu0 0.0
    %2040 = vmatpush1.msra.mxu0 0.0
    %2041 = vmatprep.subr.mxu0 0.0
    %2042 = vmatpush1.msra.mxu0 0.0
    %2043 = vmatprep.subr.mxu0 0.0
    %2044 = vmatpush1.msra.mxu0 0.0
    %2045 = vmatprep.subr.mxu0 0.0
    %2046 = vmatpush1.msra.mxu0 0.0
    %2047 = vmatprep.subr.mxu0 0.0
    %2048 = vmatpush1.msra.mxu0 0.0
    %2049 = vmatprep.subr.mxu0 0.0
    %2050 = vmatpush1.msra.mxu0 0.0
    %2051 = vmatprep.subr.mxu0 0.0
    %2052 = vmatpush1.msra.mxu0 0.0
    %2053 = vmatprep.subr.mxu0 0.0
    %2054 = vmatpush1.msra.mxu0 0.0
    %2055 = vmatprep.subr.mxu0 0.0
    %2056 = vmatpush1.msra.mxu0 0.0
    %2057 = vmatprep.subr.mxu0 0.0
    %2058 = vmatpush1.msra.mxu0 0.0
    %2059 = vmatprep.subr.mxu0 0.0
    %2060 = vmatpush1.msra.mxu0 0.0
    %2061 = vmatprep.subr.mxu0 0.0
    %2062 = vmatpush1.msra.mxu0 0.0
    %2063 = vmatprep.subr.mxu0 0.0
    %2064 = vmatpush1.msra.mxu0 0.0
    %2065 = vmatprep.subr.mxu0 0.0
    %2066 = vmatpush1.msra.mxu0 0.0
    %2067 = vmatprep.subr.mxu0 0.0
    %2068 = vmatpush1.msra.mxu0 0.0
    %2069 = vmatprep.subr.mxu0 0.0
    %2070 = vmatpush1.msra.mxu0 0.0
    %2071 = vmatprep.subr.mxu0 0.0
    %2072 = vmatpush1.msra.mxu0 0.0
    %2073 = vmatprep.subr.mxu0 0.0
    %2074 = vmatpush1.msra.mxu0 0.0
    %2075 = vmatprep.subr.mxu0 0.0
    %2076 = vmatpush1.msra.mxu0 0.0
    %2077 = vmatprep.subr.mxu0 0.0
    %2078 = vmatpush1.msra.mxu0 0.0
    %2079 = vmatprep.mubr.f32.mxu0 0.0
    %2080 = vmatmul.mubr.f32.gmra.mrb[0].mxu0 %v2013
    %v2081 = vpop.f32.mrb[0].mxu0
    %v2082 = vadd.f32 %v953, %v2081
    %v2083 = vpop.f32.mrb[0].mxu0
    %2084 = vdwg.mxu0
    %v2085 = vmax.f32 %v2082, 0.0
    %2087 = vrot.lane.b32.xlu0 %v2085, 108
    %v2088 = vpop.permute.xlu0 %2087
    %v2089 = vsel %vm1043, %v2088, 0
    %2091 = vmatprep.subr.mxu0 0.0
    %2092 = vmatpush1.msra.mxu0 %v945
    %2093 = vmatprep.subr.mxu0 0.0
    %2094 = vmatpush1.msra.mxu0 %v946
    %2095 = vmatprep.subr.mxu0 0.0
    %2096 = vmatpush1.msra.mxu0 %v1047
    %2097 = vmatprep.subr.mxu0 0.0
    %2098 = vmatpush1.msra.mxu0 0.0
    %2099 = vmatprep.subr.mxu0 0.0
    %2100 = vmatpush1.msra.mxu0 0.0
    %2101 = vmatprep.subr.mxu0 0.0
    %2102 = vmatpush1.msra.mxu0 0.0
    %2103 = vmatprep.subr.mxu0 0.0
    %2104 = vmatpush1.msra.mxu0 0.0
    %2105 = vmatprep.subr.mxu0 0.0
    %2106 = vmatpush1.msra.mxu0 0.0
    %2107 = vmatprep.subr.mxu0 0.0
    %2108 = vmatpush1.msra.mxu0 0.0
    %2109 = vmatprep.subr.mxu0 0.0
    %2110 = vmatpush1.msra.mxu0 0.0
    %2111 = vmatprep.subr.mxu0 0.0
    %2112 = vmatpush1.msra.mxu0 0.0
    %2113 = vmatprep.subr.mxu0 0.0
    %2114 = vmatpush1.msra.mxu0 0.0
    %2115 = vmatprep.subr.mxu0 0.0
    %2116 = vmatpush1.msra.mxu0 0.0
    %2117 = vmatprep.subr.mxu0 0.0
    %2118 = vmatpush1.msra.mxu0 0.0
    %2119 = vmatprep.subr.mxu0 0.0
    %2120 = vmatpush1.msra.mxu0 0.0
    %2121 = vmatprep.subr.mxu0 0.0
    %2122 = vmatpush1.msra.mxu0 0.0
    %2123 = vmatprep.subr.mxu0 0.0
    %2124 = vmatpush1.msra.mxu0 0.0
    %2125 = vmatprep.subr.mxu0 0.0
    %2126 = vmatpush1.msra.mxu0 0.0
    %2127 = vmatprep.subr.mxu0 0.0
    %2128 = vmatpush1.msra.mxu0 0.0
    %2129 = vmatprep.subr.mxu0 0.0
    %2130 = vmatpush1.msra.mxu0 0.0
    %2131 = vmatprep.subr.mxu0 0.0
    %2132 = vmatpush1.msra.mxu0 0.0
    %2133 = vmatprep.subr.mxu0 0.0
    %2134 = vmatpush1.msra.mxu0 0.0
    %2135 = vmatprep.subr.mxu0 0.0
    %2136 = vmatpush1.msra.mxu0 0.0
    %2137 = vmatprep.subr.mxu0 0.0
    %2138 = vmatpush1.msra.mxu0 0.0
    %2139 = vmatprep.subr.mxu0 0.0
    %2140 = vmatpush1.msra.mxu0 0.0
    %2141 = vmatprep.subr.mxu0 0.0
    %2142 = vmatpush1.msra.mxu0 0.0
    %2143 = vmatprep.subr.mxu0 0.0
    %2144 = vmatpush1.msra.mxu0 0.0
    %2145 = vmatprep.subr.mxu0 0.0
    %2146 = vmatpush1.msra.mxu0 0.0
    %2147 = vmatprep.subr.mxu0 0.0
    %2148 = vmatpush1.msra.mxu0 0.0
    %2149 = vmatprep.subr.mxu0 0.0
    %2150 = vmatpush1.msra.mxu0 0.0
    %2151 = vmatprep.subr.mxu0 0.0
    %2152 = vmatpush1.msra.mxu0 0.0
    %2153 = vmatprep.subr.mxu0 0.0
    %2154 = vmatpush1.msra.mxu0 0.0
    %2155 = vmatprep.mubr.f32.mxu0 0.0
    %2156 = vmatmul.mubr.f32.gmra.mrb[0].mxu0 %v2089
    %v2157 = vpop.f32.mrb[0].mxu0
    %v2158 = vadd.f32 %v1038, %v2157
    %v2159 = vpop.f32.mrb[0].mxu0
    %2160 = vdwg.mxu0
    %2161 = vrot.lane.b32.xlu0 %v2011, 4
    %v2162 = vpop.permute.xlu0 %2161
    %vm2164 = vcmask 64544
    %2165 = vst.msk [vmem:[%s19] sm:$0xff] %vm2164, %v2162
    %2167 = vrot.lane.b32.xlu0 %v2158, 2
    %v2168 = vpop.permute.xlu0 %2167
    %vm2170 = vcmask 31760
    %2171 = vst.msk [vmem:[%s20] sm:$0xff] %vm2170, %v2168
    %s2172 = sld [smem:[#allocation2 + $0x1]]
    %vm2173 = vcmp.gt.f32.partialorder %v2082, 0.0
    %v2174 = vmul.f32 %v2082, 1.442695
    %v2175 = vpow.pop %v2174
    %v2176 = vsub.f32 %v2175, 1.0
    %v2177 = vsel %vm2173, %v2082, %v2176
    %v2179 = vsel %vm1043, %v2177, 0
    %2181 = vmatprep.subr.mxu0 0.0
    %2182 = vmatpush1.msra.mxu0 %v937
    %2183 = vmatprep.subr.mxu0 0.0
    %2184 = vmatpush1.msra.mxu0 %v938
    %2185 = vmatprep.subr.mxu0 0.0
    %2186 = vmatpush1.msra.mxu0 %v1137
    %2187 = vmatprep.subr.mxu0 0.0
    %2188 = vmatpush1.msra.mxu0 0.0
    %2189 = vmatprep.subr.mxu0 0.0
    %2190 = vmatpush1.msra.mxu0 0.0
    %2191 = vmatprep.subr.mxu0 0.0
    %2192 = vmatpush1.msra.mxu0 0.0
    %2193 = vmatprep.subr.mxu0 0.0
    %2194 = vmatpush1.msra.mxu0 0.0
    %2195 = vmatprep.subr.mxu0 0.0
    %2196 = vmatpush1.msra.mxu0 0.0
    %2197 = vmatprep.subr.mxu0 0.0
    %2198 = vmatpush1.msra.mxu0 0.0
    %2199 = vmatprep.subr.mxu0 0.0
    %2200 = vmatpush1.msra.mxu0 0.0
    %2201 = vmatprep.subr.mxu0 0.0
    %2202 = vmatpush1.msra.mxu0 0.0
    %2203 = vmatprep.subr.mxu0 0.0
    %2204 = vmatpush1.msra.mxu0 0.0
    %2205 = vmatprep.subr.mxu0 0.0
    %2206 = vmatpush1.msra.mxu0 0.0
    %2207 = vmatprep.subr.mxu0 0.0
    %2208 = vmatpush1.msra.mxu0 0.0
    %2209 = vmatprep.subr.mxu0 0.0
    %2210 = vmatpush1.msra.mxu0 0.0
    %2211 = vmatprep.subr.mxu0 0.0
    %2212 = vmatpush1.msra.mxu0 0.0
    %2213 = vmatprep.subr.mxu0 0.0
    %2214 = vmatpush1.msra.mxu0 0.0
    %2215 = vmatprep.subr.mxu0 0.0
    %2216 = vmatpush1.msra.mxu0 0.0
    %2217 = vmatprep.subr.mxu0 0.0
    %2218 = vmatpush1.msra.mxu0 0.0
    %2219 = vmatprep.subr.mxu0 0.0
    %2220 = vmatpush1.msra.mxu0 0.0
    %2221 = vmatprep.subr.mxu0 0.0
    %2222 = vmatpush1.msra.mxu0 0.0
    %2223 = vmatprep.subr.mxu0 0.0
    %2224 = vmatpush1.msra.mxu0 0.0
    %2225 = vmatprep.subr.mxu0 0.0
    %2226 = vmatpush1.msra.mxu0 0.0
    %2227 = vmatprep.subr.mxu0 0.0
    %2228 = vmatpush1.msra.mxu0 0.0
    %2229 = vmatprep.subr.mxu0 0.0
    %2230 = vmatpush1.msra.mxu0 0.0
    %2231 = vmatprep.subr.mxu0 0.0
    %2232 = vmatpush1.msra.mxu0 0.0
    %2233 = vmatprep.subr.mxu0 0.0
    %2234 = vmatpush1.msra.mxu0 0.0
    %2235 = vmatprep.subr.mxu0 0.0
    %2236 = vmatpush1.msra.mxu0 0.0
    %2237 = vmatprep.subr.mxu0 0.0
    %2238 = vmatpush1.msra.mxu0 0.0
    %2239 = vmatprep.subr.mxu0 0.0
    %2240 = vmatpush1.msra.mxu0 0.0
    %2241 = vmatprep.subr.mxu0 0.0
    %2242 = vmatpush1.msra.mxu0 0.0
    %2243 = vmatprep.subr.mxu0 0.0
    %2244 = vmatpush1.msra.mxu0 0.0
    %2245 = vmatprep.mubr.f32.mxu0 0.0
    %2246 = vmatmul.mubr.f32.gmra.mrb[0].mxu0 %v2179
    %v2247 = vpop.f32.mrb[0].mxu0
    %v2248 = vadd.f32 %v1131, %v2247
    %v2249 = vpop.f32.mrb[0].mxu0
    %2250 = vdwg.mxu0
    %vm2251 = vcmp.gt.f32.partialorder %v2248, 0.0
    %v2252 = vmul.f32 %v2248, 1.442695
    %v2253 = vpow.pop %v2252
    %v2254 = vsub.f32 %v2253, 1.0
    %v2255 = vsel %vm2251, %v2248, %v2254
    %v2257 = vsel %vm1043, %v2255, 0
    %2259 = vmatprep.subr.mxu0 0.0
    %2260 = vmatpush1.msra.mxu0 %v941
    %2261 = vmatprep.subr.mxu0 0.0
    %2262 = vmatpush1.msra.mxu0 %v942
    %2263 = vmatprep.subr.mxu0 0.0
    %2264 = vmatpush1.msra.mxu0 %v1224
    %2265 = vmatprep.subr.mxu0 0.0
    %2266 = vmatpush1.msra.mxu0 0.0
    %2267 = vmatprep.subr.mxu0 0.0
    %2268 = vmatpush1.msra.mxu0 0.0
    %2269 = vmatprep.subr.mxu0 0.0
    %2270 = vmatpush1.msra.mxu0 0.0
    %2271 = vmatprep.subr.mxu0 0.0
    %2272 = vmatpush1.msra.mxu0 0.0
    %2273 = vmatprep.subr.mxu0 0.0
    %2274 = vmatpush1.msra.mxu0 0.0
    %2275 = vmatprep.subr.mxu0 0.0
    %2276 = vmatpush1.msra.mxu0 0.0
    %2277 = vmatprep.subr.mxu0 0.0
    %2278 = vmatpush1.msra.mxu0 0.0
    %2279 = vmatprep.subr.mxu0 0.0
    %2280 = vmatpush1.msra.mxu0 0.0
    %2281 = vmatprep.subr.mxu0 0.0
    %2282 = vmatpush1.msra.mxu0 0.0
    %2283 = vmatprep.subr.mxu0 0.0
    %2284 = vmatpush1.msra.mxu0 0.0
    %2285 = vmatprep.subr.mxu0 0.0
    %2286 = vmatpush1.msra.mxu0 0.0
    %2287 = vmatprep.subr.mxu0 0.0
    %2288 = vmatpush1.msra.mxu0 0.0
    %2289 = vmatprep.subr.mxu0 0.0
    %2290 = vmatpush1.msra.mxu0 0.0
    %2291 = vmatprep.subr.mxu0 0.0
    %2292 = vmatpush1.msra.mxu0 0.0
    %2293 = vmatprep.subr.mxu0 0.0
    %2294 = vmatpush1.msra.mxu0 0.0
    %2295 = vmatprep.subr.mxu0 0.0
    %2296 = vmatpush1.msra.mxu0 0.0
    %2297 = vmatprep.subr.mxu0 0.0
    %2298 = vmatpush1.msra.mxu0 0.0
    %2299 = vmatprep.subr.mxu0 0.0
    %2300 = vmatpush1.msra.mxu0 0.0
    %2301 = vmatprep.subr.mxu0 0.0
    %2302 = vmatpush1.msra.mxu0 0.0
    %2303 = vmatprep.subr.mxu0 0.0
    %2304 = vmatpush1.msra.mxu0 0.0
    %2305 = vmatprep.subr.mxu0 0.0
    %2306 = vmatpush1.msra.mxu0 0.0
    %2307 = vmatprep.subr.mxu0 0.0
    %2308 = vmatpush1.msra.mxu0 0.0
    %2309 = vmatprep.subr.mxu0 0.0
    %2310 = vmatpush1.msra.mxu0 0.0
    %2311 = vmatprep.subr.mxu0 0.0
    %2312 = vmatpush1.msra.mxu0 0.0
    %2313 = vmatprep.subr.mxu0 0.0
    %2314 = vmatpush1.msra.mxu0 0.0
    %2315 = vmatprep.subr.mxu0 0.0
    %2316 = vmatpush1.msra.mxu0 0.0
    %2317 = vmatprep.subr.mxu0 0.0
    %2318 = vmatpush1.msra.mxu0 0.0
    %2319 = vmatprep.subr.mxu0 0.0
    %2320 = vmatpush1.msra.mxu0 0.0
    %2321 = vmatprep.subr.mxu0 0.0
    %2322 = vmatpush1.msra.mxu0 0.0
    %2323 = vmatprep.mubr.f32.mxu0 0.0
    %2324 = vmatmul.mubr.f32.gmra.mrb[0].mxu0 %v2257
    %v2325 = vpop.f32.mrb[0].mxu0
    %v2326 = vadd.f32 %v1218, %v2325
    %v2327 = vpop.f32.mrb[0].mxu0
    %2328 = vdwg.mxu0
    %s2329 = smul.f32 %s2172, 0.5
    %v2330 = vstv %s2329
    %v2331 = vmul.f32 %v2330, %v2326
    %v2332 = vadd.f32 %v2011, %v2331
    %v2334 = vsel %vm955, %v2332, 0
    %2336 = vmatprep.subr.mxu0 0.0
    %2337 = vmatpush1.msra.mxu0 %v1310
    %2338 = vmatprep.subr.mxu0 0.0
    %2339 = vmatpush1.msra.mxu0 0.0
    %2340 = vmatprep.subr.mxu0 0.0
    %2341 = vmatpush1.msra.mxu0 0.0
    %2342 = vmatprep.subr.mxu0 0.0
    %2343 = vmatpush1.msra.mxu0 0.0
    %2344 = vmatprep.subr.mxu0 0.0
    %2345 = vmatpush1.msra.mxu0 0.0
    %2346 = vmatprep.subr.mxu0 0.0
    %2347 = vmatpush1.msra.mxu0 0.0
    %2348 = vmatprep.subr.mxu0 0.0
    %2349 = vmatpush1.msra.mxu0 0.0
    %2350 = vmatprep.subr.mxu0 0.0
    %2351 = vmatpush1.msra.mxu0 0.0
    %2352 = vmatprep.subr.mxu0 0.0
    %2353 = vmatpush1.msra.mxu0 0.0
    %2354 = vmatprep.subr.mxu0 0.0
    %2355 = vmatpush1.msra.mxu0 0.0
    %2356 = vmatprep.subr.mxu0 0.0
    %2357 = vmatpush1.msra.mxu0 0.0
    %2358 = vmatprep.subr.mxu0 0.0
    %2359 = vmatpush1.msra.mxu0 0.0
    %2360 = vmatprep.subr.mxu0 0.0
    %2361 = vmatpush1.msra.mxu0 0.0
    %2362 = vmatprep.subr.mxu0 0.0
    %2363 = vmatpush1.msra.mxu0 0.0
    %2364 = vmatprep.subr.mxu0 0.0
    %2365 = vmatpush1.msra.mxu0 0.0
    %2366 = vmatprep.subr.mxu0 0.0
    %2367 = vmatpush1.msra.mxu0 0.0
    %2368 = vmatprep.subr.mxu0 0.0
    %2369 = vmatpush1.msra.mxu0 0.0
    %2370 = vmatprep.subr.mxu0 0.0
    %2371 = vmatpush1.msra.mxu0 0.0
    %2372 = vmatprep.subr.mxu0 0.0
    %2373 = vmatpush1.msra.mxu0 0.0
    %2374 = vmatprep.subr.mxu0 0.0
    %2375 = vmatpush1.msra.mxu0 0.0
    %2376 = vmatprep.subr.mxu0 0.0
    %2377 = vmatpush1.msra.mxu0 0.0
    %2378 = vmatprep.subr.mxu0 0.0
    %2379 = vmatpush1.msra.mxu0 0.0
    %2380 = vmatprep.subr.mxu0 0.0
    %2381 = vmatpush1.msra.mxu0 0.0
    %2382 = vmatprep.subr.mxu0 0.0
    %2383 = vmatpush1.msra.mxu0 0.0
    %2384 = vmatprep.subr.mxu0 0.0
    %2385 = vmatpush1.msra.mxu0 0.0
    %2386 = vmatprep.subr.mxu0 0.0
    %2387 = vmatpush1.msra.mxu0 0.0
    %2388 = vmatprep.subr.mxu0 0.0
    %2389 = vmatpush1.msra.mxu0 0.0
    %2390 = vmatprep.subr.mxu0 0.0
    %2391 = vmatpush1.msra.mxu0 0.0
    %2392 = vmatprep.subr.mxu0 0.0
    %2393 = vmatpush1.msra.mxu0 0.0
    %2394 = vmatprep.subr.mxu0 0.0
    %2395 = vmatpush1.msra.mxu0 0.0
    %2396 = vmatprep.subr.mxu0 0.0
    %2397 = vmatpush1.msra.mxu0 0.0
    %2398 = vmatprep.subr.mxu0 0.0
    %2399 = vmatpush1.msra.mxu0 0.0
    %2400 = vmatprep.mubr.f32.mxu0 0.0
    %2401 = vmatmul.mubr.f32.gmra.mrb[0].mxu0 %v2334
    %v2402 = vpop.f32.mrb[0].mxu0
    %v2403 = vadd.f32 %v1304, %v2402
    %v2404 = vpop.f32.mrb[0].mxu0
    %2405 = vdwg.mxu0
    %vm2406 = vcmp.gt.f32.partialorder %v2403, 0.0
    %v2407 = vmul.f32 %v2403, 1.442695
    %v2408 = vpow.pop %v2407
    %v2409 = vsub.f32 %v2408, 1.0
    %v2410 = vsel %vm2406, %v2403, %v2409
    %v2412 = vsel %vm1043, %v2410, 0
    %2414 = vmatprep.subr.mxu0 0.0
    %2415 = vmatpush1.msra.mxu0 %v937
    %2416 = vmatprep.subr.mxu0 0.0
    %2417 = vmatpush1.msra.mxu0 %v938
    %2418 = vmatprep.subr.mxu0 0.0
    %2419 = vmatpush1.msra.mxu0 %v1137
    %2420 = vmatprep.subr.mxu0 0.0
    %2421 = vmatpush1.msra.mxu0 0.0
    %2422 = vmatprep.subr.mxu0 0.0
    %2423 = vmatpush1.msra.mxu0 0.0
    %2424 = vmatprep.subr.mxu0 0.0
    %2425 = vmatpush1.msra.mxu0 0.0
    %2426 = vmatprep.subr.mxu0 0.0
    %2427 = vmatpush1.msra.mxu0 0.0
    %2428 = vmatprep.subr.mxu0 0.0
    %2429 = vmatpush1.msra.mxu0 0.0
    %2430 = vmatprep.subr.mxu0 0.0
    %2431 = vmatpush1.msra.mxu0 0.0
    %2432 = vmatprep.subr.mxu0 0.0
    %2433 = vmatpush1.msra.mxu0 0.0
    %2434 = vmatprep.subr.mxu0 0.0
    %2435 = vmatpush1.msra.mxu0 0.0
    %2436 = vmatprep.subr.mxu0 0.0
    %2437 = vmatpush1.msra.mxu0 0.0
    %2438 = vmatprep.subr.mxu0 0.0
    %2439 = vmatpush1.msra.mxu0 0.0
    %2440 = vmatprep.subr.mxu0 0.0
    %2441 = vmatpush1.msra.mxu0 0.0
    %2442 = vmatprep.subr.mxu0 0.0
    %2443 = vmatpush1.msra.mxu0 0.0
    %2444 = vmatprep.subr.mxu0 0.0
    %2445 = vmatpush1.msra.mxu0 0.0
    %2446 = vmatprep.subr.mxu0 0.0
    %2447 = vmatpush1.msra.mxu0 0.0
    %2448 = vmatprep.subr.mxu0 0.0
    %2449 = vmatpush1.msra.mxu0 0.0
    %2450 = vmatprep.subr.mxu0 0.0
    %2451 = vmatpush1.msra.mxu0 0.0
    %2452 = vmatprep.subr.mxu0 0.0
    %2453 = vmatpush1.msra.mxu0 0.0
    %2454 = vmatprep.subr.mxu0 0.0
    %2455 = vmatpush1.msra.mxu0 0.0
    %2456 = vmatprep.subr.mxu0 0.0
    %2457 = vmatpush1.msra.mxu0 0.0
    %2458 = vmatprep.subr.mxu0 0.0
    %2459 = vmatpush1.msra.mxu0 0.0
    %2460 = vmatprep.subr.mxu0 0.0
    %2461 = vmatpush1.msra.mxu0 0.0
    %2462 = vmatprep.subr.mxu0 0.0
    %2463 = vmatpush1.msra.mxu0 0.0
    %2464 = vmatprep.subr.mxu0 0.0
    %2465 = vmatpush1.msra.mxu0 0.0
    %2466 = vmatprep.subr.mxu0 0.0
    %2467 = vmatpush1.msra.mxu0 0.0
    %2468 = vmatprep.subr.mxu0 0.0
    %2469 = vmatpush1.msra.mxu0 0.0
    %2470 = vmatprep.subr.mxu0 0.0
    %2471 = vmatpush1.msra.mxu0 0.0
    %2472 = vmatprep.subr.mxu0 0.0
    %2473 = vmatpush1.msra.mxu0 0.0
    %2474 = vmatprep.subr.mxu0 0.0
    %2475 = vmatpush1.msra.mxu0 0.0
    %2476 = vmatprep.subr.mxu0 0.0
    %2477 = vmatpush1.msra.mxu0 0.0
    %2478 = vmatprep.mubr.f32.mxu0 0.0
    %2479 = vmatmul.mubr.f32.gmra.mrb[0].mxu0 %v2412
    %v2480 = vpop.f32.mrb[0].mxu0
    %v2481 = vadd.f32 %v1131, %v2480
    %v2482 = vpop.f32.mrb[0].mxu0
    %2483 = vdwg.mxu0
    %vm2484 = vcmp.gt.f32.partialorder %v2481, 0.0
    %v2485 = vmul.f32 %v2481, 1.442695
    %v2486 = vpow.pop %v2485
    %v2487 = vsub.f32 %v2486, 1.0
    %v2488 = vsel %vm2484, %v2481, %v2487
    %v2490 = vsel %vm1043, %v2488, 0
    %2492 = vmatprep.subr.mxu0 0.0
    %2493 = vmatpush1.msra.mxu0 %v941
    %2494 = vmatprep.subr.mxu0 0.0
    %2495 = vmatpush1.msra.mxu0 %v942
    %2496 = vmatprep.subr.mxu0 0.0
    %2497 = vmatpush1.msra.mxu0 %v1224
    %2498 = vmatprep.subr.mxu0 0.0
    %2499 = vmatpush1.msra.mxu0 0.0
    %2500 = vmatprep.subr.mxu0 0.0
    %2501 = vmatpush1.msra.mxu0 0.0
    %2502 = vmatprep.subr.mxu0 0.0
    %2503 = vmatpush1.msra.mxu0 0.0
    %2504 = vmatprep.subr.mxu0 0.0
    %2505 = vmatpush1.msra.mxu0 0.0
    %2506 = vmatprep.subr.mxu0 0.0
    %2507 = vmatpush1.msra.mxu0 0.0
    %2508 = vmatprep.subr.mxu0 0.0
    %2509 = vmatpush1.msra.mxu0 0.0
    %2510 = vmatprep.subr.mxu0 0.0
    %2511 = vmatpush1.msra.mxu0 0.0
    %2512 = vmatprep.subr.mxu0 0.0
    %2513 = vmatpush1.msra.mxu0 0.0
    %2514 = vmatprep.subr.mxu0 0.0
    %2515 = vmatpush1.msra.mxu0 0.0
    %2516 = vmatprep.subr.mxu0 0.0
    %2517 = vmatpush1.msra.mxu0 0.0
    %2518 = vmatprep.subr.mxu0 0.0
    %2519 = vmatpush1.msra.mxu0 0.0
    %2520 = vmatprep.subr.mxu0 0.0
    %2521 = vmatpush1.msra.mxu0 0.0
    %2522 = vmatprep.subr.mxu0 0.0
    %2523 = vmatpush1.msra.mxu0 0.0
    %2524 = vmatprep.subr.mxu0 0.0
    %2525 = vmatpush1.msra.mxu0 0.0
    %2526 = vmatprep.subr.mxu0 0.0
    %2527 = vmatpush1.msra.mxu0 0.0
    %2528 = vmatprep.subr.mxu0 0.0
    %2529 = vmatpush1.msra.mxu0 0.0
    %2530 = vmatprep.subr.mxu0 0.0
    %2531 = vmatpush1.msra.mxu0 0.0
    %2532 = vmatprep.subr.mxu0 0.0
    %2533 = vmatpush1.msra.mxu0 0.0
    %2534 = vmatprep.subr.mxu0 0.0
    %2535 = vmatpush1.msra.mxu0 0.0
    %2536 = vmatprep.subr.mxu0 0.0
    %2537 = vmatpush1.msra.mxu0 0.0
    %2538 = vmatprep.subr.mxu0 0.0
    %2539 = vmatpush1.msra.mxu0 0.0
    %2540 = vmatprep.subr.mxu0 0.0
    %2541 = vmatpush1.msra.mxu0 0.0
    %2542 = vmatprep.subr.mxu0 0.0
    %2543 = vmatpush1.msra.mxu0 0.0
    %2544 = vmatprep.subr.mxu0 0.0
    %2545 = vmatpush1.msra.mxu0 0.0
    %2546 = vmatprep.subr.mxu0 0.0
    %2547 = vmatpush1.msra.mxu0 0.0
    %2548 = vmatprep.subr.mxu0 0.0
    %2549 = vmatpush1.msra.mxu0 0.0
    %2550 = vmatprep.subr.mxu0 0.0
    %2551 = vmatpush1.msra.mxu0 0.0
    %2552 = vmatprep.subr.mxu0 0.0
    %2553 = vmatpush1.msra.mxu0 0.0
    %2554 = vmatprep.subr.mxu0 0.0
    %2555 = vmatpush1.msra.mxu0 0.0
    %2556 = vmatprep.mubr.f32.mxu0 0.0
    %2557 = vmatmul.mubr.f32.gmra.mrb[0].mxu0 %v2490
    %v2558 = vpop.f32.mrb[0].mxu0
    %v2559 = vadd.f32 %v1218, %v2558
    %v2560 = vpop.f32.mrb[0].mxu0
    %2561 = vdwg.mxu0
    %v2562 = vmul.f32 %v2330, %v2559
    %v2563 = vadd.f32 %v2011, %v2562
    %v2565 = vsel %vm955, %v2563, 0
    %2567 = vmatprep.subr.mxu0 0.0
    %2568 = vmatpush1.msra.mxu0 %v1310
    %2569 = vmatprep.subr.mxu0 0.0
    %2570 = vmatpush1.msra.mxu0 0.0
    %2571 = vmatprep.subr.mxu0 0.0
    %2572 = vmatpush1.msra.mxu0 0.0
    %2573 = vmatprep.subr.mxu0 0.0
    %2574 = vmatpush1.msra.mxu0 0.0
    %2575 = vmatprep.subr.mxu0 0.0
    %2576 = vmatpush1.msra.mxu0 0.0
    %2577 = vmatprep.subr.mxu0 0.0
    %2578 = vmatpush1.msra.mxu0 0.0
    %2579 = vmatprep.subr.mxu0 0.0
    %2580 = vmatpush1.msra.mxu0 0.0
    %2581 = vmatprep.subr.mxu0 0.0
    %2582 = vmatpush1.msra.mxu0 0.0
    %2583 = vmatprep.subr.mxu0 0.0
    %2584 = vmatpush1.msra.mxu0 0.0
    %2585 = vmatprep.subr.mxu0 0.0
    %2586 = vmatpush1.msra.mxu0 0.0
    %2587 = vmatprep.subr.mxu0 0.0
    %2588 = vmatpush1.msra.mxu0 0.0
    %2589 = vmatprep.subr.mxu0 0.0
    %2590 = vmatpush1.msra.mxu0 0.0
    %2591 = vmatprep.subr.mxu0 0.0
    %2592 = vmatpush1.msra.mxu0 0.0
    %2593 = vmatprep.subr.mxu0 0.0
    %2594 = vmatpush1.msra.mxu0 0.0
    %2595 = vmatprep.subr.mxu0 0.0
    %2596 = vmatpush1.msra.mxu0 0.0
    %2597 = vmatprep.subr.mxu0 0.0
    %2598 = vmatpush1.msra.mxu0 0.0
    %2599 = vmatprep.subr.mxu0 0.0
    %2600 = vmatpush1.msra.mxu0 0.0
    %2601 = vmatprep.subr.mxu0 0.0
    %2602 = vmatpush1.msra.mxu0 0.0
    %2603 = vmatprep.subr.mxu0 0.0
    %2604 = vmatpush1.msra.mxu0 0.0
    %2605 = vmatprep.subr.mxu0 0.0
    %2606 = vmatpush1.msra.mxu0 0.0
    %2607 = vmatprep.subr.mxu0 0.0
    %2608 = vmatpush1.msra.mxu0 0.0
    %2609 = vmatprep.subr.mxu0 0.0
    %2610 = vmatpush1.msra.mxu0 0.0
    %2611 = vmatprep.subr.mxu0 0.0
    %2612 = vmatpush1.msra.mxu0 0.0
    %2613 = vmatprep.subr.mxu0 0.0
    %2614 = vmatpush1.msra.mxu0 0.0
    %2615 = vmatprep.subr.mxu0 0.0
    %2616 = vmatpush1.msra.mxu0 0.0
    %2617 = vmatprep.subr.mxu0 0.0
    %2618 = vmatpush1.msra.mxu0 0.0
    %2619 = vmatprep.subr.mxu0 0.0
    %2620 = vmatpush1.msra.mxu0 0.0
    %2621 = vmatprep.subr.mxu0 0.0
    %2622 = vmatpush1.msra.mxu0 0.0
    %2623 = vmatprep.subr.mxu0 0.0
    %2624 = vmatpush1.msra.mxu0 0.0
    %2625 = vmatprep.subr.mxu0 0.0
    %2626 = vmatpush1.msra.mxu0 0.0
    %2627 = vmatprep.subr.mxu0 0.0
    %2628 = vmatpush1.msra.mxu0 0.0
    %2629 = vmatprep.subr.mxu0 0.0
    %2630 = vmatpush1.msra.mxu0 0.0
    %2631 = vmatprep.mubr.f32.mxu0 0.0
    %2632 = vmatmul.mubr.f32.gmra.mrb[0].mxu0 %v2565
    %v2633 = vpop.f32.mrb[0].mxu0
    %v2634 = vadd.f32 %v1304, %v2633
    %v2635 = vpop.f32.mrb[0].mxu0
    %2636 = vdwg.mxu0
    %vm2637 = vcmp.gt.f32.partialorder %v2634, 0.0
    %v2638 = vmul.f32 %v2634, 1.442695
    %v2639 = vpow.pop %v2638
    %v2640 = vsub.f32 %v2639, 1.0
    %v2641 = vsel %vm2637, %v2634, %v2640
    %v2643 = vsel %vm1043, %v2641, 0
    %2645 = vmatprep.subr.mxu0 0.0
    %2646 = vmatpush1.msra.mxu0 %v937
    %2647 = vmatprep.subr.mxu0 0.0
    %2648 = vmatpush1.msra.mxu0 %v938
    %2649 = vmatprep.subr.mxu0 0.0
    %2650 = vmatpush1.msra.mxu0 %v1137
    %2651 = vmatprep.subr.mxu0 0.0
    %2652 = vmatpush1.msra.mxu0 0.0
    %2653 = vmatprep.subr.mxu0 0.0
    %2654 = vmatpush1.msra.mxu0 0.0
    %2655 = vmatprep.subr.mxu0 0.0
    %2656 = vmatpush1.msra.mxu0 0.0
    %2657 = vmatprep.subr.mxu0 0.0
    %2658 = vmatpush1.msra.mxu0 0.0
    %2659 = vmatprep.subr.mxu0 0.0
    %2660 = vmatpush1.msra.mxu0 0.0
    %2661 = vmatprep.subr.mxu0 0.0
    %2662 = vmatpush1.msra.mxu0 0.0
    %2663 = vmatprep.subr.mxu0 0.0
    %2664 = vmatpush1.msra.mxu0 0.0
    %2665 = vmatprep.subr.mxu0 0.0
    %2666 = vmatpush1.msra.mxu0 0.0
    %2667 = vmatprep.subr.mxu0 0.0
    %2668 = vmatpush1.msra.mxu0 0.0
    %2669 = vmatprep.subr.mxu0 0.0
    %2670 = vmatpush1.msra.mxu0 0.0
    %2671 = vmatprep.subr.mxu0 0.0
    %2672 = vmatpush1.msra.mxu0 0.0
    %2673 = vmatprep.subr.mxu0 0.0
    %2674 = vmatpush1.msra.mxu0 0.0
    %2675 = vmatprep.subr.mxu0 0.0
    %2676 = vmatpush1.msra.mxu0 0.0
    %2677 = vmatprep.subr.mxu0 0.0
    %2678 = vmatpush1.msra.mxu0 0.0
    %2679 = vmatprep.subr.mxu0 0.0
    %2680 = vmatpush1.msra.mxu0 0.0
    %2681 = vmatprep.subr.mxu0 0.0
    %2682 = vmatpush1.msra.mxu0 0.0
    %2683 = vmatprep.subr.mxu0 0.0
    %2684 = vmatpush1.msra.mxu0 0.0
    %2685 = vmatprep.subr.mxu0 0.0
    %2686 = vmatpush1.msra.mxu0 0.0
    %2687 = vmatprep.subr.mxu0 0.0
    %2688 = vmatpush1.msra.mxu0 0.0
    %2689 = vmatprep.subr.mxu0 0.0
    %2690 = vmatpush1.msra.mxu0 0.0
    %2691 = vmatprep.subr.mxu0 0.0
    %2692 = vmatpush1.msra.mxu0 0.0
    %2693 = vmatprep.subr.mxu0 0.0
    %2694 = vmatpush1.msra.mxu0 0.0
    %2695 = vmatprep.subr.mxu0 0.0
    %2696 = vmatpush1.msra.mxu0 0.0
    %2697 = vmatprep.subr.mxu0 0.0
    %2698 = vmatpush1.msra.mxu0 0.0
    %2699 = vmatprep.subr.mxu0 0.0
    %2700 = vmatpush1.msra.mxu0 0.0
    %2701 = vmatprep.subr.mxu0 0.0
    %2702 = vmatpush1.msra.mxu0 0.0
    %2703 = vmatprep.subr.mxu0 0.0
    %2704 = vmatpush1.msra.mxu0 0.0
    %2705 = vmatprep.subr.mxu0 0.0
    %2706 = vmatpush1.msra.mxu0 0.0
    %2707 = vmatprep.subr.mxu0 0.0
    %2708 = vmatpush1.msra.mxu0 0.0
    %2709 = vmatprep.mubr.f32.mxu0 0.0
    %2710 = vmatmul.mubr.f32.gmra.mrb[0].mxu0 %v2643
    %v2711 = vpop.f32.mrb[0].mxu0
    %v2712 = vadd.f32 %v1131, %v2711
    %v2713 = vpop.f32.mrb[0].mxu0
    %2714 = vdwg.mxu0
    %vm2715 = vcmp.gt.f32.partialorder %v2712, 0.0
    %v2716 = vmul.f32 %v2712, 1.442695
    %v2717 = vpow.pop %v2716
    %v2718 = vsub.f32 %v2717, 1.0
    %v2719 = vsel %vm2715, %v2712, %v2718
    %v2721 = vsel %vm1043, %v2719, 0
    %2723 = vmatprep.subr.mxu0 0.0
    %2724 = vmatpush1.msra.mxu0 %v941
    %2725 = vmatprep.subr.mxu0 0.0
    %2726 = vmatpush1.msra.mxu0 %v942
    %2727 = vmatprep.subr.mxu0 0.0
    %2728 = vmatpush1.msra.mxu0 %v1224
    %2729 = vmatprep.subr.mxu0 0.0
    %2730 = vmatpush1.msra.mxu0 0.0
    %2731 = vmatprep.subr.mxu0 0.0
    %2732 = vmatpush1.msra.mxu0 0.0
    %2733 = vmatprep.subr.mxu0 0.0
    %2734 = vmatpush1.msra.mxu0 0.0
    %2735 = vmatprep.subr.mxu0 0.0
    %2736 = vmatpush1.msra.mxu0 0.0
    %2737 = vmatprep.subr.mxu0 0.0
    %2738 = vmatpush1.msra.mxu0 0.0
    %2739 = vmatprep.subr.mxu0 0.0
    %2740 = vmatpush1.msra.mxu0 0.0
    %2741 = vmatprep.subr.mxu0 0.0
    %2742 = vmatpush1.msra.mxu0 0.0
    %2743 = vmatprep.subr.mxu0 0.0
    %2744 = vmatpush1.msra.mxu0 0.0
    %2745 = vmatprep.subr.mxu0 0.0
    %2746 = vmatpush1.msra.mxu0 0.0
    %2747 = vmatprep.subr.mxu0 0.0
    %2748 = vmatpush1.msra.mxu0 0.0
    %2749 = vmatprep.subr.mxu0 0.0
    %2750 = vmatpush1.msra.mxu0 0.0
    %2751 = vmatprep.subr.mxu0 0.0
    %2752 = vmatpush1.msra.mxu0 0.0
    %2753 = vmatprep.subr.mxu0 0.0
    %2754 = vmatpush1.msra.mxu0 0.0
    %2755 = vmatprep.subr.mxu0 0.0
    %2756 = vmatpush1.msra.mxu0 0.0
    %2757 = vmatprep.subr.mxu0 0.0
    %2758 = vmatpush1.msra.mxu0 0.0
    %2759 = vmatprep.subr.mxu0 0.0
    %2760 = vmatpush1.msra.mxu0 0.0
    %2761 = vmatprep.subr.mxu0 0.0
    %2762 = vmatpush1.msra.mxu0 0.0
    %2763 = vmatprep.subr.mxu0 0.0
    %2764 = vmatpush1.msra.mxu0 0.0
    %2765 = vmatprep.subr.mxu0 0.0
    %2766 = vmatpush1.msra.mxu0 0.0
    %2767 = vmatprep.subr.mxu0 0.0
    %2768 = vmatpush1.msra.mxu0 0.0
    %2769 = vmatprep.subr.mxu0 0.0
    %2770 = vmatpush1.msra.mxu0 0.0
    %2771 = vmatprep.subr.mxu0 0.0
    %2772 = vmatpush1.msra.mxu0 0.0
    %2773 = vmatprep.subr.mxu0 0.0
    %2774 = vmatpush1.msra.mxu0 0.0
    %2775 = vmatprep.subr.mxu0 0.0
    %2776 = vmatpush1.msra.mxu0 0.0
    %2777 = vmatprep.subr.mxu0 0.0
    %2778 = vmatpush1.msra.mxu0 0.0
    %2779 = vmatprep.subr.mxu0 0.0
    %2780 = vmatpush1.msra.mxu0 0.0
    %2781 = vmatprep.subr.mxu0 0.0
    %2782 = vmatpush1.msra.mxu0 0.0
    %2783 = vmatprep.subr.mxu0 0.0
    %2784 = vmatpush1.msra.mxu0 0.0
    %2785 = vmatprep.subr.mxu0 0.0
    %2786 = vmatpush1.msra.mxu0 0.0
    %2787 = vmatprep.mubr.f32.mxu0 0.0
    %2788 = vmatmul.mubr.f32.gmra.mrb[0].mxu0 %v2721
    %v2789 = vpop.f32.mrb[0].mxu0
    %v2790 = vadd.f32 %v1218, %v2789
    %v2791 = vpop.f32.mrb[0].mxu0
    %2792 = vdwg.mxu0
    %v2793 = vstv %s2172
    %v2794 = vmul.f32 %v2793, %v2790
    %v2795 = vadd.f32 %v2011, %v2794
    %v2797 = vsel %vm955, %v2795, 0
    %2799 = vmatprep.subr.mxu0 0.0
    %2800 = vmatpush1.msra.mxu0 %v1310
    %2801 = vmatprep.subr.mxu0 0.0
    %2802 = vmatpush1.msra.mxu0 0.0
    %2803 = vmatprep.subr.mxu0 0.0
    %2804 = vmatpush1.msra.mxu0 0.0
    %2805 = vmatprep.subr.mxu0 0.0
    %2806 = vmatpush1.msra.mxu0 0.0
    %2807 = vmatprep.subr.mxu0 0.0
    %2808 = vmatpush1.msra.mxu0 0.0
    %2809 = vmatprep.subr.mxu0 0.0
    %2810 = vmatpush1.msra.mxu0 0.0
    %2811 = vmatprep.subr.mxu0 0.0
    %2812 = vmatpush1.msra.mxu0 0.0
    %2813 = vmatprep.subr.mxu0 0.0
    %2814 = vmatpush1.msra.mxu0 0.0
    %2815 = vmatprep.subr.mxu0 0.0
    %2816 = vmatpush1.msra.mxu0 0.0
    %2817 = vmatprep.subr.mxu0 0.0
    %2818 = vmatpush1.msra.mxu0 0.0
    %2819 = vmatprep.subr.mxu0 0.0
    %2820 = vmatpush1.msra.mxu0 0.0
    %2821 = vmatprep.subr.mxu0 0.0
    %2822 = vmatpush1.msra.mxu0 0.0
    %2823 = vmatprep.subr.mxu0 0.0
    %2824 = vmatpush1.msra.mxu0 0.0
    %2825 = vmatprep.subr.mxu0 0.0
    %2826 = vmatpush1.msra.mxu0 0.0
    %2827 = vmatprep.subr.mxu0 0.0
    %2828 = vmatpush1.msra.mxu0 0.0
    %2829 = vmatprep.subr.mxu0 0.0
    %2830 = vmatpush1.msra.mxu0 0.0
    %2831 = vmatprep.subr.mxu0 0.0
    %2832 = vmatpush1.msra.mxu0 0.0
    %2833 = vmatprep.subr.mxu0 0.0
    %2834 = vmatpush1.msra.mxu0 0.0
    %2835 = vmatprep.subr.mxu0 0.0
    %2836 = vmatpush1.msra.mxu0 0.0
    %2837 = vmatprep.subr.mxu0 0.0
    %2838 = vmatpush1.msra.mxu0 0.0
    %2839 = vmatprep.subr.mxu0 0.0
    %2840 = vmatpush1.msra.mxu0 0.0
    %2841 = vmatprep.subr.mxu0 0.0
    %2842 = vmatpush1.msra.mxu0 0.0
    %2843 = vmatprep.subr.mxu0 0.0
    %2844 = vmatpush1.msra.mxu0 0.0
    %2845 = vmatprep.subr.mxu0 0.0
    %2846 = vmatpush1.msra.mxu0 0.0
    %2847 = vmatprep.subr.mxu0 0.0
    %2848 = vmatpush1.msra.mxu0 0.0
    %2849 = vmatprep.subr.mxu0 0.0
    %2850 = vmatpush1.msra.mxu0 0.0
    %2851 = vmatprep.subr.mxu0 0.0
    %2852 = vmatpush1.msra.mxu0 0.0
    %2853 = vmatprep.subr.mxu0 0.0
    %2854 = vmatpush1.msra.mxu0 0.0
    %2855 = vmatprep.subr.mxu0 0.0
    %2856 = vmatpush1.msra.mxu0 0.0
    %2857 = vmatprep.subr.mxu0 0.0
    %2858 = vmatpush1.msra.mxu0 0.0
    %2859 = vmatprep.subr.mxu0 0.0
    %2860 = vmatpush1.msra.mxu0 0.0
    %2861 = vmatprep.subr.mxu0 0.0
    %2862 = vmatpush1.msra.mxu0 0.0
    %2863 = vmatprep.mubr.f32.mxu0 0.0
    %2864 = vmatmul.mubr.f32.gmra.mrb[0].mxu0 %v2797
    %v2865 = vpop.f32.mrb[0].mxu0
    %v2866 = vadd.f32 %v1304, %v2865
    %v2867 = vpop.f32.mrb[0].mxu0
    %2868 = vdwg.mxu0
    %vm2869 = vcmp.gt.f32.partialorder %v2866, 0.0
    %v2870 = vmul.f32 %v2866, 1.442695
    %v2871 = vpow.pop %v2870
    %v2872 = vsub.f32 %v2871, 1.0
    %v2873 = vsel %vm2869, %v2866, %v2872
    %v2875 = vsel %vm1043, %v2873, 0
    %2877 = vmatprep.subr.mxu0 0.0
    %2878 = vmatpush1.msra.mxu0 %v937
    %2879 = vmatprep.subr.mxu0 0.0
    %2880 = vmatpush1.msra.mxu0 %v938
    %2881 = vmatprep.subr.mxu0 0.0
    %2882 = vmatpush1.msra.mxu0 %v1137
    %2883 = vmatprep.subr.mxu0 0.0
    %2884 = vmatpush1.msra.mxu0 0.0
    %2885 = vmatprep.subr.mxu0 0.0
    %2886 = vmatpush1.msra.mxu0 0.0
    %2887 = vmatprep.subr.mxu0 0.0
    %2888 = vmatpush1.msra.mxu0 0.0
    %2889 = vmatprep.subr.mxu0 0.0
    %2890 = vmatpush1.msra.mxu0 0.0
    %2891 = vmatprep.subr.mxu0 0.0
    %2892 = vmatpush1.msra.mxu0 0.0
    %2893 = vmatprep.subr.mxu0 0.0
    %2894 = vmatpush1.msra.mxu0 0.0
    %2895 = vmatprep.subr.mxu0 0.0
    %2896 = vmatpush1.msra.mxu0 0.0
    %2897 = vmatprep.subr.mxu0 0.0
    %2898 = vmatpush1.msra.mxu0 0.0
    %2899 = vmatprep.subr.mxu0 0.0
    %2900 = vmatpush1.msra.mxu0 0.0
    %2901 = vmatprep.subr.mxu0 0.0
    %2902 = vmatpush1.msra.mxu0 0.0
    %2903 = vmatprep.subr.mxu0 0.0
    %2904 = vmatpush1.msra.mxu0 0.0
    %2905 = vmatprep.subr.mxu0 0.0
    %2906 = vmatpush1.msra.mxu0 0.0
    %2907 = vmatprep.subr.mxu0 0.0
    %2908 = vmatpush1.msra.mxu0 0.0
    %2909 = vmatprep.subr.mxu0 0.0
    %2910 = vmatpush1.msra.mxu0 0.0
    %2911 = vmatprep.subr.mxu0 0.0
    %2912 = vmatpush1.msra.mxu0 0.0
    %2913 = vmatprep.subr.mxu0 0.0
    %2914 = vmatpush1.msra.mxu0 0.0
    %2915 = vmatprep.subr.mxu0 0.0
    %2916 = vmatpush1.msra.mxu0 0.0
    %2917 = vmatprep.subr.mxu0 0.0
    %2918 = vmatpush1.msra.mxu0 0.0
    %2919 = vmatprep.subr.mxu0 0.0
    %2920 = vmatpush1.msra.mxu0 0.0
    %2921 = vmatprep.subr.mxu0 0.0
    %2922 = vmatpush1.msra.mxu0 0.0
    %2923 = vmatprep.subr.mxu0 0.0
    %2924 = vmatpush1.msra.mxu0 0.0
    %2925 = vmatprep.subr.mxu0 0.0
    %2926 = vmatpush1.msra.mxu0 0.0
    %2927 = vmatprep.subr.mxu0 0.0
    %2928 = vmatpush1.msra.mxu0 0.0
    %2929 = vmatprep.subr.mxu0 0.0
    %2930 = vmatpush1.msra.mxu0 0.0
    %2931 = vmatprep.subr.mxu0 0.0
    %2932 = vmatpush1.msra.mxu0 0.0
    %2933 = vmatprep.subr.mxu0 0.0
    %2934 = vmatpush1.msra.mxu0 0.0
    %2935 = vmatprep.subr.mxu0 0.0
    %2936 = vmatpush1.msra.mxu0 0.0
    %2937 = vmatprep.subr.mxu0 0.0
    %2938 = vmatpush1.msra.mxu0 0.0
    %2939 = vmatprep.subr.mxu0 0.0
    %2940 = vmatpush1.msra.mxu0 0.0
    %2941 = vmatprep.mubr.f32.mxu0 0.0
    %2942 = vmatmul.mubr.f32.gmra.mrb[0].mxu0 %v2875
    %v2943 = vpop.f32.mrb[0].mxu0
    %v2944 = vadd.f32 %v1131, %v2943
    %v2945 = vpop.f32.mrb[0].mxu0
    %2946 = vdwg.mxu0
    %vm2947 = vcmp.gt.f32.partialorder %v2944, 0.0
    %v2948 = vmul.f32 %v2944, 1.442695
    %v2949 = vpow.pop %v2948
    %v2950 = vsub.f32 %v2949, 1.0
    %v2951 = vsel %vm2947, %v2944, %v2950
    %v2953 = vsel %vm1043, %v2951, 0
    %2955 = vmatprep.subr.mxu0 0.0
    %2956 = vmatpush1.msra.mxu0 %v941
    %2957 = vmatprep.subr.mxu0 0.0
    %2958 = vmatpush1.msra.mxu0 %v942
    %2959 = vmatprep.subr.mxu0 0.0
    %2960 = vmatpush1.msra.mxu0 %v1224
    %2961 = vmatprep.subr.mxu0 0.0
    %2962 = vmatpush1.msra.mxu0 0.0
    %2963 = vmatprep.subr.mxu0 0.0
    %2964 = vmatpush1.msra.mxu0 0.0
    %2965 = vmatprep.subr.mxu0 0.0
    %2966 = vmatpush1.msra.mxu0 0.0
    %2967 = vmatprep.subr.mxu0 0.0
    %2968 = vmatpush1.msra.mxu0 0.0
    %2969 = vmatprep.subr.mxu0 0.0
    %2970 = vmatpush1.msra.mxu0 0.0
    %2971 = vmatprep.subr.mxu0 0.0
    %2972 = vmatpush1.msra.mxu0 0.0
    %2973 = vmatprep.subr.mxu0 0.0
    %2974 = vmatpush1.msra.mxu0 0.0
    %2975 = vmatprep.subr.mxu0 0.0
    %2976 = vmatpush1.msra.mxu0 0.0
    %2977 = vmatprep.subr.mxu0 0.0
    %2978 = vmatpush1.msra.mxu0 0.0
    %2979 = vmatprep.subr.mxu0 0.0
    %2980 = vmatpush1.msra.mxu0 0.0
    %2981 = vmatprep.subr.mxu0 0.0
    %2982 = vmatpush1.msra.mxu0 0.0
    %2983 = vmatprep.subr.mxu0 0.0
    %2984 = vmatpush1.msra.mxu0 0.0
    %2985 = vmatprep.subr.mxu0 0.0
    %2986 = vmatpush1.msra.mxu0 0.0
    %2987 = vmatprep.subr.mxu0 0.0
    %2988 = vmatpush1.msra.mxu0 0.0
    %2989 = vmatprep.subr.mxu0 0.0
    %2990 = vmatpush1.msra.mxu0 0.0
    %2991 = vmatprep.subr.mxu0 0.0
    %2992 = vmatpush1.msra.mxu0 0.0
    %2993 = vmatprep.subr.mxu0 0.0
    %2994 = vmatpush1.msra.mxu0 0.0
    %2995 = vmatprep.subr.mxu0 0.0
    %2996 = vmatpush1.msra.mxu0 0.0
    %2997 = vmatprep.subr.mxu0 0.0
    %2998 = vmatpush1.msra.mxu0 0.0
    %2999 = vmatprep.subr.mxu0 0.0
    %3000 = vmatpush1.msra.mxu0 0.0
    %3001 = vmatprep.subr.mxu0 0.0
    %3002 = vmatpush1.msra.mxu0 0.0
    %3003 = vmatprep.subr.mxu0 0.0
    %3004 = vmatpush1.msra.mxu0 0.0
    %3005 = vmatprep.subr.mxu0 0.0
    %3006 = vmatpush1.msra.mxu0 0.0
    %3007 = vmatprep.subr.mxu0 0.0
    %3008 = vmatpush1.msra.mxu0 0.0
    %3009 = vmatprep.subr.mxu0 0.0
    %3010 = vmatpush1.msra.mxu0 0.0
    %3011 = vmatprep.subr.mxu0 0.0
    %3012 = vmatpush1.msra.mxu0 0.0
    %3013 = vmatprep.subr.mxu0 0.0
    %3014 = vmatpush1.msra.mxu0 0.0
    %3015 = vmatprep.subr.mxu0 0.0
    %3016 = vmatpush1.msra.mxu0 0.0
    %3017 = vmatprep.subr.mxu0 0.0
    %3018 = vmatpush1.msra.mxu0 0.0
    %3019 = vmatprep.mubr.f32.mxu0 0.0
    %3020 = vmatmul.mubr.f32.gmra.mrb[0].mxu0 %v2953
    %v3021 = vpop.f32.mrb[0].mxu0
    %v3022 = vadd.f32 %v1218, %v3021
    %v3023 = vpop.f32.mrb[0].mxu0
    %3024 = vdwg.mxu0
    %v3025 = vrcp.pop 6.0
    %s3026 = vtos %v3025
    %s3027 = smul.f32 %s2172, %s3026
    %v3028 = vmul.f32 %v2559, 2.0
    %v3029 = vadd.f32 %v2326, %v3028
    %v3030 = vmul.f32 %v2790, 2.0
    %v3031 = vadd.f32 %v3029, %v3030
    %v3032 = vadd.f32 %v3031, %v3022
    %v3033 = vstv %s3027
    %v3034 = vmul.f32 %v3033, %v3032
    %v3035 = vadd.f32 %v2011, %v3034
    %v3037 = vsel %vm955, %v3035, 0
    %3039 = vmatprep.subr.mxu0 0.0
    %3040 = vmatpush1.msra.mxu0 %v961
    %3041 = vmatprep.subr.mxu0 0.0
    %3042 = vmatpush1.msra.mxu0 0.0
    %3043 = vmatprep.subr.mxu0 0.0
    %3044 = vmatpush1.msra.mxu0 0.0
    %3045 = vmatprep.subr.mxu0 0.0
    %3046 = vmatpush1.msra.mxu0 0.0
    %3047 = vmatprep.subr.mxu0 0.0
    %3048 = vmatpush1.msra.mxu0 0.0
    %3049 = vmatprep.subr.mxu0 0.0
    %3050 = vmatpush1.msra.mxu0 0.0
    %3051 = vmatprep.subr.mxu0 0.0
    %3052 = vmatpush1.msra.mxu0 0.0
    %3053 = vmatprep.subr.mxu0 0.0
    %3054 = vmatpush1.msra.mxu0 0.0
    %3055 = vmatprep.subr.mxu0 0.0
    %3056 = vmatpush1.msra.mxu0 0.0
    %3057 = vmatprep.subr.mxu0 0.0
    %3058 = vmatpush1.msra.mxu0 0.0
    %3059 = vmatprep.subr.mxu0 0.0
    %3060 = vmatpush1.msra.mxu0 0.0
    %3061 = vmatprep.subr.mxu0 0.0
    %3062 = vmatpush1.msra.mxu0 0.0
    %3063 = vmatprep.subr.mxu0 0.0
    %3064 = vmatpush1.msra.mxu0 0.0
    %3065 = vmatprep.subr.mxu0 0.0
    %3066 = vmatpush1.msra.mxu0 0.0
    %3067 = vmatprep.subr.mxu0 0.0
    %3068 = vmatpush1.msra.mxu0 0.0
    %3069 = vmatprep.subr.mxu0 0.0
    %3070 = vmatpush1.msra.mxu0 0.0
    %3071 = vmatprep.subr.mxu0 0.0
    %3072 = vmatpush1.msra.mxu0 0.0
    %3073 = vmatprep.subr.mxu0 0.0
    %3074 = vmatpush1.msra.mxu0 0.0
    %3075 = vmatprep.subr.mxu0 0.0
    %3076 = vmatpush1.msra.mxu0 0.0
    %3077 = vmatprep.subr.mxu0 0.0
    %3078 = vmatpush1.msra.mxu0 0.0
    %3079 = vmatprep.subr.mxu0 0.0
    %3080 = vmatpush1.msra.mxu0 0.0
    %3081 = vmatprep.subr.mxu0 0.0
    %3082 = vmatpush1.msra.mxu0 0.0
    %3083 = vmatprep.subr.mxu0 0.0
    %3084 = vmatpush1.msra.mxu0 0.0
    %3085 = vmatprep.subr.mxu0 0.0
    %3086 = vmatpush1.msra.mxu0 0.0
    %3087 = vmatprep.subr.mxu0 0.0
    %3088 = vmatpush1.msra.mxu0 0.0
    %3089 = vmatprep.subr.mxu0 0.0
    %3090 = vmatpush1.msra.mxu0 0.0
    %3091 = vmatprep.subr.mxu0 0.0
    %3092 = vmatpush1.msra.mxu0 0.0
    %3093 = vmatprep.subr.mxu0 0.0
    %3094 = vmatpush1.msra.mxu0 0.0
    %3095 = vmatprep.subr.mxu0 0.0
    %3096 = vmatpush1.msra.mxu0 0.0
    %3097 = vmatprep.subr.mxu0 0.0
    %3098 = vmatpush1.msra.mxu0 0.0
    %3099 = vmatprep.subr.mxu0 0.0
    %3100 = vmatpush1.msra.mxu0 0.0
    %3101 = vmatprep.subr.mxu0 0.0
    %3102 = vmatpush1.msra.mxu0 0.0
    %3103 = vmatprep.mubr.f32.mxu0 0.0
    %3104 = vmatmul.mubr.f32.gmra.mrb[0].mxu0 %v3037
    %v3105 = vpop.f32.mrb[0].mxu0
    %v3106 = vadd.f32 %v953, %v3105
    %v3107 = vpop.f32.mrb[0].mxu0
    %3108 = vdwg.mxu0
    %v3109 = vmax.f32 %v3106, 0.0
    %3111 = vrot.lane.b32.xlu0 %v3109, 108
    %v3112 = vpop.permute.xlu0 %3111
    %v3113 = vsel %vm1043, %v3112, 0
    %3115 = vmatprep.subr.mxu0 0.0
    %3116 = vmatpush1.msra.mxu0 %v945
    %3117 = vmatprep.subr.mxu0 0.0
    %3118 = vmatpush1.msra.mxu0 %v946
    %3119 = vmatprep.subr.mxu0 0.0
    %3120 = vmatpush1.msra.mxu0 %v1047
    %3121 = vmatprep.subr.mxu0 0.0
    %3122 = vmatpush1.msra.mxu0 0.0
    %3123 = vmatprep.subr.mxu0 0.0
    %3124 = vmatpush1.msra.mxu0 0.0
    %3125 = vmatprep.subr.mxu0 0.0
    %3126 = vmatpush1.msra.mxu0 0.0
    %3127 = vmatprep.subr.mxu0 0.0
    %3128 = vmatpush1.msra.mxu0 0.0
    %3129 = vmatprep.subr.mxu0 0.0
    %3130 = vmatpush1.msra.mxu0 0.0
    %3131 = vmatprep.subr.mxu0 0.0
    %3132 = vmatpush1.msra.mxu0 0.0
    %3133 = vmatprep.subr.mxu0 0.0
    %3134 = vmatpush1.msra.mxu0 0.0
    %3135 = vmatprep.subr.mxu0 0.0
    %3136 = vmatpush1.msra.mxu0 0.0
    %3137 = vmatprep.subr.mxu0 0.0
    %3138 = vmatpush1.msra.mxu0 0.0
    %3139 = vmatprep.subr.mxu0 0.0
    %3140 = vmatpush1.msra.mxu0 0.0
    %3141 = vmatprep.subr.mxu0 0.0
    %3142 = vmatpush1.msra.mxu0 0.0
    %3143 = vmatprep.subr.mxu0 0.0
    %3144 = vmatpush1.msra.mxu0 0.0
    %3145 = vmatprep.subr.mxu0 0.0
    %3146 = vmatpush1.msra.mxu0 0.0
    %3147 = vmatprep.subr.mxu0 0.0
    %3148 = vmatpush1.msra.mxu0 0.0
    %3149 = vmatprep.subr.mxu0 0.0
    %3150 = vmatpush1.msra.mxu0 0.0
    %3151 = vmatprep.subr.mxu0 0.0
    %3152 = vmatpush1.msra.mxu0 0.0
    %3153 = vmatprep.subr.mxu0 0.0
    %3154 = vmatpush1.msra.mxu0 0.0
    %3155 = vmatprep.subr.mxu0 0.0
    %3156 = vmatpush1.msra.mxu0 0.0
    %3157 = vmatprep.subr.mxu0 0.0
    %3158 = vmatpush1.msra.mxu0 0.0
    %3159 = vmatprep.subr.mxu0 0.0
    %3160 = vmatpush1.msra.mxu0 0.0
    %3161 = vmatprep.subr.mxu0 0.0
    %3162 = vmatpush1.msra.mxu0 0.0
    %3163 = vmatprep.subr.mxu0 0.0
    %3164 = vmatpush1.msra.mxu0 0.0
    %3165 = vmatprep.subr.mxu0 0.0
    %3166 = vmatpush1.msra.mxu0 0.0
    %3167 = vmatprep.subr.mxu0 0.0
    %3168 = vmatpush1.msra.mxu0 0.0
    %3169 = vmatprep.subr.mxu0 0.0
    %3170 = vmatpush1.msra.mxu0 0.0
    %3171 = vmatprep.subr.mxu0 0.0
    %3172 = vmatpush1.msra.mxu0 0.0
    %3173 = vmatprep.subr.mxu0 0.0
    %3174 = vmatpush1.msra.mxu0 0.0
    %3175 = vmatprep.subr.mxu0 0.0
    %3176 = vmatpush1.msra.mxu0 0.0
    %3177 = vmatprep.subr.mxu0 0.0
    %3178 = vmatpush1.msra.mxu0 0.0
    %3179 = vmatprep.mubr.f32.mxu0 0.0
    %3180 = vmatmul.mubr.f32.gmra.mrb[0].mxu0 %v3113
    %v3181 = vpop.f32.mrb[0].mxu0
    %v3182 = vadd.f32 %v1038, %v3181
    %v3183 = vpop.f32.mrb[0].mxu0
    %3184 = vdwg.mxu0
    %3185 = vrot.lane.b32.xlu0 %v3035, 8
    %v3186 = vpop.permute.xlu0 %3185
    %vm3188 = vcmask 97344
    %3189 = vst.msk [vmem:[%s19] sm:$0xff] %vm3188, %v3186
    %3191 = vrot.lane.b32.xlu0 %v3182, 4
    %v3192 = vpop.permute.xlu0 %3191
    %vm3194 = vcmask 48160
    %3195 = vst.msk [vmem:[%s20] sm:$0xff] %vm3194, %v3192
    %s3196 = sld [smem:[#allocation2 + $0x2]]
    %vm3197 = vcmp.gt.f32.partialorder %v3106, 0.0
    %v3198 = vmul.f32 %v3106, 1.442695
    %v3199 = vpow.pop %v3198
    %v3200 = vsub.f32 %v3199, 1.0
    %v3201 = vsel %vm3197, %v3106, %v3200
    %v3203 = vsel %vm1043, %v3201, 0
    %3205 = vmatprep.subr.mxu0 0.0
    %3206 = vmatpush1.msra.mxu0 %v937
    %3207 = vmatprep.subr.mxu0 0.0
    %3208 = vmatpush1.msra.mxu0 %v938
    %3209 = vmatprep.subr.mxu0 0.0
    %3210 = vmatpush1.msra.mxu0 %v1137
    %3211 = vmatprep.subr.mxu0 0.0
    %3212 = vmatpush1.msra.mxu0 0.0
    %3213 = vmatprep.subr.mxu0 0.0
    %3214 = vmatpush1.msra.mxu0 0.0
    %3215 = vmatprep.subr.mxu0 0.0
    %3216 = vmatpush1.msra.mxu0 0.0
    %3217 = vmatprep.subr.mxu0 0.0
    %3218 = vmatpush1.msra.mxu0 0.0
    %3219 = vmatprep.subr.mxu0 0.0
    %3220 = vmatpush1.msra.mxu0 0.0
    %3221 = vmatprep.subr.mxu0 0.0
    %3222 = vmatpush1.msra.mxu0 0.0
    %3223 = vmatprep.subr.mxu0 0.0
    %3224 = vmatpush1.msra.mxu0 0.0
    %3225 = vmatprep.subr.mxu0 0.0
    %3226 = vmatpush1.msra.mxu0 0.0
    %3227 = vmatprep.subr.mxu0 0.0
    %3228 = vmatpush1.msra.mxu0 0.0
    %3229 = vmatprep.subr.mxu0 0.0
    %3230 = vmatpush1.msra.mxu0 0.0
    %3231 = vmatprep.subr.mxu0 0.0
    %3232 = vmatpush1.msra.mxu0 0.0
    %3233 = vmatprep.subr.mxu0 0.0
    %3234 = vmatpush1.msra.mxu0 0.0
    %3235 = vmatprep.subr.mxu0 0.0
    %3236 = vmatpush1.msra.mxu0 0.0
    %3237 = vmatprep.subr.mxu0 0.0
    %3238 = vmatpush1.msra.mxu0 0.0
    %3239 = vmatprep.subr.mxu0 0.0
    %3240 = vmatpush1.msra.mxu0 0.0
    %3241 = vmatprep.subr.mxu0 0.0
    %3242 = vmatpush1.msra.mxu0 0.0
    %3243 = vmatprep.subr.mxu0 0.0
    %3244 = vmatpush1.msra.mxu0 0.0
    %3245 = vmatprep.subr.mxu0 0.0
    %3246 = vmatpush1.msra.mxu0 0.0
    %3247 = vmatprep.subr.mxu0 0.0
    %3248 = vmatpush1.msra.mxu0 0.0
    %3249 = vmatprep.subr.mxu0 0.0
    %3250 = vmatpush1.msra.mxu0 0.0
    %3251 = vmatprep.subr.mxu0 0.0
    %3252 = vmatpush1.msra.mxu0 0.0
    %3253 = vmatprep.subr.mxu0 0.0
    %3254 = vmatpush1.msra.mxu0 0.0
    %3255 = vmatprep.subr.mxu0 0.0
    %3256 = vmatpush1.msra.mxu0 0.0
    %3257 = vmatprep.subr.mxu0 0.0
    %3258 = vmatpush1.msra.mxu0 0.0
    %3259 = vmatprep.subr.mxu0 0.0
    %3260 = vmatpush1.msra.mxu0 0.0
    %3261 = vmatprep.subr.mxu0 0.0
    %3262 = vmatpush1.msra.mxu0 0.0
    %3263 = vmatprep.subr.mxu0 0.0
    %3264 = vmatpush1.msra.mxu0 0.0
    %3265 = vmatprep.subr.mxu0 0.0
    %3266 = vmatpush1.msra.mxu0 0.0
    %3267 = vmatprep.subr.mxu0 0.0
    %3268 = vmatpush1.msra.mxu0 0.0
    %3269 = vmatprep.mubr.f32.mxu0 0.0
    %3270 = vmatmul.mubr.f32.gmra.mrb[0].mxu0 %v3203
    %v3271 = vpop.f32.mrb[0].mxu0
    %v3272 = vadd.f32 %v1131, %v3271
    %v3273 = vpop.f32.mrb[0].mxu0
    %3274 = vdwg.mxu0
    %vm3275 = vcmp.gt.f32.partialorder %v3272, 0.0
    %v3276 = vmul.f32 %v3272, 1.442695
    %v3277 = vpow.pop %v3276
    %v3278 = vsub.f32 %v3277, 1.0
    %v3279 = vsel %vm3275, %v3272, %v3278
    %v3281 = vsel %vm1043, %v3279, 0
    %3283 = vmatprep.subr.mxu0 0.0
    %3284 = vmatpush1.msra.mxu0 %v941
    %3285 = vmatprep.subr.mxu0 0.0
    %3286 = vmatpush1.msra.mxu0 %v942
    %3287 = vmatprep.subr.mxu0 0.0
    %3288 = vmatpush1.msra.mxu0 %v1224
    %3289 = vmatprep.subr.mxu0 0.0
    %3290 = vmatpush1.msra.mxu0 0.0
    %3291 = vmatprep.subr.mxu0 0.0
    %3292 = vmatpush1.msra.mxu0 0.0
    %3293 = vmatprep.subr.mxu0 0.0
    %3294 = vmatpush1.msra.mxu0 0.0
    %3295 = vmatprep.subr.mxu0 0.0
    %3296 = vmatpush1.msra.mxu0 0.0
    %3297 = vmatprep.subr.mxu0 0.0
    %3298 = vmatpush1.msra.mxu0 0.0
    %3299 = vmatprep.subr.mxu0 0.0
    %3300 = vmatpush1.msra.mxu0 0.0
    %3301 = vmatprep.subr.mxu0 0.0
    %3302 = vmatpush1.msra.mxu0 0.0
    %3303 = vmatprep.subr.mxu0 0.0
    %3304 = vmatpush1.msra.mxu0 0.0
    %3305 = vmatprep.subr.mxu0 0.0
    %3306 = vmatpush1.msra.mxu0 0.0
    %3307 = vmatprep.subr.mxu0 0.0
    %3308 = vmatpush1.msra.mxu0 0.0
    %3309 = vmatprep.subr.mxu0 0.0
    %3310 = vmatpush1.msra.mxu0 0.0
    %3311 = vmatprep.subr.mxu0 0.0
    %3312 = vmatpush1.msra.mxu0 0.0
    %3313 = vmatprep.subr.mxu0 0.0
    %3314 = vmatpush1.msra.mxu0 0.0
    %3315 = vmatprep.subr.mxu0 0.0
    %3316 = vmatpush1.msra.mxu0 0.0
    %3317 = vmatprep.subr.mxu0 0.0
    %3318 = vmatpush1.msra.mxu0 0.0
    %3319 = vmatprep.subr.mxu0 0.0
    %3320 = vmatpush1.msra.mxu0 0.0
    %3321 = vmatprep.subr.mxu0 0.0
    %3322 = vmatpush1.msra.mxu0 0.0
    %3323 = vmatprep.subr.mxu0 0.0
    %3324 = vmatpush1.msra.mxu0 0.0
    %3325 = vmatprep.subr.mxu0 0.0
    %3326 = vmatpush1.msra.mxu0 0.0
    %3327 = vmatprep.subr.mxu0 0.0
    %3328 = vmatpush1.msra.mxu0 0.0
    %3329 = vmatprep.subr.mxu0 0.0
    %3330 = vmatpush1.msra.mxu0 0.0
    %3331 = vmatprep.subr.mxu0 0.0
    %3332 = vmatpush1.msra.mxu0 0.0
    %3333 = vmatprep.subr.mxu0 0.0
    %3334 = vmatpush1.msra.mxu0 0.0
    %3335 = vmatprep.subr.mxu0 0.0
    %3336 = vmatpush1.msra.mxu0 0.0
    %3337 = vmatprep.subr.mxu0 0.0
    %3338 = vmatpush1.msra.mxu0 0.0
    %3339 = vmatprep.subr.mxu0 0.0
    %3340 = vmatpush1.msra.mxu0 0.0
    %3341 = vmatprep.subr.mxu0 0.0
    %3342 = vmatpush1.msra.mxu0 0.0
    %3343 = vmatprep.subr.mxu0 0.0
    %3344 = vmatpush1.msra.mxu0 0.0
    %3345 = vmatprep.subr.mxu0 0.0
    %3346 = vmatpush1.msra.mxu0 0.0
    %3347 = vmatprep.mubr.f32.mxu0 0.0
    %3348 = vmatmul.mubr.f32.gmra.mrb[0].mxu0 %v3281
    %v3349 = vpop.f32.mrb[0].mxu0
    %v3350 = vadd.f32 %v1218, %v3349
    %v3351 = vpop.f32.mrb[0].mxu0
    %3352 = vdwg.mxu0
    %s3353 = smul.f32 %s3196, 0.5
    %v3354 = vstv %s3353
    %v3355 = vmul.f32 %v3354, %v3350
    %v3356 = vadd.f32 %v3035, %v3355
    %v3358 = vsel %vm955, %v3356, 0
    %3360 = vmatprep.subr.mxu0 0.0
    %3361 = vmatpush1.msra.mxu0 %v1310
    %3362 = vmatprep.subr.mxu0 0.0
    %3363 = vmatpush1.msra.mxu0 0.0
    %3364 = vmatprep.subr.mxu0 0.0
    %3365 = vmatpush1.msra.mxu0 0.0
    %3366 = vmatprep.subr.mxu0 0.0
    %3367 = vmatpush1.msra.mxu0 0.0
    %3368 = vmatprep.subr.mxu0 0.0
    %3369 = vmatpush1.msra.mxu0 0.0
    %3370 = vmatprep.subr.mxu0 0.0
    %3371 = vmatpush1.msra.mxu0 0.0
    %3372 = vmatprep.subr.mxu0 0.0
    %3373 = vmatpush1.msra.mxu0 0.0
    %3374 = vmatprep.subr.mxu0 0.0
    %3375 = vmatpush1.msra.mxu0 0.0
    %3376 = vmatprep.subr.mxu0 0.0
    %3377 = vmatpush1.msra.mxu0 0.0
    %3378 = vmatprep.subr.mxu0 0.0
    %3379 = vmatpush1.msra.mxu0 0.0
    %3380 = vmatprep.subr.mxu0 0.0
    %3381 = vmatpush1.msra.mxu0 0.0
    %3382 = vmatprep.subr.mxu0 0.0
    %3383 = vmatpush1.msra.mxu0 0.0
    %3384 = vmatprep.subr.mxu0 0.0
    %3385 = vmatpush1.msra.mxu0 0.0
    %3386 = vmatprep.subr.mxu0 0.0
    %3387 = vmatpush1.msra.mxu0 0.0
    %3388 = vmatprep.subr.mxu0 0.0
    %3389 = vmatpush1.msra.mxu0 0.0
    %3390 = vmatprep.subr.mxu0 0.0
    %3391 = vmatpush1.msra.mxu0 0.0
    %3392 = vmatprep.subr.mxu0 0.0
    %3393 = vmatpush1.msra.mxu0 0.0
    %3394 = vmatprep.subr.mxu0 0.0
    %3395 = vmatpush1.msra.mxu0 0.0
    %3396 = vmatprep.subr.mxu0 0.0
    %3397 = vmatpush1.msra.mxu0 0.0
    %3398 = vmatprep.subr.mxu0 0.0
    %3399 = vmatpush1.msra.mxu0 0.0
    %3400 = vmatprep.subr.mxu0 0.0
    %3401 = vmatpush1.msra.mxu0 0.0
    %3402 = vmatprep.subr.mxu0 0.0
    %3403 = vmatpush1.msra.mxu0 0.0
    %3404 = vmatprep.subr.mxu0 0.0
    %3405 = vmatpush1.msra.mxu0 0.0
    %3406 = vmatprep.subr.mxu0 0.0
    %3407 = vmatpush1.msra.mxu0 0.0
    %3408 = vmatprep.subr.mxu0 0.0
    %3409 = vmatpush1.msra.mxu0 0.0
    %3410 = vmatprep.subr.mxu0 0.0
    %3411 = vmatpush1.msra.mxu0 0.0
    %3412 = vmatprep.subr.mxu0 0.0
    %3413 = vmatpush1.msra.mxu0 0.0
    %3414 = vmatprep.subr.mxu0 0.0
    %3415 = vmatpush1.msra.mxu0 0.0
    %3416 = vmatprep.subr.mxu0 0.0
    %3417 = vmatpush1.msra.mxu0 0.0
    %3418 = vmatprep.subr.mxu0 0.0
    %3419 = vmatpush1.msra.mxu0 0.0
    %3420 = vmatprep.subr.mxu0 0.0
    %3421 = vmatpush1.msra.mxu0 0.0
    %3422 = vmatprep.subr.mxu0 0.0
    %3423 = vmatpush1.msra.mxu0 0.0
    %3424 = vmatprep.mubr.f32.mxu0 0.0
    %3425 = vmatmul.mubr.f32.gmra.mrb[0].mxu0 %v3358
    %v3426 = vpop.f32.mrb[0].mxu0
    %v3427 = vadd.f32 %v1304, %v3426
    %v3428 = vpop.f32.mrb[0].mxu0
    %3429 = vdwg.mxu0
    %vm3430 = vcmp.gt.f32.partialorder %v3427, 0.0
    %v3431 = vmul.f32 %v3427, 1.442695
    %v3432 = vpow.pop %v3431
    %v3433 = vsub.f32 %v3432, 1.0
    %v3434 = vsel %vm3430, %v3427, %v3433
    %v3436 = vsel %vm1043, %v3434, 0
    %3438 = vmatprep.subr.mxu0 0.0
    %3439 = vmatpush1.msra.mxu0 %v937
    %3440 = vmatprep.subr.mxu0 0.0
    %3441 = vmatpush1.msra.mxu0 %v938
    %3442 = vmatprep.subr.mxu0 0.0
    %3443 = vmatpush1.msra.mxu0 %v1137
    %3444 = vmatprep.subr.mxu0 0.0
    %3445 = vmatpush1.msra.mxu0 0.0
    %3446 = vmatprep.subr.mxu0 0.0
    %3447 = vmatpush1.msra.mxu0 0.0
    %3448 = vmatprep.subr.mxu0 0.0
    %3449 = vmatpush1.msra.mxu0 0.0
    %3450 = vmatprep.subr.mxu0 0.0
    %3451 = vmatpush1.msra.mxu0 0.0
    %3452 = vmatprep.subr.mxu0 0.0
    %3453 = vmatpush1.msra.mxu0 0.0
    %3454 = vmatprep.subr.mxu0 0.0
    %3455 = vmatpush1.msra.mxu0 0.0
    %3456 = vmatprep.subr.mxu0 0.0
    %3457 = vmatpush1.msra.mxu0 0.0
    %3458 = vmatprep.subr.mxu0 0.0
    %3459 = vmatpush1.msra.mxu0 0.0
    %3460 = vmatprep.subr.mxu0 0.0
    %3461 = vmatpush1.msra.mxu0 0.0
    %3462 = vmatprep.subr.mxu0 0.0
    %3463 = vmatpush1.msra.mxu0 0.0
    %3464 = vmatprep.subr.mxu0 0.0
    %3465 = vmatpush1.msra.mxu0 0.0
    %3466 = vmatprep.subr.mxu0 0.0
    %3467 = vmatpush1.msra.mxu0 0.0
    %3468 = vmatprep.subr.mxu0 0.0
    %3469 = vmatpush1.msra.mxu0 0.0
    %3470 = vmatprep.subr.mxu0 0.0
    %3471 = vmatpush1.msra.mxu0 0.0
    %3472 = vmatprep.subr.mxu0 0.0
    %3473 = vmatpush1.msra.mxu0 0.0
    %3474 = vmatprep.subr.mxu0 0.0
    %3475 = vmatpush1.msra.mxu0 0.0
    %3476 = vmatprep.subr.mxu0 0.0
    %3477 = vmatpush1.msra.mxu0 0.0
    %3478 = vmatprep.subr.mxu0 0.0
    %3479 = vmatpush1.msra.mxu0 0.0
    %3480 = vmatprep.subr.mxu0 0.0
    %3481 = vmatpush1.msra.mxu0 0.0
    %3482 = vmatprep.subr.mxu0 0.0
    %3483 = vmatpush1.msra.mxu0 0.0
    %3484 = vmatprep.subr.mxu0 0.0
    %3485 = vmatpush1.msra.mxu0 0.0
    %3486 = vmatprep.subr.mxu0 0.0
    %3487 = vmatpush1.msra.mxu0 0.0
    %3488 = vmatprep.subr.mxu0 0.0
    %3489 = vmatpush1.msra.mxu0 0.0
    %3490 = vmatprep.subr.mxu0 0.0
    %3491 = vmatpush1.msra.mxu0 0.0
    %3492 = vmatprep.subr.mxu0 0.0
    %3493 = vmatpush1.msra.mxu0 0.0
    %3494 = vmatprep.subr.mxu0 0.0
    %3495 = vmatpush1.msra.mxu0 0.0
    %3496 = vmatprep.subr.mxu0 0.0
    %3497 = vmatpush1.msra.mxu0 0.0
    %3498 = vmatprep.subr.mxu0 0.0
    %3499 = vmatpush1.msra.mxu0 0.0
    %3500 = vmatprep.subr.mxu0 0.0
    %3501 = vmatpush1.msra.mxu0 0.0
    %3502 = vmatprep.mubr.f32.mxu0 0.0
    %3503 = vmatmul.mubr.f32.gmra.mrb[0].mxu0 %v3436
    %v3504 = vpop.f32.mrb[0].mxu0
    %v3505 = vadd.f32 %v1131, %v3504
    %v3506 = vpop.f32.mrb[0].mxu0
    %3507 = vdwg.mxu0
    %vm3508 = vcmp.gt.f32.partialorder %v3505, 0.0
    %v3509 = vmul.f32 %v3505, 1.442695
    %v3510 = vpow.pop %v3509
    %v3511 = vsub.f32 %v3510, 1.0
    %v3512 = vsel %vm3508, %v3505, %v3511
    %v3514 = vsel %vm1043, %v3512, 0
    %3516 = vmatprep.subr.mxu0 0.0
    %3517 = vmatpush1.msra.mxu0 %v941
    %3518 = vmatprep.subr.mxu0 0.0
    %3519 = vmatpush1.msra.mxu0 %v942
    %3520 = vmatprep.subr.mxu0 0.0
    %3521 = vmatpush1.msra.mxu0 %v1224
    %3522 = vmatprep.subr.mxu0 0.0
    %3523 = vmatpush1.msra.mxu0 0.0
    %3524 = vmatprep.subr.mxu0 0.0
    %3525 = vmatpush1.msra.mxu0 0.0
    %3526 = vmatprep.subr.mxu0 0.0
    %3527 = vmatpush1.msra.mxu0 0.0
    %3528 = vmatprep.subr.mxu0 0.0
    %3529 = vmatpush1.msra.mxu0 0.0
    %3530 = vmatprep.subr.mxu0 0.0
    %3531 = vmatpush1.msra.mxu0 0.0
    %3532 = vmatprep.subr.mxu0 0.0
    %3533 = vmatpush1.msra.mxu0 0.0
    %3534 = vmatprep.subr.mxu0 0.0
    %3535 = vmatpush1.msra.mxu0 0.0
    %3536 = vmatprep.subr.mxu0 0.0
    %3537 = vmatpush1.msra.mxu0 0.0
    %3538 = vmatprep.subr.mxu0 0.0
    %3539 = vmatpush1.msra.mxu0 0.0
    %3540 = vmatprep.subr.mxu0 0.0
    %3541 = vmatpush1.msra.mxu0 0.0
    %3542 = vmatprep.subr.mxu0 0.0
    %3543 = vmatpush1.msra.mxu0 0.0
    %3544 = vmatprep.subr.mxu0 0.0
    %3545 = vmatpush1.msra.mxu0 0.0
    %3546 = vmatprep.subr.mxu0 0.0
    %3547 = vmatpush1.msra.mxu0 0.0
    %3548 = vmatprep.subr.mxu0 0.0
    %3549 = vmatpush1.msra.mxu0 0.0
    %3550 = vmatprep.subr.mxu0 0.0
    %3551 = vmatpush1.msra.mxu0 0.0
    %3552 = vmatprep.subr.mxu0 0.0
    %3553 = vmatpush1.msra.mxu0 0.0
    %3554 = vmatprep.subr.mxu0 0.0
    %3555 = vmatpush1.msra.mxu0 0.0
    %3556 = vmatprep.subr.mxu0 0.0
    %3557 = vmatpush1.msra.mxu0 0.0
    %3558 = vmatprep.subr.mxu0 0.0
    %3559 = vmatpush1.msra.mxu0 0.0
    %3560 = vmatprep.subr.mxu0 0.0
    %3561 = vmatpush1.msra.mxu0 0.0
    %3562 = vmatprep.subr.mxu0 0.0
    %3563 = vmatpush1.msra.mxu0 0.0
    %3564 = vmatprep.subr.mxu0 0.0
    %3565 = vmatpush1.msra.mxu0 0.0
    %3566 = vmatprep.subr.mxu0 0.0
    %3567 = vmatpush1.msra.mxu0 0.0
    %3568 = vmatprep.subr.mxu0 0.0
    %3569 = vmatpush1.msra.mxu0 0.0
    %3570 = vmatprep.subr.mxu0 0.0
    %3571 = vmatpush1.msra.mxu0 0.0
    %3572 = vmatprep.subr.mxu0 0.0
    %3573 = vmatpush1.msra.mxu0 0.0
    %3574 = vmatprep.subr.mxu0 0.0
    %3575 = vmatpush1.msra.mxu0 0.0
    %3576 = vmatprep.subr.mxu0 0.0
    %3577 = vmatpush1.msra.mxu0 0.0
    %3578 = vmatprep.subr.mxu0 0.0
    %3579 = vmatpush1.msra.mxu0 0.0
    %3580 = vmatprep.mubr.f32.mxu0 0.0
    %3581 = vmatmul.mubr.f32.gmra.mrb[0].mxu0 %v3514
    %v3582 = vpop.f32.mrb[0].mxu0
    %v3583 = vadd.f32 %v1218, %v3582
    %v3584 = vpop.f32.mrb[0].mxu0
    %3585 = vdwg.mxu0
    %v3586 = vmul.f32 %v3354, %v3583
    %v3587 = vadd.f32 %v3035, %v3586
    %v3589 = vsel %vm955, %v3587, 0
    %3591 = vmatprep.subr.mxu0 0.0
    %3592 = vmatpush1.msra.mxu0 %v1310
    %3593 = vmatprep.subr.mxu0 0.0
    %3594 = vmatpush1.msra.mxu0 0.0
    %3595 = vmatprep.subr.mxu0 0.0
    %3596 = vmatpush1.msra.mxu0 0.0
    %3597 = vmatprep.subr.mxu0 0.0
    %3598 = vmatpush1.msra.mxu0 0.0
    %3599 = vmatprep.subr.mxu0 0.0
    %3600 = vmatpush1.msra.mxu0 0.0
    %3601 = vmatprep.subr.mxu0 0.0
    %3602 = vmatpush1.msra.mxu0 0.0
    %3603 = vmatprep.subr.mxu0 0.0
    %3604 = vmatpush1.msra.mxu0 0.0
    %3605 = vmatprep.subr.mxu0 0.0
    %3606 = vmatpush1.msra.mxu0 0.0
    %3607 = vmatprep.subr.mxu0 0.0
    %3608 = vmatpush1.msra.mxu0 0.0
    %3609 = vmatprep.subr.mxu0 0.0
    %3610 = vmatpush1.msra.mxu0 0.0
    %3611 = vmatprep.subr.mxu0 0.0
    %3612 = vmatpush1.msra.mxu0 0.0
    %3613 = vmatprep.subr.mxu0 0.0
    %3614 = vmatpush1.msra.mxu0 0.0
    %3615 = vmatprep.subr.mxu0 0.0
    %3616 = vmatpush1.msra.mxu0 0.0
    %3617 = vmatprep.subr.mxu0 0.0
    %3618 = vmatpush1.msra.mxu0 0.0
    %3619 = vmatprep.subr.mxu0 0.0
    %3620 = vmatpush1.msra.mxu0 0.0
    %3621 = vmatprep.subr.mxu0 0.0
    %3622 = vmatpush1.msra.mxu0 0.0
    %3623 = vmatprep.subr.mxu0 0.0
    %3624 = vmatpush1.msra.mxu0 0.0
    %3625 = vmatprep.subr.mxu0 0.0
    %3626 = vmatpush1.msra.mxu0 0.0
    %3627 = vmatprep.subr.mxu0 0.0
    %3628 = vmatpush1.msra.mxu0 0.0
    %3629 = vmatprep.subr.mxu0 0.0
    %3630 = vmatpush1.msra.mxu0 0.0
    %3631 = vmatprep.subr.mxu0 0.0
    %3632 = vmatpush1.msra.mxu0 0.0
    %3633 = vmatprep.subr.mxu0 0.0
    %3634 = vmatpush1.msra.mxu0 0.0
    %3635 = vmatprep.subr.mxu0 0.0
    %3636 = vmatpush1.msra.mxu0 0.0
    %3637 = vmatprep.subr.mxu0 0.0
    %3638 = vmatpush1.msra.mxu0 0.0
    %3639 = vmatprep.subr.mxu0 0.0
    %3640 = vmatpush1.msra.mxu0 0.0
    %3641 = vmatprep.subr.mxu0 0.0
    %3642 = vmatpush1.msra.mxu0 0.0
    %3643 = vmatprep.subr.mxu0 0.0
    %3644 = vmatpush1.msra.mxu0 0.0
    %3645 = vmatprep.subr.mxu0 0.0
    %3646 = vmatpush1.msra.mxu0 0.0
    %3647 = vmatprep.subr.mxu0 0.0
    %3648 = vmatpush1.msra.mxu0 0.0
    %3649 = vmatprep.subr.mxu0 0.0
    %3650 = vmatpush1.msra.mxu0 0.0
    %3651 = vmatprep.subr.mxu0 0.0
    %3652 = vmatpush1.msra.mxu0 0.0
    %3653 = vmatprep.subr.mxu0 0.0
    %3654 = vmatpush1.msra.mxu0 0.0
    %3655 = vmatprep.mubr.f32.mxu0 0.0
    %3656 = vmatmul.mubr.f32.gmra.mrb[0].mxu0 %v3589
    %v3657 = vpop.f32.mrb[0].mxu0
    %v3658 = vadd.f32 %v1304, %v3657
    %v3659 = vpop.f32.mrb[0].mxu0
    %3660 = vdwg.mxu0
    %vm3661 = vcmp.gt.f32.partialorder %v3658, 0.0
    %v3662 = vmul.f32 %v3658, 1.442695
    %v3663 = vpow.pop %v3662
    %v3664 = vsub.f32 %v3663, 1.0
    %v3665 = vsel %vm3661, %v3658, %v3664
    %v3667 = vsel %vm1043, %v3665, 0
    %3669 = vmatprep.subr.mxu0 0.0
    %3670 = vmatpush1.msra.mxu0 %v937
    %3671 = vmatprep.subr.mxu0 0.0
    %3672 = vmatpush1.msra.mxu0 %v938
    %3673 = vmatprep.subr.mxu0 0.0
    %3674 = vmatpush1.msra.mxu0 %v1137
    %3675 = vmatprep.subr.mxu0 0.0
    %3676 = vmatpush1.msra.mxu0 0.0
    %3677 = vmatprep.subr.mxu0 0.0
    %3678 = vmatpush1.msra.mxu0 0.0
    %3679 = vmatprep.subr.mxu0 0.0
    %3680 = vmatpush1.msra.mxu0 0.0
    %3681 = vmatprep.subr.mxu0 0.0
    %3682 = vmatpush1.msra.mxu0 0.0
    %3683 = vmatprep.subr.mxu0 0.0
    %3684 = vmatpush1.msra.mxu0 0.0
    %3685 = vmatprep.subr.mxu0 0.0
    %3686 = vmatpush1.msra.mxu0 0.0
    %3687 = vmatprep.subr.mxu0 0.0
    %3688 = vmatpush1.msra.mxu0 0.0
    %3689 = vmatprep.subr.mxu0 0.0
    %3690 = vmatpush1.msra.mxu0 0.0
    %3691 = vmatprep.subr.mxu0 0.0
    %3692 = vmatpush1.msra.mxu0 0.0
    %3693 = vmatprep.subr.mxu0 0.0
    %3694 = vmatpush1.msra.mxu0 0.0
    %3695 = vmatprep.subr.mxu0 0.0
    %3696 = vmatpush1.msra.mxu0 0.0
    %3697 = vmatprep.subr.mxu0 0.0
    %3698 = vmatpush1.msra.mxu0 0.0
    %3699 = vmatprep.subr.mxu0 0.0
    %3700 = vmatpush1.msra.mxu0 0.0
    %3701 = vmatprep.subr.mxu0 0.0
    %3702 = vmatpush1.msra.mxu0 0.0
    %3703 = vmatprep.subr.mxu0 0.0
    %3704 = vmatpush1.msra.mxu0 0.0
    %3705 = vmatprep.subr.mxu0 0.0
    %3706 = vmatpush1.msra.mxu0 0.0
    %3707 = vmatprep.subr.mxu0 0.0
    %3708 = vmatpush1.msra.mxu0 0.0
    %3709 = vmatprep.subr.mxu0 0.0
    %3710 = vmatpush1.msra.mxu0 0.0
    %3711 = vmatprep.subr.mxu0 0.0
    %3712 = vmatpush1.msra.mxu0 0.0
    %3713 = vmatprep.subr.mxu0 0.0
    %3714 = vmatpush1.msra.mxu0 0.0
    %3715 = vmatprep.subr.mxu0 0.0
    %3716 = vmatpush1.msra.mxu0 0.0
    %3717 = vmatprep.subr.mxu0 0.0
    %3718 = vmatpush1.msra.mxu0 0.0
    %3719 = vmatprep.subr.mxu0 0.0
    %3720 = vmatpush1.msra.mxu0 0.0
    %3721 = vmatprep.subr.mxu0 0.0
    %3722 = vmatpush1.msra.mxu0 0.0
    %3723 = vmatprep.subr.mxu0 0.0
    %3724 = vmatpush1.msra.mxu0 0.0
    %3725 = vmatprep.subr.mxu0 0.0
    %3726 = vmatpush1.msra.mxu0 0.0
    %3727 = vmatprep.subr.mxu0 0.0
    %3728 = vmatpush1.msra.mxu0 0.0
    %3729 = vmatprep.subr.mxu0 0.0
    %3730 = vmatpush1.msra.mxu0 0.0
    %3731 = vmatprep.subr.mxu0 0.0
    %3732 = vmatpush1.msra.mxu0 0.0
    %3733 = vmatprep.mubr.f32.mxu0 0.0
    %3734 = vmatmul.mubr.f32.gmra.mrb[0].mxu0 %v3667
    %v3735 = vpop.f32.mrb[0].mxu0
    %v3736 = vadd.f32 %v1131, %v3735
    %v3737 = vpop.f32.mrb[0].mxu0
    %3738 = vdwg.mxu0
    %vm3739 = vcmp.gt.f32.partialorder %v3736, 0.0
    %v3740 = vmul.f32 %v3736, 1.442695
    %v3741 = vpow.pop %v3740
    %v3742 = vsub.f32 %v3741, 1.0
    %v3743 = vsel %vm3739, %v3736, %v3742
    %v3745 = vsel %vm1043, %v3743, 0
    %3747 = vmatprep.subr.mxu0 0.0
    %3748 = vmatpush1.msra.mxu0 %v941
    %3749 = vmatprep.subr.mxu0 0.0
    %3750 = vmatpush1.msra.mxu0 %v942
    %3751 = vmatprep.subr.mxu0 0.0
    %3752 = vmatpush1.msra.mxu0 %v1224
    %3753 = vmatprep.subr.mxu0 0.0
    %3754 = vmatpush1.msra.mxu0 0.0
    %3755 = vmatprep.subr.mxu0 0.0
    %3756 = vmatpush1.msra.mxu0 0.0
    %3757 = vmatprep.subr.mxu0 0.0
    %3758 = vmatpush1.msra.mxu0 0.0
    %3759 = vmatprep.subr.mxu0 0.0
    %3760 = vmatpush1.msra.mxu0 0.0
    %3761 = vmatprep.subr.mxu0 0.0
    %3762 = vmatpush1.msra.mxu0 0.0
    %3763 = vmatprep.subr.mxu0 0.0
    %3764 = vmatpush1.msra.mxu0 0.0
    %3765 = vmatprep.subr.mxu0 0.0
    %3766 = vmatpush1.msra.mxu0 0.0
    %3767 = vmatprep.subr.mxu0 0.0
    %3768 = vmatpush1.msra.mxu0 0.0
    %3769 = vmatprep.subr.mxu0 0.0
    %3770 = vmatpush1.msra.mxu0 0.0
    %3771 = vmatprep.subr.mxu0 0.0
    %3772 = vmatpush1.msra.mxu0 0.0
    %3773 = vmatprep.subr.mxu0 0.0
    %3774 = vmatpush1.msra.mxu0 0.0
    %3775 = vmatprep.subr.mxu0 0.0
    %3776 = vmatpush1.msra.mxu0 0.0
    %3777 = vmatprep.subr.mxu0 0.0
    %3778 = vmatpush1.msra.mxu0 0.0
    %3779 = vmatprep.subr.mxu0 0.0
    %3780 = vmatpush1.msra.mxu0 0.0
    %3781 = vmatprep.subr.mxu0 0.0
    %3782 = vmatpush1.msra.mxu0 0.0
    %3783 = vmatprep.subr.mxu0 0.0
    %3784 = vmatpush1.msra.mxu0 0.0
    %3785 = vmatprep.subr.mxu0 0.0
    %3786 = vmatpush1.msra.mxu0 0.0
    %3787 = vmatprep.subr.mxu0 0.0
    %3788 = vmatpush1.msra.mxu0 0.0
    %3789 = vmatprep.subr.mxu0 0.0
    %3790 = vmatpush1.msra.mxu0 0.0
    %3791 = vmatprep.subr.mxu0 0.0
    %3792 = vmatpush1.msra.mxu0 0.0
    %3793 = vmatprep.subr.mxu0 0.0
    %3794 = vmatpush1.msra.mxu0 0.0
    %3795 = vmatprep.subr.mxu0 0.0
    %3796 = vmatpush1.msra.mxu0 0.0
    %3797 = vmatprep.subr.mxu0 0.0
    %3798 = vmatpush1.msra.mxu0 0.0
    %3799 = vmatprep.subr.mxu0 0.0
    %3800 = vmatpush1.msra.mxu0 0.0
    %3801 = vmatprep.subr.mxu0 0.0
    %3802 = vmatpush1.msra.mxu0 0.0
    %3803 = vmatprep.subr.mxu0 0.0
    %3804 = vmatpush1.msra.mxu0 0.0
    %3805 = vmatprep.subr.mxu0 0.0
    %3806 = vmatpush1.msra.mxu0 0.0
    %3807 = vmatprep.subr.mxu0 0.0
    %3808 = vmatpush1.msra.mxu0 0.0
    %3809 = vmatprep.subr.mxu0 0.0
    %3810 = vmatpush1.msra.mxu0 0.0
    %3811 = vmatprep.mubr.f32.mxu0 0.0
    %3812 = vmatmul.mubr.f32.gmra.mrb[0].mxu0 %v3745
    %v3813 = vpop.f32.mrb[0].mxu0
    %v3814 = vadd.f32 %v1218, %v3813
    %v3815 = vpop.f32.mrb[0].mxu0
    %3816 = vdwg.mxu0
    %v3817 = vstv %s3196
    %v3818 = vmul.f32 %v3817, %v3814
    %v3819 = vadd.f32 %v3035, %v3818
    %v3821 = vsel %vm955, %v3819, 0
    %3823 = vmatprep.subr.mxu0 0.0
    %3824 = vmatpush1.msra.mxu0 %v1310
    %3825 = vmatprep.subr.mxu0 0.0
    %3826 = vmatpush1.msra.mxu0 0.0
    %3827 = vmatprep.subr.mxu0 0.0
    %3828 = vmatpush1.msra.mxu0 0.0
    %3829 = vmatprep.subr.mxu0 0.0
    %3830 = vmatpush1.msra.mxu0 0.0
    %3831 = vmatprep.subr.mxu0 0.0
    %3832 = vmatpush1.msra.mxu0 0.0
    %3833 = vmatprep.subr.mxu0 0.0
    %3834 = vmatpush1.msra.mxu0 0.0
    %3835 = vmatprep.subr.mxu0 0.0
    %3836 = vmatpush1.msra.mxu0 0.0
    %3837 = vmatprep.subr.mxu0 0.0
    %3838 = vmatpush1.msra.mxu0 0.0
    %3839 = vmatprep.subr.mxu0 0.0
    %3840 = vmatpush1.msra.mxu0 0.0
    %3841 = vmatprep.subr.mxu0 0.0
    %3842 = vmatpush1.msra.mxu0 0.0
    %3843 = vmatprep.subr.mxu0 0.0
    %3844 = vmatpush1.msra.mxu0 0.0
    %3845 = vmatprep.subr.mxu0 0.0
    %3846 = vmatpush1.msra.mxu0 0.0
    %3847 = vmatprep.subr.mxu0 0.0
    %3848 = vmatpush1.msra.mxu0 0.0
    %3849 = vmatprep.subr.mxu0 0.0
    %3850 = vmatpush1.msra.mxu0 0.0
    %3851 = vmatprep.subr.mxu0 0.0
    %3852 = vmatpush1.msra.mxu0 0.0
    %3853 = vmatprep.subr.mxu0 0.0
    %3854 = vmatpush1.msra.mxu0 0.0
    %3855 = vmatprep.subr.mxu0 0.0
    %3856 = vmatpush1.msra.mxu0 0.0
    %3857 = vmatprep.subr.mxu0 0.0
    %3858 = vmatpush1.msra.mxu0 0.0
    %3859 = vmatprep.subr.mxu0 0.0
    %3860 = vmatpush1.msra.mxu0 0.0
    %3861 = vmatprep.subr.mxu0 0.0
    %3862 = vmatpush1.msra.mxu0 0.0
    %3863 = vmatprep.subr.mxu0 0.0
    %3864 = vmatpush1.msra.mxu0 0.0
    %3865 = vmatprep.subr.mxu0 0.0
    %3866 = vmatpush1.msra.mxu0 0.0
    %3867 = vmatprep.subr.mxu0 0.0
    %3868 = vmatpush1.msra.mxu0 0.0
    %3869 = vmatprep.subr.mxu0 0.0
    %3870 = vmatpush1.msra.mxu0 0.0
    %3871 = vmatprep.subr.mxu0 0.0
    %3872 = vmatpush1.msra.mxu0 0.0
    %3873 = vmatprep.subr.mxu0 0.0
    %3874 = vmatpush1.msra.mxu0 0.0
    %3875 = vmatprep.subr.mxu0 0.0
    %3876 = vmatpush1.msra.mxu0 0.0
    %3877 = vmatprep.subr.mxu0 0.0
    %3878 = vmatpush1.msra.mxu0 0.0
    %3879 = vmatprep.subr.mxu0 0.0
    %3880 = vmatpush1.msra.mxu0 0.0
    %3881 = vmatprep.subr.mxu0 0.0
    %3882 = vmatpush1.msra.mxu0 0.0
    %3883 = vmatprep.subr.mxu0 0.0
    %3884 = vmatpush1.msra.mxu0 0.0
    %3885 = vmatprep.subr.mxu0 0.0
    %3886 = vmatpush1.msra.mxu0 0.0
    %3887 = vmatprep.mubr.f32.mxu0 0.0
    %3888 = vmatmul.mubr.f32.gmra.mrb[0].mxu0 %v3821
    %v3889 = vpop.f32.mrb[0].mxu0
    %v3890 = vadd.f32 %v1304, %v3889
    %v3891 = vpop.f32.mrb[0].mxu0
    %3892 = vdwg.mxu0
    %vm3893 = vcmp.gt.f32.partialorder %v3890, 0.0
    %v3894 = vmul.f32 %v3890, 1.442695
    %v3895 = vpow.pop %v3894
    %v3896 = vsub.f32 %v3895, 1.0
    %v3897 = vsel %vm3893, %v3890, %v3896
    %v3899 = vsel %vm1043, %v3897, 0
    %3901 = vmatprep.subr.mxu0 0.0
    %3902 = vmatpush1.msra.mxu0 %v937
    %3903 = vmatprep.subr.mxu0 0.0
    %3904 = vmatpush1.msra.mxu0 %v938
    %3905 = vmatprep.subr.mxu0 0.0
    %3906 = vmatpush1.msra.mxu0 %v1137
    %3907 = vmatprep.subr.mxu0 0.0
    %3908 = vmatpush1.msra.mxu0 0.0
    %3909 = vmatprep.subr.mxu0 0.0
    %3910 = vmatpush1.msra.mxu0 0.0
    %3911 = vmatprep.subr.mxu0 0.0
    %3912 = vmatpush1.msra.mxu0 0.0
    %3913 = vmatprep.subr.mxu0 0.0
    %3914 = vmatpush1.msra.mxu0 0.0
    %3915 = vmatprep.subr.mxu0 0.0
    %3916 = vmatpush1.msra.mxu0 0.0
    %3917 = vmatprep.subr.mxu0 0.0
    %3918 = vmatpush1.msra.mxu0 0.0
    %3919 = vmatprep.subr.mxu0 0.0
    %3920 = vmatpush1.msra.mxu0 0.0
    %3921 = vmatprep.subr.mxu0 0.0
    %3922 = vmatpush1.msra.mxu0 0.0
    %3923 = vmatprep.subr.mxu0 0.0
    %3924 = vmatpush1.msra.mxu0 0.0
    %3925 = vmatprep.subr.mxu0 0.0
    %3926 = vmatpush1.msra.mxu0 0.0
    %3927 = vmatprep.subr.mxu0 0.0
    %3928 = vmatpush1.msra.mxu0 0.0
    %3929 = vmatprep.subr.mxu0 0.0
    %3930 = vmatpush1.msra.mxu0 0.0
    %3931 = vmatprep.subr.mxu0 0.0
    %3932 = vmatpush1.msra.mxu0 0.0
    %3933 = vmatprep.subr.mxu0 0.0
    %3934 = vmatpush1.msra.mxu0 0.0
    %3935 = vmatprep.subr.mxu0 0.0
    %3936 = vmatpush1.msra.mxu0 0.0
    %3937 = vmatprep.subr.mxu0 0.0
    %3938 = vmatpush1.msra.mxu0 0.0
    %3939 = vmatprep.subr.mxu0 0.0
    %3940 = vmatpush1.msra.mxu0 0.0
    %3941 = vmatprep.subr.mxu0 0.0
    %3942 = vmatpush1.msra.mxu0 0.0
    %3943 = vmatprep.subr.mxu0 0.0
    %3944 = vmatpush1.msra.mxu0 0.0
    %3945 = vmatprep.subr.mxu0 0.0
    %3946 = vmatpush1.msra.mxu0 0.0
    %3947 = vmatprep.subr.mxu0 0.0
    %3948 = vmatpush1.msra.mxu0 0.0
    %3949 = vmatprep.subr.mxu0 0.0
    %3950 = vmatpush1.msra.mxu0 0.0
    %3951 = vmatprep.subr.mxu0 0.0
    %3952 = vmatpush1.msra.mxu0 0.0
    %3953 = vmatprep.subr.mxu0 0.0
    %3954 = vmatpush1.msra.mxu0 0.0
    %3955 = vmatprep.subr.mxu0 0.0
    %3956 = vmatpush1.msra.mxu0 0.0
    %3957 = vmatprep.subr.mxu0 0.0
    %3958 = vmatpush1.msra.mxu0 0.0
    %3959 = vmatprep.subr.mxu0 0.0
    %3960 = vmatpush1.msra.mxu0 0.0
    %3961 = vmatprep.subr.mxu0 0.0
    %3962 = vmatpush1.msra.mxu0 0.0
    %3963 = vmatprep.subr.mxu0 0.0
    %3964 = vmatpush1.msra.mxu0 0.0
    %3965 = vmatprep.mubr.f32.mxu0 0.0
    %3966 = vmatmul.mubr.f32.gmra.mrb[0].mxu0 %v3899
    %v3967 = vpop.f32.mrb[0].mxu0
    %v3968 = vadd.f32 %v1131, %v3967
    %v3969 = vpop.f32.mrb[0].mxu0
    %3970 = vdwg.mxu0
    %vm3971 = vcmp.gt.f32.partialorder %v3968, 0.0
    %v3972 = vmul.f32 %v3968, 1.442695
    %v3973 = vpow.pop %v3972
    %v3974 = vsub.f32 %v3973, 1.0
    %v3975 = vsel %vm3971, %v3968, %v3974
    %v3977 = vsel %vm1043, %v3975, 0
    %3979 = vmatprep.subr.mxu0 0.0
    %3980 = vmatpush1.msra.mxu0 %v941
    %3981 = vmatprep.subr.mxu0 0.0
    %3982 = vmatpush1.msra.mxu0 %v942
    %3983 = vmatprep.subr.mxu0 0.0
    %3984 = vmatpush1.msra.mxu0 %v1224
    %3985 = vmatprep.subr.mxu0 0.0
    %3986 = vmatpush1.msra.mxu0 0.0
    %3987 = vmatprep.subr.mxu0 0.0
    %3988 = vmatpush1.msra.mxu0 0.0
    %3989 = vmatprep.subr.mxu0 0.0
    %3990 = vmatpush1.msra.mxu0 0.0
    %3991 = vmatprep.subr.mxu0 0.0
    %3992 = vmatpush1.msra.mxu0 0.0
    %3993 = vmatprep.subr.mxu0 0.0
    %3994 = vmatpush1.msra.mxu0 0.0
    %3995 = vmatprep.subr.mxu0 0.0
    %3996 = vmatpush1.msra.mxu0 0.0
    %3997 = vmatprep.subr.mxu0 0.0
    %3998 = vmatpush1.msra.mxu0 0.0
    %3999 = vmatprep.subr.mxu0 0.0
    %4000 = vmatpush1.msra.mxu0 0.0
    %4001 = vmatprep.subr.mxu0 0.0
    %4002 = vmatpush1.msra.mxu0 0.0
    %4003 = vmatprep.subr.mxu0 0.0
    %4004 = vmatpush1.msra.mxu0 0.0
    %4005 = vmatprep.subr.mxu0 0.0
    %4006 = vmatpush1.msra.mxu0 0.0
    %4007 = vmatprep.subr.mxu0 0.0
    %4008 = vmatpush1.msra.mxu0 0.0
    %4009 = vmatprep.subr.mxu0 0.0
    %4010 = vmatpush1.msra.mxu0 0.0
    %4011 = vmatprep.subr.mxu0 0.0
    %4012 = vmatpush1.msra.mxu0 0.0
    %4013 = vmatprep.subr.mxu0 0.0
    %4014 = vmatpush1.msra.mxu0 0.0
    %4015 = vmatprep.subr.mxu0 0.0
    %4016 = vmatpush1.msra.mxu0 0.0
    %4017 = vmatprep.subr.mxu0 0.0
    %4018 = vmatpush1.msra.mxu0 0.0
    %4019 = vmatprep.subr.mxu0 0.0
    %4020 = vmatpush1.msra.mxu0 0.0
    %4021 = vmatprep.subr.mxu0 0.0
    %4022 = vmatpush1.msra.mxu0 0.0
    %4023 = vmatprep.subr.mxu0 0.0
    %4024 = vmatpush1.msra.mxu0 0.0
    %4025 = vmatprep.subr.mxu0 0.0
    %4026 = vmatpush1.msra.mxu0 0.0
    %4027 = vmatprep.subr.mxu0 0.0
    %4028 = vmatpush1.msra.mxu0 0.0
    %4029 = vmatprep.subr.mxu0 0.0
    %4030 = vmatpush1.msra.mxu0 0.0
    %4031 = vmatprep.subr.mxu0 0.0
    %4032 = vmatpush1.msra.mxu0 0.0
    %4033 = vmatprep.subr.mxu0 0.0
    %4034 = vmatpush1.msra.mxu0 0.0
    %4035 = vmatprep.subr.mxu0 0.0
    %4036 = vmatpush1.msra.mxu0 0.0
    %4037 = vmatprep.subr.mxu0 0.0
    %4038 = vmatpush1.msra.mxu0 0.0
    %4039 = vmatprep.subr.mxu0 0.0
    %4040 = vmatpush1.msra.mxu0 0.0
    %4041 = vmatprep.subr.mxu0 0.0
    %4042 = vmatpush1.msra.mxu0 0.0
    %4043 = vmatprep.mubr.f32.mxu0 0.0
    %4044 = vmatmul.mubr.f32.gmra.mrb[0].mxu0 %v3977
    %v4045 = vpop.f32.mrb[0].mxu0
    %v4046 = vadd.f32 %v1218, %v4045
    %v4047 = vpop.f32.mrb[0].mxu0
    %4048 = vdwg.mxu0
    %v4049 = vrcp.pop 6.0
    %s4050 = vtos %v4049
    %s4051 = smul.f32 %s3196, %s4050
    %v4052 = vmul.f32 %v3583, 2.0
    %v4053 = vadd.f32 %v3350, %v4052
    %v4054 = vmul.f32 %v3814, 2.0
    %v4055 = vadd.f32 %v4053, %v4054
    %v4056 = vadd.f32 %v4055, %v4046
    %v4057 = vstv %s4051
    %v4058 = vmul.f32 %v4057, %v4056
    %v4059 = vadd.f32 %v3035, %v4058
    %v4061 = vsel %vm955, %v4059, 0
    %4063 = vmatprep.subr.mxu0 0.0
    %4064 = vmatpush1.msra.mxu0 %v961
    %4065 = vmatprep.subr.mxu0 0.0
    %4066 = vmatpush1.msra.mxu0 0.0
    %4067 = vmatprep.subr.mxu0 0.0
    %4068 = vmatpush1.msra.mxu0 0.0
    %4069 = vmatprep.subr.mxu0 0.0
    %4070 = vmatpush1.msra.mxu0 0.0
    %4071 = vmatprep.subr.mxu0 0.0
    %4072 = vmatpush1.msra.mxu0 0.0
    %4073 = vmatprep.subr.mxu0 0.0
    %4074 = vmatpush1.msra.mxu0 0.0
    %4075 = vmatprep.subr.mxu0 0.0
    %4076 = vmatpush1.msra.mxu0 0.0
    %4077 = vmatprep.subr.mxu0 0.0
    %4078 = vmatpush1.msra.mxu0 0.0
    %4079 = vmatprep.subr.mxu0 0.0
    %4080 = vmatpush1.msra.mxu0 0.0
    %4081 = vmatprep.subr.mxu0 0.0
    %4082 = vmatpush1.msra.mxu0 0.0
    %4083 = vmatprep.subr.mxu0 0.0
    %4084 = vmatpush1.msra.mxu0 0.0
    %4085 = vmatprep.subr.mxu0 0.0
    %4086 = vmatpush1.msra.mxu0 0.0
    %4087 = vmatprep.subr.mxu0 0.0
    %4088 = vmatpush1.msra.mxu0 0.0
    %4089 = vmatprep.subr.mxu0 0.0
    %4090 = vmatpush1.msra.mxu0 0.0
    %4091 = vmatprep.subr.mxu0 0.0
    %4092 = vmatpush1.msra.mxu0 0.0
    %4093 = vmatprep.subr.mxu0 0.0
    %4094 = vmatpush1.msra.mxu0 0.0
    %4095 = vmatprep.subr.mxu0 0.0
    %4096 = vmatpush1.msra.mxu0 0.0
    %4097 = vmatprep.subr.mxu0 0.0
    %4098 = vmatpush1.msra.mxu0 0.0
    %4099 = vmatprep.subr.mxu0 0.0
    %4100 = vmatpush1.msra.mxu0 0.0
    %4101 = vmatprep.subr.mxu0 0.0
    %4102 = vmatpush1.msra.mxu0 0.0
    %4103 = vmatprep.subr.mxu0 0.0
    %4104 = vmatpush1.msra.mxu0 0.0
    %4105 = vmatprep.subr.mxu0 0.0
    %4106 = vmatpush1.msra.mxu0 0.0
    %4107 = vmatprep.subr.mxu0 0.0
    %4108 = vmatpush1.msra.mxu0 0.0
    %4109 = vmatprep.subr.mxu0 0.0
    %4110 = vmatpush1.msra.mxu0 0.0
    %4111 = vmatprep.subr.mxu0 0.0
    %4112 = vmatpush1.msra.mxu0 0.0
    %4113 = vmatprep.subr.mxu0 0.0
    %4114 = vmatpush1.msra.mxu0 0.0
    %4115 = vmatprep.subr.mxu0 0.0
    %4116 = vmatpush1.msra.mxu0 0.0
    %4117 = vmatprep.subr.mxu0 0.0
    %4118 = vmatpush1.msra.mxu0 0.0
    %4119 = vmatprep.subr.mxu0 0.0
    %4120 = vmatpush1.msra.mxu0 0.0
    %4121 = vmatprep.subr.mxu0 0.0
    %4122 = vmatpush1.msra.mxu0 0.0
    %4123 = vmatprep.subr.mxu0 0.0
    %4124 = vmatpush1.msra.mxu0 0.0
    %4125 = vmatprep.subr.mxu0 0.0
    %4126 = vmatpush1.msra.mxu0 0.0
    %4127 = vmatprep.mubr.f32.mxu0 0.0
    %4128 = vmatmul.mubr.f32.gmra.mrb[0].mxu0 %v4061
    %v4129 = vpop.f32.mrb[0].mxu0
    %v4130 = vadd.f32 %v953, %v4129
    %v4131 = vpop.f32.mrb[0].mxu0
    %4132 = vdwg.mxu0
    %v4133 = vmax.f32 %v4130, 0.0
    %4135 = vrot.lane.b32.xlu0 %v4133, 108
    %v4136 = vpop.permute.xlu0 %4135
    %v4137 = vsel %vm1043, %v4136, 0
    %4139 = vmatprep.subr.mxu0 0.0
    %4140 = vmatpush1.msra.mxu0 %v945
    %4141 = vmatprep.subr.mxu0 0.0
    %4142 = vmatpush1.msra.mxu0 %v946
    %4143 = vmatprep.subr.mxu0 0.0
    %4144 = vmatpush1.msra.mxu0 %v1047
    %4145 = vmatprep.subr.mxu0 0.0
    %4146 = vmatpush1.msra.mxu0 0.0
    %4147 = vmatprep.subr.mxu0 0.0
    %4148 = vmatpush1.msra.mxu0 0.0
    %4149 = vmatprep.subr.mxu0 0.0
    %4150 = vmatpush1.msra.mxu0 0.0
    %4151 = vmatprep.subr.mxu0 0.0
    %4152 = vmatpush1.msra.mxu0 0.0
    %4153 = vmatprep.subr.mxu0 0.0
    %4154 = vmatpush1.msra.mxu0 0.0
    %4155 = vmatprep.subr.mxu0 0.0
    %4156 = vmatpush1.msra.mxu0 0.0
    %4157 = vmatprep.subr.mxu0 0.0
    %4158 = vmatpush1.msra.mxu0 0.0
    %4159 = vmatprep.subr.mxu0 0.0
    %4160 = vmatpush1.msra.mxu0 0.0
    %4161 = vmatprep.subr.mxu0 0.0
    %4162 = vmatpush1.msra.mxu0 0.0
    %4163 = vmatprep.subr.mxu0 0.0
    %4164 = vmatpush1.msra.mxu0 0.0
    %4165 = vmatprep.subr.mxu0 0.0
    %4166 = vmatpush1.msra.mxu0 0.0
    %4167 = vmatprep.subr.mxu0 0.0
    %4168 = vmatpush1.msra.mxu0 0.0
    %4169 = vmatprep.subr.mxu0 0.0
    %4170 = vmatpush1.msra.mxu0 0.0
    %4171 = vmatprep.subr.mxu0 0.0
    %4172 = vmatpush1.msra.mxu0 0.0
    %4173 = vmatprep.subr.mxu0 0.0
    %4174 = vmatpush1.msra.mxu0 0.0
    %4175 = vmatprep.subr.mxu0 0.0
    %4176 = vmatpush1.msra.mxu0 0.0
    %4177 = vmatprep.subr.mxu0 0.0
    %4178 = vmatpush1.msra.mxu0 0.0
    %4179 = vmatprep.subr.mxu0 0.0
    %4180 = vmatpush1.msra.mxu0 0.0
    %4181 = vmatprep.subr.mxu0 0.0
    %4182 = vmatpush1.msra.mxu0 0.0
    %4183 = vmatprep.subr.mxu0 0.0
    %4184 = vmatpush1.msra.mxu0 0.0
    %4185 = vmatprep.subr.mxu0 0.0
    %4186 = vmatpush1.msra.mxu0 0.0
    %4187 = vmatprep.subr.mxu0 0.0
    %4188 = vmatpush1.msra.mxu0 0.0
    %4189 = vmatprep.subr.mxu0 0.0
    %4190 = vmatpush1.msra.mxu0 0.0
    %4191 = vmatprep.subr.mxu0 0.0
    %4192 = vmatpush1.msra.mxu0 0.0
    %4193 = vmatprep.subr.mxu0 0.0
    %4194 = vmatpush1.msra.mxu0 0.0
    %4195 = vmatprep.subr.mxu0 0.0
    %4196 = vmatpush1.msra.mxu0 0.0
    %4197 = vmatprep.subr.mxu0 0.0
    %4198 = vmatpush1.msra.mxu0 0.0
    %4199 = vmatprep.subr.mxu0 0.0
    %4200 = vmatpush1.msra.mxu0 0.0
    %4201 = vmatprep.subr.mxu0 0.0
    %4202 = vmatpush1.msra.mxu0 0.0
    %4203 = vmatprep.mubr.f32.mxu0 0.0
    %4204 = vmatmul.mubr.f32.gmra.mrb[0].mxu0 %v4137
    %v4205 = vpop.f32.mrb[0].mxu0
    %v4206 = vadd.f32 %v1038, %v4205
    %v4207 = vpop.f32.mrb[0].mxu0
    %4208 = vdwg.mxu0
    %4209 = vrot.lane.b32.xlu0 %v4059, 12
    %v4210 = vpop.permute.xlu0 %4209
    %vm4212 = vcmask 130144
    %4213 = vst.msk [vmem:[%s19] sm:$0xff] %vm4212, %v4210
    %4215 = vrot.lane.b32.xlu0 %v4206, 6
    %v4216 = vpop.permute.xlu0 %4215
    %vm4218 = vcmask 64560
    %4219 = vst.msk [vmem:[%s20] sm:$0xff] %vm4218, %v4216
    %s4220 = sld [smem:[#allocation2 + $0x3]]
    %vm4221 = vcmp.gt.f32.partialorder %v4130, 0.0
    %v4222 = vmul.f32 %v4130, 1.442695
    %v4223 = vpow.pop %v4222
    %v4224 = vsub.f32 %v4223, 1.0
    %v4225 = vsel %vm4221, %v4130, %v4224
    %v4227 = vsel %vm1043, %v4225, 0
    %4229 = vmatprep.subr.mxu0 0.0
    %4230 = vmatpush1.msra.mxu0 %v937
    %4231 = vmatprep.subr.mxu0 0.0
    %4232 = vmatpush1.msra.mxu0 %v938
    %4233 = vmatprep.subr.mxu0 0.0
    %4234 = vmatpush1.msra.mxu0 %v1137
    %4235 = vmatprep.subr.mxu0 0.0
    %4236 = vmatpush1.msra.mxu0 0.0
    %4237 = vmatprep.subr.mxu0 0.0
    %4238 = vmatpush1.msra.mxu0 0.0
    %4239 = vmatprep.subr.mxu0 0.0
    %4240 = vmatpush1.msra.mxu0 0.0
    %4241 = vmatprep.subr.mxu0 0.0
    %4242 = vmatpush1.msra.mxu0 0.0
    %4243 = vmatprep.subr.mxu0 0.0
    %4244 = vmatpush1.msra.mxu0 0.0
    %4245 = vmatprep.subr.mxu0 0.0
    %4246 = vmatpush1.msra.mxu0 0.0
    %4247 = vmatprep.subr.mxu0 0.0
    %4248 = vmatpush1.msra.mxu0 0.0
    %4249 = vmatprep.subr.mxu0 0.0
    %4250 = vmatpush1.msra.mxu0 0.0
    %4251 = vmatprep.subr.mxu0 0.0
    %4252 = vmatpush1.msra.mxu0 0.0
    %4253 = vmatprep.subr.mxu0 0.0
    %4254 = vmatpush1.msra.mxu0 0.0
    %4255 = vmatprep.subr.mxu0 0.0
    %4256 = vmatpush1.msra.mxu0 0.0
    %4257 = vmatprep.subr.mxu0 0.0
    %4258 = vmatpush1.msra.mxu0 0.0
    %4259 = vmatprep.subr.mxu0 0.0
    %4260 = vmatpush1.msra.mxu0 0.0
    %4261 = vmatprep.subr.mxu0 0.0
    %4262 = vmatpush1.msra.mxu0 0.0
    %4263 = vmatprep.subr.mxu0 0.0
    %4264 = vmatpush1.msra.mxu0 0.0
    %4265 = vmatprep.subr.mxu0 0.0
    %4266 = vmatpush1.msra.mxu0 0.0
    %4267 = vmatprep.subr.mxu0 0.0
    %4268 = vmatpush1.msra.mxu0 0.0
    %4269 = vmatprep.subr.mxu0 0.0
    %4270 = vmatpush1.msra.mxu0 0.0
    %4271 = vmatprep.subr.mxu0 0.0
    %4272 = vmatpush1.msra.mxu0 0.0
    %4273 = vmatprep.subr.mxu0 0.0
    %4274 = vmatpush1.msra.mxu0 0.0
    %4275 = vmatprep.subr.mxu0 0.0
    %4276 = vmatpush1.msra.mxu0 0.0
    %4277 = vmatprep.subr.mxu0 0.0
    %4278 = vmatpush1.msra.mxu0 0.0
    %4279 = vmatprep.subr.mxu0 0.0
    %4280 = vmatpush1.msra.mxu0 0.0
    %4281 = vmatprep.subr.mxu0 0.0
    %4282 = vmatpush1.msra.mxu0 0.0
    %4283 = vmatprep.subr.mxu0 0.0
    %4284 = vmatpush1.msra.mxu0 0.0
    %4285 = vmatprep.subr.mxu0 0.0
    %4286 = vmatpush1.msra.mxu0 0.0
    %4287 = vmatprep.subr.mxu0 0.0
    %4288 = vmatpush1.msra.mxu0 0.0
    %4289 = vmatprep.subr.mxu0 0.0
    %4290 = vmatpush1.msra.mxu0 0.0
    %4291 = vmatprep.subr.mxu0 0.0
    %4292 = vmatpush1.msra.mxu0 0.0
    %4293 = vmatprep.mubr.f32.mxu0 0.0
    %4294 = vmatmul.mubr.f32.gmra.mrb[0].mxu0 %v4227
    %v4295 = vpop.f32.mrb[0].mxu0
    %v4296 = vadd.f32 %v1131, %v4295
    %v4297 = vpop.f32.mrb[0].mxu0
    %4298 = vdwg.mxu0
    %vm4299 = vcmp.gt.f32.partialorder %v4296, 0.0
    %v4300 = vmul.f32 %v4296, 1.442695
    %v4301 = vpow.pop %v4300
    %v4302 = vsub.f32 %v4301, 1.0
    %v4303 = vsel %vm4299, %v4296, %v4302
    %v4305 = vsel %vm1043, %v4303, 0
    %4307 = vmatprep.subr.mxu0 0.0
    %4308 = vmatpush1.msra.mxu0 %v941
    %4309 = vmatprep.subr.mxu0 0.0
    %4310 = vmatpush1.msra.mxu0 %v942
    %4311 = vmatprep.subr.mxu0 0.0
    %4312 = vmatpush1.msra.mxu0 %v1224
    %4313 = vmatprep.subr.mxu0 0.0
    %4314 = vmatpush1.msra.mxu0 0.0
    %4315 = vmatprep.subr.mxu0 0.0
    %4316 = vmatpush1.msra.mxu0 0.0
    %4317 = vmatprep.subr.mxu0 0.0
    %4318 = vmatpush1.msra.mxu0 0.0
    %4319 = vmatprep.subr.mxu0 0.0
    %4320 = vmatpush1.msra.mxu0 0.0
    %4321 = vmatprep.subr.mxu0 0.0
    %4322 = vmatpush1.msra.mxu0 0.0
    %4323 = vmatprep.subr.mxu0 0.0
    %4324 = vmatpush1.msra.mxu0 0.0
    %4325 = vmatprep.subr.mxu0 0.0
    %4326 = vmatpush1.msra.mxu0 0.0
    %4327 = vmatprep.subr.mxu0 0.0
    %4328 = vmatpush1.msra.mxu0 0.0
    %4329 = vmatprep.subr.mxu0 0.0
    %4330 = vmatpush1.msra.mxu0 0.0
    %4331 = vmatprep.subr.mxu0 0.0
    %4332 = vmatpush1.msra.mxu0 0.0
    %4333 = vmatprep.subr.mxu0 0.0
    %4334 = vmatpush1.msra.mxu0 0.0
    %4335 = vmatprep.subr.mxu0 0.0
    %4336 = vmatpush1.msra.mxu0 0.0
    %4337 = vmatprep.subr.mxu0 0.0
    %4338 = vmatpush1.msra.mxu0 0.0
    %4339 = vmatprep.subr.mxu0 0.0
    %4340 = vmatpush1.msra.mxu0 0.0
    %4341 = vmatprep.subr.mxu0 0.0
    %4342 = vmatpush1.msra.mxu0 0.0
    %4343 = vmatprep.subr.mxu0 0.0
    %4344 = vmatpush1.msra.mxu0 0.0
    %4345 = vmatprep.subr.mxu0 0.0
    %4346 = vmatpush1.msra.mxu0 0.0
    %4347 = vmatprep.subr.mxu0 0.0
    %4348 = vmatpush1.msra.mxu0 0.0
    %4349 = vmatprep.subr.mxu0 0.0
    %4350 = vmatpush1.msra.mxu0 0.0
    %4351 = vmatprep.subr.mxu0 0.0
    %4352 = vmatpush1.msra.mxu0 0.0
    %4353 = vmatprep.subr.mxu0 0.0
    %4354 = vmatpush1.msra.mxu0 0.0
    %4355 = vmatprep.subr.mxu0 0.0
    %4356 = vmatpush1.msra.mxu0 0.0
    %4357 = vmatprep.subr.mxu0 0.0
    %4358 = vmatpush1.msra.mxu0 0.0
    %4359 = vmatprep.subr.mxu0 0.0
    %4360 = vmatpush1.msra.mxu0 0.0
    %4361 = vmatprep.subr.mxu0 0.0
    %4362 = vmatpush1.msra.mxu0 0.0
    %4363 = vmatprep.subr.mxu0 0.0
    %4364 = vmatpush1.msra.mxu0 0.0
    %4365 = vmatprep.subr.mxu0 0.0
    %4366 = vmatpush1.msra.mxu0 0.0
    %4367 = vmatprep.subr.mxu0 0.0
    %4368 = vmatpush1.msra.mxu0 0.0
    %4369 = vmatprep.subr.mxu0 0.0
    %4370 = vmatpush1.msra.mxu0 0.0
    %4371 = vmatprep.mubr.f32.mxu0 0.0
    %4372 = vmatmul.mubr.f32.gmra.mrb[0].mxu0 %v4305
    %v4373 = vpop.f32.mrb[0].mxu0
    %v4374 = vadd.f32 %v1218, %v4373
    %v4375 = vpop.f32.mrb[0].mxu0
    %4376 = vdwg.mxu0
    %s4377 = smul.f32 %s4220, 0.5
    %v4378 = vstv %s4377
    %v4379 = vmul.f32 %v4378, %v4374
    %v4380 = vadd.f32 %v4059, %v4379
    %v4382 = vsel %vm955, %v4380, 0
    %4384 = vmatprep.subr.mxu0 0.0
    %4385 = vmatpush1.msra.mxu0 %v1310
    %4386 = vmatprep.subr.mxu0 0.0
    %4387 = vmatpush1.msra.mxu0 0.0
    %4388 = vmatprep.subr.mxu0 0.0
    %4389 = vmatpush1.msra.mxu0 0.0
    %4390 = vmatprep.subr.mxu0 0.0
    %4391 = vmatpush1.msra.mxu0 0.0
    %4392 = vmatprep.subr.mxu0 0.0
    %4393 = vmatpush1.msra.mxu0 0.0
    %4394 = vmatprep.subr.mxu0 0.0
    %4395 = vmatpush1.msra.mxu0 0.0
    %4396 = vmatprep.subr.mxu0 0.0
    %4397 = vmatpush1.msra.mxu0 0.0
    %4398 = vmatprep.subr.mxu0 0.0
    %4399 = vmatpush1.msra.mxu0 0.0
    %4400 = vmatprep.subr.mxu0 0.0
    %4401 = vmatpush1.msra.mxu0 0.0
    %4402 = vmatprep.subr.mxu0 0.0
    %4403 = vmatpush1.msra.mxu0 0.0
    %4404 = vmatprep.subr.mxu0 0.0
    %4405 = vmatpush1.msra.mxu0 0.0
    %4406 = vmatprep.subr.mxu0 0.0
    %4407 = vmatpush1.msra.mxu0 0.0
    %4408 = vmatprep.subr.mxu0 0.0
    %4409 = vmatpush1.msra.mxu0 0.0
    %4410 = vmatprep.subr.mxu0 0.0
    %4411 = vmatpush1.msra.mxu0 0.0
    %4412 = vmatprep.subr.mxu0 0.0
    %4413 = vmatpush1.msra.mxu0 0.0
    %4414 = vmatprep.subr.mxu0 0.0
    %4415 = vmatpush1.msra.mxu0 0.0
    %4416 = vmatprep.subr.mxu0 0.0
    %4417 = vmatpush1.msra.mxu0 0.0
    %4418 = vmatprep.subr.mxu0 0.0
    %4419 = vmatpush1.msra.mxu0 0.0
    %4420 = vmatprep.subr.mxu0 0.0
    %4421 = vmatpush1.msra.mxu0 0.0
    %4422 = vmatprep.subr.mxu0 0.0
    %4423 = vmatpush1.msra.mxu0 0.0
    %4424 = vmatprep.subr.mxu0 0.0
    %4425 = vmatpush1.msra.mxu0 0.0
    %4426 = vmatprep.subr.mxu0 0.0
    %4427 = vmatpush1.msra.mxu0 0.0
    %4428 = vmatprep.subr.mxu0 0.0
    %4429 = vmatpush1.msra.mxu0 0.0
    %4430 = vmatprep.subr.mxu0 0.0
    %4431 = vmatpush1.msra.mxu0 0.0
    %4432 = vmatprep.subr.mxu0 0.0
    %4433 = vmatpush1.msra.mxu0 0.0
    %4434 = vmatprep.subr.mxu0 0.0
    %4435 = vmatpush1.msra.mxu0 0.0
    %4436 = vmatprep.subr.mxu0 0.0
    %4437 = vmatpush1.msra.mxu0 0.0
    %4438 = vmatprep.subr.mxu0 0.0
    %4439 = vmatpush1.msra.mxu0 0.0
    %4440 = vmatprep.subr.mxu0 0.0
    %4441 = vmatpush1.msra.mxu0 0.0
    %4442 = vmatprep.subr.mxu0 0.0
    %4443 = vmatpush1.msra.mxu0 0.0
    %4444 = vmatprep.subr.mxu0 0.0
    %4445 = vmatpush1.msra.mxu0 0.0
    %4446 = vmatprep.subr.mxu0 0.0
    %4447 = vmatpush1.msra.mxu0 0.0
    %4448 = vmatprep.mubr.f32.mxu0 0.0
    %4449 = vmatmul.mubr.f32.gmra.mrb[0].mxu0 %v4382
    %v4450 = vpop.f32.mrb[0].mxu0
    %v4451 = vadd.f32 %v1304, %v4450
    %v4452 = vpop.f32.mrb[0].mxu0
    %4453 = vdwg.mxu0
    %vm4454 = vcmp.gt.f32.partialorder %v4451, 0.0
    %v4455 = vmul.f32 %v4451, 1.442695
    %v4456 = vpow.pop %v4455
    %v4457 = vsub.f32 %v4456, 1.0
    %v4458 = vsel %vm4454, %v4451, %v4457
    %v4460 = vsel %vm1043, %v4458, 0
    %4462 = vmatprep.subr.mxu0 0.0
    %4463 = vmatpush1.msra.mxu0 %v937
    %4464 = vmatprep.subr.mxu0 0.0
    %4465 = vmatpush1.msra.mxu0 %v938
    %4466 = vmatprep.subr.mxu0 0.0
    %4467 = vmatpush1.msra.mxu0 %v1137
    %4468 = vmatprep.subr.mxu0 0.0
    %4469 = vmatpush1.msra.mxu0 0.0
    %4470 = vmatprep.subr.mxu0 0.0
    %4471 = vmatpush1.msra.mxu0 0.0
    %4472 = vmatprep.subr.mxu0 0.0
    %4473 = vmatpush1.msra.mxu0 0.0
    %4474 = vmatprep.subr.mxu0 0.0
    %4475 = vmatpush1.msra.mxu0 0.0
    %4476 = vmatprep.subr.mxu0 0.0
    %4477 = vmatpush1.msra.mxu0 0.0
    %4478 = vmatprep.subr.mxu0 0.0
    %4479 = vmatpush1.msra.mxu0 0.0
    %4480 = vmatprep.subr.mxu0 0.0
    %4481 = vmatpush1.msra.mxu0 0.0
    %4482 = vmatprep.subr.mxu0 0.0
    %4483 = vmatpush1.msra.mxu0 0.0
    %4484 = vmatprep.subr.mxu0 0.0
    %4485 = vmatpush1.msra.mxu0 0.0
    %4486 = vmatprep.subr.mxu0 0.0
    %4487 = vmatpush1.msra.mxu0 0.0
    %4488 = vmatprep.subr.mxu0 0.0
    %4489 = vmatpush1.msra.mxu0 0.0
    %4490 = vmatprep.subr.mxu0 0.0
    %4491 = vmatpush1.msra.mxu0 0.0
    %4492 = vmatprep.subr.mxu0 0.0
    %4493 = vmatpush1.msra.mxu0 0.0
    %4494 = vmatprep.subr.mxu0 0.0
    %4495 = vmatpush1.msra.mxu0 0.0
    %4496 = vmatprep.subr.mxu0 0.0
    %4497 = vmatpush1.msra.mxu0 0.0
    %4498 = vmatprep.subr.mxu0 0.0
    %4499 = vmatpush1.msra.mxu0 0.0
    %4500 = vmatprep.subr.mxu0 0.0
    %4501 = vmatpush1.msra.mxu0 0.0
    %4502 = vmatprep.subr.mxu0 0.0
    %4503 = vmatpush1.msra.mxu0 0.0
    %4504 = vmatprep.subr.mxu0 0.0
    %4505 = vmatpush1.msra.mxu0 0.0
    %4506 = vmatprep.subr.mxu0 0.0
    %4507 = vmatpush1.msra.mxu0 0.0
    %4508 = vmatprep.subr.mxu0 0.0
    %4509 = vmatpush1.msra.mxu0 0.0
    %4510 = vmatprep.subr.mxu0 0.0
    %4511 = vmatpush1.msra.mxu0 0.0
    %4512 = vmatprep.subr.mxu0 0.0
    %4513 = vmatpush1.msra.mxu0 0.0
    %4514 = vmatprep.subr.mxu0 0.0
    %4515 = vmatpush1.msra.mxu0 0.0
    %4516 = vmatprep.subr.mxu0 0.0
    %4517 = vmatpush1.msra.mxu0 0.0
    %4518 = vmatprep.subr.mxu0 0.0
    %4519 = vmatpush1.msra.mxu0 0.0
    %4520 = vmatprep.subr.mxu0 0.0
    %4521 = vmatpush1.msra.mxu0 0.0
    %4522 = vmatprep.subr.mxu0 0.0
    %4523 = vmatpush1.msra.mxu0 0.0
    %4524 = vmatprep.subr.mxu0 0.0
    %4525 = vmatpush1.msra.mxu0 0.0
    %4526 = vmatprep.mubr.f32.mxu0 0.0
    %4527 = vmatmul.mubr.f32.gmra.mrb[0].mxu0 %v4460
    %v4528 = vpop.f32.mrb[0].mxu0
    %v4529 = vadd.f32 %v1131, %v4528
    %v4530 = vpop.f32.mrb[0].mxu0
    %4531 = vdwg.mxu0
    %vm4532 = vcmp.gt.f32.partialorder %v4529, 0.0
    %v4533 = vmul.f32 %v4529, 1.442695
    %v4534 = vpow.pop %v4533
    %v4535 = vsub.f32 %v4534, 1.0
    %v4536 = vsel %vm4532, %v4529, %v4535
    %v4538 = vsel %vm1043, %v4536, 0
    %4540 = vmatprep.subr.mxu0 0.0
    %4541 = vmatpush1.msra.mxu0 %v941
    %4542 = vmatprep.subr.mxu0 0.0
    %4543 = vmatpush1.msra.mxu0 %v942
    %4544 = vmatprep.subr.mxu0 0.0
    %4545 = vmatpush1.msra.mxu0 %v1224
    %4546 = vmatprep.subr.mxu0 0.0
    %4547 = vmatpush1.msra.mxu0 0.0
    %4548 = vmatprep.subr.mxu0 0.0
    %4549 = vmatpush1.msra.mxu0 0.0
    %4550 = vmatprep.subr.mxu0 0.0
    %4551 = vmatpush1.msra.mxu0 0.0
    %4552 = vmatprep.subr.mxu0 0.0
    %4553 = vmatpush1.msra.mxu0 0.0
    %4554 = vmatprep.subr.mxu0 0.0
    %4555 = vmatpush1.msra.mxu0 0.0
    %4556 = vmatprep.subr.mxu0 0.0
    %4557 = vmatpush1.msra.mxu0 0.0
    %4558 = vmatprep.subr.mxu0 0.0
    %4559 = vmatpush1.msra.mxu0 0.0
    %4560 = vmatprep.subr.mxu0 0.0
    %4561 = vmatpush1.msra.mxu0 0.0
    %4562 = vmatprep.subr.mxu0 0.0
    %4563 = vmatpush1.msra.mxu0 0.0
    %4564 = vmatprep.subr.mxu0 0.0
    %4565 = vmatpush1.msra.mxu0 0.0
    %4566 = vmatprep.subr.mxu0 0.0
    %4567 = vmatpush1.msra.mxu0 0.0
    %4568 = vmatprep.subr.mxu0 0.0
    %4569 = vmatpush1.msra.mxu0 0.0
    %4570 = vmatprep.subr.mxu0 0.0
    %4571 = vmatpush1.msra.mxu0 0.0
    %4572 = vmatprep.subr.mxu0 0.0
    %4573 = vmatpush1.msra.mxu0 0.0
    %4574 = vmatprep.subr.mxu0 0.0
    %4575 = vmatpush1.msra.mxu0 0.0
    %4576 = vmatprep.subr.mxu0 0.0
    %4577 = vmatpush1.msra.mxu0 0.0
    %4578 = vmatprep.subr.mxu0 0.0
    %4579 = vmatpush1.msra.mxu0 0.0
    %4580 = vmatprep.subr.mxu0 0.0
    %4581 = vmatpush1.msra.mxu0 0.0
    %4582 = vmatprep.subr.mxu0 0.0
    %4583 = vmatpush1.msra.mxu0 0.0
    %4584 = vmatprep.subr.mxu0 0.0
    %4585 = vmatpush1.msra.mxu0 0.0
    %4586 = vmatprep.subr.mxu0 0.0
    %4587 = vmatpush1.msra.mxu0 0.0
    %4588 = vmatprep.subr.mxu0 0.0
    %4589 = vmatpush1.msra.mxu0 0.0
    %4590 = vmatprep.subr.mxu0 0.0
    %4591 = vmatpush1.msra.mxu0 0.0
    %4592 = vmatprep.subr.mxu0 0.0
    %4593 = vmatpush1.msra.mxu0 0.0
    %4594 = vmatprep.subr.mxu0 0.0
    %4595 = vmatpush1.msra.mxu0 0.0
    %4596 = vmatprep.subr.mxu0 0.0
    %4597 = vmatpush1.msra.mxu0 0.0
    %4598 = vmatprep.subr.mxu0 0.0
    %4599 = vmatpush1.msra.mxu0 0.0
    %4600 = vmatprep.subr.mxu0 0.0
    %4601 = vmatpush1.msra.mxu0 0.0
    %4602 = vmatprep.subr.mxu0 0.0
    %4603 = vmatpush1.msra.mxu0 0.0
    %4604 = vmatprep.mubr.f32.mxu0 0.0
    %4605 = vmatmul.mubr.f32.gmra.mrb[0].mxu0 %v4538
    %v4606 = vpop.f32.mrb[0].mxu0
    %v4607 = vadd.f32 %v1218, %v4606
    %v4608 = vpop.f32.mrb[0].mxu0
    %4609 = vdwg.mxu0
    %v4610 = vmul.f32 %v4378, %v4607
    %v4611 = vadd.f32 %v4059, %v4610
    %v4613 = vsel %vm955, %v4611, 0
    %4615 = vmatprep.subr.mxu0 0.0
    %4616 = vmatpush1.msra.mxu0 %v1310
    %4617 = vmatprep.subr.mxu0 0.0
    %4618 = vmatpush1.msra.mxu0 0.0
    %4619 = vmatprep.subr.mxu0 0.0
    %4620 = vmatpush1.msra.mxu0 0.0
    %4621 = vmatprep.subr.mxu0 0.0
    %4622 = vmatpush1.msra.mxu0 0.0
    %4623 = vmatprep.subr.mxu0 0.0
    %4624 = vmatpush1.msra.mxu0 0.0
    %4625 = vmatprep.subr.mxu0 0.0
    %4626 = vmatpush1.msra.mxu0 0.0
    %4627 = vmatprep.subr.mxu0 0.0
    %4628 = vmatpush1.msra.mxu0 0.0
    %4629 = vmatprep.subr.mxu0 0.0
    %4630 = vmatpush1.msra.mxu0 0.0
    %4631 = vmatprep.subr.mxu0 0.0
    %4632 = vmatpush1.msra.mxu0 0.0
    %4633 = vmatprep.subr.mxu0 0.0
    %4634 = vmatpush1.msra.mxu0 0.0
    %4635 = vmatprep.subr.mxu0 0.0
    %4636 = vmatpush1.msra.mxu0 0.0
    %4637 = vmatprep.subr.mxu0 0.0
    %4638 = vmatpush1.msra.mxu0 0.0
    %4639 = vmatprep.subr.mxu0 0.0
    %4640 = vmatpush1.msra.mxu0 0.0
    %4641 = vmatprep.subr.mxu0 0.0
    %4642 = vmatpush1.msra.mxu0 0.0
    %4643 = vmatprep.subr.mxu0 0.0
    %4644 = vmatpush1.msra.mxu0 0.0
    %4645 = vmatprep.subr.mxu0 0.0
    %4646 = vmatpush1.msra.mxu0 0.0
    %4647 = vmatprep.subr.mxu0 0.0
    %4648 = vmatpush1.msra.mxu0 0.0
    %4649 = vmatprep.subr.mxu0 0.0
    %4650 = vmatpush1.msra.mxu0 0.0
    %4651 = vmatprep.subr.mxu0 0.0
    %4652 = vmatpush1.msra.mxu0 0.0
    %4653 = vmatprep.subr.mxu0 0.0
    %4654 = vmatpush1.msra.mxu0 0.0
    %4655 = vmatprep.subr.mxu0 0.0
    %4656 = vmatpush1.msra.mxu0 0.0
    %4657 = vmatprep.subr.mxu0 0.0
    %4658 = vmatpush1.msra.mxu0 0.0
    %4659 = vmatprep.subr.mxu0 0.0
    %4660 = vmatpush1.msra.mxu0 0.0
    %4661 = vmatprep.subr.mxu0 0.0
    %4662 = vmatpush1.msra.mxu0 0.0
    %4663 = vmatprep.subr.mxu0 0.0
    %4664 = vmatpush1.msra.mxu0 0.0
    %4665 = vmatprep.subr.mxu0 0.0
    %4666 = vmatpush1.msra.mxu0 0.0
    %4667 = vmatprep.subr.mxu0 0.0
    %4668 = vmatpush1.msra.mxu0 0.0
    %4669 = vmatprep.subr.mxu0 0.0
    %4670 = vmatpush1.msra.mxu0 0.0
    %4671 = vmatprep.subr.mxu0 0.0
    %4672 = vmatpush1.msra.mxu0 0.0
    %4673 = vmatprep.subr.mxu0 0.0
    %4674 = vmatpush1.msra.mxu0 0.0
    %4675 = vmatprep.subr.mxu0 0.0
    %4676 = vmatpush1.msra.mxu0 0.0
    %4677 = vmatprep.subr.mxu0 0.0
    %4678 = vmatpush1.msra.mxu0 0.0
    %4679 = vmatprep.mubr.f32.mxu0 0.0
    %4680 = vmatmul.mubr.f32.gmra.mrb[0].mxu0 %v4613
    %v4681 = vpop.f32.mrb[0].mxu0
    %v4682 = vadd.f32 %v1304, %v4681
    %v4683 = vpop.f32.mrb[0].mxu0
    %4684 = vdwg.mxu0
    %vm4685 = vcmp.gt.f32.partialorder %v4682, 0.0
    %v4686 = vmul.f32 %v4682, 1.442695
    %v4687 = vpow.pop %v4686
    %v4688 = vsub.f32 %v4687, 1.0
    %v4689 = vsel %vm4685, %v4682, %v4688
    %v4691 = vsel %vm1043, %v4689, 0
    %4693 = vmatprep.subr.mxu0 0.0
    %4694 = vmatpush1.msra.mxu0 %v937
    %4695 = vmatprep.subr.mxu0 0.0
    %4696 = vmatpush1.msra.mxu0 %v938
    %4697 = vmatprep.subr.mxu0 0.0
    %4698 = vmatpush1.msra.mxu0 %v1137
    %4699 = vmatprep.subr.mxu0 0.0
    %4700 = vmatpush1.msra.mxu0 0.0
    %4701 = vmatprep.subr.mxu0 0.0
    %4702 = vmatpush1.msra.mxu0 0.0
    %4703 = vmatprep.subr.mxu0 0.0
    %4704 = vmatpush1.msra.mxu0 0.0
    %4705 = vmatprep.subr.mxu0 0.0
    %4706 = vmatpush1.msra.mxu0 0.0
    %4707 = vmatprep.subr.mxu0 0.0
    %4708 = vmatpush1.msra.mxu0 0.0
    %4709 = vmatprep.subr.mxu0 0.0
    %4710 = vmatpush1.msra.mxu0 0.0
    %4711 = vmatprep.subr.mxu0 0.0
    %4712 = vmatpush1.msra.mxu0 0.0
    %4713 = vmatprep.subr.mxu0 0.0
    %4714 = vmatpush1.msra.mxu0 0.0
    %4715 = vmatprep.subr.mxu0 0.0
    %4716 = vmatpush1.msra.mxu0 0.0
    %4717 = vmatprep.subr.mxu0 0.0
    %4718 = vmatpush1.msra.mxu0 0.0
    %4719 = vmatprep.subr.mxu0 0.0
    %4720 = vmatpush1.msra.mxu0 0.0
    %4721 = vmatprep.subr.mxu0 0.0
    %4722 = vmatpush1.msra.mxu0 0.0
    %4723 = vmatprep.subr.mxu0 0.0
    %4724 = vmatpush1.msra.mxu0 0.0
    %4725 = vmatprep.subr.mxu0 0.0
    %4726 = vmatpush1.msra.mxu0 0.0
    %4727 = vmatprep.subr.mxu0 0.0
    %4728 = vmatpush1.msra.mxu0 0.0
    %4729 = vmatprep.subr.mxu0 0.0
    %4730 = vmatpush1.msra.mxu0 0.0
    %4731 = vmatprep.subr.mxu0 0.0
    %4732 = vmatpush1.msra.mxu0 0.0
    %4733 = vmatprep.subr.mxu0 0.0
    %4734 = vmatpush1.msra.mxu0 0.0
    %4735 = vmatprep.subr.mxu0 0.0
    %4736 = vmatpush1.msra.mxu0 0.0
    %4737 = vmatprep.subr.mxu0 0.0
    %4738 = vmatpush1.msra.mxu0 0.0
    %4739 = vmatprep.subr.mxu0 0.0
    %4740 = vmatpush1.msra.mxu0 0.0
    %4741 = vmatprep.subr.mxu0 0.0
    %4742 = vmatpush1.msra.mxu0 0.0
    %4743 = vmatprep.subr.mxu0 0.0
    %4744 = vmatpush1.msra.mxu0 0.0
    %4745 = vmatprep.subr.mxu0 0.0
    %4746 = vmatpush1.msra.mxu0 0.0
    %4747 = vmatprep.subr.mxu0 0.0
    %4748 = vmatpush1.msra.mxu0 0.0
    %4749 = vmatprep.subr.mxu0 0.0
    %4750 = vmatpush1.msra.mxu0 0.0
    %4751 = vmatprep.subr.mxu0 0.0
    %4752 = vmatpush1.msra.mxu0 0.0
    %4753 = vmatprep.subr.mxu0 0.0
    %4754 = vmatpush1.msra.mxu0 0.0
    %4755 = vmatprep.subr.mxu0 0.0
    %4756 = vmatpush1.msra.mxu0 0.0
    %4757 = vmatprep.mubr.f32.mxu0 0.0
    %4758 = vmatmul.mubr.f32.gmra.mrb[0].mxu0 %v4691
    %v4759 = vpop.f32.mrb[0].mxu0
    %v4760 = vadd.f32 %v1131, %v4759
    %v4761 = vpop.f32.mrb[0].mxu0
    %4762 = vdwg.mxu0
    %vm4763 = vcmp.gt.f32.partialorder %v4760, 0.0
    %v4764 = vmul.f32 %v4760, 1.442695
    %v4765 = vpow.pop %v4764
    %v4766 = vsub.f32 %v4765, 1.0
    %v4767 = vsel %vm4763, %v4760, %v4766
    %v4769 = vsel %vm1043, %v4767, 0
    %4771 = vmatprep.subr.mxu0 0.0
    %4772 = vmatpush1.msra.mxu0 %v941
    %4773 = vmatprep.subr.mxu0 0.0
    %4774 = vmatpush1.msra.mxu0 %v942
    %4775 = vmatprep.subr.mxu0 0.0
    %4776 = vmatpush1.msra.mxu0 %v1224
    %4777 = vmatprep.subr.mxu0 0.0
    %4778 = vmatpush1.msra.mxu0 0.0
    %4779 = vmatprep.subr.mxu0 0.0
    %4780 = vmatpush1.msra.mxu0 0.0
    %4781 = vmatprep.subr.mxu0 0.0
    %4782 = vmatpush1.msra.mxu0 0.0
    %4783 = vmatprep.subr.mxu0 0.0
    %4784 = vmatpush1.msra.mxu0 0.0
    %4785 = vmatprep.subr.mxu0 0.0
    %4786 = vmatpush1.msra.mxu0 0.0
    %4787 = vmatprep.subr.mxu0 0.0
    %4788 = vmatpush1.msra.mxu0 0.0
    %4789 = vmatprep.subr.mxu0 0.0
    %4790 = vmatpush1.msra.mxu0 0.0
    %4791 = vmatprep.subr.mxu0 0.0
    %4792 = vmatpush1.msra.mxu0 0.0
    %4793 = vmatprep.subr.mxu0 0.0
    %4794 = vmatpush1.msra.mxu0 0.0
    %4795 = vmatprep.subr.mxu0 0.0
    %4796 = vmatpush1.msra.mxu0 0.0
    %4797 = vmatprep.subr.mxu0 0.0
    %4798 = vmatpush1.msra.mxu0 0.0
    %4799 = vmatprep.subr.mxu0 0.0
    %4800 = vmatpush1.msra.mxu0 0.0
    %4801 = vmatprep.subr.mxu0 0.0
    %4802 = vmatpush1.msra.mxu0 0.0
    %4803 = vmatprep.subr.mxu0 0.0
    %4804 = vmatpush1.msra.mxu0 0.0
    %4805 = vmatprep.subr.mxu0 0.0
    %4806 = vmatpush1.msra.mxu0 0.0
    %4807 = vmatprep.subr.mxu0 0.0
    %4808 = vmatpush1.msra.mxu0 0.0
    %4809 = vmatprep.subr.mxu0 0.0
    %4810 = vmatpush1.msra.mxu0 0.0
    %4811 = vmatprep.subr.mxu0 0.0
    %4812 = vmatpush1.msra.mxu0 0.0
    %4813 = vmatprep.subr.mxu0 0.0
    %4814 = vmatpush1.msra.mxu0 0.0
    %4815 = vmatprep.subr.mxu0 0.0
    %4816 = vmatpush1.msra.mxu0 0.0
    %4817 = vmatprep.subr.mxu0 0.0
    %4818 = vmatpush1.msra.mxu0 0.0
    %4819 = vmatprep.subr.mxu0 0.0
    %4820 = vmatpush1.msra.mxu0 0.0
    %4821 = vmatprep.subr.mxu0 0.0
    %4822 = vmatpush1.msra.mxu0 0.0
    %4823 = vmatprep.subr.mxu0 0.0
    %4824 = vmatpush1.msra.mxu0 0.0
    %4825 = vmatprep.subr.mxu0 0.0
    %4826 = vmatpush1.msra.mxu0 0.0
    %4827 = vmatprep.subr.mxu0 0.0
    %4828 = vmatpush1.msra.mxu0 0.0
    %4829 = vmatprep.subr.mxu0 0.0
    %4830 = vmatpush1.msra.mxu0 0.0
    %4831 = vmatprep.subr.mxu0 0.0
    %4832 = vmatpush1.msra.mxu0 0.0
    %4833 = vmatprep.subr.mxu0 0.0
    %4834 = vmatpush1.msra.mxu0 0.0
    %4835 = vmatprep.mubr.f32.mxu0 0.0
    %4836 = vmatmul.mubr.f32.gmra.mrb[0].mxu0 %v4769
    %v4837 = vpop.f32.mrb[0].mxu0
    %v4838 = vadd.f32 %v1218, %v4837
    %v4839 = vpop.f32.mrb[0].mxu0
    %4840 = vdwg.mxu0
    %v4841 = vstv %s4220
    %v4842 = vmul.f32 %v4841, %v4838
    %v4843 = vadd.f32 %v4059, %v4842
    %v4845 = vsel %vm955, %v4843, 0
    %4847 = vmatprep.subr.mxu0 0.0
    %4848 = vmatpush1.msra.mxu0 %v1310
    %4849 = vmatprep.subr.mxu0 0.0
    %4850 = vmatpush1.msra.mxu0 0.0
    %4851 = vmatprep.subr.mxu0 0.0
    %4852 = vmatpush1.msra.mxu0 0.0
    %4853 = vmatprep.subr.mxu0 0.0
    %4854 = vmatpush1.msra.mxu0 0.0
    %4855 = vmatprep.subr.mxu0 0.0
    %4856 = vmatpush1.msra.mxu0 0.0
    %4857 = vmatprep.subr.mxu0 0.0
    %4858 = vmatpush1.msra.mxu0 0.0
    %4859 = vmatprep.subr.mxu0 0.0
    %4860 = vmatpush1.msra.mxu0 0.0
    %4861 = vmatprep.subr.mxu0 0.0
    %4862 = vmatpush1.msra.mxu0 0.0
    %4863 = vmatprep.subr.mxu0 0.0
    %4864 = vmatpush1.msra.mxu0 0.0
    %4865 = vmatprep.subr.mxu0 0.0
    %4866 = vmatpush1.msra.mxu0 0.0
    %4867 = vmatprep.subr.mxu0 0.0
    %4868 = vmatpush1.msra.mxu0 0.0
    %4869 = vmatprep.subr.mxu0 0.0
    %4870 = vmatpush1.msra.mxu0 0.0
    %4871 = vmatprep.subr.mxu0 0.0
    %4872 = vmatpush1.msra.mxu0 0.0
    %4873 = vmatprep.subr.mxu0 0.0
    %4874 = vmatpush1.msra.mxu0 0.0
    %4875 = vmatprep.subr.mxu0 0.0
    %4876 = vmatpush1.msra.mxu0 0.0
    %4877 = vmatprep.subr.mxu0 0.0
    %4878 = vmatpush1.msra.mxu0 0.0
    %4879 = vmatprep.subr.mxu0 0.0
    %4880 = vmatpush1.msra.mxu0 0.0
    %4881 = vmatprep.subr.mxu0 0.0
    %4882 = vmatpush1.msra.mxu0 0.0
    %4883 = vmatprep.subr.mxu0 0.0
    %4884 = vmatpush1.msra.mxu0 0.0
    %4885 = vmatprep.subr.mxu0 0.0
    %4886 = vmatpush1.msra.mxu0 0.0
    %4887 = vmatprep.subr.mxu0 0.0
    %4888 = vmatpush1.msra.mxu0 0.0
    %4889 = vmatprep.subr.mxu0 0.0
    %4890 = vmatpush1.msra.mxu0 0.0
    %4891 = vmatprep.subr.mxu0 0.0
    %4892 = vmatpush1.msra.mxu0 0.0
    %4893 = vmatprep.subr.mxu0 0.0
    %4894 = vmatpush1.msra.mxu0 0.0
    %4895 = vmatprep.subr.mxu0 0.0
    %4896 = vmatpush1.msra.mxu0 0.0
    %4897 = vmatprep.subr.mxu0 0.0
    %4898 = vmatpush1.msra.mxu0 0.0
    %4899 = vmatprep.subr.mxu0 0.0
    %4900 = vmatpush1.msra.mxu0 0.0
    %4901 = vmatprep.subr.mxu0 0.0
    %4902 = vmatpush1.msra.mxu0 0.0
    %4903 = vmatprep.subr.mxu0 0.0
    %4904 = vmatpush1.msra.mxu0 0.0
    %4905 = vmatprep.subr.mxu0 0.0
    %4906 = vmatpush1.msra.mxu0 0.0
    %4907 = vmatprep.subr.mxu0 0.0
    %4908 = vmatpush1.msra.mxu0 0.0
    %4909 = vmatprep.subr.mxu0 0.0
    %4910 = vmatpush1.msra.mxu0 0.0
    %4911 = vmatprep.mubr.f32.mxu0 0.0
    %4912 = vmatmul.mubr.f32.gmra.mrb[0].mxu0 %v4845
    %v4913 = vpop.f32.mrb[0].mxu0
    %v4914 = vadd.f32 %v1304, %v4913
    %v4915 = vpop.f32.mrb[0].mxu0
    %4916 = vdwg.mxu0
    %vm4917 = vcmp.gt.f32.partialorder %v4914, 0.0
    %v4918 = vmul.f32 %v4914, 1.442695
    %v4919 = vpow.pop %v4918
    %v4920 = vsub.f32 %v4919, 1.0
    %v4921 = vsel %vm4917, %v4914, %v4920
    %v4923 = vsel %vm1043, %v4921, 0
    %4925 = vmatprep.subr.mxu0 0.0
    %4926 = vmatpush1.msra.mxu0 %v937
    %4927 = vmatprep.subr.mxu0 0.0
    %4928 = vmatpush1.msra.mxu0 %v938
    %4929 = vmatprep.subr.mxu0 0.0
    %4930 = vmatpush1.msra.mxu0 %v1137
    %4931 = vmatprep.subr.mxu0 0.0
    %4932 = vmatpush1.msra.mxu0 0.0
    %4933 = vmatprep.subr.mxu0 0.0
    %4934 = vmatpush1.msra.mxu0 0.0
    %4935 = vmatprep.subr.mxu0 0.0
    %4936 = vmatpush1.msra.mxu0 0.0
    %4937 = vmatprep.subr.mxu0 0.0
    %4938 = vmatpush1.msra.mxu0 0.0
    %4939 = vmatprep.subr.mxu0 0.0
    %4940 = vmatpush1.msra.mxu0 0.0
    %4941 = vmatprep.subr.mxu0 0.0
    %4942 = vmatpush1.msra.mxu0 0.0
    %4943 = vmatprep.subr.mxu0 0.0
    %4944 = vmatpush1.msra.mxu0 0.0
    %4945 = vmatprep.subr.mxu0 0.0
    %4946 = vmatpush1.msra.mxu0 0.0
    %4947 = vmatprep.subr.mxu0 0.0
    %4948 = vmatpush1.msra.mxu0 0.0
    %4949 = vmatprep.subr.mxu0 0.0
    %4950 = vmatpush1.msra.mxu0 0.0
    %4951 = vmatprep.subr.mxu0 0.0
    %4952 = vmatpush1.msra.mxu0 0.0
    %4953 = vmatprep.subr.mxu0 0.0
    %4954 = vmatpush1.msra.mxu0 0.0
    %4955 = vmatprep.subr.mxu0 0.0
    %4956 = vmatpush1.msra.mxu0 0.0
    %4957 = vmatprep.subr.mxu0 0.0
    %4958 = vmatpush1.msra.mxu0 0.0
    %4959 = vmatprep.subr.mxu0 0.0
    %4960 = vmatpush1.msra.mxu0 0.0
    %4961 = vmatprep.subr.mxu0 0.0
    %4962 = vmatpush1.msra.mxu0 0.0
    %4963 = vmatprep.subr.mxu0 0.0
    %4964 = vmatpush1.msra.mxu0 0.0
    %4965 = vmatprep.subr.mxu0 0.0
    %4966 = vmatpush1.msra.mxu0 0.0
    %4967 = vmatprep.subr.mxu0 0.0
    %4968 = vmatpush1.msra.mxu0 0.0
    %4969 = vmatprep.subr.mxu0 0.0
    %4970 = vmatpush1.msra.mxu0 0.0
    %4971 = vmatprep.subr.mxu0 0.0
    %4972 = vmatpush1.msra.mxu0 0.0
    %4973 = vmatprep.subr.mxu0 0.0
    %4974 = vmatpush1.msra.mxu0 0.0
    %4975 = vmatprep.subr.mxu0 0.0
    %4976 = vmatpush1.msra.mxu0 0.0
    %4977 = vmatprep.subr.mxu0 0.0
    %4978 = vmatpush1.msra.mxu0 0.0
    %4979 = vmatprep.subr.mxu0 0.0
    %4980 = vmatpush1.msra.mxu0 0.0
    %4981 = vmatprep.subr.mxu0 0.0
    %4982 = vmatpush1.msra.mxu0 0.0
    %4983 = vmatprep.subr.mxu0 0.0
    %4984 = vmatpush1.msra.mxu0 0.0
    %4985 = vmatprep.subr.mxu0 0.0
    %4986 = vmatpush1.msra.mxu0 0.0
    %4987 = vmatprep.subr.mxu0 0.0
    %4988 = vmatpush1.msra.mxu0 0.0
    %4989 = vmatprep.mubr.f32.mxu0 0.0
    %4990 = vmatmul.mubr.f32.gmra.mrb[0].mxu0 %v4923
    %v4991 = vpop.f32.mrb[0].mxu0
    %v4992 = vadd.f32 %v1131, %v4991
    %v4993 = vpop.f32.mrb[0].mxu0
    %4994 = vdwg.mxu0
    %vm4995 = vcmp.gt.f32.partialorder %v4992, 0.0
    %v4996 = vmul.f32 %v4992, 1.442695
    %v4997 = vpow.pop %v4996
    %v4998 = vsub.f32 %v4997, 1.0
    %v4999 = vsel %vm4995, %v4992, %v4998
    %v5001 = vsel %vm1043, %v4999, 0
    %5003 = vmatprep.subr.mxu0 0.0
    %5004 = vmatpush1.msra.mxu0 %v941
    %5005 = vmatprep.subr.mxu0 0.0
    %5006 = vmatpush1.msra.mxu0 %v942
    %5007 = vmatprep.subr.mxu0 0.0
    %5008 = vmatpush1.msra.mxu0 %v1224
    %5009 = vmatprep.subr.mxu0 0.0
    %5010 = vmatpush1.msra.mxu0 0.0
    %5011 = vmatprep.subr.mxu0 0.0
    %5012 = vmatpush1.msra.mxu0 0.0
    %5013 = vmatprep.subr.mxu0 0.0
    %5014 = vmatpush1.msra.mxu0 0.0
    %5015 = vmatprep.subr.mxu0 0.0
    %5016 = vmatpush1.msra.mxu0 0.0
    %5017 = vmatprep.subr.mxu0 0.0
    %5018 = vmatpush1.msra.mxu0 0.0
    %5019 = vmatprep.subr.mxu0 0.0
    %5020 = vmatpush1.msra.mxu0 0.0
    %5021 = vmatprep.subr.mxu0 0.0
    %5022 = vmatpush1.msra.mxu0 0.0
    %5023 = vmatprep.subr.mxu0 0.0
    %5024 = vmatpush1.msra.mxu0 0.0
    %5025 = vmatprep.subr.mxu0 0.0
    %5026 = vmatpush1.msra.mxu0 0.0
    %5027 = vmatprep.subr.mxu0 0.0
    %5028 = vmatpush1.msra.mxu0 0.0
    %5029 = vmatprep.subr.mxu0 0.0
    %5030 = vmatpush1.msra.mxu0 0.0
    %5031 = vmatprep.subr.mxu0 0.0
    %5032 = vmatpush1.msra.mxu0 0.0
    %5033 = vmatprep.subr.mxu0 0.0
    %5034 = vmatpush1.msra.mxu0 0.0
    %5035 = vmatprep.subr.mxu0 0.0
    %5036 = vmatpush1.msra.mxu0 0.0
    %5037 = vmatprep.subr.mxu0 0.0
    %5038 = vmatpush1.msra.mxu0 0.0
    %5039 = vmatprep.subr.mxu0 0.0
    %5040 = vmatpush1.msra.mxu0 0.0
    %5041 = vmatprep.subr.mxu0 0.0
    %5042 = vmatpush1.msra.mxu0 0.0
    %5043 = vmatprep.subr.mxu0 0.0
    %5044 = vmatpush1.msra.mxu0 0.0
    %5045 = vmatprep.subr.mxu0 0.0
    %5046 = vmatpush1.msra.mxu0 0.0
    %5047 = vmatprep.subr.mxu0 0.0
    %5048 = vmatpush1.msra.mxu0 0.0
    %5049 = vmatprep.subr.mxu0 0.0
    %5050 = vmatpush1.msra.mxu0 0.0
    %5051 = vmatprep.subr.mxu0 0.0
    %5052 = vmatpush1.msra.mxu0 0.0
    %5053 = vmatprep.subr.mxu0 0.0
    %5054 = vmatpush1.msra.mxu0 0.0
    %5055 = vmatprep.subr.mxu0 0.0
    %5056 = vmatpush1.msra.mxu0 0.0
    %5057 = vmatprep.subr.mxu0 0.0
    %5058 = vmatpush1.msra.mxu0 0.0
    %5059 = vmatprep.subr.mxu0 0.0
    %5060 = vmatpush1.msra.mxu0 0.0
    %5061 = vmatprep.subr.mxu0 0.0
    %5062 = vmatpush1.msra.mxu0 0.0
    %5063 = vmatprep.subr.mxu0 0.0
    %5064 = vmatpush1.msra.mxu0 0.0
    %5065 = vmatprep.subr.mxu0 0.0
    %5066 = vmatpush1.msra.mxu0 0.0
    %5067 = vmatprep.mubr.f32.mxu0 0.0
    %5068 = vmatmul.mubr.f32.gmra.mrb[0].mxu0 %v5001
    %v5069 = vpop.f32.mrb[0].mxu0
    %v5070 = vadd.f32 %v1218, %v5069
    %v5071 = vpop.f32.mrb[0].mxu0
    %5072 = vdwg.mxu0
    %v5073 = vrcp.pop 6.0
    %s5074 = vtos %v5073
    %s5075 = smul.f32 %s4220, %s5074
    %v5076 = vmul.f32 %v4607, 2.0
    %v5077 = vadd.f32 %v4374, %v5076
    %v5078 = vmul.f32 %v4838, 2.0
    %v5079 = vadd.f32 %v5077, %v5078
    %v5080 = vadd.f32 %v5079, %v5070
    %v5081 = vstv %s5075
    %v5082 = vmul.f32 %v5081, %v5080
    %v5083 = vadd.f32 %v4059, %v5082
    %v5085 = vsel %vm955, %v5083, 0
    %5087 = vmatprep.subr.mxu0 0.0
    %5088 = vmatpush1.msra.mxu0 %v961
    %5089 = vmatprep.subr.mxu0 0.0
    %5090 = vmatpush1.msra.mxu0 0.0
    %5091 = vmatprep.subr.mxu0 0.0
    %5092 = vmatpush1.msra.mxu0 0.0
    %5093 = vmatprep.subr.mxu0 0.0
    %5094 = vmatpush1.msra.mxu0 0.0
    %5095 = vmatprep.subr.mxu0 0.0
    %5096 = vmatpush1.msra.mxu0 0.0
    %5097 = vmatprep.subr.mxu0 0.0
    %5098 = vmatpush1.msra.mxu0 0.0
    %5099 = vmatprep.subr.mxu0 0.0
    %5100 = vmatpush1.msra.mxu0 0.0
    %5101 = vmatprep.subr.mxu0 0.0
    %5102 = vmatpush1.msra.mxu0 0.0
    %5103 = vmatprep.subr.mxu0 0.0
    %5104 = vmatpush1.msra.mxu0 0.0
    %5105 = vmatprep.subr.mxu0 0.0
    %5106 = vmatpush1.msra.mxu0 0.0
    %5107 = vmatprep.subr.mxu0 0.0
    %5108 = vmatpush1.msra.mxu0 0.0
    %5109 = vmatprep.subr.mxu0 0.0
    %5110 = vmatpush1.msra.mxu0 0.0
    %5111 = vmatprep.subr.mxu0 0.0
    %5112 = vmatpush1.msra.mxu0 0.0
    %5113 = vmatprep.subr.mxu0 0.0
    %5114 = vmatpush1.msra.mxu0 0.0
    %5115 = vmatprep.subr.mxu0 0.0
    %5116 = vmatpush1.msra.mxu0 0.0
    %5117 = vmatprep.subr.mxu0 0.0
    %5118 = vmatpush1.msra.mxu0 0.0
    %5119 = vmatprep.subr.mxu0 0.0
    %5120 = vmatpush1.msra.mxu0 0.0
    %5121 = vmatprep.subr.mxu0 0.0
    %5122 = vmatpush1.msra.mxu0 0.0
    %5123 = vmatprep.subr.mxu0 0.0
    %5124 = vmatpush1.msra.mxu0 0.0
    %5125 = vmatprep.subr.mxu0 0.0
    %5126 = vmatpush1.msra.mxu0 0.0
    %5127 = vmatprep.subr.mxu0 0.0
    %5128 = vmatpush1.msra.mxu0 0.0
    %5129 = vmatprep.subr.mxu0 0.0
    %5130 = vmatpush1.msra.mxu0 0.0
    %5131 = vmatprep.subr.mxu0 0.0
    %5132 = vmatpush1.msra.mxu0 0.0
    %5133 = vmatprep.subr.mxu0 0.0
    %5134 = vmatpush1.msra.mxu0 0.0
    %5135 = vmatprep.subr.mxu0 0.0
    %5136 = vmatpush1.msra.mxu0 0.0
    %5137 = vmatprep.subr.mxu0 0.0
    %5138 = vmatpush1.msra.mxu0 0.0
    %5139 = vmatprep.subr.mxu0 0.0
    %5140 = vmatpush1.msra.mxu0 0.0
    %5141 = vmatprep.subr.mxu0 0.0
    %5142 = vmatpush1.msra.mxu0 0.0
    %5143 = vmatprep.subr.mxu0 0.0
    %5144 = vmatpush1.msra.mxu0 0.0
    %5145 = vmatprep.subr.mxu0 0.0
    %5146 = vmatpush1.msra.mxu0 0.0
    %5147 = vmatprep.subr.mxu0 0.0
    %5148 = vmatpush1.msra.mxu0 0.0
    %5149 = vmatprep.subr.mxu0 0.0
    %5150 = vmatpush1.msra.mxu0 0.0
    %5151 = vmatprep.mubr.f32.mxu0 0.0
    %5152 = vmatmul.mubr.f32.gmra.mrb[0].mxu0 %v5085
    %v5153 = vpop.f32.mrb[0].mxu0
    %v5154 = vadd.f32 %v953, %v5153
    %v5155 = vpop.f32.mrb[0].mxu0
    %5156 = vdwg.mxu0
    %v5157 = vmax.f32 %v5154, 0.0
    %5159 = vrot.lane.b32.xlu0 %v5157, 108
    %v5160 = vpop.permute.xlu0 %5159
    %v5161 = vsel %vm1043, %v5160, 0
    %5163 = vmatprep.subr.mxu0 0.0
    %5164 = vmatpush1.msra.mxu0 %v945
    %5165 = vmatprep.subr.mxu0 0.0
    %5166 = vmatpush1.msra.mxu0 %v946
    %5167 = vmatprep.subr.mxu0 0.0
    %5168 = vmatpush1.msra.mxu0 %v1047
    %5169 = vmatprep.subr.mxu0 0.0
    %5170 = vmatpush1.msra.mxu0 0.0
    %5171 = vmatprep.subr.mxu0 0.0
    %5172 = vmatpush1.msra.mxu0 0.0
    %5173 = vmatprep.subr.mxu0 0.0
    %5174 = vmatpush1.msra.mxu0 0.0
    %5175 = vmatprep.subr.mxu0 0.0
    %5176 = vmatpush1.msra.mxu0 0.0
    %5177 = vmatprep.subr.mxu0 0.0
    %5178 = vmatpush1.msra.mxu0 0.0
    %5179 = vmatprep.subr.mxu0 0.0
    %5180 = vmatpush1.msra.mxu0 0.0
    %5181 = vmatprep.subr.mxu0 0.0
    %5182 = vmatpush1.msra.mxu0 0.0
    %5183 = vmatprep.subr.mxu0 0.0
    %5184 = vmatpush1.msra.mxu0 0.0
    %5185 = vmatprep.subr.mxu0 0.0
    %5186 = vmatpush1.msra.mxu0 0.0
    %5187 = vmatprep.subr.mxu0 0.0
    %5188 = vmatpush1.msra.mxu0 0.0
    %5189 = vmatprep.subr.mxu0 0.0
    %5190 = vmatpush1.msra.mxu0 0.0
    %5191 = vmatprep.subr.mxu0 0.0
    %5192 = vmatpush1.msra.mxu0 0.0
    %5193 = vmatprep.subr.mxu0 0.0
    %5194 = vmatpush1.msra.mxu0 0.0
    %5195 = vmatprep.subr.mxu0 0.0
    %5196 = vmatpush1.msra.mxu0 0.0
    %5197 = vmatprep.subr.mxu0 0.0
    %5198 = vmatpush1.msra.mxu0 0.0
    %5199 = vmatprep.subr.mxu0 0.0
    %5200 = vmatpush1.msra.mxu0 0.0
    %5201 = vmatprep.subr.mxu0 0.0
    %5202 = vmatpush1.msra.mxu0 0.0
    %5203 = vmatprep.subr.mxu0 0.0
    %5204 = vmatpush1.msra.mxu0 0.0
    %5205 = vmatprep.subr.mxu0 0.0
    %5206 = vmatpush1.msra.mxu0 0.0
    %5207 = vmatprep.subr.mxu0 0.0
    %5208 = vmatpush1.msra.mxu0 0.0
    %5209 = vmatprep.subr.mxu0 0.0
    %5210 = vmatpush1.msra.mxu0 0.0
    %5211 = vmatprep.subr.mxu0 0.0
    %5212 = vmatpush1.msra.mxu0 0.0
    %5213 = vmatprep.subr.mxu0 0.0
    %5214 = vmatpush1.msra.mxu0 0.0
    %5215 = vmatprep.subr.mxu0 0.0
    %5216 = vmatpush1.msra.mxu0 0.0
    %5217 = vmatprep.subr.mxu0 0.0
    %5218 = vmatpush1.msra.mxu0 0.0
    %5219 = vmatprep.subr.mxu0 0.0
    %5220 = vmatpush1.msra.mxu0 0.0
    %5221 = vmatprep.subr.mxu0 0.0
    %5222 = vmatpush1.msra.mxu0 0.0
    %5223 = vmatprep.subr.mxu0 0.0
    %5224 = vmatpush1.msra.mxu0 0.0
    %5225 = vmatprep.subr.mxu0 0.0
    %5226 = vmatpush1.msra.mxu0 0.0
    %5227 = vmatprep.mubr.f32.mxu0 0.0
    %5228 = vmatmul.mubr.f32.gmra.mrb[0].mxu0 %v5161
    %v5229 = vpop.f32.mrb[0].mxu0
    %v5230 = vadd.f32 %v1038, %v5229
    %v5231 = vpop.f32.mrb[0].mxu0
    %5232 = vdwg.mxu0
    %5233 = vrot.lane.b32.xlu0 %v5083, 16
    %v5234 = vpop.permute.xlu0 %5233
    %vm5236 = vcmask 162944
    %5237 = vst.msk [vmem:[%s19] sm:$0xff] %vm5236, %v5234
    %5239 = vrot.lane.b32.xlu0 %v5230, 8
    %v5240 = vpop.permute.xlu0 %5239
    %vm5242 = vcmask 80960
    %5243 = vst.msk [vmem:[%s20] sm:$0xff] %vm5242, %v5240
    %s5244 = sld [smem:[#allocation2 + $0x4]]
    %vm5245 = vcmp.gt.f32.partialorder %v5154, 0.0
    %v5246 = vmul.f32 %v5154, 1.442695
    %v5247 = vpow.pop %v5246
    %v5248 = vsub.f32 %v5247, 1.0
    %v5249 = vsel %vm5245, %v5154, %v5248
    %v5251 = vsel %vm1043, %v5249, 0
    %5253 = vmatprep.subr.mxu0 0.0
    %5254 = vmatpush1.msra.mxu0 %v937
    %5255 = vmatprep.subr.mxu0 0.0
    %5256 = vmatpush1.msra.mxu0 %v938
    %5257 = vmatprep.subr.mxu0 0.0
    %5258 = vmatpush1.msra.mxu0 %v1137
    %5259 = vmatprep.subr.mxu0 0.0
    %5260 = vmatpush1.msra.mxu0 0.0
    %5261 = vmatprep.subr.mxu0 0.0
    %5262 = vmatpush1.msra.mxu0 0.0
    %5263 = vmatprep.subr.mxu0 0.0
    %5264 = vmatpush1.msra.mxu0 0.0
    %5265 = vmatprep.subr.mxu0 0.0
    %5266 = vmatpush1.msra.mxu0 0.0
    %5267 = vmatprep.subr.mxu0 0.0
    %5268 = vmatpush1.msra.mxu0 0.0
    %5269 = vmatprep.subr.mxu0 0.0
    %5270 = vmatpush1.msra.mxu0 0.0
    %5271 = vmatprep.subr.mxu0 0.0
    %5272 = vmatpush1.msra.mxu0 0.0
    %5273 = vmatprep.subr.mxu0 0.0
    %5274 = vmatpush1.msra.mxu0 0.0
    %5275 = vmatprep.subr.mxu0 0.0
    %5276 = vmatpush1.msra.mxu0 0.0
    %5277 = vmatprep.subr.mxu0 0.0
    %5278 = vmatpush1.msra.mxu0 0.0
    %5279 = vmatprep.subr.mxu0 0.0
    %5280 = vmatpush1.msra.mxu0 0.0
    %5281 = vmatprep.subr.mxu0 0.0
    %5282 = vmatpush1.msra.mxu0 0.0
    %5283 = vmatprep.subr.mxu0 0.0
    %5284 = vmatpush1.msra.mxu0 0.0
    %5285 = vmatprep.subr.mxu0 0.0
    %5286 = vmatpush1.msra.mxu0 0.0
    %5287 = vmatprep.subr.mxu0 0.0
    %5288 = vmatpush1.msra.mxu0 0.0
    %5289 = vmatprep.subr.mxu0 0.0
    %5290 = vmatpush1.msra.mxu0 0.0
    %5291 = vmatprep.subr.mxu0 0.0
    %5292 = vmatpush1.msra.mxu0 0.0
    %5293 = vmatprep.subr.mxu0 0.0
    %5294 = vmatpush1.msra.mxu0 0.0
    %5295 = vmatprep.subr.mxu0 0.0
    %5296 = vmatpush1.msra.mxu0 0.0
    %5297 = vmatprep.subr.mxu0 0.0
    %5298 = vmatpush1.msra.mxu0 0.0
    %5299 = vmatprep.subr.mxu0 0.0
    %5300 = vmatpush1.msra.mxu0 0.0
    %5301 = vmatprep.subr.mxu0 0.0
    %5302 = vmatpush1.msra.mxu0 0.0
    %5303 = vmatprep.subr.mxu0 0.0
    %5304 = vmatpush1.msra.mxu0 0.0
    %5305 = vmatprep.subr.mxu0 0.0
    %5306 = vmatpush1.msra.mxu0 0.0
    %5307 = vmatprep.subr.mxu0 0.0
    %5308 = vmatpush1.msra.mxu0 0.0
    %5309 = vmatprep.subr.mxu0 0.0
    %5310 = vmatpush1.msra.mxu0 0.0
    %5311 = vmatprep.subr.mxu0 0.0
    %5312 = vmatpush1.msra.mxu0 0.0
    %5313 = vmatprep.subr.mxu0 0.0
    %5314 = vmatpush1.msra.mxu0 0.0
    %5315 = vmatprep.subr.mxu0 0.0
    %5316 = vmatpush1.msra.mxu0 0.0
    %5317 = vmatprep.mubr.f32.mxu0 0.0
    %5318 = vmatmul.mubr.f32.gmra.mrb[0].mxu0 %v5251
    %v5319 = vpop.f32.mrb[0].mxu0
    %v5320 = vadd.f32 %v1131, %v5319
    %v5321 = vpop.f32.mrb[0].mxu0
    %5322 = vdwg.mxu0
    %vm5323 = vcmp.gt.f32.partialorder %v5320, 0.0
    %v5324 = vmul.f32 %v5320, 1.442695
    %v5325 = vpow.pop %v5324
    %v5326 = vsub.f32 %v5325, 1.0
    %v5327 = vsel %vm5323, %v5320, %v5326
    %v5329 = vsel %vm1043, %v5327, 0
    %5331 = vmatprep.subr.mxu0 0.0
    %5332 = vmatpush1.msra.mxu0 %v941
    %5333 = vmatprep.subr.mxu0 0.0
    %5334 = vmatpush1.msra.mxu0 %v942
    %5335 = vmatprep.subr.mxu0 0.0
    %5336 = vmatpush1.msra.mxu0 %v1224
    %5337 = vmatprep.subr.mxu0 0.0
    %5338 = vmatpush1.msra.mxu0 0.0
    %5339 = vmatprep.subr.mxu0 0.0
    %5340 = vmatpush1.msra.mxu0 0.0
    %5341 = vmatprep.subr.mxu0 0.0
    %5342 = vmatpush1.msra.mxu0 0.0
    %5343 = vmatprep.subr.mxu0 0.0
    %5344 = vmatpush1.msra.mxu0 0.0
    %5345 = vmatprep.subr.mxu0 0.0
    %5346 = vmatpush1.msra.mxu0 0.0
    %5347 = vmatprep.subr.mxu0 0.0
    %5348 = vmatpush1.msra.mxu0 0.0
    %5349 = vmatprep.subr.mxu0 0.0
    %5350 = vmatpush1.msra.mxu0 0.0
    %5351 = vmatprep.subr.mxu0 0.0
    %5352 = vmatpush1.msra.mxu0 0.0
    %5353 = vmatprep.subr.mxu0 0.0
    %5354 = vmatpush1.msra.mxu0 0.0
    %5355 = vmatprep.subr.mxu0 0.0
    %5356 = vmatpush1.msra.mxu0 0.0
    %5357 = vmatprep.subr.mxu0 0.0
    %5358 = vmatpush1.msra.mxu0 0.0
    %5359 = vmatprep.subr.mxu0 0.0
    %5360 = vmatpush1.msra.mxu0 0.0
    %5361 = vmatprep.subr.mxu0 0.0
    %5362 = vmatpush1.msra.mxu0 0.0
    %5363 = vmatprep.subr.mxu0 0.0
    %5364 = vmatpush1.msra.mxu0 0.0
    %5365 = vmatprep.subr.mxu0 0.0
    %5366 = vmatpush1.msra.mxu0 0.0
    %5367 = vmatprep.subr.mxu0 0.0
    %5368 = vmatpush1.msra.mxu0 0.0
    %5369 = vmatprep.subr.mxu0 0.0
    %5370 = vmatpush1.msra.mxu0 0.0
    %5371 = vmatprep.subr.mxu0 0.0
    %5372 = vmatpush1.msra.mxu0 0.0
    %5373 = vmatprep.subr.mxu0 0.0
    %5374 = vmatpush1.msra.mxu0 0.0
    %5375 = vmatprep.subr.mxu0 0.0
    %5376 = vmatpush1.msra.mxu0 0.0
    %5377 = vmatprep.subr.mxu0 0.0
    %5378 = vmatpush1.msra.mxu0 0.0
    %5379 = vmatprep.subr.mxu0 0.0
    %5380 = vmatpush1.msra.mxu0 0.0
    %5381 = vmatprep.subr.mxu0 0.0
    %5382 = vmatpush1.msra.mxu0 0.0
    %5383 = vmatprep.subr.mxu0 0.0
    %5384 = vmatpush1.msra.mxu0 0.0
    %5385 = vmatprep.subr.mxu0 0.0
    %5386 = vmatpush1.msra.mxu0 0.0
    %5387 = vmatprep.subr.mxu0 0.0
    %5388 = vmatpush1.msra.mxu0 0.0
    %5389 = vmatprep.subr.mxu0 0.0
    %5390 = vmatpush1.msra.mxu0 0.0
    %5391 = vmatprep.subr.mxu0 0.0
    %5392 = vmatpush1.msra.mxu0 0.0
    %5393 = vmatprep.subr.mxu0 0.0
    %5394 = vmatpush1.msra.mxu0 0.0
    %5395 = vmatprep.mubr.f32.mxu0 0.0
    %5396 = vmatmul.mubr.f32.gmra.mrb[0].mxu0 %v5329
    %v5397 = vpop.f32.mrb[0].mxu0
    %v5398 = vadd.f32 %v1218, %v5397
    %v5399 = vpop.f32.mrb[0].mxu0
    %5400 = vdwg.mxu0
    %s5401 = smul.f32 %s5244, 0.5
    %v5402 = vstv %s5401
    %v5403 = vmul.f32 %v5402, %v5398
    %v5404 = vadd.f32 %v5083, %v5403
    %v5406 = vsel %vm955, %v5404, 0
    %5408 = vmatprep.subr.mxu0 0.0
    %5409 = vmatpush1.msra.mxu0 %v1310
    %5410 = vmatprep.subr.mxu0 0.0
    %5411 = vmatpush1.msra.mxu0 0.0
    %5412 = vmatprep.subr.mxu0 0.0
    %5413 = vmatpush1.msra.mxu0 0.0
    %5414 = vmatprep.subr.mxu0 0.0
    %5415 = vmatpush1.msra.mxu0 0.0
    %5416 = vmatprep.subr.mxu0 0.0
    %5417 = vmatpush1.msra.mxu0 0.0
    %5418 = vmatprep.subr.mxu0 0.0
    %5419 = vmatpush1.msra.mxu0 0.0
    %5420 = vmatprep.subr.mxu0 0.0
    %5421 = vmatpush1.msra.mxu0 0.0
    %5422 = vmatprep.subr.mxu0 0.0
    %5423 = vmatpush1.msra.mxu0 0.0
    %5424 = vmatprep.subr.mxu0 0.0
    %5425 = vmatpush1.msra.mxu0 0.0
    %5426 = vmatprep.subr.mxu0 0.0
    %5427 = vmatpush1.msra.mxu0 0.0
    %5428 = vmatprep.subr.mxu0 0.0
    %5429 = vmatpush1.msra.mxu0 0.0
    %5430 = vmatprep.subr.mxu0 0.0
    %5431 = vmatpush1.msra.mxu0 0.0
    %5432 = vmatprep.subr.mxu0 0.0
    %5433 = vmatpush1.msra.mxu0 0.0
    %5434 = vmatprep.subr.mxu0 0.0
    %5435 = vmatpush1.msra.mxu0 0.0
    %5436 = vmatprep.subr.mxu0 0.0
    %5437 = vmatpush1.msra.mxu0 0.0
    %5438 = vmatprep.subr.mxu0 0.0
    %5439 = vmatpush1.msra.mxu0 0.0
    %5440 = vmatprep.subr.mxu0 0.0
    %5441 = vmatpush1.msra.mxu0 0.0
    %5442 = vmatprep.subr.mxu0 0.0
    %5443 = vmatpush1.msra.mxu0 0.0
    %5444 = vmatprep.subr.mxu0 0.0
    %5445 = vmatpush1.msra.mxu0 0.0
    %5446 = vmatprep.subr.mxu0 0.0
    %5447 = vmatpush1.msra.mxu0 0.0
    %5448 = vmatprep.subr.mxu0 0.0
    %5449 = vmatpush1.msra.mxu0 0.0
    %5450 = vmatprep.subr.mxu0 0.0
    %5451 = vmatpush1.msra.mxu0 0.0
    %5452 = vmatprep.subr.mxu0 0.0
    %5453 = vmatpush1.msra.mxu0 0.0
    %5454 = vmatprep.subr.mxu0 0.0
    %5455 = vmatpush1.msra.mxu0 0.0
    %5456 = vmatprep.subr.mxu0 0.0
    %5457 = vmatpush1.msra.mxu0 0.0
    %5458 = vmatprep.subr.mxu0 0.0
    %5459 = vmatpush1.msra.mxu0 0.0
    %5460 = vmatprep.subr.mxu0 0.0
    %5461 = vmatpush1.msra.mxu0 0.0
    %5462 = vmatprep.subr.mxu0 0.0
    %5463 = vmatpush1.msra.mxu0 0.0
    %5464 = vmatprep.subr.mxu0 0.0
    %5465 = vmatpush1.msra.mxu0 0.0
    %5466 = vmatprep.subr.mxu0 0.0
    %5467 = vmatpush1.msra.mxu0 0.0
    %5468 = vmatprep.subr.mxu0 0.0
    %5469 = vmatpush1.msra.mxu0 0.0
    %5470 = vmatprep.subr.mxu0 0.0
    %5471 = vmatpush1.msra.mxu0 0.0
    %5472 = vmatprep.mubr.f32.mxu0 0.0
    %5473 = vmatmul.mubr.f32.gmra.mrb[0].mxu0 %v5406
    %v5474 = vpop.f32.mrb[0].mxu0
    %v5475 = vadd.f32 %v1304, %v5474
    %v5476 = vpop.f32.mrb[0].mxu0
    %5477 = vdwg.mxu0
    %vm5478 = vcmp.gt.f32.partialorder %v5475, 0.0
    %v5479 = vmul.f32 %v5475, 1.442695
    %v5480 = vpow.pop %v5479
    %v5481 = vsub.f32 %v5480, 1.0
    %v5482 = vsel %vm5478, %v5475, %v5481
    %v5484 = vsel %vm1043, %v5482, 0
    %5486 = vmatprep.subr.mxu0 0.0
    %5487 = vmatpush1.msra.mxu0 %v937
    %5488 = vmatprep.subr.mxu0 0.0
    %5489 = vmatpush1.msra.mxu0 %v938
    %5490 = vmatprep.subr.mxu0 0.0
    %5491 = vmatpush1.msra.mxu0 %v1137
    %5492 = vmatprep.subr.mxu0 0.0
    %5493 = vmatpush1.msra.mxu0 0.0
    %5494 = vmatprep.subr.mxu0 0.0
    %5495 = vmatpush1.msra.mxu0 0.0
    %5496 = vmatprep.subr.mxu0 0.0
    %5497 = vmatpush1.msra.mxu0 0.0
    %5498 = vmatprep.subr.mxu0 0.0
    %5499 = vmatpush1.msra.mxu0 0.0
    %5500 = vmatprep.subr.mxu0 0.0
    %5501 = vmatpush1.msra.mxu0 0.0
    %5502 = vmatprep.subr.mxu0 0.0
    %5503 = vmatpush1.msra.mxu0 0.0
    %5504 = vmatprep.subr.mxu0 0.0
    %5505 = vmatpush1.msra.mxu0 0.0
    %5506 = vmatprep.subr.mxu0 0.0
    %5507 = vmatpush1.msra.mxu0 0.0
    %5508 = vmatprep.subr.mxu0 0.0
    %5509 = vmatpush1.msra.mxu0 0.0
    %5510 = vmatprep.subr.mxu0 0.0
    %5511 = vmatpush1.msra.mxu0 0.0
    %5512 = vmatprep.subr.mxu0 0.0
    %5513 = vmatpush1.msra.mxu0 0.0
    %5514 = vmatprep.subr.mxu0 0.0
    %5515 = vmatpush1.msra.mxu0 0.0
    %5516 = vmatprep.subr.mxu0 0.0
    %5517 = vmatpush1.msra.mxu0 0.0
    %5518 = vmatprep.subr.mxu0 0.0
    %5519 = vmatpush1.msra.mxu0 0.0
    %5520 = vmatprep.subr.mxu0 0.0
    %5521 = vmatpush1.msra.mxu0 0.0
    %5522 = vmatprep.subr.mxu0 0.0
    %5523 = vmatpush1.msra.mxu0 0.0
    %5524 = vmatprep.subr.mxu0 0.0
    %5525 = vmatpush1.msra.mxu0 0.0
    %5526 = vmatprep.subr.mxu0 0.0
    %5527 = vmatpush1.msra.mxu0 0.0
    %5528 = vmatprep.subr.mxu0 0.0
    %5529 = vmatpush1.msra.mxu0 0.0
    %5530 = vmatprep.subr.mxu0 0.0
    %5531 = vmatpush1.msra.mxu0 0.0
    %5532 = vmatprep.subr.mxu0 0.0
    %5533 = vmatpush1.msra.mxu0 0.0
    %5534 = vmatprep.subr.mxu0 0.0
    %5535 = vmatpush1.msra.mxu0 0.0
    %5536 = vmatprep.subr.mxu0 0.0
    %5537 = vmatpush1.msra.mxu0 0.0
    %5538 = vmatprep.subr.mxu0 0.0
    %5539 = vmatpush1.msra.mxu0 0.0
    %5540 = vmatprep.subr.mxu0 0.0
    %5541 = vmatpush1.msra.mxu0 0.0
    %5542 = vmatprep.subr.mxu0 0.0
    %5543 = vmatpush1.msra.mxu0 0.0
    %5544 = vmatprep.subr.mxu0 0.0
    %5545 = vmatpush1.msra.mxu0 0.0
    %5546 = vmatprep.subr.mxu0 0.0
    %5547 = vmatpush1.msra.mxu0 0.0
    %5548 = vmatprep.subr.mxu0 0.0
    %5549 = vmatpush1.msra.mxu0 0.0
    %5550 = vmatprep.mubr.f32.mxu0 0.0
    %5551 = vmatmul.mubr.f32.gmra.mrb[0].mxu0 %v5484
    %v5552 = vpop.f32.mrb[0].mxu0
    %v5553 = vadd.f32 %v1131, %v5552
    %v5554 = vpop.f32.mrb[0].mxu0
    %5555 = vdwg.mxu0
    %vm5556 = vcmp.gt.f32.partialorder %v5553, 0.0
    %v5557 = vmul.f32 %v5553, 1.442695
    %v5558 = vpow.pop %v5557
    %v5559 = vsub.f32 %v5558, 1.0
    %v5560 = vsel %vm5556, %v5553, %v5559
    %v5562 = vsel %vm1043, %v5560, 0
    %5564 = vmatprep.subr.mxu0 0.0
    %5565 = vmatpush1.msra.mxu0 %v941
    %5566 = vmatprep.subr.mxu0 0.0
    %5567 = vmatpush1.msra.mxu0 %v942
    %5568 = vmatprep.subr.mxu0 0.0
    %5569 = vmatpush1.msra.mxu0 %v1224
    %5570 = vmatprep.subr.mxu0 0.0
    %5571 = vmatpush1.msra.mxu0 0.0
    %5572 = vmatprep.subr.mxu0 0.0
    %5573 = vmatpush1.msra.mxu0 0.0
    %5574 = vmatprep.subr.mxu0 0.0
    %5575 = vmatpush1.msra.mxu0 0.0
    %5576 = vmatprep.subr.mxu0 0.0
    %5577 = vmatpush1.msra.mxu0 0.0
    %5578 = vmatprep.subr.mxu0 0.0
    %5579 = vmatpush1.msra.mxu0 0.0
    %5580 = vmatprep.subr.mxu0 0.0
    %5581 = vmatpush1.msra.mxu0 0.0
    %5582 = vmatprep.subr.mxu0 0.0
    %5583 = vmatpush1.msra.mxu0 0.0
    %5584 = vmatprep.subr.mxu0 0.0
    %5585 = vmatpush1.msra.mxu0 0.0
    %5586 = vmatprep.subr.mxu0 0.0
    %5587 = vmatpush1.msra.mxu0 0.0
    %5588 = vmatprep.subr.mxu0 0.0
    %5589 = vmatpush1.msra.mxu0 0.0
    %5590 = vmatprep.subr.mxu0 0.0
    %5591 = vmatpush1.msra.mxu0 0.0
    %5592 = vmatprep.subr.mxu0 0.0
    %5593 = vmatpush1.msra.mxu0 0.0
    %5594 = vmatprep.subr.mxu0 0.0
    %5595 = vmatpush1.msra.mxu0 0.0
    %5596 = vmatprep.subr.mxu0 0.0
    %5597 = vmatpush1.msra.mxu0 0.0
    %5598 = vmatprep.subr.mxu0 0.0
    %5599 = vmatpush1.msra.mxu0 0.0
    %5600 = vmatprep.subr.mxu0 0.0
    %5601 = vmatpush1.msra.mxu0 0.0
    %5602 = vmatprep.subr.mxu0 0.0
    %5603 = vmatpush1.msra.mxu0 0.0
    %5604 = vmatprep.subr.mxu0 0.0
    %5605 = vmatpush1.msra.mxu0 0.0
    %5606 = vmatprep.subr.mxu0 0.0
    %5607 = vmatpush1.msra.mxu0 0.0
    %5608 = vmatprep.subr.mxu0 0.0
    %5609 = vmatpush1.msra.mxu0 0.0
    %5610 = vmatprep.subr.mxu0 0.0
    %5611 = vmatpush1.msra.mxu0 0.0
    %5612 = vmatprep.subr.mxu0 0.0
    %5613 = vmatpush1.msra.mxu0 0.0
    %5614 = vmatprep.subr.mxu0 0.0
    %5615 = vmatpush1.msra.mxu0 0.0
    %5616 = vmatprep.subr.mxu0 0.0
    %5617 = vmatpush1.msra.mxu0 0.0
    %5618 = vmatprep.subr.mxu0 0.0
    %5619 = vmatpush1.msra.mxu0 0.0
    %5620 = vmatprep.subr.mxu0 0.0
    %5621 = vmatpush1.msra.mxu0 0.0
    %5622 = vmatprep.subr.mxu0 0.0
    %5623 = vmatpush1.msra.mxu0 0.0
    %5624 = vmatprep.subr.mxu0 0.0
    %5625 = vmatpush1.msra.mxu0 0.0
    %5626 = vmatprep.subr.mxu0 0.0
    %5627 = vmatpush1.msra.mxu0 0.0
    %5628 = vmatprep.mubr.f32.mxu0 0.0
    %5629 = vmatmul.mubr.f32.gmra.mrb[0].mxu0 %v5562
    %v5630 = vpop.f32.mrb[0].mxu0
    %v5631 = vadd.f32 %v1218, %v5630
    %v5632 = vpop.f32.mrb[0].mxu0
    %5633 = vdwg.mxu0
    %v5634 = vmul.f32 %v5402, %v5631
    %v5635 = vadd.f32 %v5083, %v5634
    %v5637 = vsel %vm955, %v5635, 0
    %5639 = vmatprep.subr.mxu0 0.0
    %5640 = vmatpush1.msra.mxu0 %v1310
    %5641 = vmatprep.subr.mxu0 0.0
    %5642 = vmatpush1.msra.mxu0 0.0
    %5643 = vmatprep.subr.mxu0 0.0
    %5644 = vmatpush1.msra.mxu0 0.0
    %5645 = vmatprep.subr.mxu0 0.0
    %5646 = vmatpush1.msra.mxu0 0.0
    %5647 = vmatprep.subr.mxu0 0.0
    %5648 = vmatpush1.msra.mxu0 0.0
    %5649 = vmatprep.subr.mxu0 0.0
    %5650 = vmatpush1.msra.mxu0 0.0
    %5651 = vmatprep.subr.mxu0 0.0
    %5652 = vmatpush1.msra.mxu0 0.0
    %5653 = vmatprep.subr.mxu0 0.0
    %5654 = vmatpush1.msra.mxu0 0.0
    %5655 = vmatprep.subr.mxu0 0.0
    %5656 = vmatpush1.msra.mxu0 0.0
    %5657 = vmatprep.subr.mxu0 0.0
    %5658 = vmatpush1.msra.mxu0 0.0
    %5659 = vmatprep.subr.mxu0 0.0
    %5660 = vmatpush1.msra.mxu0 0.0
    %5661 = vmatprep.subr.mxu0 0.0
    %5662 = vmatpush1.msra.mxu0 0.0
    %5663 = vmatprep.subr.mxu0 0.0
    %5664 = vmatpush1.msra.mxu0 0.0
    %5665 = vmatprep.subr.mxu0 0.0
    %5666 = vmatpush1.msra.mxu0 0.0
    %5667 = vmatprep.subr.mxu0 0.0
    %5668 = vmatpush1.msra.mxu0 0.0
    %5669 = vmatprep.subr.mxu0 0.0
    %5670 = vmatpush1.msra.mxu0 0.0
    %5671 = vmatprep.subr.mxu0 0.0
    %5672 = vmatpush1.msra.mxu0 0.0
    %5673 = vmatprep.subr.mxu0 0.0
    %5674 = vmatpush1.msra.mxu0 0.0
    %5675 = vmatprep.subr.mxu0 0.0
    %5676 = vmatpush1.msra.mxu0 0.0
    %5677 = vmatprep.subr.mxu0 0.0
    %5678 = vmatpush1.msra.mxu0 0.0
    %5679 = vmatprep.subr.mxu0 0.0
    %5680 = vmatpush1.msra.mxu0 0.0
    %5681 = vmatprep.subr.mxu0 0.0
    %5682 = vmatpush1.msra.mxu0 0.0
    %5683 = vmatprep.subr.mxu0 0.0
    %5684 = vmatpush1.msra.mxu0 0.0
    %5685 = vmatprep.subr.mxu0 0.0
    %5686 = vmatpush1.msra.mxu0 0.0
    %5687 = vmatprep.subr.mxu0 0.0
    %5688 = vmatpush1.msra.mxu0 0.0
    %5689 = vmatprep.subr.mxu0 0.0
    %5690 = vmatpush1.msra.mxu0 0.0
    %5691 = vmatprep.subr.mxu0 0.0
    %5692 = vmatpush1.msra.mxu0 0.0
    %5693 = vmatprep.subr.mxu0 0.0
    %5694 = vmatpush1.msra.mxu0 0.0
    %5695 = vmatprep.subr.mxu0 0.0
    %5696 = vmatpush1.msra.mxu0 0.0
    %5697 = vmatprep.subr.mxu0 0.0
    %5698 = vmatpush1.msra.mxu0 0.0
    %5699 = vmatprep.subr.mxu0 0.0
    %5700 = vmatpush1.msra.mxu0 0.0
    %5701 = vmatprep.subr.mxu0 0.0
    %5702 = vmatpush1.msra.mxu0 0.0
    %5703 = vmatprep.mubr.f32.mxu0 0.0
    %5704 = vmatmul.mubr.f32.gmra.mrb[0].mxu0 %v5637
    %v5705 = vpop.f32.mrb[0].mxu0
    %v5706 = vadd.f32 %v1304, %v5705
    %v5707 = vpop.f32.mrb[0].mxu0
    %5708 = vdwg.mxu0
    %vm5709 = vcmp.gt.f32.partialorder %v5706, 0.0
    %v5710 = vmul.f32 %v5706, 1.442695
    %v5711 = vpow.pop %v5710
    %v5712 = vsub.f32 %v5711, 1.0
    %v5713 = vsel %vm5709, %v5706, %v5712
    %v5715 = vsel %vm1043, %v5713, 0
    %5717 = vmatprep.subr.mxu0 0.0
    %5718 = vmatpush1.msra.mxu0 %v937
    %5719 = vmatprep.subr.mxu0 0.0
    %5720 = vmatpush1.msra.mxu0 %v938
    %5721 = vmatprep.subr.mxu0 0.0
    %5722 = vmatpush1.msra.mxu0 %v1137
    %5723 = vmatprep.subr.mxu0 0.0
    %5724 = vmatpush1.msra.mxu0 0.0
    %5725 = vmatprep.subr.mxu0 0.0
    %5726 = vmatpush1.msra.mxu0 0.0
    %5727 = vmatprep.subr.mxu0 0.0
    %5728 = vmatpush1.msra.mxu0 0.0
    %5729 = vmatprep.subr.mxu0 0.0
    %5730 = vmatpush1.msra.mxu0 0.0
    %5731 = vmatprep.subr.mxu0 0.0
    %5732 = vmatpush1.msra.mxu0 0.0
    %5733 = vmatprep.subr.mxu0 0.0
    %5734 = vmatpush1.msra.mxu0 0.0
    %5735 = vmatprep.subr.mxu0 0.0
    %5736 = vmatpush1.msra.mxu0 0.0
    %5737 = vmatprep.subr.mxu0 0.0
    %5738 = vmatpush1.msra.mxu0 0.0
    %5739 = vmatprep.subr.mxu0 0.0
    %5740 = vmatpush1.msra.mxu0 0.0
    %5741 = vmatprep.subr.mxu0 0.0
    %5742 = vmatpush1.msra.mxu0 0.0
    %5743 = vmatprep.subr.mxu0 0.0
    %5744 = vmatpush1.msra.mxu0 0.0
    %5745 = vmatprep.subr.mxu0 0.0
    %5746 = vmatpush1.msra.mxu0 0.0
    %5747 = vmatprep.subr.mxu0 0.0
    %5748 = vmatpush1.msra.mxu0 0.0
    %5749 = vmatprep.subr.mxu0 0.0
    %5750 = vmatpush1.msra.mxu0 0.0
    %5751 = vmatprep.subr.mxu0 0.0
    %5752 = vmatpush1.msra.mxu0 0.0
    %5753 = vmatprep.subr.mxu0 0.0
    %5754 = vmatpush1.msra.mxu0 0.0
    %5755 = vmatprep.subr.mxu0 0.0
    %5756 = vmatpush1.msra.mxu0 0.0
    %5757 = vmatprep.subr.mxu0 0.0
    %5758 = vmatpush1.msra.mxu0 0.0
    %5759 = vmatprep.subr.mxu0 0.0
    %5760 = vmatpush1.msra.mxu0 0.0
    %5761 = vmatprep.subr.mxu0 0.0
    %5762 = vmatpush1.msra.mxu0 0.0
    %5763 = vmatprep.subr.mxu0 0.0
    %5764 = vmatpush1.msra.mxu0 0.0
    %5765 = vmatprep.subr.mxu0 0.0
    %5766 = vmatpush1.msra.mxu0 0.0
    %5767 = vmatprep.subr.mxu0 0.0
    %5768 = vmatpush1.msra.mxu0 0.0
    %5769 = vmatprep.subr.mxu0 0.0
    %5770 = vmatpush1.msra.mxu0 0.0
    %5771 = vmatprep.subr.mxu0 0.0
    %5772 = vmatpush1.msra.mxu0 0.0
    %5773 = vmatprep.subr.mxu0 0.0
    %5774 = vmatpush1.msra.mxu0 0.0
    %5775 = vmatprep.subr.mxu0 0.0
    %5776 = vmatpush1.msra.mxu0 0.0
    %5777 = vmatprep.subr.mxu0 0.0
    %5778 = vmatpush1.msra.mxu0 0.0
    %5779 = vmatprep.subr.mxu0 0.0
    %5780 = vmatpush1.msra.mxu0 0.0
    %5781 = vmatprep.mubr.f32.mxu0 0.0
    %5782 = vmatmul.mubr.f32.gmra.mrb[0].mxu0 %v5715
    %v5783 = vpop.f32.mrb[0].mxu0
    %v5784 = vadd.f32 %v1131, %v5783
    %v5785 = vpop.f32.mrb[0].mxu0
    %5786 = vdwg.mxu0
    %vm5787 = vcmp.gt.f32.partialorder %v5784, 0.0
    %v5788 = vmul.f32 %v5784, 1.442695
    %v5789 = vpow.pop %v5788
    %v5790 = vsub.f32 %v5789, 1.0
    %v5791 = vsel %vm5787, %v5784, %v5790
    %v5793 = vsel %vm1043, %v5791, 0
    %5795 = vmatprep.subr.mxu0 0.0
    %5796 = vmatpush1.msra.mxu0 %v941
    %5797 = vmatprep.subr.mxu0 0.0
    %5798 = vmatpush1.msra.mxu0 %v942
    %5799 = vmatprep.subr.mxu0 0.0
    %5800 = vmatpush1.msra.mxu0 %v1224
    %5801 = vmatprep.subr.mxu0 0.0
    %5802 = vmatpush1.msra.mxu0 0.0
    %5803 = vmatprep.subr.mxu0 0.0
    %5804 = vmatpush1.msra.mxu0 0.0
    %5805 = vmatprep.subr.mxu0 0.0
    %5806 = vmatpush1.msra.mxu0 0.0
    %5807 = vmatprep.subr.mxu0 0.0
    %5808 = vmatpush1.msra.mxu0 0.0
    %5809 = vmatprep.subr.mxu0 0.0
    %5810 = vmatpush1.msra.mxu0 0.0
    %5811 = vmatprep.subr.mxu0 0.0
    %5812 = vmatpush1.msra.mxu0 0.0
    %5813 = vmatprep.subr.mxu0 0.0
    %5814 = vmatpush1.msra.mxu0 0.0
    %5815 = vmatprep.subr.mxu0 0.0
    %5816 = vmatpush1.msra.mxu0 0.0
    %5817 = vmatprep.subr.mxu0 0.0
    %5818 = vmatpush1.msra.mxu0 0.0
    %5819 = vmatprep.subr.mxu0 0.0
    %5820 = vmatpush1.msra.mxu0 0.0
    %5821 = vmatprep.subr.mxu0 0.0
    %5822 = vmatpush1.msra.mxu0 0.0
    %5823 = vmatprep.subr.mxu0 0.0
    %5824 = vmatpush1.msra.mxu0 0.0
    %5825 = vmatprep.subr.mxu0 0.0
    %5826 = vmatpush1.msra.mxu0 0.0
    %5827 = vmatprep.subr.mxu0 0.0
    %5828 = vmatpush1.msra.mxu0 0.0
    %5829 = vmatprep.subr.mxu0 0.0
    %5830 = vmatpush1.msra.mxu0 0.0
    %5831 = vmatprep.subr.mxu0 0.0
    %5832 = vmatpush1.msra.mxu0 0.0
    %5833 = vmatprep.subr.mxu0 0.0
    %5834 = vmatpush1.msra.mxu0 0.0
    %5835 = vmatprep.subr.mxu0 0.0
    %5836 = vmatpush1.msra.mxu0 0.0
    %5837 = vmatprep.subr.mxu0 0.0
    %5838 = vmatpush1.msra.mxu0 0.0
    %5839 = vmatprep.subr.mxu0 0.0
    %5840 = vmatpush1.msra.mxu0 0.0
    %5841 = vmatprep.subr.mxu0 0.0
    %5842 = vmatpush1.msra.mxu0 0.0
    %5843 = vmatprep.subr.mxu0 0.0
    %5844 = vmatpush1.msra.mxu0 0.0
    %5845 = vmatprep.subr.mxu0 0.0
    %5846 = vmatpush1.msra.mxu0 0.0
    %5847 = vmatprep.subr.mxu0 0.0
    %5848 = vmatpush1.msra.mxu0 0.0
    %5849 = vmatprep.subr.mxu0 0.0
    %5850 = vmatpush1.msra.mxu0 0.0
    %5851 = vmatprep.subr.mxu0 0.0
    %5852 = vmatpush1.msra.mxu0 0.0
    %5853 = vmatprep.subr.mxu0 0.0
    %5854 = vmatpush1.msra.mxu0 0.0
    %5855 = vmatprep.subr.mxu0 0.0
    %5856 = vmatpush1.msra.mxu0 0.0
    %5857 = vmatprep.subr.mxu0 0.0
    %5858 = vmatpush1.msra.mxu0 0.0
    %5859 = vmatprep.mubr.f32.mxu0 0.0
    %5860 = vmatmul.mubr.f32.gmra.mrb[0].mxu0 %v5793
    %v5861 = vpop.f32.mrb[0].mxu0
    %v5862 = vadd.f32 %v1218, %v5861
    %v5863 = vpop.f32.mrb[0].mxu0
    %5864 = vdwg.mxu0
    %v5865 = vstv %s5244
    %v5866 = vmul.f32 %v5865, %v5862
    %v5867 = vadd.f32 %v5083, %v5866
    %v5869 = vsel %vm955, %v5867, 0
    %5871 = vmatprep.subr.mxu0 0.0
    %5872 = vmatpush1.msra.mxu0 %v1310
    %5873 = vmatprep.subr.mxu0 0.0
    %5874 = vmatpush1.msra.mxu0 0.0
    %5875 = vmatprep.subr.mxu0 0.0
    %5876 = vmatpush1.msra.mxu0 0.0
    %5877 = vmatprep.subr.mxu0 0.0
    %5878 = vmatpush1.msra.mxu0 0.0
    %5879 = vmatprep.subr.mxu0 0.0
    %5880 = vmatpush1.msra.mxu0 0.0
    %5881 = vmatprep.subr.mxu0 0.0
    %5882 = vmatpush1.msra.mxu0 0.0
    %5883 = vmatprep.subr.mxu0 0.0
    %5884 = vmatpush1.msra.mxu0 0.0
    %5885 = vmatprep.subr.mxu0 0.0
    %5886 = vmatpush1.msra.mxu0 0.0
    %5887 = vmatprep.subr.mxu0 0.0
    %5888 = vmatpush1.msra.mxu0 0.0
    %5889 = vmatprep.subr.mxu0 0.0
    %5890 = vmatpush1.msra.mxu0 0.0
    %5891 = vmatprep.subr.mxu0 0.0
    %5892 = vmatpush1.msra.mxu0 0.0
    %5893 = vmatprep.subr.mxu0 0.0
    %5894 = vmatpush1.msra.mxu0 0.0
    %5895 = vmatprep.subr.mxu0 0.0
    %5896 = vmatpush1.msra.mxu0 0.0
    %5897 = vmatprep.subr.mxu0 0.0
    %5898 = vmatpush1.msra.mxu0 0.0
    %5899 = vmatprep.subr.mxu0 0.0
    %5900 = vmatpush1.msra.mxu0 0.0
    %5901 = vmatprep.subr.mxu0 0.0
    %5902 = vmatpush1.msra.mxu0 0.0
    %5903 = vmatprep.subr.mxu0 0.0
    %5904 = vmatpush1.msra.mxu0 0.0
    %5905 = vmatprep.subr.mxu0 0.0
    %5906 = vmatpush1.msra.mxu0 0.0
    %5907 = vmatprep.subr.mxu0 0.0
    %5908 = vmatpush1.msra.mxu0 0.0
    %5909 = vmatprep.subr.mxu0 0.0
    %5910 = vmatpush1.msra.mxu0 0.0
    %5911 = vmatprep.subr.mxu0 0.0
    %5912 = vmatpush1.msra.mxu0 0.0
    %5913 = vmatprep.subr.mxu0 0.0
    %5914 = vmatpush1.msra.mxu0 0.0
    %5915 = vmatprep.subr.mxu0 0.0
    %5916 = vmatpush1.msra.mxu0 0.0
    %5917 = vmatprep.subr.mxu0 0.0
    %5918 = vmatpush1.msra.mxu0 0.0
    %5919 = vmatprep.subr.mxu0 0.0
    %5920 = vmatpush1.msra.mxu0 0.0
    %5921 = vmatprep.subr.mxu0 0.0
    %5922 = vmatpush1.msra.mxu0 0.0
    %5923 = vmatprep.subr.mxu0 0.0
    %5924 = vmatpush1.msra.mxu0 0.0
    %5925 = vmatprep.subr.mxu0 0.0
    %5926 = vmatpush1.msra.mxu0 0.0
    %5927 = vmatprep.subr.mxu0 0.0
    %5928 = vmatpush1.msra.mxu0 0.0
    %5929 = vmatprep.subr.mxu0 0.0
    %5930 = vmatpush1.msra.mxu0 0.0
    %5931 = vmatprep.subr.mxu0 0.0
    %5932 = vmatpush1.msra.mxu0 0.0
    %5933 = vmatprep.subr.mxu0 0.0
    %5934 = vmatpush1.msra.mxu0 0.0
    %5935 = vmatprep.mubr.f32.mxu0 0.0
    %5936 = vmatmul.mubr.f32.gmra.mrb[0].mxu0 %v5869
    %v5937 = vpop.f32.mrb[0].mxu0
    %v5938 = vadd.f32 %v1304, %v5937
    %v5939 = vpop.f32.mrb[0].mxu0
    %5940 = vdwg.mxu0
    %vm5941 = vcmp.gt.f32.partialorder %v5938, 0.0
    %v5942 = vmul.f32 %v5938, 1.442695
    %v5943 = vpow.pop %v5942
    %v5944 = vsub.f32 %v5943, 1.0
    %v5945 = vsel %vm5941, %v5938, %v5944
    %v5947 = vsel %vm1043, %v5945, 0
    %5949 = vmatprep.subr.mxu0 0.0
    %5950 = vmatpush1.msra.mxu0 %v937
    %5951 = vmatprep.subr.mxu0 0.0
    %5952 = vmatpush1.msra.mxu0 %v938
    %5953 = vmatprep.subr.mxu0 0.0
    %5954 = vmatpush1.msra.mxu0 %v1137
    %5955 = vmatprep.subr.mxu0 0.0
    %5956 = vmatpush1.msra.mxu0 0.0
    %5957 = vmatprep.subr.mxu0 0.0
    %5958 = vmatpush1.msra.mxu0 0.0
    %5959 = vmatprep.subr.mxu0 0.0
    %5960 = vmatpush1.msra.mxu0 0.0
    %5961 = vmatprep.subr.mxu0 0.0
    %5962 = vmatpush1.msra.mxu0 0.0
    %5963 = vmatprep.subr.mxu0 0.0
    %5964 = vmatpush1.msra.mxu0 0.0
    %5965 = vmatprep.subr.mxu0 0.0
    %5966 = vmatpush1.msra.mxu0 0.0
    %5967 = vmatprep.subr.mxu0 0.0
    %5968 = vmatpush1.msra.mxu0 0.0
    %5969 = vmatprep.subr.mxu0 0.0
    %5970 = vmatpush1.msra.mxu0 0.0
    %5971 = vmatprep.subr.mxu0 0.0
    %5972 = vmatpush1.msra.mxu0 0.0
    %5973 = vmatprep.subr.mxu0 0.0
    %5974 = vmatpush1.msra.mxu0 0.0
    %5975 = vmatprep.subr.mxu0 0.0
    %5976 = vmatpush1.msra.mxu0 0.0
    %5977 = vmatprep.subr.mxu0 0.0
    %5978 = vmatpush1.msra.mxu0 0.0
    %5979 = vmatprep.subr.mxu0 0.0
    %5980 = vmatpush1.msra.mxu0 0.0
    %5981 = vmatprep.subr.mxu0 0.0
    %5982 = vmatpush1.msra.mxu0 0.0
    %5983 = vmatprep.subr.mxu0 0.0
    %5984 = vmatpush1.msra.mxu0 0.0
    %5985 = vmatprep.subr.mxu0 0.0
    %5986 = vmatpush1.msra.mxu0 0.0
    %5987 = vmatprep.subr.mxu0 0.0
    %5988 = vmatpush1.msra.mxu0 0.0
    %5989 = vmatprep.subr.mxu0 0.0
    %5990 = vmatpush1.msra.mxu0 0.0
    %5991 = vmatprep.subr.mxu0 0.0
    %5992 = vmatpush1.msra.mxu0 0.0
    %5993 = vmatprep.subr.mxu0 0.0
    %5994 = vmatpush1.msra.mxu0 0.0
    %5995 = vmatprep.subr.mxu0 0.0
    %5996 = vmatpush1.msra.mxu0 0.0
    %5997 = vmatprep.subr.mxu0 0.0
    %5998 = vmatpush1.msra.mxu0 0.0
    %5999 = vmatprep.subr.mxu0 0.0
    %6000 = vmatpush1.msra.mxu0 0.0
    %6001 = vmatprep.subr.mxu0 0.0
    %6002 = vmatpush1.msra.mxu0 0.0
    %6003 = vmatprep.subr.mxu0 0.0
    %6004 = vmatpush1.msra.mxu0 0.0
    %6005 = vmatprep.subr.mxu0 0.0
    %6006 = vmatpush1.msra.mxu0 0.0
    %6007 = vmatprep.subr.mxu0 0.0
    %6008 = vmatpush1.msra.mxu0 0.0
    %6009 = vmatprep.subr.mxu0 0.0
    %6010 = vmatpush1.msra.mxu0 0.0
    %6011 = vmatprep.subr.mxu0 0.0
    %6012 = vmatpush1.msra.mxu0 0.0
    %6013 = vmatprep.mubr.f32.mxu0 0.0
    %6014 = vmatmul.mubr.f32.gmra.mrb[0].mxu0 %v5947
    %v6015 = vpop.f32.mrb[0].mxu0
    %v6016 = vadd.f32 %v1131, %v6015
    %v6017 = vpop.f32.mrb[0].mxu0
    %6018 = vdwg.mxu0
    %vm6019 = vcmp.gt.f32.partialorder %v6016, 0.0
    %v6020 = vmul.f32 %v6016, 1.442695
    %v6021 = vpow.pop %v6020
    %v6022 = vsub.f32 %v6021, 1.0
    %v6023 = vsel %vm6019, %v6016, %v6022
    %v6025 = vsel %vm1043, %v6023, 0
    %6027 = vmatprep.subr.mxu0 0.0
    %6028 = vmatpush1.msra.mxu0 %v941
    %6029 = vmatprep.subr.mxu0 0.0
    %6030 = vmatpush1.msra.mxu0 %v942
    %6031 = vmatprep.subr.mxu0 0.0
    %6032 = vmatpush1.msra.mxu0 %v1224
    %6033 = vmatprep.subr.mxu0 0.0
    %6034 = vmatpush1.msra.mxu0 0.0
    %6035 = vmatprep.subr.mxu0 0.0
    %6036 = vmatpush1.msra.mxu0 0.0
    %6037 = vmatprep.subr.mxu0 0.0
    %6038 = vmatpush1.msra.mxu0 0.0
    %6039 = vmatprep.subr.mxu0 0.0
    %6040 = vmatpush1.msra.mxu0 0.0
    %6041 = vmatprep.subr.mxu0 0.0
    %6042 = vmatpush1.msra.mxu0 0.0
    %6043 = vmatprep.subr.mxu0 0.0
    %6044 = vmatpush1.msra.mxu0 0.0
    %6045 = vmatprep.subr.mxu0 0.0
    %6046 = vmatpush1.msra.mxu0 0.0
    %6047 = vmatprep.subr.mxu0 0.0
    %6048 = vmatpush1.msra.mxu0 0.0
    %6049 = vmatprep.subr.mxu0 0.0
    %6050 = vmatpush1.msra.mxu0 0.0
    %6051 = vmatprep.subr.mxu0 0.0
    %6052 = vmatpush1.msra.mxu0 0.0
    %6053 = vmatprep.subr.mxu0 0.0
    %6054 = vmatpush1.msra.mxu0 0.0
    %6055 = vmatprep.subr.mxu0 0.0
    %6056 = vmatpush1.msra.mxu0 0.0
    %6057 = vmatprep.subr.mxu0 0.0
    %6058 = vmatpush1.msra.mxu0 0.0
    %6059 = vmatprep.subr.mxu0 0.0
    %6060 = vmatpush1.msra.mxu0 0.0
    %6061 = vmatprep.subr.mxu0 0.0
    %6062 = vmatpush1.msra.mxu0 0.0
    %6063 = vmatprep.subr.mxu0 0.0
    %6064 = vmatpush1.msra.mxu0 0.0
    %6065 = vmatprep.subr.mxu0 0.0
    %6066 = vmatpush1.msra.mxu0 0.0
    %6067 = vmatprep.subr.mxu0 0.0
    %6068 = vmatpush1.msra.mxu0 0.0
    %6069 = vmatprep.subr.mxu0 0.0
    %6070 = vmatpush1.msra.mxu0 0.0
    %6071 = vmatprep.subr.mxu0 0.0
    %6072 = vmatpush1.msra.mxu0 0.0
    %6073 = vmatprep.subr.mxu0 0.0
    %6074 = vmatpush1.msra.mxu0 0.0
    %6075 = vmatprep.subr.mxu0 0.0
    %6076 = vmatpush1.msra.mxu0 0.0
    %6077 = vmatprep.subr.mxu0 0.0
    %6078 = vmatpush1.msra.mxu0 0.0
    %6079 = vmatprep.subr.mxu0 0.0
    %6080 = vmatpush1.msra.mxu0 0.0
    %6081 = vmatprep.subr.mxu0 0.0
    %6082 = vmatpush1.msra.mxu0 0.0
    %6083 = vmatprep.subr.mxu0 0.0
    %6084 = vmatpush1.msra.mxu0 0.0
    %6085 = vmatprep.subr.mxu0 0.0
    %6086 = vmatpush1.msra.mxu0 0.0
    %6087 = vmatprep.subr.mxu0 0.0
    %6088 = vmatpush1.msra.mxu0 0.0
    %6089 = vmatprep.subr.mxu0 0.0
    %6090 = vmatpush1.msra.mxu0 0.0
    %6091 = vmatprep.mubr.f32.mxu0 0.0
    %6092 = vmatmul.mubr.f32.gmra.mrb[0].mxu0 %v6025
    %v6093 = vpop.f32.mrb[0].mxu0
    %v6094 = vadd.f32 %v1218, %v6093
    %v6095 = vpop.f32.mrb[0].mxu0
    %6096 = vdwg.mxu0
    %v6097 = vrcp.pop 6.0
    %s6098 = vtos %v6097
    %s6099 = smul.f32 %s5244, %s6098
    %v6100 = vmul.f32 %v5631, 2.0
    %v6101 = vadd.f32 %v5398, %v6100
    %v6102 = vmul.f32 %v5862, 2.0
    %v6103 = vadd.f32 %v6101, %v6102
    %v6104 = vadd.f32 %v6103, %v6094
    %v6105 = vstv %s6099
    %v6106 = vmul.f32 %v6105, %v6104
    %v6107 = vadd.f32 %v5083, %v6106
    %v6109 = vsel %vm955, %v6107, 0
    %6111 = vmatprep.subr.mxu0 0.0
    %6112 = vmatpush1.msra.mxu0 %v961
    %6113 = vmatprep.subr.mxu0 0.0
    %6114 = vmatpush1.msra.mxu0 0.0
    %6115 = vmatprep.subr.mxu0 0.0
    %6116 = vmatpush1.msra.mxu0 0.0
    %6117 = vmatprep.subr.mxu0 0.0
    %6118 = vmatpush1.msra.mxu0 0.0
    %6119 = vmatprep.subr.mxu0 0.0
    %6120 = vmatpush1.msra.mxu0 0.0
    %6121 = vmatprep.subr.mxu0 0.0
    %6122 = vmatpush1.msra.mxu0 0.0
    %6123 = vmatprep.subr.mxu0 0.0
    %6124 = vmatpush1.msra.mxu0 0.0
    %6125 = vmatprep.subr.mxu0 0.0
    %6126 = vmatpush1.msra.mxu0 0.0
    %6127 = vmatprep.subr.mxu0 0.0
    %6128 = vmatpush1.msra.mxu0 0.0
    %6129 = vmatprep.subr.mxu0 0.0
    %6130 = vmatpush1.msra.mxu0 0.0
    %6131 = vmatprep.subr.mxu0 0.0
    %6132 = vmatpush1.msra.mxu0 0.0
    %6133 = vmatprep.subr.mxu0 0.0
    %6134 = vmatpush1.msra.mxu0 0.0
    %6135 = vmatprep.subr.mxu0 0.0
    %6136 = vmatpush1.msra.mxu0 0.0
    %6137 = vmatprep.subr.mxu0 0.0
    %6138 = vmatpush1.msra.mxu0 0.0
    %6139 = vmatprep.subr.mxu0 0.0
    %6140 = vmatpush1.msra.mxu0 0.0
    %6141 = vmatprep.subr.mxu0 0.0
    %6142 = vmatpush1.msra.mxu0 0.0
    %6143 = vmatprep.subr.mxu0 0.0
    %6144 = vmatpush1.msra.mxu0 0.0
    %6145 = vmatprep.subr.mxu0 0.0
    %6146 = vmatpush1.msra.mxu0 0.0
    %6147 = vmatprep.subr.mxu0 0.0
    %6148 = vmatpush1.msra.mxu0 0.0
    %6149 = vmatprep.subr.mxu0 0.0
    %6150 = vmatpush1.msra.mxu0 0.0
    %6151 = vmatprep.subr.mxu0 0.0
    %6152 = vmatpush1.msra.mxu0 0.0
    %6153 = vmatprep.subr.mxu0 0.0
    %6154 = vmatpush1.msra.mxu0 0.0
    %6155 = vmatprep.subr.mxu0 0.0
    %6156 = vmatpush1.msra.mxu0 0.0
    %6157 = vmatprep.subr.mxu0 0.0
    %6158 = vmatpush1.msra.mxu0 0.0
    %6159 = vmatprep.subr.mxu0 0.0
    %6160 = vmatpush1.msra.mxu0 0.0
    %6161 = vmatprep.subr.mxu0 0.0
    %6162 = vmatpush1.msra.mxu0 0.0
    %6163 = vmatprep.subr.mxu0 0.0
    %6164 = vmatpush1.msra.mxu0 0.0
    %6165 = vmatprep.subr.mxu0 0.0
    %6166 = vmatpush1.msra.mxu0 0.0
    %6167 = vmatprep.subr.mxu0 0.0
    %6168 = vmatpush1.msra.mxu0 0.0
    %6169 = vmatprep.subr.mxu0 0.0
    %6170 = vmatpush1.msra.mxu0 0.0
    %6171 = vmatprep.subr.mxu0 0.0
    %6172 = vmatpush1.msra.mxu0 0.0
    %6173 = vmatprep.subr.mxu0 0.0
    %6174 = vmatpush1.msra.mxu0 0.0
    %6175 = vmatprep.mubr.f32.mxu0 0.0
    %6176 = vmatmul.mubr.f32.gmra.mrb[0].mxu0 %v6109
    %v6177 = vpop.f32.mrb[0].mxu0
    %v6178 = vadd.f32 %v953, %v6177
    %v6179 = vpop.f32.mrb[0].mxu0
    %6180 = vdwg.mxu0
    %v6181 = vmax.f32 %v6178, 0.0
    %6183 = vrot.lane.b32.xlu0 %v6181, 108
    %v6184 = vpop.permute.xlu0 %6183
    %v6185 = vsel %vm1043, %v6184, 0
    %6187 = vmatprep.subr.mxu0 0.0
    %6188 = vmatpush1.msra.mxu0 %v945
    %6189 = vmatprep.subr.mxu0 0.0
    %6190 = vmatpush1.msra.mxu0 %v946
    %6191 = vmatprep.subr.mxu0 0.0
    %6192 = vmatpush1.msra.mxu0 %v1047
    %6193 = vmatprep.subr.mxu0 0.0
    %6194 = vmatpush1.msra.mxu0 0.0
    %6195 = vmatprep.subr.mxu0 0.0
    %6196 = vmatpush1.msra.mxu0 0.0
    %6197 = vmatprep.subr.mxu0 0.0
    %6198 = vmatpush1.msra.mxu0 0.0
    %6199 = vmatprep.subr.mxu0 0.0
    %6200 = vmatpush1.msra.mxu0 0.0
    %6201 = vmatprep.subr.mxu0 0.0
    %6202 = vmatpush1.msra.mxu0 0.0
    %6203 = vmatprep.subr.mxu0 0.0
    %6204 = vmatpush1.msra.mxu0 0.0
    %6205 = vmatprep.subr.mxu0 0.0
    %6206 = vmatpush1.msra.mxu0 0.0
    %6207 = vmatprep.subr.mxu0 0.0
    %6208 = vmatpush1.msra.mxu0 0.0
    %6209 = vmatprep.subr.mxu0 0.0
    %6210 = vmatpush1.msra.mxu0 0.0
    %6211 = vmatprep.subr.mxu0 0.0
    %6212 = vmatpush1.msra.mxu0 0.0
    %6213 = vmatprep.subr.mxu0 0.0
    %6214 = vmatpush1.msra.mxu0 0.0
    %6215 = vmatprep.subr.mxu0 0.0
    %6216 = vmatpush1.msra.mxu0 0.0
    %6217 = vmatprep.subr.mxu0 0.0
    %6218 = vmatpush1.msra.mxu0 0.0
    %6219 = vmatprep.subr.mxu0 0.0
    %6220 = vmatpush1.msra.mxu0 0.0
    %6221 = vmatprep.subr.mxu0 0.0
    %6222 = vmatpush1.msra.mxu0 0.0
    %6223 = vmatprep.subr.mxu0 0.0
    %6224 = vmatpush1.msra.mxu0 0.0
    %6225 = vmatprep.subr.mxu0 0.0
    %6226 = vmatpush1.msra.mxu0 0.0
    %6227 = vmatprep.subr.mxu0 0.0
    %6228 = vmatpush1.msra.mxu0 0.0
    %6229 = vmatprep.subr.mxu0 0.0
    %6230 = vmatpush1.msra.mxu0 0.0
    %6231 = vmatprep.subr.mxu0 0.0
    %6232 = vmatpush1.msra.mxu0 0.0
    %6233 = vmatprep.subr.mxu0 0.0
    %6234 = vmatpush1.msra.mxu0 0.0
    %6235 = vmatprep.subr.mxu0 0.0
    %6236 = vmatpush1.msra.mxu0 0.0
    %6237 = vmatprep.subr.mxu0 0.0
    %6238 = vmatpush1.msra.mxu0 0.0
    %6239 = vmatprep.subr.mxu0 0.0
    %6240 = vmatpush1.msra.mxu0 0.0
    %6241 = vmatprep.subr.mxu0 0.0
    %6242 = vmatpush1.msra.mxu0 0.0
    %6243 = vmatprep.subr.mxu0 0.0
    %6244 = vmatpush1.msra.mxu0 0.0
    %6245 = vmatprep.subr.mxu0 0.0
    %6246 = vmatpush1.msra.mxu0 0.0
    %6247 = vmatprep.subr.mxu0 0.0
    %6248 = vmatpush1.msra.mxu0 0.0
    %6249 = vmatprep.subr.mxu0 0.0
    %6250 = vmatpush1.msra.mxu0 0.0
    %6251 = vmatprep.mubr.f32.mxu0 0.0
    %6252 = vmatmul.mubr.f32.gmra.mrb[0].mxu0 %v6185
    %v6253 = vpop.f32.mrb[0].mxu0
    %v6254 = vadd.f32 %v1038, %v6253
    %v6255 = vpop.f32.mrb[0].mxu0
    %6256 = vdwg.mxu0
    %6257 = vrot.lane.b32.xlu0 %v6107, 20
    %v6258 = vpop.permute.xlu0 %6257
    %vm6260 = vcmask 195744
    %6261 = vst.msk [vmem:[%s19] sm:$0xff] %vm6260, %v6258
    %6263 = vrot.lane.b32.xlu0 %v6254, 10
    %v6264 = vpop.permute.xlu0 %6263
    %vm6266 = vcmask 97360
    %6267 = vst.msk [vmem:[%s20] sm:$0xff] %vm6266, %v6264
    %s6268 = sld [smem:[#allocation2 + $0x5]]
    %vm6269 = vcmp.gt.f32.partialorder %v6178, 0.0
    %v6270 = vmul.f32 %v6178, 1.442695
    %v6271 = vpow.pop %v6270
    %v6272 = vsub.f32 %v6271, 1.0
    %v6273 = vsel %vm6269, %v6178, %v6272
    %v6275 = vsel %vm1043, %v6273, 0
    %6277 = vmatprep.subr.mxu0 0.0
    %6278 = vmatpush1.msra.mxu0 %v937
    %6279 = vmatprep.subr.mxu0 0.0
    %6280 = vmatpush1.msra.mxu0 %v938
    %6281 = vmatprep.subr.mxu0 0.0
    %6282 = vmatpush1.msra.mxu0 %v1137
    %6283 = vmatprep.subr.mxu0 0.0
    %6284 = vmatpush1.msra.mxu0 0.0
    %6285 = vmatprep.subr.mxu0 0.0
    %6286 = vmatpush1.msra.mxu0 0.0
    %6287 = vmatprep.subr.mxu0 0.0
    %6288 = vmatpush1.msra.mxu0 0.0
    %6289 = vmatprep.subr.mxu0 0.0
    %6290 = vmatpush1.msra.mxu0 0.0
    %6291 = vmatprep.subr.mxu0 0.0
    %6292 = vmatpush1.msra.mxu0 0.0
    %6293 = vmatprep.subr.mxu0 0.0
    %6294 = vmatpush1.msra.mxu0 0.0
    %6295 = vmatprep.subr.mxu0 0.0
    %6296 = vmatpush1.msra.mxu0 0.0
    %6297 = vmatprep.subr.mxu0 0.0
    %6298 = vmatpush1.msra.mxu0 0.0
    %6299 = vmatprep.subr.mxu0 0.0
    %6300 = vmatpush1.msra.mxu0 0.0
    %6301 = vmatprep.subr.mxu0 0.0
    %6302 = vmatpush1.msra.mxu0 0.0
    %6303 = vmatprep.subr.mxu0 0.0
    %6304 = vmatpush1.msra.mxu0 0.0
    %6305 = vmatprep.subr.mxu0 0.0
    %6306 = vmatpush1.msra.mxu0 0.0
    %6307 = vmatprep.subr.mxu0 0.0
    %6308 = vmatpush1.msra.mxu0 0.0
    %6309 = vmatprep.subr.mxu0 0.0
    %6310 = vmatpush1.msra.mxu0 0.0
    %6311 = vmatprep.subr.mxu0 0.0
    %6312 = vmatpush1.msra.mxu0 0.0
    %6313 = vmatprep.subr.mxu0 0.0
    %6314 = vmatpush1.msra.mxu0 0.0
    %6315 = vmatprep.subr.mxu0 0.0
    %6316 = vmatpush1.msra.mxu0 0.0
    %6317 = vmatprep.subr.mxu0 0.0
    %6318 = vmatpush1.msra.mxu0 0.0
    %6319 = vmatprep.subr.mxu0 0.0
    %6320 = vmatpush1.msra.mxu0 0.0
    %6321 = vmatprep.subr.mxu0 0.0
    %6322 = vmatpush1.msra.mxu0 0.0
    %6323 = vmatprep.subr.mxu0 0.0
    %6324 = vmatpush1.msra.mxu0 0.0
    %6325 = vmatprep.subr.mxu0 0.0
    %6326 = vmatpush1.msra.mxu0 0.0
    %6327 = vmatprep.subr.mxu0 0.0
    %6328 = vmatpush1.msra.mxu0 0.0
    %6329 = vmatprep.subr.mxu0 0.0
    %6330 = vmatpush1.msra.mxu0 0.0
    %6331 = vmatprep.subr.mxu0 0.0
    %6332 = vmatpush1.msra.mxu0 0.0
    %6333 = vmatprep.subr.mxu0 0.0
    %6334 = vmatpush1.msra.mxu0 0.0
    %6335 = vmatprep.subr.mxu0 0.0
    %6336 = vmatpush1.msra.mxu0 0.0
    %6337 = vmatprep.subr.mxu0 0.0
    %6338 = vmatpush1.msra.mxu0 0.0
    %6339 = vmatprep.subr.mxu0 0.0
    %6340 = vmatpush1.msra.mxu0 0.0
    %6341 = vmatprep.mubr.f32.mxu0 0.0
    %6342 = vmatmul.mubr.f32.gmra.mrb[0].mxu0 %v6275
    %v6343 = vpop.f32.mrb[0].mxu0
    %v6344 = vadd.f32 %v1131, %v6343
    %v6345 = vpop.f32.mrb[0].mxu0
    %6346 = vdwg.mxu0
    %vm6347 = vcmp.gt.f32.partialorder %v6344, 0.0
    %v6348 = vmul.f32 %v6344, 1.442695
    %v6349 = vpow.pop %v6348
    %v6350 = vsub.f32 %v6349, 1.0
    %v6351 = vsel %vm6347, %v6344, %v6350
    %v6353 = vsel %vm1043, %v6351, 0
    %6355 = vmatprep.subr.mxu0 0.0
    %6356 = vmatpush1.msra.mxu0 %v941
    %6357 = vmatprep.subr.mxu0 0.0
    %6358 = vmatpush1.msra.mxu0 %v942
    %6359 = vmatprep.subr.mxu0 0.0
    %6360 = vmatpush1.msra.mxu0 %v1224
    %6361 = vmatprep.subr.mxu0 0.0
    %6362 = vmatpush1.msra.mxu0 0.0
    %6363 = vmatprep.subr.mxu0 0.0
    %6364 = vmatpush1.msra.mxu0 0.0
    %6365 = vmatprep.subr.mxu0 0.0
    %6366 = vmatpush1.msra.mxu0 0.0
    %6367 = vmatprep.subr.mxu0 0.0
    %6368 = vmatpush1.msra.mxu0 0.0
    %6369 = vmatprep.subr.mxu0 0.0
    %6370 = vmatpush1.msra.mxu0 0.0
    %6371 = vmatprep.subr.mxu0 0.0
    %6372 = vmatpush1.msra.mxu0 0.0
    %6373 = vmatprep.subr.mxu0 0.0
    %6374 = vmatpush1.msra.mxu0 0.0
    %6375 = vmatprep.subr.mxu0 0.0
    %6376 = vmatpush1.msra.mxu0 0.0
    %6377 = vmatprep.subr.mxu0 0.0
    %6378 = vmatpush1.msra.mxu0 0.0
    %6379 = vmatprep.subr.mxu0 0.0
    %6380 = vmatpush1.msra.mxu0 0.0
    %6381 = vmatprep.subr.mxu0 0.0
    %6382 = vmatpush1.msra.mxu0 0.0
    %6383 = vmatprep.subr.mxu0 0.0
    %6384 = vmatpush1.msra.mxu0 0.0
    %6385 = vmatprep.subr.mxu0 0.0
    %6386 = vmatpush1.msra.mxu0 0.0
    %6387 = vmatprep.subr.mxu0 0.0
    %6388 = vmatpush1.msra.mxu0 0.0
    %6389 = vmatprep.subr.mxu0 0.0
    %6390 = vmatpush1.msra.mxu0 0.0
    %6391 = vmatprep.subr.mxu0 0.0
    %6392 = vmatpush1.msra.mxu0 0.0
    %6393 = vmatprep.subr.mxu0 0.0
    %6394 = vmatpush1.msra.mxu0 0.0
    %6395 = vmatprep.subr.mxu0 0.0
    %6396 = vmatpush1.msra.mxu0 0.0
    %6397 = vmatprep.subr.mxu0 0.0
    %6398 = vmatpush1.msra.mxu0 0.0
    %6399 = vmatprep.subr.mxu0 0.0
    %6400 = vmatpush1.msra.mxu0 0.0
    %6401 = vmatprep.subr.mxu0 0.0
    %6402 = vmatpush1.msra.mxu0 0.0
    %6403 = vmatprep.subr.mxu0 0.0
    %6404 = vmatpush1.msra.mxu0 0.0
    %6405 = vmatprep.subr.mxu0 0.0
    %6406 = vmatpush1.msra.mxu0 0.0
    %6407 = vmatprep.subr.mxu0 0.0
    %6408 = vmatpush1.msra.mxu0 0.0
    %6409 = vmatprep.subr.mxu0 0.0
    %6410 = vmatpush1.msra.mxu0 0.0
    %6411 = vmatprep.subr.mxu0 0.0
    %6412 = vmatpush1.msra.mxu0 0.0
    %6413 = vmatprep.subr.mxu0 0.0
    %6414 = vmatpush1.msra.mxu0 0.0
    %6415 = vmatprep.subr.mxu0 0.0
    %6416 = vmatpush1.msra.mxu0 0.0
    %6417 = vmatprep.subr.mxu0 0.0
    %6418 = vmatpush1.msra.mxu0 0.0
    %6419 = vmatprep.mubr.f32.mxu0 0.0
    %6420 = vmatmul.mubr.f32.gmra.mrb[0].mxu0 %v6353
    %v6421 = vpop.f32.mrb[0].mxu0
    %v6422 = vadd.f32 %v1218, %v6421
    %v6423 = vpop.f32.mrb[0].mxu0
    %6424 = vdwg.mxu0
    %s6425 = smul.f32 %s6268, 0.5
    %v6426 = vstv %s6425
    %v6427 = vmul.f32 %v6426, %v6422
    %v6428 = vadd.f32 %v6107, %v6427
    %v6430 = vsel %vm955, %v6428, 0
    %6432 = vmatprep.subr.mxu0 0.0
    %6433 = vmatpush1.msra.mxu0 %v1310
    %6434 = vmatprep.subr.mxu0 0.0
    %6435 = vmatpush1.msra.mxu0 0.0
    %6436 = vmatprep.subr.mxu0 0.0
    %6437 = vmatpush1.msra.mxu0 0.0
    %6438 = vmatprep.subr.mxu0 0.0
    %6439 = vmatpush1.msra.mxu0 0.0
    %6440 = vmatprep.subr.mxu0 0.0
    %6441 = vmatpush1.msra.mxu0 0.0
    %6442 = vmatprep.subr.mxu0 0.0
    %6443 = vmatpush1.msra.mxu0 0.0
    %6444 = vmatprep.subr.mxu0 0.0
    %6445 = vmatpush1.msra.mxu0 0.0
    %6446 = vmatprep.subr.mxu0 0.0
    %6447 = vmatpush1.msra.mxu0 0.0
    %6448 = vmatprep.subr.mxu0 0.0
    %6449 = vmatpush1.msra.mxu0 0.0
    %6450 = vmatprep.subr.mxu0 0.0
    %6451 = vmatpush1.msra.mxu0 0.0
    %6452 = vmatprep.subr.mxu0 0.0
    %6453 = vmatpush1.msra.mxu0 0.0
    %6454 = vmatprep.subr.mxu0 0.0
    %6455 = vmatpush1.msra.mxu0 0.0
    %6456 = vmatprep.subr.mxu0 0.0
    %6457 = vmatpush1.msra.mxu0 0.0
    %6458 = vmatprep.subr.mxu0 0.0
    %6459 = vmatpush1.msra.mxu0 0.0
    %6460 = vmatprep.subr.mxu0 0.0
    %6461 = vmatpush1.msra.mxu0 0.0
    %6462 = vmatprep.subr.mxu0 0.0
    %6463 = vmatpush1.msra.mxu0 0.0
    %6464 = vmatprep.subr.mxu0 0.0
    %6465 = vmatpush1.msra.mxu0 0.0
    %6466 = vmatprep.subr.mxu0 0.0
    %6467 = vmatpush1.msra.mxu0 0.0
    %6468 = vmatprep.subr.mxu0 0.0
    %6469 = vmatpush1.msra.mxu0 0.0
    %6470 = vmatprep.subr.mxu0 0.0
    %6471 = vmatpush1.msra.mxu0 0.0
    %6472 = vmatprep.subr.mxu0 0.0
    %6473 = vmatpush1.msra.mxu0 0.0
    %6474 = vmatprep.subr.mxu0 0.0
    %6475 = vmatpush1.msra.mxu0 0.0
    %6476 = vmatprep.subr.mxu0 0.0
    %6477 = vmatpush1.msra.mxu0 0.0
    %6478 = vmatprep.subr.mxu0 0.0
    %6479 = vmatpush1.msra.mxu0 0.0
    %6480 = vmatprep.subr.mxu0 0.0
    %6481 = vmatpush1.msra.mxu0 0.0
    %6482 = vmatprep.subr.mxu0 0.0
    %6483 = vmatpush1.msra.mxu0 0.0
    %6484 = vmatprep.subr.mxu0 0.0
    %6485 = vmatpush1.msra.mxu0 0.0
    %6486 = vmatprep.subr.mxu0 0.0
    %6487 = vmatpush1.msra.mxu0 0.0
    %6488 = vmatprep.subr.mxu0 0.0
    %6489 = vmatpush1.msra.mxu0 0.0
    %6490 = vmatprep.subr.mxu0 0.0
    %6491 = vmatpush1.msra.mxu0 0.0
    %6492 = vmatprep.subr.mxu0 0.0
    %6493 = vmatpush1.msra.mxu0 0.0
    %6494 = vmatprep.subr.mxu0 0.0
    %6495 = vmatpush1.msra.mxu0 0.0
    %6496 = vmatprep.mubr.f32.mxu0 0.0
    %6497 = vmatmul.mubr.f32.gmra.mrb[0].mxu0 %v6430
    %v6498 = vpop.f32.mrb[0].mxu0
    %v6499 = vadd.f32 %v1304, %v6498
    %v6500 = vpop.f32.mrb[0].mxu0
    %6501 = vdwg.mxu0
    %vm6502 = vcmp.gt.f32.partialorder %v6499, 0.0
    %v6503 = vmul.f32 %v6499, 1.442695
    %v6504 = vpow.pop %v6503
    %v6505 = vsub.f32 %v6504, 1.0
    %v6506 = vsel %vm6502, %v6499, %v6505
    %v6508 = vsel %vm1043, %v6506, 0
    %6510 = vmatprep.subr.mxu0 0.0
    %6511 = vmatpush1.msra.mxu0 %v937
    %6512 = vmatprep.subr.mxu0 0.0
    %6513 = vmatpush1.msra.mxu0 %v938
    %6514 = vmatprep.subr.mxu0 0.0
    %6515 = vmatpush1.msra.mxu0 %v1137
    %6516 = vmatprep.subr.mxu0 0.0
    %6517 = vmatpush1.msra.mxu0 0.0
    %6518 = vmatprep.subr.mxu0 0.0
    %6519 = vmatpush1.msra.mxu0 0.0
    %6520 = vmatprep.subr.mxu0 0.0
    %6521 = vmatpush1.msra.mxu0 0.0
    %6522 = vmatprep.subr.mxu0 0.0
    %6523 = vmatpush1.msra.mxu0 0.0
    %6524 = vmatprep.subr.mxu0 0.0
    %6525 = vmatpush1.msra.mxu0 0.0
    %6526 = vmatprep.subr.mxu0 0.0
    %6527 = vmatpush1.msra.mxu0 0.0
    %6528 = vmatprep.subr.mxu0 0.0
    %6529 = vmatpush1.msra.mxu0 0.0
    %6530 = vmatprep.subr.mxu0 0.0
    %6531 = vmatpush1.msra.mxu0 0.0
    %6532 = vmatprep.subr.mxu0 0.0
    %6533 = vmatpush1.msra.mxu0 0.0
    %6534 = vmatprep.subr.mxu0 0.0
    %6535 = vmatpush1.msra.mxu0 0.0
    %6536 = vmatprep.subr.mxu0 0.0
    %6537 = vmatpush1.msra.mxu0 0.0
    %6538 = vmatprep.subr.mxu0 0.0
    %6539 = vmatpush1.msra.mxu0 0.0
    %6540 = vmatprep.subr.mxu0 0.0
    %6541 = vmatpush1.msra.mxu0 0.0
    %6542 = vmatprep.subr.mxu0 0.0
    %6543 = vmatpush1.msra.mxu0 0.0
    %6544 = vmatprep.subr.mxu0 0.0
    %6545 = vmatpush1.msra.mxu0 0.0
    %6546 = vmatprep.subr.mxu0 0.0
    %6547 = vmatpush1.msra.mxu0 0.0
    %6548 = vmatprep.subr.mxu0 0.0
    %6549 = vmatpush1.msra.mxu0 0.0
    %6550 = vmatprep.subr.mxu0 0.0
    %6551 = vmatpush1.msra.mxu0 0.0
    %6552 = vmatprep.subr.mxu0 0.0
    %6553 = vmatpush1.msra.mxu0 0.0
    %6554 = vmatprep.subr.mxu0 0.0
    %6555 = vmatpush1.msra.mxu0 0.0
    %6556 = vmatprep.subr.mxu0 0.0
    %6557 = vmatpush1.msra.mxu0 0.0
    %6558 = vmatprep.subr.mxu0 0.0
    %6559 = vmatpush1.msra.mxu0 0.0
    %6560 = vmatprep.subr.mxu0 0.0
    %6561 = vmatpush1.msra.mxu0 0.0
    %6562 = vmatprep.subr.mxu0 0.0
    %6563 = vmatpush1.msra.mxu0 0.0
    %6564 = vmatprep.subr.mxu0 0.0
    %6565 = vmatpush1.msra.mxu0 0.0
    %6566 = vmatprep.subr.mxu0 0.0
    %6567 = vmatpush1.msra.mxu0 0.0
    %6568 = vmatprep.subr.mxu0 0.0
    %6569 = vmatpush1.msra.mxu0 0.0
    %6570 = vmatprep.subr.mxu0 0.0
    %6571 = vmatpush1.msra.mxu0 0.0
    %6572 = vmatprep.subr.mxu0 0.0
    %6573 = vmatpush1.msra.mxu0 0.0
    %6574 = vmatprep.mubr.f32.mxu0 0.0
    %6575 = vmatmul.mubr.f32.gmra.mrb[0].mxu0 %v6508
    %v6576 = vpop.f32.mrb[0].mxu0
    %v6577 = vadd.f32 %v1131, %v6576
    %v6578 = vpop.f32.mrb[0].mxu0
    %6579 = vdwg.mxu0
    %vm6580 = vcmp.gt.f32.partialorder %v6577, 0.0
    %v6581 = vmul.f32 %v6577, 1.442695
    %v6582 = vpow.pop %v6581
    %v6583 = vsub.f32 %v6582, 1.0
    %v6584 = vsel %vm6580, %v6577, %v6583
    %v6586 = vsel %vm1043, %v6584, 0
    %6588 = vmatprep.subr.mxu0 0.0
    %6589 = vmatpush1.msra.mxu0 %v941
    %6590 = vmatprep.subr.mxu0 0.0
    %6591 = vmatpush1.msra.mxu0 %v942
    %6592 = vmatprep.subr.mxu0 0.0
    %6593 = vmatpush1.msra.mxu0 %v1224
    %6594 = vmatprep.subr.mxu0 0.0
    %6595 = vmatpush1.msra.mxu0 0.0
    %6596 = vmatprep.subr.mxu0 0.0
    %6597 = vmatpush1.msra.mxu0 0.0
    %6598 = vmatprep.subr.mxu0 0.0
    %6599 = vmatpush1.msra.mxu0 0.0
    %6600 = vmatprep.subr.mxu0 0.0
    %6601 = vmatpush1.msra.mxu0 0.0
    %6602 = vmatprep.subr.mxu0 0.0
    %6603 = vmatpush1.msra.mxu0 0.0
    %6604 = vmatprep.subr.mxu0 0.0
    %6605 = vmatpush1.msra.mxu0 0.0
    %6606 = vmatprep.subr.mxu0 0.0
    %6607 = vmatpush1.msra.mxu0 0.0
    %6608 = vmatprep.subr.mxu0 0.0
    %6609 = vmatpush1.msra.mxu0 0.0
    %6610 = vmatprep.subr.mxu0 0.0
    %6611 = vmatpush1.msra.mxu0 0.0
    %6612 = vmatprep.subr.mxu0 0.0
    %6613 = vmatpush1.msra.mxu0 0.0
    %6614 = vmatprep.subr.mxu0 0.0
    %6615 = vmatpush1.msra.mxu0 0.0
    %6616 = vmatprep.subr.mxu0 0.0
    %6617 = vmatpush1.msra.mxu0 0.0
    %6618 = vmatprep.subr.mxu0 0.0
    %6619 = vmatpush1.msra.mxu0 0.0
    %6620 = vmatprep.subr.mxu0 0.0
    %6621 = vmatpush1.msra.mxu0 0.0
    %6622 = vmatprep.subr.mxu0 0.0
    %6623 = vmatpush1.msra.mxu0 0.0
    %6624 = vmatprep.subr.mxu0 0.0
    %6625 = vmatpush1.msra.mxu0 0.0
    %6626 = vmatprep.subr.mxu0 0.0
    %6627 = vmatpush1.msra.mxu0 0.0
    %6628 = vmatprep.subr.mxu0 0.0
    %6629 = vmatpush1.msra.mxu0 0.0
    %6630 = vmatprep.subr.mxu0 0.0
    %6631 = vmatpush1.msra.mxu0 0.0
    %6632 = vmatprep.subr.mxu0 0.0
    %6633 = vmatpush1.msra.mxu0 0.0
    %6634 = vmatprep.subr.mxu0 0.0
    %6635 = vmatpush1.msra.mxu0 0.0
    %6636 = vmatprep.subr.mxu0 0.0
    %6637 = vmatpush1.msra.mxu0 0.0
    %6638 = vmatprep.subr.mxu0 0.0
    %6639 = vmatpush1.msra.mxu0 0.0
    %6640 = vmatprep.subr.mxu0 0.0
    %6641 = vmatpush1.msra.mxu0 0.0
    %6642 = vmatprep.subr.mxu0 0.0
    %6643 = vmatpush1.msra.mxu0 0.0
    %6644 = vmatprep.subr.mxu0 0.0
    %6645 = vmatpush1.msra.mxu0 0.0
    %6646 = vmatprep.subr.mxu0 0.0
    %6647 = vmatpush1.msra.mxu0 0.0
    %6648 = vmatprep.subr.mxu0 0.0
    %6649 = vmatpush1.msra.mxu0 0.0
    %6650 = vmatprep.subr.mxu0 0.0
    %6651 = vmatpush1.msra.mxu0 0.0
    %6652 = vmatprep.mubr.f32.mxu0 0.0
    %6653 = vmatmul.mubr.f32.gmra.mrb[0].mxu0 %v6586
    %v6654 = vpop.f32.mrb[0].mxu0
    %v6655 = vadd.f32 %v1218, %v6654
    %v6656 = vpop.f32.mrb[0].mxu0
    %6657 = vdwg.mxu0
    %v6658 = vmul.f32 %v6426, %v6655
    %v6659 = vadd.f32 %v6107, %v6658
    %v6661 = vsel %vm955, %v6659, 0
    %6663 = vmatprep.subr.mxu0 0.0
    %6664 = vmatpush1.msra.mxu0 %v1310
    %6665 = vmatprep.subr.mxu0 0.0
    %6666 = vmatpush1.msra.mxu0 0.0
    %6667 = vmatprep.subr.mxu0 0.0
    %6668 = vmatpush1.msra.mxu0 0.0
    %6669 = vmatprep.subr.mxu0 0.0
    %6670 = vmatpush1.msra.mxu0 0.0
    %6671 = vmatprep.subr.mxu0 0.0
    %6672 = vmatpush1.msra.mxu0 0.0
    %6673 = vmatprep.subr.mxu0 0.0
    %6674 = vmatpush1.msra.mxu0 0.0
    %6675 = vmatprep.subr.mxu0 0.0
    %6676 = vmatpush1.msra.mxu0 0.0
    %6677 = vmatprep.subr.mxu0 0.0
    %6678 = vmatpush1.msra.mxu0 0.0
    %6679 = vmatprep.subr.mxu0 0.0
    %6680 = vmatpush1.msra.mxu0 0.0
    %6681 = vmatprep.subr.mxu0 0.0
    %6682 = vmatpush1.msra.mxu0 0.0
    %6683 = vmatprep.subr.mxu0 0.0
    %6684 = vmatpush1.msra.mxu0 0.0
    %6685 = vmatprep.subr.mxu0 0.0
    %6686 = vmatpush1.msra.mxu0 0.0
    %6687 = vmatprep.subr.mxu0 0.0
    %6688 = vmatpush1.msra.mxu0 0.0
    %6689 = vmatprep.subr.mxu0 0.0
    %6690 = vmatpush1.msra.mxu0 0.0
    %6691 = vmatprep.subr.mxu0 0.0
    %6692 = vmatpush1.msra.mxu0 0.0
    %6693 = vmatprep.subr.mxu0 0.0
    %6694 = vmatpush1.msra.mxu0 0.0
    %6695 = vmatprep.subr.mxu0 0.0
    %6696 = vmatpush1.msra.mxu0 0.0
    %6697 = vmatprep.subr.mxu0 0.0
    %6698 = vmatpush1.msra.mxu0 0.0
    %6699 = vmatprep.subr.mxu0 0.0
    %6700 = vmatpush1.msra.mxu0 0.0
    %6701 = vmatprep.subr.mxu0 0.0
    %6702 = vmatpush1.msra.mxu0 0.0
    %6703 = vmatprep.subr.mxu0 0.0
    %6704 = vmatpush1.msra.mxu0 0.0
    %6705 = vmatprep.subr.mxu0 0.0
    %6706 = vmatpush1.msra.mxu0 0.0
    %6707 = vmatprep.subr.mxu0 0.0
    %6708 = vmatpush1.msra.mxu0 0.0
    %6709 = vmatprep.subr.mxu0 0.0
    %6710 = vmatpush1.msra.mxu0 0.0
    %6711 = vmatprep.subr.mxu0 0.0
    %6712 = vmatpush1.msra.mxu0 0.0
    %6713 = vmatprep.subr.mxu0 0.0
    %6714 = vmatpush1.msra.mxu0 0.0
    %6715 = vmatprep.subr.mxu0 0.0
    %6716 = vmatpush1.msra.mxu0 0.0
    %6717 = vmatprep.subr.mxu0 0.0
    %6718 = vmatpush1.msra.mxu0 0.0
    %6719 = vmatprep.subr.mxu0 0.0
    %6720 = vmatpush1.msra.mxu0 0.0
    %6721 = vmatprep.subr.mxu0 0.0
    %6722 = vmatpush1.msra.mxu0 0.0
    %6723 = vmatprep.subr.mxu0 0.0
    %6724 = vmatpush1.msra.mxu0 0.0
    %6725 = vmatprep.subr.mxu0 0.0
    %6726 = vmatpush1.msra.mxu0 0.0
    %6727 = vmatprep.mubr.f32.mxu0 0.0
    %6728 = vmatmul.mubr.f32.gmra.mrb[0].mxu0 %v6661
    %v6729 = vpop.f32.mrb[0].mxu0
    %v6730 = vadd.f32 %v1304, %v6729
    %v6731 = vpop.f32.mrb[0].mxu0
    %6732 = vdwg.mxu0
    %vm6733 = vcmp.gt.f32.partialorder %v6730, 0.0
    %v6734 = vmul.f32 %v6730, 1.442695
    %v6735 = vpow.pop %v6734
    %v6736 = vsub.f32 %v6735, 1.0
    %v6737 = vsel %vm6733, %v6730, %v6736
    %v6739 = vsel %vm1043, %v6737, 0
    %6741 = vmatprep.subr.mxu0 0.0
    %6742 = vmatpush1.msra.mxu0 %v937
    %6743 = vmatprep.subr.mxu0 0.0
    %6744 = vmatpush1.msra.mxu0 %v938
    %6745 = vmatprep.subr.mxu0 0.0
    %6746 = vmatpush1.msra.mxu0 %v1137
    %6747 = vmatprep.subr.mxu0 0.0
    %6748 = vmatpush1.msra.mxu0 0.0
    %6749 = vmatprep.subr.mxu0 0.0
    %6750 = vmatpush1.msra.mxu0 0.0
    %6751 = vmatprep.subr.mxu0 0.0
    %6752 = vmatpush1.msra.mxu0 0.0
    %6753 = vmatprep.subr.mxu0 0.0
    %6754 = vmatpush1.msra.mxu0 0.0
    %6755 = vmatprep.subr.mxu0 0.0
    %6756 = vmatpush1.msra.mxu0 0.0
    %6757 = vmatprep.subr.mxu0 0.0
    %6758 = vmatpush1.msra.mxu0 0.0
    %6759 = vmatprep.subr.mxu0 0.0
    %6760 = vmatpush1.msra.mxu0 0.0
    %6761 = vmatprep.subr.mxu0 0.0
    %6762 = vmatpush1.msra.mxu0 0.0
    %6763 = vmatprep.subr.mxu0 0.0
    %6764 = vmatpush1.msra.mxu0 0.0
    %6765 = vmatprep.subr.mxu0 0.0
    %6766 = vmatpush1.msra.mxu0 0.0
    %6767 = vmatprep.subr.mxu0 0.0
    %6768 = vmatpush1.msra.mxu0 0.0
    %6769 = vmatprep.subr.mxu0 0.0
    %6770 = vmatpush1.msra.mxu0 0.0
    %6771 = vmatprep.subr.mxu0 0.0
    %6772 = vmatpush1.msra.mxu0 0.0
    %6773 = vmatprep.subr.mxu0 0.0
    %6774 = vmatpush1.msra.mxu0 0.0
    %6775 = vmatprep.subr.mxu0 0.0
    %6776 = vmatpush1.msra.mxu0 0.0
    %6777 = vmatprep.subr.mxu0 0.0
    %6778 = vmatpush1.msra.mxu0 0.0
    %6779 = vmatprep.subr.mxu0 0.0
    %6780 = vmatpush1.msra.mxu0 0.0
    %6781 = vmatprep.subr.mxu0 0.0
    %6782 = vmatpush1.msra.mxu0 0.0
    %6783 = vmatprep.subr.mxu0 0.0
    %6784 = vmatpush1.msra.mxu0 0.0
    %6785 = vmatprep.subr.mxu0 0.0
    %6786 = vmatpush1.msra.mxu0 0.0
    %6787 = vmatprep.subr.mxu0 0.0
    %6788 = vmatpush1.msra.mxu0 0.0
    %6789 = vmatprep.subr.mxu0 0.0
    %6790 = vmatpush1.msra.mxu0 0.0
    %6791 = vmatprep.subr.mxu0 0.0
    %6792 = vmatpush1.msra.mxu0 0.0
    %6793 = vmatprep.subr.mxu0 0.0
    %6794 = vmatpush1.msra.mxu0 0.0
    %6795 = vmatprep.subr.mxu0 0.0
    %6796 = vmatpush1.msra.mxu0 0.0
    %6797 = vmatprep.subr.mxu0 0.0
    %6798 = vmatpush1.msra.mxu0 0.0
    %6799 = vmatprep.subr.mxu0 0.0
    %6800 = vmatpush1.msra.mxu0 0.0
    %6801 = vmatprep.subr.mxu0 0.0
    %6802 = vmatpush1.msra.mxu0 0.0
    %6803 = vmatprep.subr.mxu0 0.0
    %6804 = vmatpush1.msra.mxu0 0.0
    %6805 = vmatprep.mubr.f32.mxu0 0.0
    %6806 = vmatmul.mubr.f32.gmra.mrb[0].mxu0 %v6739
    %v6807 = vpop.f32.mrb[0].mxu0
    %v6808 = vadd.f32 %v1131, %v6807
    %v6809 = vpop.f32.mrb[0].mxu0
    %6810 = vdwg.mxu0
    %vm6811 = vcmp.gt.f32.partialorder %v6808, 0.0
    %v6812 = vmul.f32 %v6808, 1.442695
    %v6813 = vpow.pop %v6812
    %v6814 = vsub.f32 %v6813, 1.0
    %v6815 = vsel %vm6811, %v6808, %v6814
    %v6817 = vsel %vm1043, %v6815, 0
    %6819 = vmatprep.subr.mxu0 0.0
    %6820 = vmatpush1.msra.mxu0 %v941
    %6821 = vmatprep.subr.mxu0 0.0
    %6822 = vmatpush1.msra.mxu0 %v942
    %6823 = vmatprep.subr.mxu0 0.0
    %6824 = vmatpush1.msra.mxu0 %v1224
    %6825 = vmatprep.subr.mxu0 0.0
    %6826 = vmatpush1.msra.mxu0 0.0
    %6827 = vmatprep.subr.mxu0 0.0
    %6828 = vmatpush1.msra.mxu0 0.0
    %6829 = vmatprep.subr.mxu0 0.0
    %6830 = vmatpush1.msra.mxu0 0.0
    %6831 = vmatprep.subr.mxu0 0.0
    %6832 = vmatpush1.msra.mxu0 0.0
    %6833 = vmatprep.subr.mxu0 0.0
    %6834 = vmatpush1.msra.mxu0 0.0
    %6835 = vmatprep.subr.mxu0 0.0
    %6836 = vmatpush1.msra.mxu0 0.0
    %6837 = vmatprep.subr.mxu0 0.0
    %6838 = vmatpush1.msra.mxu0 0.0
    %6839 = vmatprep.subr.mxu0 0.0
    %6840 = vmatpush1.msra.mxu0 0.0
    %6841 = vmatprep.subr.mxu0 0.0
    %6842 = vmatpush1.msra.mxu0 0.0
    %6843 = vmatprep.subr.mxu0 0.0
    %6844 = vmatpush1.msra.mxu0 0.0
    %6845 = vmatprep.subr.mxu0 0.0
    %6846 = vmatpush1.msra.mxu0 0.0
    %6847 = vmatprep.subr.mxu0 0.0
    %6848 = vmatpush1.msra.mxu0 0.0
    %6849 = vmatprep.subr.mxu0 0.0
    %6850 = vmatpush1.msra.mxu0 0.0
    %6851 = vmatprep.subr.mxu0 0.0
    %6852 = vmatpush1.msra.mxu0 0.0
    %6853 = vmatprep.subr.mxu0 0.0
    %6854 = vmatpush1.msra.mxu0 0.0
    %6855 = vmatprep.subr.mxu0 0.0
    %6856 = vmatpush1.msra.mxu0 0.0
    %6857 = vmatprep.subr.mxu0 0.0
    %6858 = vmatpush1.msra.mxu0 0.0
    %6859 = vmatprep.subr.mxu0 0.0
    %6860 = vmatpush1.msra.mxu0 0.0
    %6861 = vmatprep.subr.mxu0 0.0
    %6862 = vmatpush1.msra.mxu0 0.0
    %6863 = vmatprep.subr.mxu0 0.0
    %6864 = vmatpush1.msra.mxu0 0.0
    %6865 = vmatprep.subr.mxu0 0.0
    %6866 = vmatpush1.msra.mxu0 0.0
    %6867 = vmatprep.subr.mxu0 0.0
    %6868 = vmatpush1.msra.mxu0 0.0
    %6869 = vmatprep.subr.mxu0 0.0
    %6870 = vmatpush1.msra.mxu0 0.0
    %6871 = vmatprep.subr.mxu0 0.0
    %6872 = vmatpush1.msra.mxu0 0.0
    %6873 = vmatprep.subr.mxu0 0.0
    %6874 = vmatpush1.msra.mxu0 0.0
    %6875 = vmatprep.subr.mxu0 0.0
    %6876 = vmatpush1.msra.mxu0 0.0
    %6877 = vmatprep.subr.mxu0 0.0
    %6878 = vmatpush1.msra.mxu0 0.0
    %6879 = vmatprep.subr.mxu0 0.0
    %6880 = vmatpush1.msra.mxu0 0.0
    %6881 = vmatprep.subr.mxu0 0.0
    %6882 = vmatpush1.msra.mxu0 0.0
    %6883 = vmatprep.mubr.f32.mxu0 0.0
    %6884 = vmatmul.mubr.f32.gmra.mrb[0].mxu0 %v6817
    %v6885 = vpop.f32.mrb[0].mxu0
    %v6886 = vadd.f32 %v1218, %v6885
    %v6887 = vpop.f32.mrb[0].mxu0
    %6888 = vdwg.mxu0
    %v6889 = vstv %s6268
    %v6890 = vmul.f32 %v6889, %v6886
    %v6891 = vadd.f32 %v6107, %v6890
    %v6893 = vsel %vm955, %v6891, 0
    %6895 = vmatprep.subr.mxu0 0.0
    %6896 = vmatpush1.msra.mxu0 %v1310
    %6897 = vmatprep.subr.mxu0 0.0
    %6898 = vmatpush1.msra.mxu0 0.0
    %6899 = vmatprep.subr.mxu0 0.0
    %6900 = vmatpush1.msra.mxu0 0.0
    %6901 = vmatprep.subr.mxu0 0.0
    %6902 = vmatpush1.msra.mxu0 0.0
    %6903 = vmatprep.subr.mxu0 0.0
    %6904 = vmatpush1.msra.mxu0 0.0
    %6905 = vmatprep.subr.mxu0 0.0
    %6906 = vmatpush1.msra.mxu0 0.0
    %6907 = vmatprep.subr.mxu0 0.0
    %6908 = vmatpush1.msra.mxu0 0.0
    %6909 = vmatprep.subr.mxu0 0.0
    %6910 = vmatpush1.msra.mxu0 0.0
    %6911 = vmatprep.subr.mxu0 0.0
    %6912 = vmatpush1.msra.mxu0 0.0
    %6913 = vmatprep.subr.mxu0 0.0
    %6914 = vmatpush1.msra.mxu0 0.0
    %6915 = vmatprep.subr.mxu0 0.0
    %6916 = vmatpush1.msra.mxu0 0.0
    %6917 = vmatprep.subr.mxu0 0.0
    %6918 = vmatpush1.msra.mxu0 0.0
    %6919 = vmatprep.subr.mxu0 0.0
    %6920 = vmatpush1.msra.mxu0 0.0
    %6921 = vmatprep.subr.mxu0 0.0
    %6922 = vmatpush1.msra.mxu0 0.0
    %6923 = vmatprep.subr.mxu0 0.0
    %6924 = vmatpush1.msra.mxu0 0.0
    %6925 = vmatprep.subr.mxu0 0.0
    %6926 = vmatpush1.msra.mxu0 0.0
    %6927 = vmatprep.subr.mxu0 0.0
    %6928 = vmatpush1.msra.mxu0 0.0
    %6929 = vmatprep.subr.mxu0 0.0
    %6930 = vmatpush1.msra.mxu0 0.0
    %6931 = vmatprep.subr.mxu0 0.0
    %6932 = vmatpush1.msra.mxu0 0.0
    %6933 = vmatprep.subr.mxu0 0.0
    %6934 = vmatpush1.msra.mxu0 0.0
    %6935 = vmatprep.subr.mxu0 0.0
    %6936 = vmatpush1.msra.mxu0 0.0
    %6937 = vmatprep.subr.mxu0 0.0
    %6938 = vmatpush1.msra.mxu0 0.0
    %6939 = vmatprep.subr.mxu0 0.0
    %6940 = vmatpush1.msra.mxu0 0.0
    %6941 = vmatprep.subr.mxu0 0.0
    %6942 = vmatpush1.msra.mxu0 0.0
    %6943 = vmatprep.subr.mxu0 0.0
    %6944 = vmatpush1.msra.mxu0 0.0
    %6945 = vmatprep.subr.mxu0 0.0
    %6946 = vmatpush1.msra.mxu0 0.0
    %6947 = vmatprep.subr.mxu0 0.0
    %6948 = vmatpush1.msra.mxu0 0.0
    %6949 = vmatprep.subr.mxu0 0.0
    %6950 = vmatpush1.msra.mxu0 0.0
    %6951 = vmatprep.subr.mxu0 0.0
    %6952 = vmatpush1.msra.mxu0 0.0
    %6953 = vmatprep.subr.mxu0 0.0
    %6954 = vmatpush1.msra.mxu0 0.0
    %6955 = vmatprep.subr.mxu0 0.0
    %6956 = vmatpush1.msra.mxu0 0.0
    %6957 = vmatprep.subr.mxu0 0.0
    %6958 = vmatpush1.msra.mxu0 0.0
    %6959 = vmatprep.mubr.f32.mxu0 0.0
    %6960 = vmatmul.mubr.f32.gmra.mrb[0].mxu0 %v6893
    %v6961 = vpop.f32.mrb[0].mxu0
    %v6962 = vadd.f32 %v1304, %v6961
    %v6963 = vpop.f32.mrb[0].mxu0
    %6964 = vdwg.mxu0
    %vm6965 = vcmp.gt.f32.partialorder %v6962, 0.0
    %v6966 = vmul.f32 %v6962, 1.442695
    %v6967 = vpow.pop %v6966
    %v6968 = vsub.f32 %v6967, 1.0
    %v6969 = vsel %vm6965, %v6962, %v6968
    %v6971 = vsel %vm1043, %v6969, 0
    %6973 = vmatprep.subr.mxu0 0.0
    %6974 = vmatpush1.msra.mxu0 %v937
    %6975 = vmatprep.subr.mxu0 0.0
    %6976 = vmatpush1.msra.mxu0 %v938
    %6977 = vmatprep.subr.mxu0 0.0
    %6978 = vmatpush1.msra.mxu0 %v1137
    %6979 = vmatprep.subr.mxu0 0.0
    %6980 = vmatpush1.msra.mxu0 0.0
    %6981 = vmatprep.subr.mxu0 0.0
    %6982 = vmatpush1.msra.mxu0 0.0
    %6983 = vmatprep.subr.mxu0 0.0
    %6984 = vmatpush1.msra.mxu0 0.0
    %6985 = vmatprep.subr.mxu0 0.0
    %6986 = vmatpush1.msra.mxu0 0.0
    %6987 = vmatprep.subr.mxu0 0.0
    %6988 = vmatpush1.msra.mxu0 0.0
    %6989 = vmatprep.subr.mxu0 0.0
    %6990 = vmatpush1.msra.mxu0 0.0
    %6991 = vmatprep.subr.mxu0 0.0
    %6992 = vmatpush1.msra.mxu0 0.0
    %6993 = vmatprep.subr.mxu0 0.0
    %6994 = vmatpush1.msra.mxu0 0.0
    %6995 = vmatprep.subr.mxu0 0.0
    %6996 = vmatpush1.msra.mxu0 0.0
    %6997 = vmatprep.subr.mxu0 0.0
    %6998 = vmatpush1.msra.mxu0 0.0
    %6999 = vmatprep.subr.mxu0 0.0
    %7000 = vmatpush1.msra.mxu0 0.0
    %7001 = vmatprep.subr.mxu0 0.0
    %7002 = vmatpush1.msra.mxu0 0.0
    %7003 = vmatprep.subr.mxu0 0.0
    %7004 = vmatpush1.msra.mxu0 0.0
    %7005 = vmatprep.subr.mxu0 0.0
    %7006 = vmatpush1.msra.mxu0 0.0
    %7007 = vmatprep.subr.mxu0 0.0
    %7008 = vmatpush1.msra.mxu0 0.0
    %7009 = vmatprep.subr.mxu0 0.0
    %7010 = vmatpush1.msra.mxu0 0.0
    %7011 = vmatprep.subr.mxu0 0.0
    %7012 = vmatpush1.msra.mxu0 0.0
    %7013 = vmatprep.subr.mxu0 0.0
    %7014 = vmatpush1.msra.mxu0 0.0
    %7015 = vmatprep.subr.mxu0 0.0
    %7016 = vmatpush1.msra.mxu0 0.0
    %7017 = vmatprep.subr.mxu0 0.0
    %7018 = vmatpush1.msra.mxu0 0.0
    %7019 = vmatprep.subr.mxu0 0.0
    %7020 = vmatpush1.msra.mxu0 0.0
    %7021 = vmatprep.subr.mxu0 0.0
    %7022 = vmatpush1.msra.mxu0 0.0
    %7023 = vmatprep.subr.mxu0 0.0
    %7024 = vmatpush1.msra.mxu0 0.0
    %7025 = vmatprep.subr.mxu0 0.0
    %7026 = vmatpush1.msra.mxu0 0.0
    %7027 = vmatprep.subr.mxu0 0.0
    %7028 = vmatpush1.msra.mxu0 0.0
    %7029 = vmatprep.subr.mxu0 0.0
    %7030 = vmatpush1.msra.mxu0 0.0
    %7031 = vmatprep.subr.mxu0 0.0
    %7032 = vmatpush1.msra.mxu0 0.0
    %7033 = vmatprep.subr.mxu0 0.0
    %7034 = vmatpush1.msra.mxu0 0.0
    %7035 = vmatprep.subr.mxu0 0.0
    %7036 = vmatpush1.msra.mxu0 0.0
    %7037 = vmatprep.mubr.f32.mxu0 0.0
    %7038 = vmatmul.mubr.f32.gmra.mrb[0].mxu0 %v6971
    %v7039 = vpop.f32.mrb[0].mxu0
    %v7040 = vadd.f32 %v1131, %v7039
    %v7041 = vpop.f32.mrb[0].mxu0
    %7042 = vdwg.mxu0
    %vm7043 = vcmp.gt.f32.partialorder %v7040, 0.0
    %v7044 = vmul.f32 %v7040, 1.442695
    %v7045 = vpow.pop %v7044
    %v7046 = vsub.f32 %v7045, 1.0
    %v7047 = vsel %vm7043, %v7040, %v7046
    %v7049 = vsel %vm1043, %v7047, 0
    %7051 = vmatprep.subr.mxu0 0.0
    %7052 = vmatpush1.msra.mxu0 %v941
    %7053 = vmatprep.subr.mxu0 0.0
    %7054 = vmatpush1.msra.mxu0 %v942
    %7055 = vmatprep.subr.mxu0 0.0
    %7056 = vmatpush1.msra.mxu0 %v1224
    %7057 = vmatprep.subr.mxu0 0.0
    %7058 = vmatpush1.msra.mxu0 0.0
    %7059 = vmatprep.subr.mxu0 0.0
    %7060 = vmatpush1.msra.mxu0 0.0
    %7061 = vmatprep.subr.mxu0 0.0
    %7062 = vmatpush1.msra.mxu0 0.0
    %7063 = vmatprep.subr.mxu0 0.0
    %7064 = vmatpush1.msra.mxu0 0.0
    %7065 = vmatprep.subr.mxu0 0.0
    %7066 = vmatpush1.msra.mxu0 0.0
    %7067 = vmatprep.subr.mxu0 0.0
    %7068 = vmatpush1.msra.mxu0 0.0
    %7069 = vmatprep.subr.mxu0 0.0
    %7070 = vmatpush1.msra.mxu0 0.0
    %7071 = vmatprep.subr.mxu0 0.0
    %7072 = vmatpush1.msra.mxu0 0.0
    %7073 = vmatprep.subr.mxu0 0.0
    %7074 = vmatpush1.msra.mxu0 0.0
    %7075 = vmatprep.subr.mxu0 0.0
    %7076 = vmatpush1.msra.mxu0 0.0
    %7077 = vmatprep.subr.mxu0 0.0
    %7078 = vmatpush1.msra.mxu0 0.0
    %7079 = vmatprep.subr.mxu0 0.0
    %7080 = vmatpush1.msra.mxu0 0.0
    %7081 = vmatprep.subr.mxu0 0.0
    %7082 = vmatpush1.msra.mxu0 0.0
    %7083 = vmatprep.subr.mxu0 0.0
    %7084 = vmatpush1.msra.mxu0 0.0
    %7085 = vmatprep.subr.mxu0 0.0
    %7086 = vmatpush1.msra.mxu0 0.0
    %7087 = vmatprep.subr.mxu0 0.0
    %7088 = vmatpush1.msra.mxu0 0.0
    %7089 = vmatprep.subr.mxu0 0.0
    %7090 = vmatpush1.msra.mxu0 0.0
    %7091 = vmatprep.subr.mxu0 0.0
    %7092 = vmatpush1.msra.mxu0 0.0
    %7093 = vmatprep.subr.mxu0 0.0
    %7094 = vmatpush1.msra.mxu0 0.0
    %7095 = vmatprep.subr.mxu0 0.0
    %7096 = vmatpush1.msra.mxu0 0.0
    %7097 = vmatprep.subr.mxu0 0.0
    %7098 = vmatpush1.msra.mxu0 0.0
    %7099 = vmatprep.subr.mxu0 0.0
    %7100 = vmatpush1.msra.mxu0 0.0
    %7101 = vmatprep.subr.mxu0 0.0
    %7102 = vmatpush1.msra.mxu0 0.0
    %7103 = vmatprep.subr.mxu0 0.0
    %7104 = vmatpush1.msra.mxu0 0.0
    %7105 = vmatprep.subr.mxu0 0.0
    %7106 = vmatpush1.msra.mxu0 0.0
    %7107 = vmatprep.subr.mxu0 0.0
    %7108 = vmatpush1.msra.mxu0 0.0
    %7109 = vmatprep.subr.mxu0 0.0
    %7110 = vmatpush1.msra.mxu0 0.0
    %7111 = vmatprep.subr.mxu0 0.0
    %7112 = vmatpush1.msra.mxu0 0.0
    %7113 = vmatprep.subr.mxu0 0.0
    %7114 = vmatpush1.msra.mxu0 0.0
    %7115 = vmatprep.mubr.f32.mxu0 0.0
    %7116 = vmatmul.mubr.f32.gmra.mrb[0].mxu0 %v7049
    %v7117 = vpop.f32.mrb[0].mxu0
    %v7118 = vadd.f32 %v1218, %v7117
    %v7119 = vpop.f32.mrb[0].mxu0
    %7120 = vdwg.mxu0
    %v7121 = vrcp.pop 6.0
    %s7122 = vtos %v7121
    %s7123 = smul.f32 %s6268, %s7122
    %v7124 = vmul.f32 %v6655, 2.0
    %v7125 = vadd.f32 %v6422, %v7124
    %v7126 = vmul.f32 %v6886, 2.0
    %v7127 = vadd.f32 %v7125, %v7126
    %v7128 = vadd.f32 %v7127, %v7118
    %v7129 = vstv %s7123
    %v7130 = vmul.f32 %v7129, %v7128
    %v7131 = vadd.f32 %v6107, %v7130
    %v7133 = vsel %vm955, %v7131, 0
    %7135 = vmatprep.subr.mxu0 0.0
    %7136 = vmatpush1.msra.mxu0 %v961
    %7137 = vmatprep.subr.mxu0 0.0
    %7138 = vmatpush1.msra.mxu0 0.0
    %7139 = vmatprep.subr.mxu0 0.0
    %7140 = vmatpush1.msra.mxu0 0.0
    %7141 = vmatprep.subr.mxu0 0.0
    %7142 = vmatpush1.msra.mxu0 0.0
    %7143 = vmatprep.subr.mxu0 0.0
    %7144 = vmatpush1.msra.mxu0 0.0
    %7145 = vmatprep.subr.mxu0 0.0
    %7146 = vmatpush1.msra.mxu0 0.0
    %7147 = vmatprep.subr.mxu0 0.0
    %7148 = vmatpush1.msra.mxu0 0.0
    %7149 = vmatprep.subr.mxu0 0.0
    %7150 = vmatpush1.msra.mxu0 0.0
    %7151 = vmatprep.subr.mxu0 0.0
    %7152 = vmatpush1.msra.mxu0 0.0
    %7153 = vmatprep.subr.mxu0 0.0
    %7154 = vmatpush1.msra.mxu0 0.0
    %7155 = vmatprep.subr.mxu0 0.0
    %7156 = vmatpush1.msra.mxu0 0.0
    %7157 = vmatprep.subr.mxu0 0.0
    %7158 = vmatpush1.msra.mxu0 0.0
    %7159 = vmatprep.subr.mxu0 0.0
    %7160 = vmatpush1.msra.mxu0 0.0
    %7161 = vmatprep.subr.mxu0 0.0
    %7162 = vmatpush1.msra.mxu0 0.0
    %7163 = vmatprep.subr.mxu0 0.0
    %7164 = vmatpush1.msra.mxu0 0.0
    %7165 = vmatprep.subr.mxu0 0.0
    %7166 = vmatpush1.msra.mxu0 0.0
    %7167 = vmatprep.subr.mxu0 0.0
    %7168 = vmatpush1.msra.mxu0 0.0
    %7169 = vmatprep.subr.mxu0 0.0
    %7170 = vmatpush1.msra.mxu0 0.0
    %7171 = vmatprep.subr.mxu0 0.0
    %7172 = vmatpush1.msra.mxu0 0.0
    %7173 = vmatprep.subr.mxu0 0.0
    %7174 = vmatpush1.msra.mxu0 0.0
    %7175 = vmatprep.subr.mxu0 0.0
    %7176 = vmatpush1.msra.mxu0 0.0
    %7177 = vmatprep.subr.mxu0 0.0
    %7178 = vmatpush1.msra.mxu0 0.0
    %7179 = vmatprep.subr.mxu0 0.0
    %7180 = vmatpush1.msra.mxu0 0.0
    %7181 = vmatprep.subr.mxu0 0.0
    %7182 = vmatpush1.msra.mxu0 0.0
    %7183 = vmatprep.subr.mxu0 0.0
    %7184 = vmatpush1.msra.mxu0 0.0
    %7185 = vmatprep.subr.mxu0 0.0
    %7186 = vmatpush1.msra.mxu0 0.0
    %7187 = vmatprep.subr.mxu0 0.0
    %7188 = vmatpush1.msra.mxu0 0.0
    %7189 = vmatprep.subr.mxu0 0.0
    %7190 = vmatpush1.msra.mxu0 0.0
    %7191 = vmatprep.subr.mxu0 0.0
    %7192 = vmatpush1.msra.mxu0 0.0
    %7193 = vmatprep.subr.mxu0 0.0
    %7194 = vmatpush1.msra.mxu0 0.0
    %7195 = vmatprep.subr.mxu0 0.0
    %7196 = vmatpush1.msra.mxu0 0.0
    %7197 = vmatprep.subr.mxu0 0.0
    %7198 = vmatpush1.msra.mxu0 0.0
    %7199 = vmatprep.mubr.f32.mxu0 0.0
    %7200 = vmatmul.mubr.f32.gmra.mrb[0].mxu0 %v7133
    %v7201 = vpop.f32.mrb[0].mxu0
    %v7202 = vadd.f32 %v953, %v7201
    %v7203 = vpop.f32.mrb[0].mxu0
    %7204 = vdwg.mxu0
    %v7205 = vmax.f32 %v7202, 0.0
    %7207 = vrot.lane.b32.xlu0 %v7205, 108
    %v7208 = vpop.permute.xlu0 %7207
    %v7209 = vsel %vm1043, %v7208, 0
    %7211 = vmatprep.subr.mxu0 0.0
    %7212 = vmatpush1.msra.mxu0 %v945
    %7213 = vmatprep.subr.mxu0 0.0
    %7214 = vmatpush1.msra.mxu0 %v946
    %7215 = vmatprep.subr.mxu0 0.0
    %7216 = vmatpush1.msra.mxu0 %v1047
    %7217 = vmatprep.subr.mxu0 0.0
    %7218 = vmatpush1.msra.mxu0 0.0
    %7219 = vmatprep.subr.mxu0 0.0
    %7220 = vmatpush1.msra.mxu0 0.0
    %7221 = vmatprep.subr.mxu0 0.0
    %7222 = vmatpush1.msra.mxu0 0.0
    %7223 = vmatprep.subr.mxu0 0.0
    %7224 = vmatpush1.msra.mxu0 0.0
    %7225 = vmatprep.subr.mxu0 0.0
    %7226 = vmatpush1.msra.mxu0 0.0
    %7227 = vmatprep.subr.mxu0 0.0
    %7228 = vmatpush1.msra.mxu0 0.0
    %7229 = vmatprep.subr.mxu0 0.0
    %7230 = vmatpush1.msra.mxu0 0.0
    %7231 = vmatprep.subr.mxu0 0.0
    %7232 = vmatpush1.msra.mxu0 0.0
    %7233 = vmatprep.subr.mxu0 0.0
    %7234 = vmatpush1.msra.mxu0 0.0
    %7235 = vmatprep.subr.mxu0 0.0
    %7236 = vmatpush1.msra.mxu0 0.0
    %7237 = vmatprep.subr.mxu0 0.0
    %7238 = vmatpush1.msra.mxu0 0.0
    %7239 = vmatprep.subr.mxu0 0.0
    %7240 = vmatpush1.msra.mxu0 0.0
    %7241 = vmatprep.subr.mxu0 0.0
    %7242 = vmatpush1.msra.mxu0 0.0
    %7243 = vmatprep.subr.mxu0 0.0
    %7244 = vmatpush1.msra.mxu0 0.0
    %7245 = vmatprep.subr.mxu0 0.0
    %7246 = vmatpush1.msra.mxu0 0.0
    %7247 = vmatprep.subr.mxu0 0.0
    %7248 = vmatpush1.msra.mxu0 0.0
    %7249 = vmatprep.subr.mxu0 0.0
    %7250 = vmatpush1.msra.mxu0 0.0
    %7251 = vmatprep.subr.mxu0 0.0
    %7252 = vmatpush1.msra.mxu0 0.0
    %7253 = vmatprep.subr.mxu0 0.0
    %7254 = vmatpush1.msra.mxu0 0.0
    %7255 = vmatprep.subr.mxu0 0.0
    %7256 = vmatpush1.msra.mxu0 0.0
    %7257 = vmatprep.subr.mxu0 0.0
    %7258 = vmatpush1.msra.mxu0 0.0
    %7259 = vmatprep.subr.mxu0 0.0
    %7260 = vmatpush1.msra.mxu0 0.0
    %7261 = vmatprep.subr.mxu0 0.0
    %7262 = vmatpush1.msra.mxu0 0.0
    %7263 = vmatprep.subr.mxu0 0.0
    %7264 = vmatpush1.msra.mxu0 0.0
    %7265 = vmatprep.subr.mxu0 0.0
    %7266 = vmatpush1.msra.mxu0 0.0
    %7267 = vmatprep.subr.mxu0 0.0
    %7268 = vmatpush1.msra.mxu0 0.0
    %7269 = vmatprep.subr.mxu0 0.0
    %7270 = vmatpush1.msra.mxu0 0.0
    %7271 = vmatprep.subr.mxu0 0.0
    %7272 = vmatpush1.msra.mxu0 0.0
    %7273 = vmatprep.subr.mxu0 0.0
    %7274 = vmatpush1.msra.mxu0 0.0
    %7275 = vmatprep.mubr.f32.mxu0 0.0
    %7276 = vmatmul.mubr.f32.gmra.mrb[0].mxu0 %v7209
    %v7277 = vpop.f32.mrb[0].mxu0
    %v7278 = vadd.f32 %v1038, %v7277
    %v7279 = vpop.f32.mrb[0].mxu0
    %7280 = vdwg.mxu0
    %7281 = vrot.lane.b32.xlu0 %v7131, 24
    %v7282 = vpop.permute.xlu0 %7281
    %vm7284 = vcmask 228544
    %7285 = vst.msk [vmem:[%s19] sm:$0xff] %vm7284, %v7282
    %7287 = vrot.lane.b32.xlu0 %v7278, 12
    %v7288 = vpop.permute.xlu0 %7287
    %vm7290 = vcmask 113760
    %7291 = vst.msk [vmem:[%s20] sm:$0xff] %vm7290, %v7288
    %s7292 = sld [smem:[#allocation2 + $0x6]]
    %vm7293 = vcmp.gt.f32.partialorder %v7202, 0.0
    %v7294 = vmul.f32 %v7202, 1.442695
    %v7295 = vpow.pop %v7294
    %v7296 = vsub.f32 %v7295, 1.0
    %v7297 = vsel %vm7293, %v7202, %v7296
    %v7299 = vsel %vm1043, %v7297, 0
    %7301 = vmatprep.subr.mxu0 0.0
    %7302 = vmatpush1.msra.mxu0 %v937
    %7303 = vmatprep.subr.mxu0 0.0
    %7304 = vmatpush1.msra.mxu0 %v938
    %7305 = vmatprep.subr.mxu0 0.0
    %7306 = vmatpush1.msra.mxu0 %v1137
    %7307 = vmatprep.subr.mxu0 0.0
    %7308 = vmatpush1.msra.mxu0 0.0
    %7309 = vmatprep.subr.mxu0 0.0
    %7310 = vmatpush1.msra.mxu0 0.0
    %7311 = vmatprep.subr.mxu0 0.0
    %7312 = vmatpush1.msra.mxu0 0.0
    %7313 = vmatprep.subr.mxu0 0.0
    %7314 = vmatpush1.msra.mxu0 0.0
    %7315 = vmatprep.subr.mxu0 0.0
    %7316 = vmatpush1.msra.mxu0 0.0
    %7317 = vmatprep.subr.mxu0 0.0
    %7318 = vmatpush1.msra.mxu0 0.0
    %7319 = vmatprep.subr.mxu0 0.0
    %7320 = vmatpush1.msra.mxu0 0.0
    %7321 = vmatprep.subr.mxu0 0.0
    %7322 = vmatpush1.msra.mxu0 0.0
    %7323 = vmatprep.subr.mxu0 0.0
    %7324 = vmatpush1.msra.mxu0 0.0
    %7325 = vmatprep.subr.mxu0 0.0
    %7326 = vmatpush1.msra.mxu0 0.0
    %7327 = vmatprep.subr.mxu0 0.0
    %7328 = vmatpush1.msra.mxu0 0.0
    %7329 = vmatprep.subr.mxu0 0.0
    %7330 = vmatpush1.msra.mxu0 0.0
    %7331 = vmatprep.subr.mxu0 0.0
    %7332 = vmatpush1.msra.mxu0 0.0
    %7333 = vmatprep.subr.mxu0 0.0
    %7334 = vmatpush1.msra.mxu0 0.0
    %7335 = vmatprep.subr.mxu0 0.0
    %7336 = vmatpush1.msra.mxu0 0.0
    %7337 = vmatprep.subr.mxu0 0.0
    %7338 = vmatpush1.msra.mxu0 0.0
    %7339 = vmatprep.subr.mxu0 0.0
    %7340 = vmatpush1.msra.mxu0 0.0
    %7341 = vmatprep.subr.mxu0 0.0
    %7342 = vmatpush1.msra.mxu0 0.0
    %7343 = vmatprep.subr.mxu0 0.0
    %7344 = vmatpush1.msra.mxu0 0.0
    %7345 = vmatprep.subr.mxu0 0.0
    %7346 = vmatpush1.msra.mxu0 0.0
    %7347 = vmatprep.subr.mxu0 0.0
    %7348 = vmatpush1.msra.mxu0 0.0
    %7349 = vmatprep.subr.mxu0 0.0
    %7350 = vmatpush1.msra.mxu0 0.0
    %7351 = vmatprep.subr.mxu0 0.0
    %7352 = vmatpush1.msra.mxu0 0.0
    %7353 = vmatprep.subr.mxu0 0.0
    %7354 = vmatpush1.msra.mxu0 0.0
    %7355 = vmatprep.subr.mxu0 0.0
    %7356 = vmatpush1.msra.mxu0 0.0
    %7357 = vmatprep.subr.mxu0 0.0
    %7358 = vmatpush1.msra.mxu0 0.0
    %7359 = vmatprep.subr.mxu0 0.0
    %7360 = vmatpush1.msra.mxu0 0.0
    %7361 = vmatprep.subr.mxu0 0.0
    %7362 = vmatpush1.msra.mxu0 0.0
    %7363 = vmatprep.subr.mxu0 0.0
    %7364 = vmatpush1.msra.mxu0 0.0
    %7365 = vmatprep.mubr.f32.mxu0 0.0
    %7366 = vmatmul.mubr.f32.gmra.mrb[0].mxu0 %v7299
    %v7367 = vpop.f32.mrb[0].mxu0
    %v7368 = vadd.f32 %v1131, %v7367
    %v7369 = vpop.f32.mrb[0].mxu0
    %7370 = vdwg.mxu0
    %vm7371 = vcmp.gt.f32.partialorder %v7368, 0.0
    %v7372 = vmul.f32 %v7368, 1.442695
    %v7373 = vpow.pop %v7372
    %v7374 = vsub.f32 %v7373, 1.0
    %v7375 = vsel %vm7371, %v7368, %v7374
    %v7377 = vsel %vm1043, %v7375, 0
    %7379 = vmatprep.subr.mxu0 0.0
    %7380 = vmatpush1.msra.mxu0 %v941
    %7381 = vmatprep.subr.mxu0 0.0
    %7382 = vmatpush1.msra.mxu0 %v942
    %7383 = vmatprep.subr.mxu0 0.0
    %7384 = vmatpush1.msra.mxu0 %v1224
    %7385 = vmatprep.subr.mxu0 0.0
    %7386 = vmatpush1.msra.mxu0 0.0
    %7387 = vmatprep.subr.mxu0 0.0
    %7388 = vmatpush1.msra.mxu0 0.0
    %7389 = vmatprep.subr.mxu0 0.0
    %7390 = vmatpush1.msra.mxu0 0.0
    %7391 = vmatprep.subr.mxu0 0.0
    %7392 = vmatpush1.msra.mxu0 0.0
    %7393 = vmatprep.subr.mxu0 0.0
    %7394 = vmatpush1.msra.mxu0 0.0
    %7395 = vmatprep.subr.mxu0 0.0
    %7396 = vmatpush1.msra.mxu0 0.0
    %7397 = vmatprep.subr.mxu0 0.0
    %7398 = vmatpush1.msra.mxu0 0.0
    %7399 = vmatprep.subr.mxu0 0.0
    %7400 = vmatpush1.msra.mxu0 0.0
    %7401 = vmatprep.subr.mxu0 0.0
    %7402 = vmatpush1.msra.mxu0 0.0
    %7403 = vmatprep.subr.mxu0 0.0
    %7404 = vmatpush1.msra.mxu0 0.0
    %7405 = vmatprep.subr.mxu0 0.0
    %7406 = vmatpush1.msra.mxu0 0.0
    %7407 = vmatprep.subr.mxu0 0.0
    %7408 = vmatpush1.msra.mxu0 0.0
    %7409 = vmatprep.subr.mxu0 0.0
    %7410 = vmatpush1.msra.mxu0 0.0
    %7411 = vmatprep.subr.mxu0 0.0
    %7412 = vmatpush1.msra.mxu0 0.0
    %7413 = vmatprep.subr.mxu0 0.0
    %7414 = vmatpush1.msra.mxu0 0.0
    %7415 = vmatprep.subr.mxu0 0.0
    %7416 = vmatpush1.msra.mxu0 0.0
    %7417 = vmatprep.subr.mxu0 0.0
    %7418 = vmatpush1.msra.mxu0 0.0
    %7419 = vmatprep.subr.mxu0 0.0
    %7420 = vmatpush1.msra.mxu0 0.0
    %7421 = vmatprep.subr.mxu0 0.0
    %7422 = vmatpush1.msra.mxu0 0.0
    %7423 = vmatprep.subr.mxu0 0.0
    %7424 = vmatpush1.msra.mxu0 0.0
    %7425 = vmatprep.subr.mxu0 0.0
    %7426 = vmatpush1.msra.mxu0 0.0
    %7427 = vmatprep.subr.mxu0 0.0
    %7428 = vmatpush1.msra.mxu0 0.0
    %7429 = vmatprep.subr.mxu0 0.0
    %7430 = vmatpush1.msra.mxu0 0.0
    %7431 = vmatprep.subr.mxu0 0.0
    %7432 = vmatpush1.msra.mxu0 0.0
    %7433 = vmatprep.subr.mxu0 0.0
    %7434 = vmatpush1.msra.mxu0 0.0
    %7435 = vmatprep.subr.mxu0 0.0
    %7436 = vmatpush1.msra.mxu0 0.0
    %7437 = vmatprep.subr.mxu0 0.0
    %7438 = vmatpush1.msra.mxu0 0.0
    %7439 = vmatprep.subr.mxu0 0.0
    %7440 = vmatpush1.msra.mxu0 0.0
    %7441 = vmatprep.subr.mxu0 0.0
    %7442 = vmatpush1.msra.mxu0 0.0
    %7443 = vmatprep.mubr.f32.mxu0 0.0
    %7444 = vmatmul.mubr.f32.gmra.mrb[0].mxu0 %v7377
    %v7445 = vpop.f32.mrb[0].mxu0
    %v7446 = vadd.f32 %v1218, %v7445
    %v7447 = vpop.f32.mrb[0].mxu0
    %7448 = vdwg.mxu0
    %s7449 = smul.f32 %s7292, 0.5
    %v7450 = vstv %s7449
    %v7451 = vmul.f32 %v7450, %v7446
    %v7452 = vadd.f32 %v7131, %v7451
    %v7454 = vsel %vm955, %v7452, 0
    %7456 = vmatprep.subr.mxu0 0.0
    %7457 = vmatpush1.msra.mxu0 %v1310
    %7458 = vmatprep.subr.mxu0 0.0
    %7459 = vmatpush1.msra.mxu0 0.0
    %7460 = vmatprep.subr.mxu0 0.0
    %7461 = vmatpush1.msra.mxu0 0.0
    %7462 = vmatprep.subr.mxu0 0.0
    %7463 = vmatpush1.msra.mxu0 0.0
    %7464 = vmatprep.subr.mxu0 0.0
    %7465 = vmatpush1.msra.mxu0 0.0
    %7466 = vmatprep.subr.mxu0 0.0
    %7467 = vmatpush1.msra.mxu0 0.0
    %7468 = vmatprep.subr.mxu0 0.0
    %7469 = vmatpush1.msra.mxu0 0.0
    %7470 = vmatprep.subr.mxu0 0.0
    %7471 = vmatpush1.msra.mxu0 0.0
    %7472 = vmatprep.subr.mxu0 0.0
    %7473 = vmatpush1.msra.mxu0 0.0
    %7474 = vmatprep.subr.mxu0 0.0
    %7475 = vmatpush1.msra.mxu0 0.0
    %7476 = vmatprep.subr.mxu0 0.0
    %7477 = vmatpush1.msra.mxu0 0.0
    %7478 = vmatprep.subr.mxu0 0.0
    %7479 = vmatpush1.msra.mxu0 0.0
    %7480 = vmatprep.subr.mxu0 0.0
    %7481 = vmatpush1.msra.mxu0 0.0
    %7482 = vmatprep.subr.mxu0 0.0
    %7483 = vmatpush1.msra.mxu0 0.0
    %7484 = vmatprep.subr.mxu0 0.0
    %7485 = vmatpush1.msra.mxu0 0.0
    %7486 = vmatprep.subr.mxu0 0.0
    %7487 = vmatpush1.msra.mxu0 0.0
    %7488 = vmatprep.subr.mxu0 0.0
    %7489 = vmatpush1.msra.mxu0 0.0
    %7490 = vmatprep.subr.mxu0 0.0
    %7491 = vmatpush1.msra.mxu0 0.0
    %7492 = vmatprep.subr.mxu0 0.0
    %7493 = vmatpush1.msra.mxu0 0.0
    %7494 = vmatprep.subr.mxu0 0.0
    %7495 = vmatpush1.msra.mxu0 0.0
    %7496 = vmatprep.subr.mxu0 0.0
    %7497 = vmatpush1.msra.mxu0 0.0
    %7498 = vmatprep.subr.mxu0 0.0
    %7499 = vmatpush1.msra.mxu0 0.0
    %7500 = vmatprep.subr.mxu0 0.0
    %7501 = vmatpush1.msra.mxu0 0.0
    %7502 = vmatprep.subr.mxu0 0.0
    %7503 = vmatpush1.msra.mxu0 0.0
    %7504 = vmatprep.subr.mxu0 0.0
    %7505 = vmatpush1.msra.mxu0 0.0
    %7506 = vmatprep.subr.mxu0 0.0
    %7507 = vmatpush1.msra.mxu0 0.0
    %7508 = vmatprep.subr.mxu0 0.0
    %7509 = vmatpush1.msra.mxu0 0.0
    %7510 = vmatprep.subr.mxu0 0.0
    %7511 = vmatpush1.msra.mxu0 0.0
    %7512 = vmatprep.subr.mxu0 0.0
    %7513 = vmatpush1.msra.mxu0 0.0
    %7514 = vmatprep.subr.mxu0 0.0
    %7515 = vmatpush1.msra.mxu0 0.0
    %7516 = vmatprep.subr.mxu0 0.0
    %7517 = vmatpush1.msra.mxu0 0.0
    %7518 = vmatprep.subr.mxu0 0.0
    %7519 = vmatpush1.msra.mxu0 0.0
    %7520 = vmatprep.mubr.f32.mxu0 0.0
    %7521 = vmatmul.mubr.f32.gmra.mrb[0].mxu0 %v7454
    %v7522 = vpop.f32.mrb[0].mxu0
    %v7523 = vadd.f32 %v1304, %v7522
    %v7524 = vpop.f32.mrb[0].mxu0
    %7525 = vdwg.mxu0
    %vm7526 = vcmp.gt.f32.partialorder %v7523, 0.0
    %v7527 = vmul.f32 %v7523, 1.442695
    %v7528 = vpow.pop %v7527
    %v7529 = vsub.f32 %v7528, 1.0
    %v7530 = vsel %vm7526, %v7523, %v7529
    %v7532 = vsel %vm1043, %v7530, 0
    %7534 = vmatprep.subr.mxu0 0.0
    %7535 = vmatpush1.msra.mxu0 %v937
    %7536 = vmatprep.subr.mxu0 0.0
    %7537 = vmatpush1.msra.mxu0 %v938
    %7538 = vmatprep.subr.mxu0 0.0
    %7539 = vmatpush1.msra.mxu0 %v1137
    %7540 = vmatprep.subr.mxu0 0.0
    %7541 = vmatpush1.msra.mxu0 0.0
    %7542 = vmatprep.subr.mxu0 0.0
    %7543 = vmatpush1.msra.mxu0 0.0
    %7544 = vmatprep.subr.mxu0 0.0
    %7545 = vmatpush1.msra.mxu0 0.0
    %7546 = vmatprep.subr.mxu0 0.0
    %7547 = vmatpush1.msra.mxu0 0.0
    %7548 = vmatprep.subr.mxu0 0.0
    %7549 = vmatpush1.msra.mxu0 0.0
    %7550 = vmatprep.subr.mxu0 0.0
    %7551 = vmatpush1.msra.mxu0 0.0
    %7552 = vmatprep.subr.mxu0 0.0
    %7553 = vmatpush1.msra.mxu0 0.0
    %7554 = vmatprep.subr.mxu0 0.0
    %7555 = vmatpush1.msra.mxu0 0.0
    %7556 = vmatprep.subr.mxu0 0.0
    %7557 = vmatpush1.msra.mxu0 0.0
    %7558 = vmatprep.subr.mxu0 0.0
    %7559 = vmatpush1.msra.mxu0 0.0
    %7560 = vmatprep.subr.mxu0 0.0
    %7561 = vmatpush1.msra.mxu0 0.0
    %7562 = vmatprep.subr.mxu0 0.0
    %7563 = vmatpush1.msra.mxu0 0.0
    %7564 = vmatprep.subr.mxu0 0.0
    %7565 = vmatpush1.msra.mxu0 0.0
    %7566 = vmatprep.subr.mxu0 0.0
    %7567 = vmatpush1.msra.mxu0 0.0
    %7568 = vmatprep.subr.mxu0 0.0
    %7569 = vmatpush1.msra.mxu0 0.0
    %7570 = vmatprep.subr.mxu0 0.0
    %7571 = vmatpush1.msra.mxu0 0.0
    %7572 = vmatprep.subr.mxu0 0.0
    %7573 = vmatpush1.msra.mxu0 0.0
    %7574 = vmatprep.subr.mxu0 0.0
    %7575 = vmatpush1.msra.mxu0 0.0
    %7576 = vmatprep.subr.mxu0 0.0
    %7577 = vmatpush1.msra.mxu0 0.0
    %7578 = vmatprep.subr.mxu0 0.0
    %7579 = vmatpush1.msra.mxu0 0.0
    %7580 = vmatprep.subr.mxu0 0.0
    %7581 = vmatpush1.msra.mxu0 0.0
    %7582 = vmatprep.subr.mxu0 0.0
    %7583 = vmatpush1.msra.mxu0 0.0
    %7584 = vmatprep.subr.mxu0 0.0
    %7585 = vmatpush1.msra.mxu0 0.0
    %7586 = vmatprep.subr.mxu0 0.0
    %7587 = vmatpush1.msra.mxu0 0.0
    %7588 = vmatprep.subr.mxu0 0.0
    %7589 = vmatpush1.msra.mxu0 0.0
    %7590 = vmatprep.subr.mxu0 0.0
    %7591 = vmatpush1.msra.mxu0 0.0
    %7592 = vmatprep.subr.mxu0 0.0
    %7593 = vmatpush1.msra.mxu0 0.0
    %7594 = vmatprep.subr.mxu0 0.0
    %7595 = vmatpush1.msra.mxu0 0.0
    %7596 = vmatprep.subr.mxu0 0.0
    %7597 = vmatpush1.msra.mxu0 0.0
    %7598 = vmatprep.mubr.f32.mxu0 0.0
    %7599 = vmatmul.mubr.f32.gmra.mrb[0].mxu0 %v7532
    %v7600 = vpop.f32.mrb[0].mxu0
    %v7601 = vadd.f32 %v1131, %v7600
    %v7602 = vpop.f32.mrb[0].mxu0
    %7603 = vdwg.mxu0
    %vm7604 = vcmp.gt.f32.partialorder %v7601, 0.0
    %v7605 = vmul.f32 %v7601, 1.442695
    %v7606 = vpow.pop %v7605
    %v7607 = vsub.f32 %v7606, 1.0
    %v7608 = vsel %vm7604, %v7601, %v7607
    %v7610 = vsel %vm1043, %v7608, 0
    %7612 = vmatprep.subr.mxu0 0.0
    %7613 = vmatpush1.msra.mxu0 %v941
    %7614 = vmatprep.subr.mxu0 0.0
    %7615 = vmatpush1.msra.mxu0 %v942
    %7616 = vmatprep.subr.mxu0 0.0
    %7617 = vmatpush1.msra.mxu0 %v1224
    %7618 = vmatprep.subr.mxu0 0.0
    %7619 = vmatpush1.msra.mxu0 0.0
    %7620 = vmatprep.subr.mxu0 0.0
    %7621 = vmatpush1.msra.mxu0 0.0
    %7622 = vmatprep.subr.mxu0 0.0
    %7623 = vmatpush1.msra.mxu0 0.0
    %7624 = vmatprep.subr.mxu0 0.0
    %7625 = vmatpush1.msra.mxu0 0.0
    %7626 = vmatprep.subr.mxu0 0.0
    %7627 = vmatpush1.msra.mxu0 0.0
    %7628 = vmatprep.subr.mxu0 0.0
    %7629 = vmatpush1.msra.mxu0 0.0
    %7630 = vmatprep.subr.mxu0 0.0
    %7631 = vmatpush1.msra.mxu0 0.0
    %7632 = vmatprep.subr.mxu0 0.0
    %7633 = vmatpush1.msra.mxu0 0.0
    %7634 = vmatprep.subr.mxu0 0.0
    %7635 = vmatpush1.msra.mxu0 0.0
    %7636 = vmatprep.subr.mxu0 0.0
    %7637 = vmatpush1.msra.mxu0 0.0
    %7638 = vmatprep.subr.mxu0 0.0
    %7639 = vmatpush1.msra.mxu0 0.0
    %7640 = vmatprep.subr.mxu0 0.0
    %7641 = vmatpush1.msra.mxu0 0.0
    %7642 = vmatprep.subr.mxu0 0.0
    %7643 = vmatpush1.msra.mxu0 0.0
    %7644 = vmatprep.subr.mxu0 0.0
    %7645 = vmatpush1.msra.mxu0 0.0
    %7646 = vmatprep.subr.mxu0 0.0
    %7647 = vmatpush1.msra.mxu0 0.0
    %7648 = vmatprep.subr.mxu0 0.0
    %7649 = vmatpush1.msra.mxu0 0.0
    %7650 = vmatprep.subr.mxu0 0.0
    %7651 = vmatpush1.msra.mxu0 0.0
    %7652 = vmatprep.subr.mxu0 0.0
    %7653 = vmatpush1.msra.mxu0 0.0
    %7654 = vmatprep.subr.mxu0 0.0
    %7655 = vmatpush1.msra.mxu0 0.0
    %7656 = vmatprep.subr.mxu0 0.0
    %7657 = vmatpush1.msra.mxu0 0.0
    %7658 = vmatprep.subr.mxu0 0.0
    %7659 = vmatpush1.msra.mxu0 0.0
    %7660 = vmatprep.subr.mxu0 0.0
    %7661 = vmatpush1.msra.mxu0 0.0
    %7662 = vmatprep.subr.mxu0 0.0
    %7663 = vmatpush1.msra.mxu0 0.0
    %7664 = vmatprep.subr.mxu0 0.0
    %7665 = vmatpush1.msra.mxu0 0.0
    %7666 = vmatprep.subr.mxu0 0.0
    %7667 = vmatpush1.msra.mxu0 0.0
    %7668 = vmatprep.subr.mxu0 0.0
    %7669 = vmatpush1.msra.mxu0 0.0
    %7670 = vmatprep.subr.mxu0 0.0
    %7671 = vmatpush1.msra.mxu0 0.0
    %7672 = vmatprep.subr.mxu0 0.0
    %7673 = vmatpush1.msra.mxu0 0.0
    %7674 = vmatprep.subr.mxu0 0.0
    %7675 = vmatpush1.msra.mxu0 0.0
    %7676 = vmatprep.mubr.f32.mxu0 0.0
    %7677 = vmatmul.mubr.f32.gmra.mrb[0].mxu0 %v7610
    %v7678 = vpop.f32.mrb[0].mxu0
    %v7679 = vadd.f32 %v1218, %v7678
    %v7680 = vpop.f32.mrb[0].mxu0
    %7681 = vdwg.mxu0
    %v7682 = vmul.f32 %v7450, %v7679
    %v7683 = vadd.f32 %v7131, %v7682
    %v7685 = vsel %vm955, %v7683, 0
    %7687 = vmatprep.subr.mxu0 0.0
    %7688 = vmatpush1.msra.mxu0 %v1310
    %7689 = vmatprep.subr.mxu0 0.0
    %7690 = vmatpush1.msra.mxu0 0.0
    %7691 = vmatprep.subr.mxu0 0.0
    %7692 = vmatpush1.msra.mxu0 0.0
    %7693 = vmatprep.subr.mxu0 0.0
    %7694 = vmatpush1.msra.mxu0 0.0
    %7695 = vmatprep.subr.mxu0 0.0
    %7696 = vmatpush1.msra.mxu0 0.0
    %7697 = vmatprep.subr.mxu0 0.0
    %7698 = vmatpush1.msra.mxu0 0.0
    %7699 = vmatprep.subr.mxu0 0.0
    %7700 = vmatpush1.msra.mxu0 0.0
    %7701 = vmatprep.subr.mxu0 0.0
    %7702 = vmatpush1.msra.mxu0 0.0
    %7703 = vmatprep.subr.mxu0 0.0
    %7704 = vmatpush1.msra.mxu0 0.0
    %7705 = vmatprep.subr.mxu0 0.0
    %7706 = vmatpush1.msra.mxu0 0.0
    %7707 = vmatprep.subr.mxu0 0.0
    %7708 = vmatpush1.msra.mxu0 0.0
    %7709 = vmatprep.subr.mxu0 0.0
    %7710 = vmatpush1.msra.mxu0 0.0
    %7711 = vmatprep.subr.mxu0 0.0
    %7712 = vmatpush1.msra.mxu0 0.0
    %7713 = vmatprep.subr.mxu0 0.0
    %7714 = vmatpush1.msra.mxu0 0.0
    %7715 = vmatprep.subr.mxu0 0.0
    %7716 = vmatpush1.msra.mxu0 0.0
    %7717 = vmatprep.subr.mxu0 0.0
    %7718 = vmatpush1.msra.mxu0 0.0
    %7719 = vmatprep.subr.mxu0 0.0
    %7720 = vmatpush1.msra.mxu0 0.0
    %7721 = vmatprep.subr.mxu0 0.0
    %7722 = vmatpush1.msra.mxu0 0.0
    %7723 = vmatprep.subr.mxu0 0.0
    %7724 = vmatpush1.msra.mxu0 0.0
    %7725 = vmatprep.subr.mxu0 0.0
    %7726 = vmatpush1.msra.mxu0 0.0
    %7727 = vmatprep.subr.mxu0 0.0
    %7728 = vmatpush1.msra.mxu0 0.0
    %7729 = vmatprep.subr.mxu0 0.0
    %7730 = vmatpush1.msra.mxu0 0.0
    %7731 = vmatprep.subr.mxu0 0.0
    %7732 = vmatpush1.msra.mxu0 0.0
    %7733 = vmatprep.subr.mxu0 0.0
    %7734 = vmatpush1.msra.mxu0 0.0
    %7735 = vmatprep.subr.mxu0 0.0
    %7736 = vmatpush1.msra.mxu0 0.0
    %7737 = vmatprep.subr.mxu0 0.0
    %7738 = vmatpush1.msra.mxu0 0.0
    %7739 = vmatprep.subr.mxu0 0.0
    %7740 = vmatpush1.msra.mxu0 0.0
    %7741 = vmatprep.subr.mxu0 0.0
    %7742 = vmatpush1.msra.mxu0 0.0
    %7743 = vmatprep.subr.mxu0 0.0
    %7744 = vmatpush1.msra.mxu0 0.0
    %7745 = vmatprep.subr.mxu0 0.0
    %7746 = vmatpush1.msra.mxu0 0.0
    %7747 = vmatprep.subr.mxu0 0.0
    %7748 = vmatpush1.msra.mxu0 0.0
    %7749 = vmatprep.subr.mxu0 0.0
    %7750 = vmatpush1.msra.mxu0 0.0
    %7751 = vmatprep.mubr.f32.mxu0 0.0
    %7752 = vmatmul.mubr.f32.gmra.mrb[0].mxu0 %v7685
    %v7753 = vpop.f32.mrb[0].mxu0
    %v7754 = vadd.f32 %v1304, %v7753
    %v7755 = vpop.f32.mrb[0].mxu0
    %7756 = vdwg.mxu0
    %vm7757 = vcmp.gt.f32.partialorder %v7754, 0.0
    %v7758 = vmul.f32 %v7754, 1.442695
    %v7759 = vpow.pop %v7758
    %v7760 = vsub.f32 %v7759, 1.0
    %v7761 = vsel %vm7757, %v7754, %v7760
    %v7763 = vsel %vm1043, %v7761, 0
    %7765 = vmatprep.subr.mxu0 0.0
    %7766 = vmatpush1.msra.mxu0 %v937
    %7767 = vmatprep.subr.mxu0 0.0
    %7768 = vmatpush1.msra.mxu0 %v938
    %7769 = vmatprep.subr.mxu0 0.0
    %7770 = vmatpush1.msra.mxu0 %v1137
    %7771 = vmatprep.subr.mxu0 0.0
    %7772 = vmatpush1.msra.mxu0 0.0
    %7773 = vmatprep.subr.mxu0 0.0
    %7774 = vmatpush1.msra.mxu0 0.0
    %7775 = vmatprep.subr.mxu0 0.0
    %7776 = vmatpush1.msra.mxu0 0.0
    %7777 = vmatprep.subr.mxu0 0.0
    %7778 = vmatpush1.msra.mxu0 0.0
    %7779 = vmatprep.subr.mxu0 0.0
    %7780 = vmatpush1.msra.mxu0 0.0
    %7781 = vmatprep.subr.mxu0 0.0
    %7782 = vmatpush1.msra.mxu0 0.0
    %7783 = vmatprep.subr.mxu0 0.0
    %7784 = vmatpush1.msra.mxu0 0.0
    %7785 = vmatprep.subr.mxu0 0.0
    %7786 = vmatpush1.msra.mxu0 0.0
    %7787 = vmatprep.subr.mxu0 0.0
    %7788 = vmatpush1.msra.mxu0 0.0
    %7789 = vmatprep.subr.mxu0 0.0
    %7790 = vmatpush1.msra.mxu0 0.0
    %7791 = vmatprep.subr.mxu0 0.0
    %7792 = vmatpush1.msra.mxu0 0.0
    %7793 = vmatprep.subr.mxu0 0.0
    %7794 = vmatpush1.msra.mxu0 0.0
    %7795 = vmatprep.subr.mxu0 0.0
    %7796 = vmatpush1.msra.mxu0 0.0
    %7797 = vmatprep.subr.mxu0 0.0
    %7798 = vmatpush1.msra.mxu0 0.0
    %7799 = vmatprep.subr.mxu0 0.0
    %7800 = vmatpush1.msra.mxu0 0.0
    %7801 = vmatprep.subr.mxu0 0.0
    %7802 = vmatpush1.msra.mxu0 0.0
    %7803 = vmatprep.subr.mxu0 0.0
    %7804 = vmatpush1.msra.mxu0 0.0
    %7805 = vmatprep.subr.mxu0 0.0
    %7806 = vmatpush1.msra.mxu0 0.0
    %7807 = vmatprep.subr.mxu0 0.0
    %7808 = vmatpush1.msra.mxu0 0.0
    %7809 = vmatprep.subr.mxu0 0.0
    %7810 = vmatpush1.msra.mxu0 0.0
    %7811 = vmatprep.subr.mxu0 0.0
    %7812 = vmatpush1.msra.mxu0 0.0
    %7813 = vmatprep.subr.mxu0 0.0
    %7814 = vmatpush1.msra.mxu0 0.0
    %7815 = vmatprep.subr.mxu0 0.0
    %7816 = vmatpush1.msra.mxu0 0.0
    %7817 = vmatprep.subr.mxu0 0.0
    %7818 = vmatpush1.msra.mxu0 0.0
    %7819 = vmatprep.subr.mxu0 0.0
    %7820 = vmatpush1.msra.mxu0 0.0
    %7821 = vmatprep.subr.mxu0 0.0
    %7822 = vmatpush1.msra.mxu0 0.0
    %7823 = vmatprep.subr.mxu0 0.0
    %7824 = vmatpush1.msra.mxu0 0.0
    %7825 = vmatprep.subr.mxu0 0.0
    %7826 = vmatpush1.msra.mxu0 0.0
    %7827 = vmatprep.subr.mxu0 0.0
    %7828 = vmatpush1.msra.mxu0 0.0
    %7829 = vmatprep.mubr.f32.mxu0 0.0
    %7830 = vmatmul.mubr.f32.gmra.mrb[0].mxu0 %v7763
    %v7831 = vpop.f32.mrb[0].mxu0
    %v7832 = vadd.f32 %v1131, %v7831
    %v7833 = vpop.f32.mrb[0].mxu0
    %7834 = vdwg.mxu0
    %vm7835 = vcmp.gt.f32.partialorder %v7832, 0.0
    %v7836 = vmul.f32 %v7832, 1.442695
    %v7837 = vpow.pop %v7836
    %v7838 = vsub.f32 %v7837, 1.0
    %v7839 = vsel %vm7835, %v7832, %v7838
    %v7841 = vsel %vm1043, %v7839, 0
    %7843 = vmatprep.subr.mxu0 0.0
    %7844 = vmatpush1.msra.mxu0 %v941
    %7845 = vmatprep.subr.mxu0 0.0
    %7846 = vmatpush1.msra.mxu0 %v942
    %7847 = vmatprep.subr.mxu0 0.0
    %7848 = vmatpush1.msra.mxu0 %v1224
    %7849 = vmatprep.subr.mxu0 0.0
    %7850 = vmatpush1.msra.mxu0 0.0
    %7851 = vmatprep.subr.mxu0 0.0
    %7852 = vmatpush1.msra.mxu0 0.0
    %7853 = vmatprep.subr.mxu0 0.0
    %7854 = vmatpush1.msra.mxu0 0.0
    %7855 = vmatprep.subr.mxu0 0.0
    %7856 = vmatpush1.msra.mxu0 0.0
    %7857 = vmatprep.subr.mxu0 0.0
    %7858 = vmatpush1.msra.mxu0 0.0
    %7859 = vmatprep.subr.mxu0 0.0
    %7860 = vmatpush1.msra.mxu0 0.0
    %7861 = vmatprep.subr.mxu0 0.0
    %7862 = vmatpush1.msra.mxu0 0.0
    %7863 = vmatprep.subr.mxu0 0.0
    %7864 = vmatpush1.msra.mxu0 0.0
    %7865 = vmatprep.subr.mxu0 0.0
    %7866 = vmatpush1.msra.mxu0 0.0
    %7867 = vmatprep.subr.mxu0 0.0
    %7868 = vmatpush1.msra.mxu0 0.0
    %7869 = vmatprep.subr.mxu0 0.0
    %7870 = vmatpush1.msra.mxu0 0.0
    %7871 = vmatprep.subr.mxu0 0.0
    %7872 = vmatpush1.msra.mxu0 0.0
    %7873 = vmatprep.subr.mxu0 0.0
    %7874 = vmatpush1.msra.mxu0 0.0
    %7875 = vmatprep.subr.mxu0 0.0
    %7876 = vmatpush1.msra.mxu0 0.0
    %7877 = vmatprep.subr.mxu0 0.0
    %7878 = vmatpush1.msra.mxu0 0.0
    %7879 = vmatprep.subr.mxu0 0.0
    %7880 = vmatpush1.msra.mxu0 0.0
    %7881 = vmatprep.subr.mxu0 0.0
    %7882 = vmatpush1.msra.mxu0 0.0
    %7883 = vmatprep.subr.mxu0 0.0
    %7884 = vmatpush1.msra.mxu0 0.0
    %7885 = vmatprep.subr.mxu0 0.0
    %7886 = vmatpush1.msra.mxu0 0.0
    %7887 = vmatprep.subr.mxu0 0.0
    %7888 = vmatpush1.msra.mxu0 0.0
    %7889 = vmatprep.subr.mxu0 0.0
    %7890 = vmatpush1.msra.mxu0 0.0
    %7891 = vmatprep.subr.mxu0 0.0
    %7892 = vmatpush1.msra.mxu0 0.0
    %7893 = vmatprep.subr.mxu0 0.0
    %7894 = vmatpush1.msra.mxu0 0.0
    %7895 = vmatprep.subr.mxu0 0.0
    %7896 = vmatpush1.msra.mxu0 0.0
    %7897 = vmatprep.subr.mxu0 0.0
    %7898 = vmatpush1.msra.mxu0 0.0
    %7899 = vmatprep.subr.mxu0 0.0
    %7900 = vmatpush1.msra.mxu0 0.0
    %7901 = vmatprep.subr.mxu0 0.0
    %7902 = vmatpush1.msra.mxu0 0.0
    %7903 = vmatprep.subr.mxu0 0.0
    %7904 = vmatpush1.msra.mxu0 0.0
    %7905 = vmatprep.subr.mxu0 0.0
    %7906 = vmatpush1.msra.mxu0 0.0
    %7907 = vmatprep.mubr.f32.mxu0 0.0
    %7908 = vmatmul.mubr.f32.gmra.mrb[0].mxu0 %v7841
    %v7909 = vpop.f32.mrb[0].mxu0
    %v7910 = vadd.f32 %v1218, %v7909
    %v7911 = vpop.f32.mrb[0].mxu0
    %7912 = vdwg.mxu0
    %v7913 = vstv %s7292
    %v7914 = vmul.f32 %v7913, %v7910
    %v7915 = vadd.f32 %v7131, %v7914
    %v7917 = vsel %vm955, %v7915, 0
    %7919 = vmatprep.subr.mxu0 0.0
    %7920 = vmatpush1.msra.mxu0 %v1310
    %7921 = vmatprep.subr.mxu0 0.0
    %7922 = vmatpush1.msra.mxu0 0.0
    %7923 = vmatprep.subr.mxu0 0.0
    %7924 = vmatpush1.msra.mxu0 0.0
    %7925 = vmatprep.subr.mxu0 0.0
    %7926 = vmatpush1.msra.mxu0 0.0
    %7927 = vmatprep.subr.mxu0 0.0
    %7928 = vmatpush1.msra.mxu0 0.0
    %7929 = vmatprep.subr.mxu0 0.0
    %7930 = vmatpush1.msra.mxu0 0.0
    %7931 = vmatprep.subr.mxu0 0.0
    %7932 = vmatpush1.msra.mxu0 0.0
    %7933 = vmatprep.subr.mxu0 0.0
    %7934 = vmatpush1.msra.mxu0 0.0
    %7935 = vmatprep.subr.mxu0 0.0
    %7936 = vmatpush1.msra.mxu0 0.0
    %7937 = vmatprep.subr.mxu0 0.0
    %7938 = vmatpush1.msra.mxu0 0.0
    %7939 = vmatprep.subr.mxu0 0.0
    %7940 = vmatpush1.msra.mxu0 0.0
    %7941 = vmatprep.subr.mxu0 0.0
    %7942 = vmatpush1.msra.mxu0 0.0
    %7943 = vmatprep.subr.mxu0 0.0
    %7944 = vmatpush1.msra.mxu0 0.0
    %7945 = vmatprep.subr.mxu0 0.0
    %7946 = vmatpush1.msra.mxu0 0.0
    %7947 = vmatprep.subr.mxu0 0.0
    %7948 = vmatpush1.msra.mxu0 0.0
    %7949 = vmatprep.subr.mxu0 0.0
    %7950 = vmatpush1.msra.mxu0 0.0
    %7951 = vmatprep.subr.mxu0 0.0
    %7952 = vmatpush1.msra.mxu0 0.0
    %7953 = vmatprep.subr.mxu0 0.0
    %7954 = vmatpush1.msra.mxu0 0.0
    %7955 = vmatprep.subr.mxu0 0.0
    %7956 = vmatpush1.msra.mxu0 0.0
    %7957 = vmatprep.subr.mxu0 0.0
    %7958 = vmatpush1.msra.mxu0 0.0
    %7959 = vmatprep.subr.mxu0 0.0
    %7960 = vmatpush1.msra.mxu0 0.0
    %7961 = vmatprep.subr.mxu0 0.0
    %7962 = vmatpush1.msra.mxu0 0.0
    %7963 = vmatprep.subr.mxu0 0.0
    %7964 = vmatpush1.msra.mxu0 0.0
    %7965 = vmatprep.subr.mxu0 0.0
    %7966 = vmatpush1.msra.mxu0 0.0
    %7967 = vmatprep.subr.mxu0 0.0
    %7968 = vmatpush1.msra.mxu0 0.0
    %7969 = vmatprep.subr.mxu0 0.0
    %7970 = vmatpush1.msra.mxu0 0.0
    %7971 = vmatprep.subr.mxu0 0.0
    %7972 = vmatpush1.msra.mxu0 0.0
    %7973 = vmatprep.subr.mxu0 0.0
    %7974 = vmatpush1.msra.mxu0 0.0
    %7975 = vmatprep.subr.mxu0 0.0
    %7976 = vmatpush1.msra.mxu0 0.0
    %7977 = vmatprep.subr.mxu0 0.0
    %7978 = vmatpush1.msra.mxu0 0.0
    %7979 = vmatprep.subr.mxu0 0.0
    %7980 = vmatpush1.msra.mxu0 0.0
    %7981 = vmatprep.subr.mxu0 0.0
    %7982 = vmatpush1.msra.mxu0 0.0
    %7983 = vmatprep.mubr.f32.mxu0 0.0
    %7984 = vmatmul.mubr.f32.gmra.mrb[0].mxu0 %v7917
    %v7985 = vpop.f32.mrb[0].mxu0
    %v7986 = vadd.f32 %v1304, %v7985
    %v7987 = vpop.f32.mrb[0].mxu0
    %7988 = vdwg.mxu0
    %vm7989 = vcmp.gt.f32.partialorder %v7986, 0.0
    %v7990 = vmul.f32 %v7986, 1.442695
    %v7991 = vpow.pop %v7990
    %v7992 = vsub.f32 %v7991, 1.0
    %v7993 = vsel %vm7989, %v7986, %v7992
    %v7995 = vsel %vm1043, %v7993, 0
    %7997 = vmatprep.subr.mxu0 0.0
    %7998 = vmatpush1.msra.mxu0 %v937
    %7999 = vmatprep.subr.mxu0 0.0
    %8000 = vmatpush1.msra.mxu0 %v938
    %8001 = vmatprep.subr.mxu0 0.0
    %8002 = vmatpush1.msra.mxu0 %v1137
    %8003 = vmatprep.subr.mxu0 0.0
    %8004 = vmatpush1.msra.mxu0 0.0
    %8005 = vmatprep.subr.mxu0 0.0
    %8006 = vmatpush1.msra.mxu0 0.0
    %8007 = vmatprep.subr.mxu0 0.0
    %8008 = vmatpush1.msra.mxu0 0.0
    %8009 = vmatprep.subr.mxu0 0.0
    %8010 = vmatpush1.msra.mxu0 0.0
    %8011 = vmatprep.subr.mxu0 0.0
    %8012 = vmatpush1.msra.mxu0 0.0
    %8013 = vmatprep.subr.mxu0 0.0
    %8014 = vmatpush1.msra.mxu0 0.0
    %8015 = vmatprep.subr.mxu0 0.0
    %8016 = vmatpush1.msra.mxu0 0.0
    %8017 = vmatprep.subr.mxu0 0.0
    %8018 = vmatpush1.msra.mxu0 0.0
    %8019 = vmatprep.subr.mxu0 0.0
    %8020 = vmatpush1.msra.mxu0 0.0
    %8021 = vmatprep.subr.mxu0 0.0
    %8022 = vmatpush1.msra.mxu0 0.0
    %8023 = vmatprep.subr.mxu0 0.0
    %8024 = vmatpush1.msra.mxu0 0.0
    %8025 = vmatprep.subr.mxu0 0.0
    %8026 = vmatpush1.msra.mxu0 0.0
    %8027 = vmatprep.subr.mxu0 0.0
    %8028 = vmatpush1.msra.mxu0 0.0
    %8029 = vmatprep.subr.mxu0 0.0
    %8030 = vmatpush1.msra.mxu0 0.0
    %8031 = vmatprep.subr.mxu0 0.0
    %8032 = vmatpush1.msra.mxu0 0.0
    %8033 = vmatprep.subr.mxu0 0.0
    %8034 = vmatpush1.msra.mxu0 0.0
    %8035 = vmatprep.subr.mxu0 0.0
    %8036 = vmatpush1.msra.mxu0 0.0
    %8037 = vmatprep.subr.mxu0 0.0
    %8038 = vmatpush1.msra.mxu0 0.0
    %8039 = vmatprep.subr.mxu0 0.0
    %8040 = vmatpush1.msra.mxu0 0.0
    %8041 = vmatprep.subr.mxu0 0.0
    %8042 = vmatpush1.msra.mxu0 0.0
    %8043 = vmatprep.subr.mxu0 0.0
    %8044 = vmatpush1.msra.mxu0 0.0
    %8045 = vmatprep.subr.mxu0 0.0
    %8046 = vmatpush1.msra.mxu0 0.0
    %8047 = vmatprep.subr.mxu0 0.0
    %8048 = vmatpush1.msra.mxu0 0.0
    %8049 = vmatprep.subr.mxu0 0.0
    %8050 = vmatpush1.msra.mxu0 0.0
    %8051 = vmatprep.subr.mxu0 0.0
    %8052 = vmatpush1.msra.mxu0 0.0
    %8053 = vmatprep.subr.mxu0 0.0
    %8054 = vmatpush1.msra.mxu0 0.0
    %8055 = vmatprep.subr.mxu0 0.0
    %8056 = vmatpush1.msra.mxu0 0.0
    %8057 = vmatprep.subr.mxu0 0.0
    %8058 = vmatpush1.msra.mxu0 0.0
    %8059 = vmatprep.subr.mxu0 0.0
    %8060 = vmatpush1.msra.mxu0 0.0
    %8061 = vmatprep.mubr.f32.mxu0 0.0
    %8062 = vmatmul.mubr.f32.gmra.mrb[0].mxu0 %v7995
    %v8063 = vpop.f32.mrb[0].mxu0
    %v8064 = vadd.f32 %v1131, %v8063
    %v8065 = vpop.f32.mrb[0].mxu0
    %8066 = vdwg.mxu0
    %vm8067 = vcmp.gt.f32.partialorder %v8064, 0.0
    %v8068 = vmul.f32 %v8064, 1.442695
    %v8069 = vpow.pop %v8068
    %v8070 = vsub.f32 %v8069, 1.0
    %v8071 = vsel %vm8067, %v8064, %v8070
    %v8073 = vsel %vm1043, %v8071, 0
    %8075 = vmatprep.subr.mxu0 0.0
    %8076 = vmatpush1.msra.mxu0 %v941
    %8077 = vmatprep.subr.mxu0 0.0
    %8078 = vmatpush1.msra.mxu0 %v942
    %8079 = vmatprep.subr.mxu0 0.0
    %8080 = vmatpush1.msra.mxu0 %v1224
    %8081 = vmatprep.subr.mxu0 0.0
    %8082 = vmatpush1.msra.mxu0 0.0
    %8083 = vmatprep.subr.mxu0 0.0
    %8084 = vmatpush1.msra.mxu0 0.0
    %8085 = vmatprep.subr.mxu0 0.0
    %8086 = vmatpush1.msra.mxu0 0.0
    %8087 = vmatprep.subr.mxu0 0.0
    %8088 = vmatpush1.msra.mxu0 0.0
    %8089 = vmatprep.subr.mxu0 0.0
    %8090 = vmatpush1.msra.mxu0 0.0
    %8091 = vmatprep.subr.mxu0 0.0
    %8092 = vmatpush1.msra.mxu0 0.0
    %8093 = vmatprep.subr.mxu0 0.0
    %8094 = vmatpush1.msra.mxu0 0.0
    %8095 = vmatprep.subr.mxu0 0.0
    %8096 = vmatpush1.msra.mxu0 0.0
    %8097 = vmatprep.subr.mxu0 0.0
    %8098 = vmatpush1.msra.mxu0 0.0
    %8099 = vmatprep.subr.mxu0 0.0
    %8100 = vmatpush1.msra.mxu0 0.0
    %8101 = vmatprep.subr.mxu0 0.0
    %8102 = vmatpush1.msra.mxu0 0.0
    %8103 = vmatprep.subr.mxu0 0.0
    %8104 = vmatpush1.msra.mxu0 0.0
    %8105 = vmatprep.subr.mxu0 0.0
    %8106 = vmatpush1.msra.mxu0 0.0
    %8107 = vmatprep.subr.mxu0 0.0
    %8108 = vmatpush1.msra.mxu0 0.0
    %8109 = vmatprep.subr.mxu0 0.0
    %8110 = vmatpush1.msra.mxu0 0.0
    %8111 = vmatprep.subr.mxu0 0.0
    %8112 = vmatpush1.msra.mxu0 0.0
    %8113 = vmatprep.subr.mxu0 0.0
    %8114 = vmatpush1.msra.mxu0 0.0
    %8115 = vmatprep.subr.mxu0 0.0
    %8116 = vmatpush1.msra.mxu0 0.0
    %8117 = vmatprep.subr.mxu0 0.0
    %8118 = vmatpush1.msra.mxu0 0.0
    %8119 = vmatprep.subr.mxu0 0.0
    %8120 = vmatpush1.msra.mxu0 0.0
    %8121 = vmatprep.subr.mxu0 0.0
    %8122 = vmatpush1.msra.mxu0 0.0
    %8123 = vmatprep.subr.mxu0 0.0
    %8124 = vmatpush1.msra.mxu0 0.0
    %8125 = vmatprep.subr.mxu0 0.0
    %8126 = vmatpush1.msra.mxu0 0.0
    %8127 = vmatprep.subr.mxu0 0.0
    %8128 = vmatpush1.msra.mxu0 0.0
    %8129 = vmatprep.subr.mxu0 0.0
    %8130 = vmatpush1.msra.mxu0 0.0
    %8131 = vmatprep.subr.mxu0 0.0
    %8132 = vmatpush1.msra.mxu0 0.0
    %8133 = vmatprep.subr.mxu0 0.0
    %8134 = vmatpush1.msra.mxu0 0.0
    %8135 = vmatprep.subr.mxu0 0.0
    %8136 = vmatpush1.msra.mxu0 0.0
    %8137 = vmatprep.subr.mxu0 0.0
    %8138 = vmatpush1.msra.mxu0 0.0
    %8139 = vmatprep.mubr.f32.mxu0 0.0
    %8140 = vmatmul.mubr.f32.gmra.mrb[0].mxu0 %v8073
    %v8141 = vpop.f32.mrb[0].mxu0
    %v8142 = vadd.f32 %v1218, %v8141
    %v8143 = vpop.f32.mrb[0].mxu0
    %8144 = vdwg.mxu0
    %v8145 = vrcp.pop 6.0
    %s8146 = vtos %v8145
    %s8147 = smul.f32 %s7292, %s8146
    %v8148 = vmul.f32 %v7679, 2.0
    %v8149 = vadd.f32 %v7446, %v8148
    %v8150 = vmul.f32 %v7910, 2.0
    %v8151 = vadd.f32 %v8149, %v8150
    %v8152 = vadd.f32 %v8151, %v8142
    %v8153 = vstv %s8147
    %v8154 = vmul.f32 %v8153, %v8152
    %v8155 = vadd.f32 %v7131, %v8154
    %v8157 = vsel %vm955, %v8155, 0
    %8159 = vmatprep.subr.mxu0 0.0
    %8160 = vmatpush1.msra.mxu0 %v961
    %8161 = vmatprep.subr.mxu0 0.0
    %8162 = vmatpush1.msra.mxu0 0.0
    %8163 = vmatprep.subr.mxu0 0.0
    %8164 = vmatpush1.msra.mxu0 0.0
    %8165 = vmatprep.subr.mxu0 0.0
    %8166 = vmatpush1.msra.mxu0 0.0
    %8167 = vmatprep.subr.mxu0 0.0
    %8168 = vmatpush1.msra.mxu0 0.0
    %8169 = vmatprep.subr.mxu0 0.0
    %8170 = vmatpush1.msra.mxu0 0.0
    %8171 = vmatprep.subr.mxu0 0.0
    %8172 = vmatpush1.msra.mxu0 0.0
    %8173 = vmatprep.subr.mxu0 0.0
    %8174 = vmatpush1.msra.mxu0 0.0
    %8175 = vmatprep.subr.mxu0 0.0
    %8176 = vmatpush1.msra.mxu0 0.0
    %8177 = vmatprep.subr.mxu0 0.0
    %8178 = vmatpush1.msra.mxu0 0.0
    %8179 = vmatprep.subr.mxu0 0.0
    %8180 = vmatpush1.msra.mxu0 0.0
    %8181 = vmatprep.subr.mxu0 0.0
    %8182 = vmatpush1.msra.mxu0 0.0
    %8183 = vmatprep.subr.mxu0 0.0
    %8184 = vmatpush1.msra.mxu0 0.0
    %8185 = vmatprep.subr.mxu0 0.0
    %8186 = vmatpush1.msra.mxu0 0.0
    %8187 = vmatprep.subr.mxu0 0.0
    %8188 = vmatpush1.msra.mxu0 0.0
    %8189 = vmatprep.subr.mxu0 0.0
    %8190 = vmatpush1.msra.mxu0 0.0
    %8191 = vmatprep.subr.mxu0 0.0
    %8192 = vmatpush1.msra.mxu0 0.0
    %8193 = vmatprep.subr.mxu0 0.0
    %8194 = vmatpush1.msra.mxu0 0.0
    %8195 = vmatprep.subr.mxu0 0.0
    %8196 = vmatpush1.msra.mxu0 0.0
    %8197 = vmatprep.subr.mxu0 0.0
    %8198 = vmatpush1.msra.mxu0 0.0
    %8199 = vmatprep.subr.mxu0 0.0
    %8200 = vmatpush1.msra.mxu0 0.0
    %8201 = vmatprep.subr.mxu0 0.0
    %8202 = vmatpush1.msra.mxu0 0.0
    %8203 = vmatprep.subr.mxu0 0.0
    %8204 = vmatpush1.msra.mxu0 0.0
    %8205 = vmatprep.subr.mxu0 0.0
    %8206 = vmatpush1.msra.mxu0 0.0
    %8207 = vmatprep.subr.mxu0 0.0
    %8208 = vmatpush1.msra.mxu0 0.0
    %8209 = vmatprep.subr.mxu0 0.0
    %8210 = vmatpush1.msra.mxu0 0.0
    %8211 = vmatprep.subr.mxu0 0.0
    %8212 = vmatpush1.msra.mxu0 0.0
    %8213 = vmatprep.subr.mxu0 0.0
    %8214 = vmatpush1.msra.mxu0 0.0
    %8215 = vmatprep.subr.mxu0 0.0
    %8216 = vmatpush1.msra.mxu0 0.0
    %8217 = vmatprep.subr.mxu0 0.0
    %8218 = vmatpush1.msra.mxu0 0.0
    %8219 = vmatprep.subr.mxu0 0.0
    %8220 = vmatpush1.msra.mxu0 0.0
    %8221 = vmatprep.subr.mxu0 0.0
    %8222 = vmatpush1.msra.mxu0 0.0
    %8223 = vmatprep.mubr.f32.mxu0 0.0
    %8224 = vmatmul.mubr.f32.gmra.mrb[0].mxu0 %v8157
    %v8225 = vpop.f32.mrb[0].mxu0
    %v8226 = vadd.f32 %v953, %v8225
    %v8227 = vpop.f32.mrb[0].mxu0
    %8228 = vdwg.mxu0
    %v8229 = vmax.f32 %v8226, 0.0
    %8231 = vrot.lane.b32.xlu0 %v8229, 108
    %v8232 = vpop.permute.xlu0 %8231
    %v8233 = vsel %vm1043, %v8232, 0
    %8235 = vmatprep.subr.mxu0 0.0
    %8236 = vmatpush1.msra.mxu0 %v945
    %8237 = vmatprep.subr.mxu0 0.0
    %8238 = vmatpush1.msra.mxu0 %v946
    %8239 = vmatprep.subr.mxu0 0.0
    %8240 = vmatpush1.msra.mxu0 %v1047
    %8241 = vmatprep.subr.mxu0 0.0
    %8242 = vmatpush1.msra.mxu0 0.0
    %8243 = vmatprep.subr.mxu0 0.0
    %8244 = vmatpush1.msra.mxu0 0.0
    %8245 = vmatprep.subr.mxu0 0.0
    %8246 = vmatpush1.msra.mxu0 0.0
    %8247 = vmatprep.subr.mxu0 0.0
    %8248 = vmatpush1.msra.mxu0 0.0
    %8249 = vmatprep.subr.mxu0 0.0
    %8250 = vmatpush1.msra.mxu0 0.0
    %8251 = vmatprep.subr.mxu0 0.0
    %8252 = vmatpush1.msra.mxu0 0.0
    %8253 = vmatprep.subr.mxu0 0.0
    %8254 = vmatpush1.msra.mxu0 0.0
    %8255 = vmatprep.subr.mxu0 0.0
    %8256 = vmatpush1.msra.mxu0 0.0
    %8257 = vmatprep.subr.mxu0 0.0
    %8258 = vmatpush1.msra.mxu0 0.0
    %8259 = vmatprep.subr.mxu0 0.0
    %8260 = vmatpush1.msra.mxu0 0.0
    %8261 = vmatprep.subr.mxu0 0.0
    %8262 = vmatpush1.msra.mxu0 0.0
    %8263 = vmatprep.subr.mxu0 0.0
    %8264 = vmatpush1.msra.mxu0 0.0
    %8265 = vmatprep.subr.mxu0 0.0
    %8266 = vmatpush1.msra.mxu0 0.0
    %8267 = vmatprep.subr.mxu0 0.0
    %8268 = vmatpush1.msra.mxu0 0.0
    %8269 = vmatprep.subr.mxu0 0.0
    %8270 = vmatpush1.msra.mxu0 0.0
    %8271 = vmatprep.subr.mxu0 0.0
    %8272 = vmatpush1.msra.mxu0 0.0
    %8273 = vmatprep.subr.mxu0 0.0
    %8274 = vmatpush1.msra.mxu0 0.0
    %8275 = vmatprep.subr.mxu0 0.0
    %8276 = vmatpush1.msra.mxu0 0.0
    %8277 = vmatprep.subr.mxu0 0.0
    %8278 = vmatpush1.msra.mxu0 0.0
    %8279 = vmatprep.subr.mxu0 0.0
    %8280 = vmatpush1.msra.mxu0 0.0
    %8281 = vmatprep.subr.mxu0 0.0
    %8282 = vmatpush1.msra.mxu0 0.0
    %8283 = vmatprep.subr.mxu0 0.0
    %8284 = vmatpush1.msra.mxu0 0.0
    %8285 = vmatprep.subr.mxu0 0.0
    %8286 = vmatpush1.msra.mxu0 0.0
    %8287 = vmatprep.subr.mxu0 0.0
    %8288 = vmatpush1.msra.mxu0 0.0
    %8289 = vmatprep.subr.mxu0 0.0
    %8290 = vmatpush1.msra.mxu0 0.0
    %8291 = vmatprep.subr.mxu0 0.0
    %8292 = vmatpush1.msra.mxu0 0.0
    %8293 = vmatprep.subr.mxu0 0.0
    %8294 = vmatpush1.msra.mxu0 0.0
    %8295 = vmatprep.subr.mxu0 0.0
    %8296 = vmatpush1.msra.mxu0 0.0
    %8297 = vmatprep.subr.mxu0 0.0
    %8298 = vmatpush1.msra.mxu0 0.0
    %8299 = vmatprep.mubr.f32.mxu0 0.0
    %8300 = vmatmul.mubr.f32.gmra.mrb[0].mxu0 %v8233
    %v8301 = vpop.f32.mrb[0].mxu0
    %v8302 = vadd.f32 %v1038, %v8301
    %v8303 = vpop.f32.mrb[0].mxu0
    %8304 = vdwg.mxu0
    %8305 = vrot.lane.b32.xlu0 %v8155, 28
    %v8306 = vpop.permute.xlu0 %8305
    %vm8308 = vcmask 261344
    %8309 = vst.msk [vmem:[%s19] sm:$0xff] %vm8308, %v8306
    %8311 = vrot.lane.b32.xlu0 %v8302, 14
    %v8312 = vpop.permute.xlu0 %8311
    %vm8314 = vcmask 130160
    %8315 = vst.msk [vmem:[%s20] sm:$0xff] %vm8314, %v8312
    // Predicated region
    $region78: #{latent_ode_forward.1} parent=1 // pred_check
      _
    $region79: #{latent_ode_forward.1} parent=1 // pred_check_branch
      %8317 = sbr.rel (0) target = $region81
    $region80: #{latent_ode_forward.1} parent=1 // pred_region
      _
    $region81: #{latent_ode_forward.1} parent=1 // pred_fallthru
      _
    // Predicated region
    $region82: #{latent_ode_forward.1} parent=1 // pred_check
      _
    $region83: #{latent_ode_forward.1} parent=1 // pred_check_branch
      %8319 = sbr.rel (0) target = $region85
    $region84: #{latent_ode_forward.1} parent=1 // pred_region
      _
    $region85: #{latent_ode_forward.1} parent=1 // pred_fallthru
      _
    // Predicated region
    $region86: #{latent_ode_forward.1} parent=1 // pred_check
      _
    $region87: #{latent_ode_forward.1} parent=1 // pred_check_branch
      %8321 = sbr.rel (0) target = $region89
    $region88: #{latent_ode_forward.1} parent=1 // pred_region
      _
    $region89: #{latent_ode_forward.1} parent=1 // pred_fallthru
      _
    // Predicated region
    $region90: #{latent_ode_forward.1} parent=1 // pred_check
      _
    $region91: #{latent_ode_forward.1} parent=1 // pred_check_branch
      %8323 = sbr.rel (0) target = $region93
    $region92: #{latent_ode_forward.1} parent=1 // pred_region
      _
    $region93: #{latent_ode_forward.1} parent=1 // pred_fallthru
      _
    // Predicated region
    $region94: #{latent_ode_forward.1} parent=1 // pred_check
      _
    $region95: #{latent_ode_forward.1} parent=1 // pred_check_branch
      %8325 = sbr.rel (0) target = $region97
    $region96: #{latent_ode_forward.1} parent=1 // pred_region
      _
    $region97: #{latent_ode_forward.1} parent=1 // pred_fallthru
      _
    // Predicated region
    $region98: #{latent_ode_forward.1} parent=1 // pred_check
      _
    $region99: #{latent_ode_forward.1} parent=1 // pred_check_branch
      %8327 = sbr.rel (0) target = $region101
    $region100: #{latent_ode_forward.1} parent=1 // pred_region
      _
    $region101: #{latent_ode_forward.1} parent=1 // pred_fallthru
      _
    %8328 = vsyncpa [#allocation3], 1

</llo_original>
